<compile_context>
chip_gen: v7x
topology: tpu7x:2x2x1
jax: 0.10.0
libtpu: 0.0.40
codegen_flags: <defaults>
</compile_context>

<pallas_src>
import jax
import jax.numpy as jnp
from jax.experimental import pallas as pl
from jax.experimental.pallas import tpu as pltpu

# ---- model dims (small synthetic config; torch default d_model=512) ---------
NODE_FEAT = 16
D_MODEL = 32
N_HEADS = 4
HEAD_DIM = D_MODEL // N_HEADS
D_FF = 64
SEQ_LEN = 8          # nodes per graph in this synthetic config
TB = 16              # graphs per grid step  -> TB*SEQ_LEN = 128 matmul rows
N_OUT = 2            # MultipleOutputHead {'p_zinc': 2}
OUT_PAD = 128        # lane-dense padded head width (sliced back to N_OUT)
EPS = 1e-5
_SM_SCALE = 1.0 / (float(HEAD_DIM) ** 0.5)
_NEG_INF = -1e9


def _layernorm(x, gamma, beta):
    # kept entirely in f32 (VPU), rsqrt goes to the EUP slot
    mu = jnp.mean(x, axis=-1, keepdims=True)
    var = jnp.mean((x - mu) ** 2, axis=-1, keepdims=True)
    return (x - mu) * jax.lax.rsqrt(var + EPS) * gamma + beta


def graph_discriminator_kernel(
    x_ref, bias_ref,
    w_embed_ref, w_qkv_ref, b_qkv_ref, w_o_ref,
    w_ff1_ref, b_ff1_ref, w_ff2_ref,
    w_head_ref, b_head_ref,
    vec_ref,
    out_ref,
):
    # vec_ref rows: 0 embed_b, 1 wo_b, 2 ln1_g, 3 ln1_b, 4 ff2_b, 5 ln2_g, 6 ln2_b
    bf16 = jnp.bfloat16
    vec = vec_ref[...]                                    # (8, D) f32
    x = x_ref[...]                                        # (TB, S, F) f32
    bias = bias_ref[...]                                  # (TB, S, S) f32 additive mask

    # ---- node embedding on the flattened (TB*S, F) slab ----------------------
    xf = x.reshape(TB * SEQ_LEN, NODE_FEAT)
    h = jnp.dot(xf.astype(bf16), w_embed_ref[...],
                preferred_element_type=jnp.float32) + vec[0:1]        # (TB*S, D)

    # ---- fused QKV projection: one lane-dense (D, 3D) matmul -----------------
    qkv = jnp.dot(h.astype(bf16), w_qkv_ref[...],
                  preferred_element_type=jnp.float32) + b_qkv_ref[...]  # (TB*S, 3D)
    q = (qkv[:, 0:D_MODEL] * _SM_SCALE).reshape(TB, SEQ_LEN, D_MODEL)
    k = qkv[:, D_MODEL:2 * D_MODEL].reshape(TB, SEQ_LEN, D_MODEL)
    v = qkv[:, 2 * D_MODEL:3 * D_MODEL].reshape(TB, SEQ_LEN, D_MODEL)

    # ---- graph-masked multi-head attention (per-head static lane slices) -----
    ctx_heads = []
    for hd in range(N_HEADS):
        sl = slice(hd * HEAD_DIM, (hd + 1) * HEAD_DIM)
        qh = q[:, :, sl].astype(bf16)                     # (TB, S, HD)
        kh = k[:, :, sl].astype(bf16)
        vh = v[:, :, sl].astype(bf16)
        s = jnp.einsum('bqd,bkd->bqk', qh, kh,
                       preferred_element_type=jnp.float32) + bias      # (TB, S, S)
        s = s - jnp.max(s, axis=-1, keepdims=True)        # softmax math stays f32
        p = jnp.exp(s)
        p = p * pl.reciprocal(jnp.sum(p, axis=-1, keepdims=True), approx=True)
        ctx_heads.append(
            jnp.einsum('bqk,bkd->bqd', p.astype(bf16), vh,
                       preferred_element_type=jnp.float32))            # (TB, S, HD)
    ctx = jnp.concatenate(ctx_heads, axis=-1).reshape(TB * SEQ_LEN, D_MODEL)

    # single output projection over the lane-concatenated heads
    attn = jnp.dot(ctx.astype(bf16), w_o_ref[...],
                   preferred_element_type=jnp.float32) + vec[1:2]      # (TB*S, D)

    h1 = _layernorm(h + attn, vec[2:3], vec[3:4])

    # ---- position-wise feed-forward -------------------------------------------
    ff = jnp.dot(h1.astype(bf16), w_ff1_ref[...],
                 preferred_element_type=jnp.float32) + b_ff1_ref[...]
    ff = jnp.maximum(ff, 0.0)
    ff = jnp.dot(ff.astype(bf16), w_ff2_ref[...],
                 preferred_element_type=jnp.float32) + vec[4:5]
    enc = _layernorm(h1 + ff, vec[5:6], vec[6:7])                      # (TB*S, D)

    # ---- FirstSequenceElementHead + MultipleOutputHead {'p_zinc': 2} ----------
    first = enc.reshape(TB, SEQ_LEN, D_MODEL)[:, 0, :]                 # (TB, D)
    logits = jnp.dot(first.astype(bf16), w_head_ref[...],
                     preferred_element_type=jnp.float32) + b_head_ref[...]
    out_ref[...] = logits                                              # (TB, OUT_PAD)


# ---------------------------------------------------------------------------
# parameter init (deterministic, synthetic) and host-side packing
# ---------------------------------------------------------------------------
def init_params(key):
    ks = jax.random.split(key, 10)
    n = lambda k, shape: (0.02 * jax.random.normal(k, shape)).astype(jnp.float32)
    return dict(
        w_embed=n(ks[0], (NODE_FEAT, D_MODEL)), b_embed=jnp.zeros((D_MODEL,), jnp.float32),
        w_q=n(ks[1], (D_MODEL, D_MODEL)), b_q=jnp.zeros((D_MODEL,), jnp.float32),
        w_k=n(ks[2], (D_MODEL, D_MODEL)), b_k=jnp.zeros((D_MODEL,), jnp.float32),
        w_v=n(ks[3], (D_MODEL, D_MODEL)), b_v=jnp.zeros((D_MODEL,), jnp.float32),
        w_o=n(ks[4], (D_MODEL, D_MODEL)), b_o=jnp.zeros((D_MODEL,), jnp.float32),
        ln1_g=jnp.ones((D_MODEL,), jnp.float32), ln1_b=jnp.zeros((D_MODEL,), jnp.float32),
        w_ff1=n(ks[5], (D_MODEL, D_FF)), b_ff1=jnp.zeros((D_FF,), jnp.float32),
        w_ff2=n(ks[6], (D_FF, D_MODEL)), b_ff2=jnp.zeros((D_MODEL,), jnp.float32),
        ln2_g=jnp.ones((D_MODEL,), jnp.float32), ln2_b=jnp.zeros((D_MODEL,), jnp.float32),
        w_head=n(ks[7], (D_MODEL, N_OUT)), b_head=jnp.zeros((N_OUT,), jnp.float32),
    )


def pack_params(p):
    """Pack fused weights (bf16 MXU operands) and all small vectors (f32)."""
    bf = jnp.bfloat16

    w_qkv = jnp.concatenate([p['w_q'], p['w_k'], p['w_v']], axis=1).astype(bf)   # (D, 3D)
    b_qkv = jnp.concatenate([p['b_q'], p['b_k'], p['b_v']])[None, :]             # (1, 3D)

    w_head = jnp.zeros((D_MODEL, OUT_PAD), jnp.float32)
    w_head = w_head.at[:, :N_OUT].set(p['w_head']).astype(bf)                     # lane-dense
    b_head = jnp.zeros((1, OUT_PAD), jnp.float32).at[0, :N_OUT].set(p['b_head'])

    vec = jnp.stack([
        p['b_embed'], p['b_o'], p['ln1_g'], p['ln1_b'],
        p['b_ff2'], p['ln2_g'], p['ln2_b'],
        jnp.zeros((D_MODEL,), jnp.float32)], axis=0)                              # (8, D)

    return (p['w_embed'].astype(bf), w_qkv, b_qkv, p['w_o'].astype(bf),
            p['w_ff1'].astype(bf), p['b_ff1'][None, :], p['w_ff2'].astype(bf),
            w_head, b_head, vec)


# ---------------------------------------------------------------------------
# wrapper (mirrors GraphDiscriminator.forward's dict-in / dict-out behavior)
# ---------------------------------------------------------------------------
def _run_kernel(x, bias, packed):
    B, S, F = x.shape
    assert S == SEQ_LEN and F == NODE_FEAT
    num_tiles = -(-B // TB)
    b_pad = num_tiles * TB
    if b_pad != B:
        x = jnp.pad(x, ((0, b_pad - B), (0, 0), (0, 0)))
        bias = jnp.pad(bias, ((0, b_pad - B), (0, 0), (0, 0)))

    (w_embed, w_qkv, b_qkv, w_o, w_ff1, b_ff1, w_ff2, w_head, b_head, vec) = packed

    def const_spec(a):
        nd = a.ndim
        return pl.BlockSpec(a.shape, lambda b, _nd=nd: (0,) * _nd)

    out = pl.pallas_call(
        graph_discriminator_kernel,
        out_shape=jax.ShapeDtypeStruct((b_pad, OUT_PAD), jnp.float32),
        grid=(num_tiles,),
        in_specs=[
            pl.BlockSpec((TB, SEQ_LEN, NODE_FEAT), lambda b: (b, 0, 0)),   # node features
            pl.BlockSpec((TB, SEQ_LEN, SEQ_LEN), lambda b: (b, 0, 0)),     # additive mask bias
            const_spec(w_embed), const_spec(w_qkv), const_spec(b_qkv),
            const_spec(w_o), const_spec(w_ff1), const_spec(b_ff1),
            const_spec(w_ff2), const_spec(w_head), const_spec(b_head),
            const_spec(vec),
        ],
        out_specs=pl.BlockSpec((TB, OUT_PAD), lambda b: (b, 0)),
        compiler_params=pltpu.CompilerParams(
            dimension_semantics=("parallel",),
            vmem_limit_bytes=32 * 1024 * 1024,
        ),
    )(x, bias, w_embed, w_qkv, b_qkv, w_o, w_ff1, b_ff1, w_ff2,
      w_head, b_head, vec)
    return out[:B, :N_OUT]                                           # (B, 2) logits


def graph_discriminator_forward(x, params):
    """x: dict with 'node_features' (B,S,F) and 'adjacency' (B,S,S),
    or tuple/list (node_features, adjacency)."""
    if isinstance(x, (list, tuple)):
        node_features, adjacency = x
        extra = {}
    elif isinstance(x, dict):
        node_features, adjacency = x['node_features'], x['adjacency']
        extra = dict(x)
    else:
        raise ValueError('Unknown input type: ' + str(type(x)))
    # additive attention bias precomputed on host (no in-kernel compare/select)
    bias = jnp.where(adjacency > 0, 0.0, _NEG_INF).astype(jnp.float32)
    logits = _run_kernel(node_features.astype(jnp.float32), bias, pack_params(params))
    out = {'p_zinc': logits}
    out.update(extra)
    return out


# ---------------------------------------------------------------------------
# pure-JAX f32 reference for tolerance checking
# ---------------------------------------------------------------------------
def reference_forward(node_features, adjacency, p):
    B, S, _ = node_features.shape
    h = node_features @ p['w_embed'] + p['b_embed']
    q = (h @ p['w_q'] + p['b_q']).reshape(B, S, N_HEADS, HEAD_DIM)
    k = (h @ p['w_k'] + p['b_k']).reshape(B, S, N_HEADS, HEAD_DIM)
    v = (h @ p['w_v'] + p['b_v']).reshape(B, S, N_HEADS, HEAD_DIM)
    s = jnp.einsum('bqhd,bkhd->bhqk', q, k) * _SM_SCALE
    s = s + jnp.where(adjacency > 0, 0.0, _NEG_INF)[:, None]
    pa = jax.nn.softmax(s, axis=-1)
    ctx = jnp.einsum('bhqk,bkhd->bqhd', pa, v).reshape(B, S, D_MODEL)
    attn = ctx @ p['w_o'] + p['b_o']

    def ln(x, g, b):
        mu = x.mean(-1, keepdims=True)
        var = ((x - mu) ** 2).mean(-1, keepdims=True)
        return (x - mu) / jnp.sqrt(var + EPS) * g + b

    h1 = ln(h + attn, p['ln1_g'], p['ln1_b'])
    ff = jnp.maximum(h1 @ p['w_ff1'] + p['b_ff1'], 0.0) @ p['w_ff2'] + p['b_ff2']
    enc = ln(h1 + ff, p['ln2_g'], p['ln2_b'])
    return enc[:, 0, :] @ p['w_head'] + p['b_head']


if __name__ == "__main__":
    key = jax.random.PRNGKey(0)
    k_x, k_adj, k_p = jax.random.split(key, 3)

    B, S = 2, SEQ_LEN
    node_features = jax.random.normal(k_x, (B, S, NODE_FEAT), jnp.float32)
    # random symmetric adjacency with self loops
    a = (jax.random.uniform(k_adj, (B, S, S)) > 0.5).astype(jnp.float32)
    adjacency = jnp.clip(a + jnp.transpose(a, (0, 2, 1)) + jnp.eye(S)[None], 0.0, 1.0)

    params = init_params(k_p)

    out = graph_discriminator_forward(
        {'node_features': node_features, 'adjacency': adjacency}, params)
    jax.block_until_ready(out['p_zinc'])
    assert out['p_zinc'].shape == (B, N_OUT)
    assert bool(jnp.all(jnp.isfinite(out['p_zinc'])))

    ref = reference_forward(node_features, adjacency, params)
    assert bool(jnp.allclose(out['p_zinc'], ref, atol=5e-2, rtol=5e-2)), \
        "kernel deviates from f32 reference"
    print("KERNEL_OK")
</pallas_src>

<mosaic_0001>
module attributes {stable_mosaic.version = 11 : i64} {
  func.func @graph_discriminator_kernel(%arg0: i32, %arg1: memref<16x8x16xf32, #tpu.memory_space<vmem>>, %arg2: memref<16x8x8xf32, #tpu.memory_space<vmem>>, %arg3: memref<16x32xbf16, #tpu.memory_space<vmem>>, %arg4: memref<32x96xbf16, #tpu.memory_space<vmem>>, %arg5: memref<1x96xf32, #tpu.memory_space<vmem>>, %arg6: memref<32x32xbf16, #tpu.memory_space<vmem>>, %arg7: memref<32x64xbf16, #tpu.memory_space<vmem>>, %arg8: memref<1x64xf32, #tpu.memory_space<vmem>>, %arg9: memref<64x32xbf16, #tpu.memory_space<vmem>>, %arg10: memref<32x128xbf16, #tpu.memory_space<vmem>>, %arg11: memref<1x128xf32, #tpu.memory_space<vmem>>, %arg12: memref<8x32xf32, #tpu.memory_space<vmem>>, %arg13: memref<16x128xf32, #tpu.memory_space<vmem>>) attributes {dimension_semantics = [#tpu.dimension_semantics<parallel>], iteration_bounds = array<i64: 1>, scalar_prefetch = 0 : i64, scratch_operands = 0 : i64, tpu.core_type = #tpu.core_type<tc>, window_params = [{transform_indices = @transform_0, window_bounds = array<i64: 16, 8, 16>}, {transform_indices = @transform_1, window_bounds = array<i64: 16, 8, 8>}, {pipeline_mode = #tpu.pipeline_mode<synchronous>, transform_indices = @transform_2, window_bounds = array<i64: 16, 32>}, {pipeline_mode = #tpu.pipeline_mode<synchronous>, transform_indices = @transform_3, window_bounds = array<i64: 32, 96>}, {pipeline_mode = #tpu.pipeline_mode<synchronous>, transform_indices = @transform_4, window_bounds = array<i64: 1, 96>}, {pipeline_mode = #tpu.pipeline_mode<synchronous>, transform_indices = @transform_5, window_bounds = array<i64: 32, 32>}, {pipeline_mode = #tpu.pipeline_mode<synchronous>, transform_indices = @transform_6, window_bounds = array<i64: 32, 64>}, {pipeline_mode = #tpu.pipeline_mode<synchronous>, transform_indices = @transform_7, window_bounds = array<i64: 1, 64>}, {pipeline_mode = #tpu.pipeline_mode<synchronous>, transform_indices = @transform_8, window_bounds = array<i64: 64, 32>}, {pipeline_mode = #tpu.pipeline_mode<synchronous>, transform_indices = @transform_9, window_bounds = array<i64: 32, 128>}, {pipeline_mode = #tpu.pipeline_mode<synchronous>, transform_indices = @transform_10, window_bounds = array<i64: 1, 128>}, {pipeline_mode = #tpu.pipeline_mode<synchronous>, transform_indices = @transform_11, window_bounds = array<i64: 8, 32>}, {transform_indices = @transform_12, window_bounds = array<i64: 16, 128>}]} {
    %c0 = arith.constant 0 : index
    %c0_0 = arith.constant 0 : index
    %0 = vector.load %arg12[%c0, %c0_0] : memref<8x32xf32, #tpu.memory_space<vmem>>, vector<8x32xf32>
    %c0_1 = arith.constant 0 : index
    %c0_2 = arith.constant 0 : index
    %c0_3 = arith.constant 0 : index
    %1 = vector.load %arg1[%c0_1, %c0_2, %c0_3] : memref<16x8x16xf32, #tpu.memory_space<vmem>>, vector<16x8x16xf32>
    %c0_4 = arith.constant 0 : index
    %c0_5 = arith.constant 0 : index
    %c0_6 = arith.constant 0 : index
    %2 = vector.load %arg2[%c0_4, %c0_5, %c0_6] : memref<16x8x8xf32, #tpu.memory_space<vmem>>, vector<16x8x8xf32>
    %3 = vector.shape_cast %1 : vector<16x8x16xf32> to vector<128x16xf32>
    %4 = arith.truncf %3 : vector<128x16xf32> to vector<128x16xbf16>
    %c0_7 = arith.constant 0 : index
    %c0_8 = arith.constant 0 : index
    %5 = vector.load %arg3[%c0_7, %c0_8] : memref<16x32xbf16, #tpu.memory_space<vmem>>, vector<16x32xbf16>
    %cst = arith.constant dense<0.000000e+00> : vector<128x32xf32>
    %6 = tpu.matmul %4, %5, %cst {dimension_numbers = #tpu.dot_dimension_numbers<[1], [0], [0], [1], [0, 0, 1, 1], [], []>} : vector<128x16xbf16>, vector<16x32xbf16>, vector<128x32xf32> -> vector<128x32xf32>
    %7 = vector.extract_strided_slice %0 {offsets = [0, 0], sizes = [1, 32], strides = [1, 1]} : vector<8x32xf32> to vector<1x32xf32>
    %8 = vector.broadcast %7 : vector<1x32xf32> to vector<128x32xf32>
    %9 = arith.addf %6, %8 : vector<128x32xf32>
    %10 = arith.truncf %9 : vector<128x32xf32> to vector<128x32xbf16>
    %c0_9 = arith.constant 0 : index
    %c0_10 = arith.constant 0 : index
    %11 = vector.load %arg4[%c0_9, %c0_10] : memref<32x96xbf16, #tpu.memory_space<vmem>>, vector<32x96xbf16>
    %cst_11 = arith.constant dense<0.000000e+00> : vector<128x96xf32>
    %12 = tpu.matmul %10, %11, %cst_11 {dimension_numbers = #tpu.dot_dimension_numbers<[1], [0], [0], [1], [0, 0, 1, 1], [], []>} : vector<128x32xbf16>, vector<32x96xbf16>, vector<128x96xf32> -> vector<128x96xf32>
    %c0_12 = arith.constant 0 : index
    %c0_13 = arith.constant 0 : index
    %13 = vector.load %arg5[%c0_12, %c0_13] : memref<1x96xf32, #tpu.memory_space<vmem>>, vector<1x96xf32>
    %14 = vector.broadcast %13 : vector<1x96xf32> to vector<128x96xf32>
    %15 = arith.addf %12, %14 : vector<128x96xf32>
    %16 = vector.extract_strided_slice %15 {offsets = [0, 0], sizes = [128, 32], strides = [1, 1]} : vector<128x96xf32> to vector<128x32xf32>
    %cst_14 = arith.constant 0.353553385 : f32
    %17 = vector.broadcast %cst_14 : f32 to vector<128x32xf32>
    %18 = arith.mulf %16, %17 : vector<128x32xf32>
    %19 = vector.shape_cast %18 : vector<128x32xf32> to vector<16x8x32xf32>
    %20 = vector.extract_strided_slice %15 {offsets = [0, 32], sizes = [128, 32], strides = [1, 1]} : vector<128x96xf32> to vector<128x32xf32>
    %21 = vector.shape_cast %20 : vector<128x32xf32> to vector<16x8x32xf32>
    %22 = vector.extract_strided_slice %15 {offsets = [0, 64], sizes = [128, 32], strides = [1, 1]} : vector<128x96xf32> to vector<128x32xf32>
    %23 = vector.shape_cast %22 : vector<128x32xf32> to vector<16x8x32xf32>
    %24 = vector.extract_strided_slice %19 {offsets = [0, 0, 0], sizes = [16, 8, 8], strides = [1, 1, 1]} : vector<16x8x32xf32> to vector<16x8x8xf32>
    %25 = arith.truncf %24 : vector<16x8x8xf32> to vector<16x8x8xbf16>
    %26 = vector.extract_strided_slice %21 {offsets = [0, 0, 0], sizes = [16, 8, 8], strides = [1, 1, 1]} : vector<16x8x32xf32> to vector<16x8x8xf32>
    %27 = arith.truncf %26 : vector<16x8x8xf32> to vector<16x8x8xbf16>
    %28 = vector.extract_strided_slice %23 {offsets = [0, 0, 0], sizes = [16, 8, 8], strides = [1, 1, 1]} : vector<16x8x32xf32> to vector<16x8x8xf32>
    %29 = arith.truncf %28 : vector<16x8x8xf32> to vector<16x8x8xbf16>
    "tpu.trace_start"() <{level = 10 : i32, message = "bqd,bkd->bqk"}> : () -> ()
    %cst_15 = arith.constant dense<0.000000e+00> : vector<16x8x8xf32>
    %30 = tpu.matmul %25, %27, %cst_15 {dimension_numbers = #tpu.dot_dimension_numbers<[2], [2], [1], [1], [0, 0, 0, 1, 1, 1], [0], [0]>} : vector<16x8x8xbf16>, vector<16x8x8xbf16>, vector<16x8x8xf32> -> vector<16x8x8xf32>
    "tpu.trace_stop"() : () -> ()
    %31 = arith.addf %30, %2 : vector<16x8x8xf32>
    %cst_16 = arith.constant dense<0xFF800000> : vector<16x8xf32>
    %32 = vector.multi_reduction <maximumf>, %31, %cst_16 [2] : vector<16x8x8xf32> to vector<16x8xf32>
    %33 = vector.shape_cast %32 : vector<16x8xf32> to vector<16x8x1xf32>
    %34 = vector.broadcast %33 : vector<16x8x1xf32> to vector<16x8x8xf32>
    %35 = arith.subf %31, %34 : vector<16x8x8xf32>
    %36 = math.exp %35 : vector<16x8x8xf32>
    %cst_17 = arith.constant dense<0.000000e+00> : vector<16x8xf32>
    %37 = vector.multi_reduction <add>, %36, %cst_17 [2] : vector<16x8x8xf32> to vector<16x8xf32>
    %38 = vector.shape_cast %37 : vector<16x8xf32> to vector<16x8x1xf32>
    %39 = tpu.reciprocal %38 {approx = true} : vector<16x8x1xf32> -> vector<16x8x1xf32>
    %40 = vector.broadcast %39 : vector<16x8x1xf32> to vector<16x8x8xf32>
    %41 = arith.mulf %36, %40 : vector<16x8x8xf32>
    %42 = arith.truncf %41 : vector<16x8x8xf32> to vector<16x8x8xbf16>
    "tpu.trace_start"() <{level = 10 : i32, message = "bqk,bkd->bqd"}> : () -> ()
    %cst_18 = arith.constant dense<0.000000e+00> : vector<16x8x8xf32>
    %43 = tpu.matmul %42, %29, %cst_18 {dimension_numbers = #tpu.dot_dimension_numbers<[2], [1], [1], [2], [0, 0, 0, 1, 1, 2], [0], [0]>} : vector<16x8x8xbf16>, vector<16x8x8xbf16>, vector<16x8x8xf32> -> vector<16x8x8xf32>
    "tpu.trace_stop"() : () -> ()
    %44 = vector.extract_strided_slice %19 {offsets = [0, 0, 8], sizes = [16, 8, 8], strides = [1, 1, 1]} : vector<16x8x32xf32> to vector<16x8x8xf32>
    %45 = arith.truncf %44 : vector<16x8x8xf32> to vector<16x8x8xbf16>
    %46 = vector.extract_strided_slice %21 {offsets = [0, 0, 8], sizes = [16, 8, 8], strides = [1, 1, 1]} : vector<16x8x32xf32> to vector<16x8x8xf32>
    %47 = arith.truncf %46 : vector<16x8x8xf32> to vector<16x8x8xbf16>
    %48 = vector.extract_strided_slice %23 {offsets = [0, 0, 8], sizes = [16, 8, 8], strides = [1, 1, 1]} : vector<16x8x32xf32> to vector<16x8x8xf32>
    %49 = arith.truncf %48 : vector<16x8x8xf32> to vector<16x8x8xbf16>
    "tpu.trace_start"() <{level = 10 : i32, message = "bqd,bkd->bqk"}> : () -> ()
    %cst_19 = arith.constant dense<0.000000e+00> : vector<16x8x8xf32>
    %50 = tpu.matmul %45, %47, %cst_19 {dimension_numbers = #tpu.dot_dimension_numbers<[2], [2], [1], [1], [0, 0, 0, 1, 1, 1], [0], [0]>} : vector<16x8x8xbf16>, vector<16x8x8xbf16>, vector<16x8x8xf32> -> vector<16x8x8xf32>
    "tpu.trace_stop"() : () -> ()
    %51 = arith.addf %50, %2 : vector<16x8x8xf32>
    %cst_20 = arith.constant dense<0xFF800000> : vector<16x8xf32>
    %52 = vector.multi_reduction <maximumf>, %51, %cst_20 [2] : vector<16x8x8xf32> to vector<16x8xf32>
    %53 = vector.shape_cast %52 : vector<16x8xf32> to vector<16x8x1xf32>
    %54 = vector.broadcast %53 : vector<16x8x1xf32> to vector<16x8x8xf32>
    %55 = arith.subf %51, %54 : vector<16x8x8xf32>
    %56 = math.exp %55 : vector<16x8x8xf32>
    %cst_21 = arith.constant dense<0.000000e+00> : vector<16x8xf32>
    %57 = vector.multi_reduction <add>, %56, %cst_21 [2] : vector<16x8x8xf32> to vector<16x8xf32>
    %58 = vector.shape_cast %57 : vector<16x8xf32> to vector<16x8x1xf32>
    %59 = tpu.reciprocal %58 {approx = true} : vector<16x8x1xf32> -> vector<16x8x1xf32>
    %60 = vector.broadcast %59 : vector<16x8x1xf32> to vector<16x8x8xf32>
    %61 = arith.mulf %56, %60 : vector<16x8x8xf32>
    %62 = arith.truncf %61 : vector<16x8x8xf32> to vector<16x8x8xbf16>
    "tpu.trace_start"() <{level = 10 : i32, message = "bqk,bkd->bqd"}> : () -> ()
    %cst_22 = arith.constant dense<0.000000e+00> : vector<16x8x8xf32>
    %63 = tpu.matmul %62, %49, %cst_22 {dimension_numbers = #tpu.dot_dimension_numbers<[2], [1], [1], [2], [0, 0, 0, 1, 1, 2], [0], [0]>} : vector<16x8x8xbf16>, vector<16x8x8xbf16>, vector<16x8x8xf32> -> vector<16x8x8xf32>
    "tpu.trace_stop"() : () -> ()
    %64 = vector.extract_strided_slice %19 {offsets = [0, 0, 16], sizes = [16, 8, 8], strides = [1, 1, 1]} : vector<16x8x32xf32> to vector<16x8x8xf32>
    %65 = arith.truncf %64 : vector<16x8x8xf32> to vector<16x8x8xbf16>
    %66 = vector.extract_strided_slice %21 {offsets = [0, 0, 16], sizes = [16, 8, 8], strides = [1, 1, 1]} : vector<16x8x32xf32> to vector<16x8x8xf32>
    %67 = arith.truncf %66 : vector<16x8x8xf32> to vector<16x8x8xbf16>
    %68 = vector.extract_strided_slice %23 {offsets = [0, 0, 16], sizes = [16, 8, 8], strides = [1, 1, 1]} : vector<16x8x32xf32> to vector<16x8x8xf32>
    %69 = arith.truncf %68 : vector<16x8x8xf32> to vector<16x8x8xbf16>
    "tpu.trace_start"() <{level = 10 : i32, message = "bqd,bkd->bqk"}> : () -> ()
    %cst_23 = arith.constant dense<0.000000e+00> : vector<16x8x8xf32>
    %70 = tpu.matmul %65, %67, %cst_23 {dimension_numbers = #tpu.dot_dimension_numbers<[2], [2], [1], [1], [0, 0, 0, 1, 1, 1], [0], [0]>} : vector<16x8x8xbf16>, vector<16x8x8xbf16>, vector<16x8x8xf32> -> vector<16x8x8xf32>
    "tpu.trace_stop"() : () -> ()
    %71 = arith.addf %70, %2 : vector<16x8x8xf32>
    %cst_24 = arith.constant dense<0xFF800000> : vector<16x8xf32>
    %72 = vector.multi_reduction <maximumf>, %71, %cst_24 [2] : vector<16x8x8xf32> to vector<16x8xf32>
    %73 = vector.shape_cast %72 : vector<16x8xf32> to vector<16x8x1xf32>
    %74 = vector.broadcast %73 : vector<16x8x1xf32> to vector<16x8x8xf32>
    %75 = arith.subf %71, %74 : vector<16x8x8xf32>
    %76 = math.exp %75 : vector<16x8x8xf32>
    %cst_25 = arith.constant dense<0.000000e+00> : vector<16x8xf32>
    %77 = vector.multi_reduction <add>, %76, %cst_25 [2] : vector<16x8x8xf32> to vector<16x8xf32>
    %78 = vector.shape_cast %77 : vector<16x8xf32> to vector<16x8x1xf32>
    %79 = tpu.reciprocal %78 {approx = true} : vector<16x8x1xf32> -> vector<16x8x1xf32>
    %80 = vector.broadcast %79 : vector<16x8x1xf32> to vector<16x8x8xf32>
    %81 = arith.mulf %76, %80 : vector<16x8x8xf32>
    %82 = arith.truncf %81 : vector<16x8x8xf32> to vector<16x8x8xbf16>
    "tpu.trace_start"() <{level = 10 : i32, message = "bqk,bkd->bqd"}> : () -> ()
    %cst_26 = arith.constant dense<0.000000e+00> : vector<16x8x8xf32>
    %83 = tpu.matmul %82, %69, %cst_26 {dimension_numbers = #tpu.dot_dimension_numbers<[2], [1], [1], [2], [0, 0, 0, 1, 1, 2], [0], [0]>} : vector<16x8x8xbf16>, vector<16x8x8xbf16>, vector<16x8x8xf32> -> vector<16x8x8xf32>
    "tpu.trace_stop"() : () -> ()
    %84 = vector.extract_strided_slice %19 {offsets = [0, 0, 24], sizes = [16, 8, 8], strides = [1, 1, 1]} : vector<16x8x32xf32> to vector<16x8x8xf32>
    %85 = arith.truncf %84 : vector<16x8x8xf32> to vector<16x8x8xbf16>
    %86 = vector.extract_strided_slice %21 {offsets = [0, 0, 24], sizes = [16, 8, 8], strides = [1, 1, 1]} : vector<16x8x32xf32> to vector<16x8x8xf32>
    %87 = arith.truncf %86 : vector<16x8x8xf32> to vector<16x8x8xbf16>
    %88 = vector.extract_strided_slice %23 {offsets = [0, 0, 24], sizes = [16, 8, 8], strides = [1, 1, 1]} : vector<16x8x32xf32> to vector<16x8x8xf32>
    %89 = arith.truncf %88 : vector<16x8x8xf32> to vector<16x8x8xbf16>
    "tpu.trace_start"() <{level = 10 : i32, message = "bqd,bkd->bqk"}> : () -> ()
    %cst_27 = arith.constant dense<0.000000e+00> : vector<16x8x8xf32>
    %90 = tpu.matmul %85, %87, %cst_27 {dimension_numbers = #tpu.dot_dimension_numbers<[2], [2], [1], [1], [0, 0, 0, 1, 1, 1], [0], [0]>} : vector<16x8x8xbf16>, vector<16x8x8xbf16>, vector<16x8x8xf32> -> vector<16x8x8xf32>
    "tpu.trace_stop"() : () -> ()
    %91 = arith.addf %90, %2 : vector<16x8x8xf32>
    %cst_28 = arith.constant dense<0xFF800000> : vector<16x8xf32>
    %92 = vector.multi_reduction <maximumf>, %91, %cst_28 [2] : vector<16x8x8xf32> to vector<16x8xf32>
    %93 = vector.shape_cast %92 : vector<16x8xf32> to vector<16x8x1xf32>
    %94 = vector.broadcast %93 : vector<16x8x1xf32> to vector<16x8x8xf32>
    %95 = arith.subf %91, %94 : vector<16x8x8xf32>
    %96 = math.exp %95 : vector<16x8x8xf32>
    %cst_29 = arith.constant dense<0.000000e+00> : vector<16x8xf32>
    %97 = vector.multi_reduction <add>, %96, %cst_29 [2] : vector<16x8x8xf32> to vector<16x8xf32>
    %98 = vector.shape_cast %97 : vector<16x8xf32> to vector<16x8x1xf32>
    %99 = tpu.reciprocal %98 {approx = true} : vector<16x8x1xf32> -> vector<16x8x1xf32>
    %100 = vector.broadcast %99 : vector<16x8x1xf32> to vector<16x8x8xf32>
    %101 = arith.mulf %96, %100 : vector<16x8x8xf32>
    %102 = arith.truncf %101 : vector<16x8x8xf32> to vector<16x8x8xbf16>
    "tpu.trace_start"() <{level = 10 : i32, message = "bqk,bkd->bqd"}> : () -> ()
    %cst_30 = arith.constant dense<0.000000e+00> : vector<16x8x8xf32>
    %103 = tpu.matmul %102, %89, %cst_30 {dimension_numbers = #tpu.dot_dimension_numbers<[2], [1], [1], [2], [0, 0, 0, 1, 1, 2], [0], [0]>} : vector<16x8x8xbf16>, vector<16x8x8xbf16>, vector<16x8x8xf32> -> vector<16x8x8xf32>
    "tpu.trace_stop"() : () -> ()
    %104 = tpu.concatenate %43, %63, %83, %103 in 2 : vector<16x8x8xf32>, vector<16x8x8xf32>, vector<16x8x8xf32>, vector<16x8x8xf32> -> vector<16x8x32xf32>
    %105 = vector.shape_cast %104 : vector<16x8x32xf32> to vector<128x32xf32>
    %106 = arith.truncf %105 : vector<128x32xf32> to vector<128x32xbf16>
    %c0_31 = arith.constant 0 : index
    %c0_32 = arith.constant 0 : index
    %107 = vector.load %arg6[%c0_31, %c0_32] : memref<32x32xbf16, #tpu.memory_space<vmem>>, vector<32x32xbf16>
    %cst_33 = arith.constant dense<0.000000e+00> : vector<128x32xf32>
    %108 = tpu.matmul %106, %107, %cst_33 {dimension_numbers = #tpu.dot_dimension_numbers<[1], [0], [0], [1], [0, 0, 1, 1], [], []>} : vector<128x32xbf16>, vector<32x32xbf16>, vector<128x32xf32> -> vector<128x32xf32>
    %109 = vector.extract_strided_slice %0 {offsets = [1, 0], sizes = [1, 32], strides = [1, 1]} : vector<8x32xf32> to vector<1x32xf32>
    %110 = vector.broadcast %109 : vector<1x32xf32> to vector<128x32xf32>
    %111 = arith.addf %108, %110 : vector<128x32xf32>
    %112 = arith.addf %9, %111 : vector<128x32xf32>
    %113 = vector.extract_strided_slice %0 {offsets = [2, 0], sizes = [1, 32], strides = [1, 1]} : vector<8x32xf32> to vector<1x32xf32>
    %114 = vector.extract_strided_slice %0 {offsets = [3, 0], sizes = [1, 32], strides = [1, 1]} : vector<8x32xf32> to vector<1x32xf32>
    %cst_34 = arith.constant dense<0.000000e+00> : vector<128xf32>
    %115 = vector.multi_reduction <add>, %112, %cst_34 [1] : vector<128x32xf32> to vector<128xf32>
    %116 = vector.shape_cast %115 : vector<128xf32> to vector<128x1xf32>
    %cst_35 = arith.constant 3.200000e+01 : f32
    %117 = vector.broadcast %cst_35 : f32 to vector<128x1xf32>
    %118 = arith.divf %116, %117 : vector<128x1xf32>
    %119 = vector.broadcast %118 : vector<128x1xf32> to vector<128x32xf32>
    %120 = arith.subf %112, %119 : vector<128x32xf32>
    %121 = arith.mulf %120, %120 : vector<128x32xf32>
    %cst_36 = arith.constant dense<0.000000e+00> : vector<128xf32>
    %122 = vector.multi_reduction <add>, %121, %cst_36 [1] : vector<128x32xf32> to vector<128xf32>
    %123 = vector.shape_cast %122 : vector<128xf32> to vector<128x1xf32>
    %cst_37 = arith.constant 3.200000e+01 : f32
    %124 = vector.broadcast %cst_37 : f32 to vector<128x1xf32>
    %125 = arith.divf %123, %124 : vector<128x1xf32>
    %126 = vector.broadcast %118 : vector<128x1xf32> to vector<128x32xf32>
    %127 = arith.subf %112, %126 : vector<128x32xf32>
    %cst_38 = arith.constant 9.99999974E-6 : f32
    %128 = vector.broadcast %cst_38 : f32 to vector<128x1xf32>
    %129 = arith.addf %125, %128 : vector<128x1xf32>
    %130 = math.rsqrt %129 : vector<128x1xf32>
    %131 = vector.broadcast %130 : vector<128x1xf32> to vector<128x32xf32>
    %132 = arith.mulf %127, %131 : vector<128x32xf32>
    %133 = vector.broadcast %113 : vector<1x32xf32> to vector<128x32xf32>
    %134 = arith.mulf %132, %133 : vector<128x32xf32>
    %135 = vector.broadcast %114 : vector<1x32xf32> to vector<128x32xf32>
    %136 = arith.addf %134, %135 : vector<128x32xf32>
    %137 = arith.truncf %136 : vector<128x32xf32> to vector<128x32xbf16>
    %c0_39 = arith.constant 0 : index
    %c0_40 = arith.constant 0 : index
    %138 = vector.load %arg7[%c0_39, %c0_40] : memref<32x64xbf16, #tpu.memory_space<vmem>>, vector<32x64xbf16>
    %cst_41 = arith.constant dense<0.000000e+00> : vector<128x64xf32>
    %139 = tpu.matmul %137, %138, %cst_41 {dimension_numbers = #tpu.dot_dimension_numbers<[1], [0], [0], [1], [0, 0, 1, 1], [], []>} : vector<128x32xbf16>, vector<32x64xbf16>, vector<128x64xf32> -> vector<128x64xf32>
    %c0_42 = arith.constant 0 : index
    %c0_43 = arith.constant 0 : index
    %140 = vector.load %arg8[%c0_42, %c0_43] : memref<1x64xf32, #tpu.memory_space<vmem>>, vector<1x64xf32>
    %141 = vector.broadcast %140 : vector<1x64xf32> to vector<128x64xf32>
    %142 = arith.addf %139, %141 : vector<128x64xf32>
    %cst_44 = arith.constant 0.000000e+00 : f32
    %143 = vector.broadcast %cst_44 : f32 to vector<128x64xf32>
    %144 = arith.maximumf %142, %143 : vector<128x64xf32>
    %145 = arith.truncf %144 : vector<128x64xf32> to vector<128x64xbf16>
    %c0_45 = arith.constant 0 : index
    %c0_46 = arith.constant 0 : index
    %146 = vector.load %arg9[%c0_45, %c0_46] : memref<64x32xbf16, #tpu.memory_space<vmem>>, vector<64x32xbf16>
    %cst_47 = arith.constant dense<0.000000e+00> : vector<128x32xf32>
    %147 = tpu.matmul %145, %146, %cst_47 {dimension_numbers = #tpu.dot_dimension_numbers<[1], [0], [0], [1], [0, 0, 1, 1], [], []>} : vector<128x64xbf16>, vector<64x32xbf16>, vector<128x32xf32> -> vector<128x32xf32>
    %148 = vector.extract_strided_slice %0 {offsets = [4, 0], sizes = [1, 32], strides = [1, 1]} : vector<8x32xf32> to vector<1x32xf32>
    %149 = vector.broadcast %148 : vector<1x32xf32> to vector<128x32xf32>
    %150 = arith.addf %147, %149 : vector<128x32xf32>
    %151 = arith.addf %136, %150 : vector<128x32xf32>
    %152 = vector.extract_strided_slice %0 {offsets = [5, 0], sizes = [1, 32], strides = [1, 1]} : vector<8x32xf32> to vector<1x32xf32>
    %153 = vector.extract_strided_slice %0 {offsets = [6, 0], sizes = [1, 32], strides = [1, 1]} : vector<8x32xf32> to vector<1x32xf32>
    %cst_48 = arith.constant dense<0.000000e+00> : vector<128xf32>
    %154 = vector.multi_reduction <add>, %151, %cst_48 [1] : vector<128x32xf32> to vector<128xf32>
    %155 = vector.shape_cast %154 : vector<128xf32> to vector<128x1xf32>
    %cst_49 = arith.constant 3.200000e+01 : f32
    %156 = vector.broadcast %cst_49 : f32 to vector<128x1xf32>
    %157 = arith.divf %155, %156 : vector<128x1xf32>
    %158 = vector.broadcast %157 : vector<128x1xf32> to vector<128x32xf32>
    %159 = arith.subf %151, %158 : vector<128x32xf32>
    %160 = arith.mulf %159, %159 : vector<128x32xf32>
    %cst_50 = arith.constant dense<0.000000e+00> : vector<128xf32>
    %161 = vector.multi_reduction <add>, %160, %cst_50 [1] : vector<128x32xf32> to vector<128xf32>
    %162 = vector.shape_cast %161 : vector<128xf32> to vector<128x1xf32>
    %cst_51 = arith.constant 3.200000e+01 : f32
    %163 = vector.broadcast %cst_51 : f32 to vector<128x1xf32>
    %164 = arith.divf %162, %163 : vector<128x1xf32>
    %165 = vector.broadcast %157 : vector<128x1xf32> to vector<128x32xf32>
    %166 = arith.subf %151, %165 : vector<128x32xf32>
    %cst_52 = arith.constant 9.99999974E-6 : f32
    %167 = vector.broadcast %cst_52 : f32 to vector<128x1xf32>
    %168 = arith.addf %164, %167 : vector<128x1xf32>
    %169 = math.rsqrt %168 : vector<128x1xf32>
    %170 = vector.broadcast %169 : vector<128x1xf32> to vector<128x32xf32>
    %171 = arith.mulf %166, %170 : vector<128x32xf32>
    %172 = vector.broadcast %152 : vector<1x32xf32> to vector<128x32xf32>
    %173 = arith.mulf %171, %172 : vector<128x32xf32>
    %174 = vector.broadcast %153 : vector<1x32xf32> to vector<128x32xf32>
    %175 = arith.addf %173, %174 : vector<128x32xf32>
    %176 = vector.shape_cast %175 : vector<128x32xf32> to vector<16x8x32xf32>
    %177 = vector.extract_strided_slice %176 {offsets = [0, 0, 0], sizes = [16, 1, 32], strides = [1, 1, 1]} : vector<16x8x32xf32> to vector<16x1x32xf32>
    %178 = vector.shape_cast %177 : vector<16x1x32xf32> to vector<16x32xf32>
    %179 = arith.truncf %178 : vector<16x32xf32> to vector<16x32xbf16>
    %c0_53 = arith.constant 0 : index
    %c0_54 = arith.constant 0 : index
    %180 = vector.load %arg10[%c0_53, %c0_54] : memref<32x128xbf16, #tpu.memory_space<vmem>>, vector<32x128xbf16>
    %cst_55 = arith.constant dense<0.000000e+00> : vector<16x128xf32>
    %181 = tpu.matmul %179, %180, %cst_55 {dimension_numbers = #tpu.dot_dimension_numbers<[1], [0], [0], [1], [0, 0, 1, 1], [], []>} : vector<16x32xbf16>, vector<32x128xbf16>, vector<16x128xf32> -> vector<16x128xf32>
    %c0_56 = arith.constant 0 : index
    %c0_57 = arith.constant 0 : index
    %182 = vector.load %arg11[%c0_56, %c0_57] : memref<1x128xf32, #tpu.memory_space<vmem>>, vector<1x128xf32>
    %183 = vector.broadcast %182 : vector<1x128xf32> to vector<16x128xf32>
    %184 = arith.addf %181, %183 : vector<16x128xf32>
    %c0_58 = arith.constant 0 : index
    %c0_59 = arith.constant 0 : index
    %185 = vector.load %arg13[%c0_58, %c0_59] : memref<16x128xf32, #tpu.memory_space<vmem>>, vector<16x128xf32>
    tpu.vector_store %arg13[%c0_58, %c0_59], %184 {strides = array<i32>} : memref<16x128xf32, #tpu.memory_space<vmem>>, vector<16x128xf32>,
    return
  }
  func.func @transform_0(%arg0: i32) -> (i32, i32, i32) {
    %c0_i32 = arith.constant 0 : i32
    %c0_i32_0 = arith.constant 0 : i32
    %c0_i32_1 = arith.constant 0 : i32
    return %arg0, %c0_i32, %c0_i32_0 : i32, i32, i32
  }
  func.func @transform_1(%arg0: i32) -> (i32, i32, i32) {
    %c0_i32 = arith.constant 0 : i32
    %c0_i32_0 = arith.constant 0 : i32
    %c0_i32_1 = arith.constant 0 : i32
    return %arg0, %c0_i32, %c0_i32_0 : i32, i32, i32
  }
  func.func @transform_2(%arg0: i32) -> (i32, i32) {
    %c0_i32 = arith.constant 0 : i32
    %c0_i32_0 = arith.constant 0 : i32
    %c0_i32_1 = arith.constant 0 : i32
    return %c0_i32, %c0_i32_0 : i32, i32
  }
  func.func @transform_3(%arg0: i32) -> (i32, i32) {
    %c0_i32 = arith.constant 0 : i32
    %c0_i32_0 = arith.constant 0 : i32
    %c0_i32_1 = arith.constant 0 : i32
    return %c0_i32, %c0_i32_0 : i32, i32
  }
  func.func @transform_4(%arg0: i32) -> (i32, i32) {
    %c0_i32 = arith.constant 0 : i32
    %c0_i32_0 = arith.constant 0 : i32
    %c0_i32_1 = arith.constant 0 : i32
    return %c0_i32, %c0_i32_0 : i32, i32
  }
  func.func @transform_5(%arg0: i32) -> (i32, i32) {
    %c0_i32 = arith.constant 0 : i32
    %c0_i32_0 = arith.constant 0 : i32
    %c0_i32_1 = arith.constant 0 : i32
    return %c0_i32, %c0_i32_0 : i32, i32
  }
  func.func @transform_6(%arg0: i32) -> (i32, i32) {
    %c0_i32 = arith.constant 0 : i32
    %c0_i32_0 = arith.constant 0 : i32
    %c0_i32_1 = arith.constant 0 : i32
    return %c0_i32, %c0_i32_0 : i32, i32
  }
  func.func @transform_7(%arg0: i32) -> (i32, i32) {
    %c0_i32 = arith.constant 0 : i32
    %c0_i32_0 = arith.constant 0 : i32
    %c0_i32_1 = arith.constant 0 : i32
    return %c0_i32, %c0_i32_0 : i32, i32
  }
  func.func @transform_8(%arg0: i32) -> (i32, i32) {
    %c0_i32 = arith.constant 0 : i32
    %c0_i32_0 = arith.constant 0 : i32
    %c0_i32_1 = arith.constant 0 : i32
    return %c0_i32, %c0_i32_0 : i32, i32
  }
  func.func @transform_9(%arg0: i32) -> (i32, i32) {
    %c0_i32 = arith.constant 0 : i32
    %c0_i32_0 = arith.constant 0 : i32
    %c0_i32_1 = arith.constant 0 : i32
    return %c0_i32, %c0_i32_0 : i32, i32
  }
  func.func @transform_10(%arg0: i32) -> (i32, i32) {
    %c0_i32 = arith.constant 0 : i32
    %c0_i32_0 = arith.constant 0 : i32
    %c0_i32_1 = arith.constant 0 : i32
    return %c0_i32, %c0_i32_0 : i32, i32
  }
  func.func @transform_11(%arg0: i32) -> (i32, i32) {
    %c0_i32 = arith.constant 0 : i32
    %c0_i32_0 = arith.constant 0 : i32
    %c0_i32_1 = arith.constant 0 : i32
    return %c0_i32, %c0_i32_0 : i32, i32
  }
  func.func @transform_12(%arg0: i32) -> (i32, i32) {
    %c0_i32 = arith.constant 0 : i32
    %c0_i32_0 = arith.constant 0 : i32
    return %arg0, %c0_i32 : i32, i32
  }
}

</mosaic_0001>

<llo_original>
// kernel: tpu_custom_call.1
$region0: #{tpu_custom_call.1}
  #allocation0 [shape = 'u32[]', space=smem, size = 0x4, offset = 0x4, fixed_abs, tag = 'smem constant byte address 0x4 - core index']
  #allocation1 [shape = 'u32[144,128]{1,0:T(1,128)}', space=vmem, size = 0x12000, scoped, tag = 'internal scratch']
  %s0 = inlined_call_operand.vmem [shape: f32[16,8,16], index: 0, kind: input, shape index: {}]
  %s1 = inlined_call_operand.vmem [shape: f32[16,8,8], index: 1, kind: input, shape index: {}]
  %s2 = inlined_call_operand.vmem [shape: bf16[16,32], index: 2, kind: input, shape index: {}]
  %s3 = inlined_call_operand.vmem [shape: bf16[32,96], index: 3, kind: input, shape index: {}]
  %s4 = inlined_call_operand.vmem [shape: f32[1,96], index: 4, kind: input, shape index: {}]
  %s5 = inlined_call_operand.vmem [shape: bf16[32,32], index: 5, kind: input, shape index: {}]
  %s6 = inlined_call_operand.vmem [shape: bf16[32,64], index: 6, kind: input, shape index: {}]
  %s7 = inlined_call_operand.vmem [shape: f32[1,64], index: 7, kind: input, shape index: {}]
  %s8 = inlined_call_operand.vmem [shape: bf16[64,32], index: 8, kind: input, shape index: {}]
  %s9 = inlined_call_operand.vmem [shape: bf16[32,128], index: 9, kind: input, shape index: {}]
  %s10 = inlined_call_operand.vmem [shape: f32[1,128], index: 10, kind: input, shape index: {}]
  %s11 = inlined_call_operand.vmem [shape: f32[8,32], index: 11, kind: input, shape index: {}]
  %s12 = inlined_call_operand.hbm [shape: f32[16,128], index: 12, kind: output, shape index: {}]
  %s13 = sld [smem:[#allocation0]]
  $region58: #{tpu_custom_call.1} parent=0
    _
  %s15 = ssub.s32 1, %s13
  %s16 = scalar_select 0, %s15, %s13
  $region1: #{tpu_custom_call.1} parent=0
    #allocation2 [shape = 'u8[8192]{0}', space=vmem, size = 0x2000, scoped, tag = 'output window, operand 0, single buffered']
    #allocation3 [shape = 's32[1]{0}', space=sflag, size = 0x4, scoped, tag = 'scoped memory for tpu_custom_call.1']
    %17 = vsyncpa [#allocation3], 0
    // Predicated region
    $region2: #{tpu_custom_call.1} parent=1 // pred_check
      _
    $region3: #{tpu_custom_call.1} parent=1 // pred_check_branch
      %19 = sbr.rel (0) target = $region5
    $region4: #{tpu_custom_call.1} parent=1 // pred_region
      _
    $region5: #{tpu_custom_call.1} parent=1 // pred_fallthru
      _
    // Predicated region
    $region6: #{tpu_custom_call.1} parent=1 // pred_check
      _
    $region7: #{tpu_custom_call.1} parent=1 // pred_check_branch
      %21 = sbr.rel (0) target = $region9
    $region8: #{tpu_custom_call.1} parent=1 // pred_region
      _
    $region9: #{tpu_custom_call.1} parent=1 // pred_fallthru
      _
    // Predicated region
    $region10: #{tpu_custom_call.1} parent=1 // pred_check
      _
    $region11: #{tpu_custom_call.1} parent=1 // pred_check_branch
      %23 = sbr.rel (0) target = $region13
    $region12: #{tpu_custom_call.1} parent=1 // pred_region
      _
    $region13: #{tpu_custom_call.1} parent=1 // pred_fallthru
      _
    // Predicated region
    $region14: #{tpu_custom_call.1} parent=1 // pred_check
      _
    $region15: #{tpu_custom_call.1} parent=1 // pred_check_branch
      %25 = sbr.rel (0) target = $region17
    $region16: #{tpu_custom_call.1} parent=1 // pred_region
      _
    $region17: #{tpu_custom_call.1} parent=1 // pred_fallthru
      _
    // Predicated region
    $region18: #{tpu_custom_call.1} parent=1 // pred_check
      _
    $region19: #{tpu_custom_call.1} parent=1 // pred_check_branch
      %27 = sbr.rel (0) target = $region21
    $region20: #{tpu_custom_call.1} parent=1 // pred_region
      _
    $region21: #{tpu_custom_call.1} parent=1 // pred_fallthru
      _
    // Predicated region
    $region22: #{tpu_custom_call.1} parent=1 // pred_check
      _
    $region23: #{tpu_custom_call.1} parent=1 // pred_check_branch
      %29 = sbr.rel (0) target = $region25
    $region24: #{tpu_custom_call.1} parent=1 // pred_region
      _
    $region25: #{tpu_custom_call.1} parent=1 // pred_fallthru
      _
    // Predicated region
    $region26: #{tpu_custom_call.1} parent=1 // pred_check
      _
    $region27: #{tpu_custom_call.1} parent=1 // pred_check_branch
      %31 = sbr.rel (0) target = $region29
    $region28: #{tpu_custom_call.1} parent=1 // pred_region
      _
    $region29: #{tpu_custom_call.1} parent=1 // pred_fallthru
      _
    // Predicated region
    $region30: #{tpu_custom_call.1} parent=1 // pred_check
      _
    $region31: #{tpu_custom_call.1} parent=1 // pred_check_branch
      %33 = sbr.rel (0) target = $region33
    $region32: #{tpu_custom_call.1} parent=1 // pred_region
      _
    $region33: #{tpu_custom_call.1} parent=1 // pred_fallthru
      _
    // Predicated region
    $region34: #{tpu_custom_call.1} parent=1 // pred_check
      _
    $region35: #{tpu_custom_call.1} parent=1 // pred_check_branch
      %35 = sbr.rel (0) target = $region37
    $region36: #{tpu_custom_call.1} parent=1 // pred_region
      _
    $region37: #{tpu_custom_call.1} parent=1 // pred_fallthru
      _
    // Predicated region
    $region38: #{tpu_custom_call.1} parent=1 // pred_check
      _
    $region39: #{tpu_custom_call.1} parent=1 // pred_check_branch
      %37 = sbr.rel (0) target = $region41
    $region40: #{tpu_custom_call.1} parent=1 // pred_region
      _
    $region41: #{tpu_custom_call.1} parent=1 // pred_fallthru
      _
    // Predicated region
    $region42: #{tpu_custom_call.1} parent=1 // pred_check
      _
    $region43: #{tpu_custom_call.1} parent=1 // pred_check_branch
      %39 = sbr.rel (0) target = $region45
    $region44: #{tpu_custom_call.1} parent=1 // pred_region
      _
    $region45: #{tpu_custom_call.1} parent=1 // pred_fallthru
      _
    // Predicated region
    $region46: #{tpu_custom_call.1} parent=1 // pred_check
      _
    $region47: #{tpu_custom_call.1} parent=1 // pred_check_branch
      %41 = sbr.rel (0) target = $region49
    $region48: #{tpu_custom_call.1} parent=1 // pred_region
      _
    $region49: #{tpu_custom_call.1} parent=1 // pred_fallthru
      _
    %v43 = vld [vmem:[%s11] sm:$0xff]
    %v44 = vld [vmem:[%s0] sm:$0xff]
    %v45 = vld [vmem:[%s0 + $0x8] sm:$0xff]
    %v46 = vld [vmem:[%s0 + $0x10] sm:$0xff]
    %v47 = vld [vmem:[%s0 + $0x18] sm:$0xff]
    %v48 = vld [vmem:[%s0 + $0x20] sm:$0xff]
    %v49 = vld [vmem:[%s0 + $0x28] sm:$0xff]
    %v50 = vld [vmem:[%s0 + $0x30] sm:$0xff]
    %v51 = vld [vmem:[%s0 + $0x38] sm:$0xff]
    %v52 = vld [vmem:[%s0 + $0x40] sm:$0xff]
    %v53 = vld [vmem:[%s0 + $0x48] sm:$0xff]
    %v54 = vld [vmem:[%s0 + $0x50] sm:$0xff]
    %v55 = vld [vmem:[%s0 + $0x58] sm:$0xff]
    %v56 = vld [vmem:[%s0 + $0x60] sm:$0xff]
    %v57 = vld [vmem:[%s0 + $0x68] sm:$0xff]
    %v58 = vld [vmem:[%s0 + $0x70] sm:$0xff]
    %v59 = vld [vmem:[%s0 + $0x78] sm:$0xff]
    %v60 = vld [vmem:[%s1] sm:$0xff]
    %v61 = vld [vmem:[%s1 + $0x8] sm:$0xff]
    %v62 = vld [vmem:[%s1 + $0x10] sm:$0xff]
    %v63 = vld [vmem:[%s1 + $0x18] sm:$0xff]
    %v64 = vld [vmem:[%s1 + $0x20] sm:$0xff]
    %v65 = vld [vmem:[%s1 + $0x28] sm:$0xff]
    %v66 = vld [vmem:[%s1 + $0x30] sm:$0xff]
    %v67 = vld [vmem:[%s1 + $0x38] sm:$0xff]
    %v68 = vld [vmem:[%s1 + $0x40] sm:$0xff]
    %v69 = vld [vmem:[%s1 + $0x48] sm:$0xff]
    %v70 = vld [vmem:[%s1 + $0x50] sm:$0xff]
    %v71 = vld [vmem:[%s1 + $0x58] sm:$0xff]
    %v72 = vld [vmem:[%s1 + $0x60] sm:$0xff]
    %v73 = vld [vmem:[%s1 + $0x68] sm:$0xff]
    %v74 = vld [vmem:[%s1 + $0x70] sm:$0xff]
    %v75 = vld [vmem:[%s1 + $0x78] sm:$0xff]
    %v76 = vpack.c.bf16 %v45, %v44
    %v77 = vpack.c.bf16 %v47, %v46
    %v78 = vpack.c.bf16 %v49, %v48
    %v79 = vpack.c.bf16 %v51, %v50
    %v80 = vpack.c.bf16 %v53, %v52
    %v81 = vpack.c.bf16 %v55, %v54
    %v82 = vpack.c.bf16 %v57, %v56
    %v83 = vpack.c.bf16 %v59, %v58
    %v84 = vld [vmem:[%s2] sm:$0xf]
    %v85 = vld [vmem:[%s2 + $0x4] sm:$0xf]
    %v86 = vlaneseq
    %v87 = vshrl.u32 %v86, 7
    %v88 = vsub.s32 0, %v87
    %v89 = vrot.slane %v43, %v88
    %v92 = vunpack.c.l.b16 %v84
    %v93 = vunpack.c.l.b16 %v85
    %v94 = vpack.c.b16 %v93, %v92
    %vm96 = vcmask 130048
    %v98 = vsel %vm96, %v76, 0
    %v101 = vsel %vm96, %v77, 0
    %v104 = vsel %vm96, %v78, 0
    %v107 = vsel %vm96, %v79, 0
    %v110 = vsel %vm96, %v80, 0
    %v113 = vsel %vm96, %v81, 0
    %v116 = vsel %vm96, %v82, 0
    %v119 = vsel %vm96, %v83, 0
    %121 = vmatprep.subr.bf16.mxu0 0
    %122 = vmatpush1.bf16.msra.mxu0 %v94
    %123 = vmatprep.subr.bf16.mxu0 0
    %124 = vmatpush1.bf16.msra.mxu0 0
    %125 = vmatprep.subr.bf16.mxu0 0
    %126 = vmatpush1.bf16.msra.mxu0 0
    %127 = vmatprep.subr.bf16.mxu0 0
    %128 = vmatpush1.bf16.msra.mxu0 0
    %129 = vmatprep.subr.bf16.mxu0 0
    %130 = vmatpush1.bf16.msra.mxu0 0
    %131 = vmatprep.subr.bf16.mxu0 0
    %132 = vmatpush1.bf16.msra.mxu0 0
    %133 = vmatprep.subr.bf16.mxu0 0
    %134 = vmatpush1.bf16.msra.mxu0 0
    %135 = vmatprep.subr.bf16.mxu0 0
    %136 = vmatpush1.bf16.msra.mxu0 0
    %137 = vmatprep.subr.bf16.mxu0 0
    %138 = vmatpush1.bf16.msra.mxu0 0
    %139 = vmatprep.subr.bf16.mxu0 0
    %140 = vmatpush1.bf16.msra.mxu0 0
    %141 = vmatprep.subr.bf16.mxu0 0
    %142 = vmatpush1.bf16.msra.mxu0 0
    %143 = vmatprep.subr.bf16.mxu0 0
    %144 = vmatpush1.bf16.msra.mxu0 0
    %145 = vmatprep.subr.bf16.mxu0 0
    %146 = vmatpush1.bf16.msra.mxu0 0
    %147 = vmatprep.subr.bf16.mxu0 0
    %148 = vmatpush1.bf16.msra.mxu0 0
    %149 = vmatprep.subr.bf16.mxu0 0
    %150 = vmatpush1.bf16.msra.mxu0 0
    %151 = vmatprep.subr.bf16.mxu0 0
    %152 = vmatpush1.bf16.msra.mxu0 0
    %153 = vmatprep.mubr.bf16.mxu0 0
    %154 = vmatmul.mubr.bf16.gmra.mrb[0].mxu0 %v98
    %v155 = vpop.f32.mrb[0].mxu0
    %v156 = vadd.f32 %v89, %v155
    %v157 = vpop.f32.mrb[0].mxu0
    %v158 = vpop.f32.mrb[0].mxu0
    %v159 = vadd.f32 %v89, %v158
    %v160 = vpop.f32.mrb[0].mxu0
    %161 = vmatprep.mubr.bf16.mxu0 0
    %162 = vmatmul.mubr.bf16.gmra.mrb[0].mxu0 %v101
    %v163 = vpop.f32.mrb[0].mxu0
    %v164 = vadd.f32 %v89, %v163
    %v165 = vpop.f32.mrb[0].mxu0
    %v166 = vpop.f32.mrb[0].mxu0
    %v167 = vadd.f32 %v89, %v166
    %v168 = vpop.f32.mrb[0].mxu0
    %169 = vmatprep.mubr.bf16.mxu0 0
    %170 = vmatmul.mubr.bf16.gmra.mrb[0].mxu0 %v104
    %v171 = vpop.f32.mrb[0].mxu0
    %v172 = vadd.f32 %v89, %v171
    %v173 = vpop.f32.mrb[0].mxu0
    %v174 = vpop.f32.mrb[0].mxu0
    %v175 = vadd.f32 %v89, %v174
    %v176 = vpop.f32.mrb[0].mxu0
    %177 = vmatprep.mubr.bf16.mxu0 0
    %178 = vmatmul.mubr.bf16.gmra.mrb[0].mxu0 %v107
    %v179 = vpop.f32.mrb[0].mxu0
    %v180 = vadd.f32 %v89, %v179
    %v181 = vpop.f32.mrb[0].mxu0
    %v182 = vpop.f32.mrb[0].mxu0
    %v183 = vadd.f32 %v89, %v182
    %v184 = vpop.f32.mrb[0].mxu0
    %185 = vmatprep.mubr.bf16.mxu0 0
    %186 = vmatmul.mubr.bf16.gmra.mrb[0].mxu0 %v110
    %v187 = vpop.f32.mrb[0].mxu0
    %v188 = vadd.f32 %v89, %v187
    %v189 = vpop.f32.mrb[0].mxu0
    %v190 = vpop.f32.mrb[0].mxu0
    %v191 = vadd.f32 %v89, %v190
    %v192 = vpop.f32.mrb[0].mxu0
    %193 = vmatprep.mubr.bf16.mxu0 0
    %194 = vmatmul.mubr.bf16.gmra.mrb[0].mxu0 %v113
    %v195 = vpop.f32.mrb[0].mxu0
    %v196 = vadd.f32 %v89, %v195
    %v197 = vpop.f32.mrb[0].mxu0
    %v198 = vpop.f32.mrb[0].mxu0
    %v199 = vadd.f32 %v89, %v198
    %v200 = vpop.f32.mrb[0].mxu0
    %201 = vmatprep.mubr.bf16.mxu0 0
    %202 = vmatmul.mubr.bf16.gmra.mrb[0].mxu0 %v116
    %v203 = vpop.f32.mrb[0].mxu0
    %v204 = vadd.f32 %v89, %v203
    %v205 = vpop.f32.mrb[0].mxu0
    %v206 = vpop.f32.mrb[0].mxu0
    %v207 = vadd.f32 %v89, %v206
    %v208 = vpop.f32.mrb[0].mxu0
    %209 = vmatprep.mubr.bf16.mxu0 0
    %210 = vmatmul.mubr.bf16.gmra.mrb[0].mxu0 %v119
    %v211 = vpop.f32.mrb[0].mxu0
    %v212 = vadd.f32 %v89, %v211
    %v213 = vpop.f32.mrb[0].mxu0
    %v214 = vpop.f32.mrb[0].mxu0
    %v215 = vadd.f32 %v89, %v214
    %v216 = vpop.f32.mrb[0].mxu0
    %217 = vdwg.mxu0
    %v218 = vpack.c.bf16 %v159, %v156
    %v219 = vpack.c.bf16 %v167, %v164
    %v220 = vpack.c.bf16 %v175, %v172
    %v221 = vpack.c.bf16 %v183, %v180
    %v222 = vpack.c.bf16 %v191, %v188
    %v223 = vpack.c.bf16 %v199, %v196
    %v224 = vpack.c.bf16 %v207, %v204
    %v225 = vpack.c.bf16 %v215, %v212
    %v226 = vld [vmem:[%s3] sm:$0xf]
    %v227 = vld [vmem:[%s3 + $0x4] sm:$0xf]
    %v228 = vld [vmem:[%s3 + $0x8] sm:$0xf]
    %v229 = vld [vmem:[%s3 + $0xc] sm:$0xf]
    %v230 = vld [vmem:[%s4] sm:$0x1]
    %v232 = vlaneseq
    %v233 = vshrl.u32 %v232, 7
    %v234 = vsub.s32 0, %v233
    %v235 = vrot.slane %v230, %v234
    %v241 = vunpack.c.l.b16 %v226
    %v242 = vunpack.c.l.b16 %v227
    %v243 = vunpack.c.l.b16 %v228
    %v244 = vunpack.c.l.b16 %v229
    %v245 = vpack.c.b16 %v242, %v241
    %v246 = vpack.c.b16 %v244, %v243
    %vm249 = vcmask 261120
    %v251 = vsel %vm249, %v218, 0
    %v254 = vsel %vm249, %v219, 0
    %v257 = vsel %vm249, %v220, 0
    %v260 = vsel %vm249, %v221, 0
    %v263 = vsel %vm249, %v222, 0
    %v266 = vsel %vm249, %v223, 0
    %v269 = vsel %vm249, %v224, 0
    %v272 = vsel %vm249, %v225, 0
    %274 = vmatprep.subr.bf16.mxu0 0
    %275 = vmatpush1.bf16.msra.mxu0 %v245
    %276 = vmatprep.subr.bf16.mxu0 0
    %277 = vmatpush1.bf16.msra.mxu0 %v246
    %278 = vmatprep.subr.bf16.mxu0 0
    %279 = vmatpush1.bf16.msra.mxu0 0
    %280 = vmatprep.subr.bf16.mxu0 0
    %281 = vmatpush1.bf16.msra.mxu0 0
    %282 = vmatprep.subr.bf16.mxu0 0
    %283 = vmatpush1.bf16.msra.mxu0 0
    %284 = vmatprep.subr.bf16.mxu0 0
    %285 = vmatpush1.bf16.msra.mxu0 0
    %286 = vmatprep.subr.bf16.mxu0 0
    %287 = vmatpush1.bf16.msra.mxu0 0
    %288 = vmatprep.subr.bf16.mxu0 0
    %289 = vmatpush1.bf16.msra.mxu0 0
    %290 = vmatprep.subr.bf16.mxu0 0
    %291 = vmatpush1.bf16.msra.mxu0 0
    %292 = vmatprep.subr.bf16.mxu0 0
    %293 = vmatpush1.bf16.msra.mxu0 0
    %294 = vmatprep.subr.bf16.mxu0 0
    %295 = vmatpush1.bf16.msra.mxu0 0
    %296 = vmatprep.subr.bf16.mxu0 0
    %297 = vmatpush1.bf16.msra.mxu0 0
    %298 = vmatprep.subr.bf16.mxu0 0
    %299 = vmatpush1.bf16.msra.mxu0 0
    %300 = vmatprep.subr.bf16.mxu0 0
    %301 = vmatpush1.bf16.msra.mxu0 0
    %302 = vmatprep.subr.bf16.mxu0 0
    %303 = vmatpush1.bf16.msra.mxu0 0
    %304 = vmatprep.subr.bf16.mxu0 0
    %305 = vmatpush1.bf16.msra.mxu0 0
    %306 = vmatprep.mubr.bf16.mxu0 0
    %307 = vmatmul.mubr.bf16.gmra.mrb[0].mxu0 %v251
    %v308 = vpop.f32.mrb[0].mxu0
    %v309 = vadd.f32 %v235, %v308
    %v310 = vpop.f32.mrb[0].mxu0
    %v311 = vpop.f32.mrb[0].mxu0
    %v312 = vadd.f32 %v235, %v311
    %v313 = vpop.f32.mrb[0].mxu0
    %314 = vmatprep.mubr.bf16.mxu0 0
    %315 = vmatmul.mubr.bf16.gmra.mrb[0].mxu0 %v254
    %v316 = vpop.f32.mrb[0].mxu0
    %v317 = vadd.f32 %v235, %v316
    %v318 = vpop.f32.mrb[0].mxu0
    %v319 = vpop.f32.mrb[0].mxu0
    %v320 = vadd.f32 %v235, %v319
    %v321 = vpop.f32.mrb[0].mxu0
    %322 = vmatprep.mubr.bf16.mxu0 0
    %323 = vmatmul.mubr.bf16.gmra.mrb[0].mxu0 %v257
    %v324 = vpop.f32.mrb[0].mxu0
    %v325 = vadd.f32 %v235, %v324
    %v326 = vpop.f32.mrb[0].mxu0
    %v327 = vpop.f32.mrb[0].mxu0
    %v328 = vadd.f32 %v235, %v327
    %v329 = vpop.f32.mrb[0].mxu0
    %330 = vmatprep.mubr.bf16.mxu0 0
    %331 = vmatmul.mubr.bf16.gmra.mrb[0].mxu0 %v260
    %v332 = vpop.f32.mrb[0].mxu0
    %v333 = vadd.f32 %v235, %v332
    %v334 = vpop.f32.mrb[0].mxu0
    %v335 = vpop.f32.mrb[0].mxu0
    %v336 = vadd.f32 %v235, %v335
    %v337 = vpop.f32.mrb[0].mxu0
    %338 = vmatprep.mubr.bf16.mxu0 0
    %339 = vmatmul.mubr.bf16.gmra.mrb[0].mxu0 %v263
    %v340 = vpop.f32.mrb[0].mxu0
    %v341 = vadd.f32 %v235, %v340
    %v342 = vpop.f32.mrb[0].mxu0
    %v343 = vpop.f32.mrb[0].mxu0
    %v344 = vadd.f32 %v235, %v343
    %v345 = vpop.f32.mrb[0].mxu0
    %346 = vmatprep.mubr.bf16.mxu0 0
    %347 = vmatmul.mubr.bf16.gmra.mrb[0].mxu0 %v266
    %v348 = vpop.f32.mrb[0].mxu0
    %v349 = vadd.f32 %v235, %v348
    %v350 = vpop.f32.mrb[0].mxu0
    %v351 = vpop.f32.mrb[0].mxu0
    %v352 = vadd.f32 %v235, %v351
    %v353 = vpop.f32.mrb[0].mxu0
    %354 = vmatprep.mubr.bf16.mxu0 0
    %355 = vmatmul.mubr.bf16.gmra.mrb[0].mxu0 %v269
    %v356 = vpop.f32.mrb[0].mxu0
    %v357 = vadd.f32 %v235, %v356
    %v358 = vpop.f32.mrb[0].mxu0
    %v359 = vpop.f32.mrb[0].mxu0
    %v360 = vadd.f32 %v235, %v359
    %v361 = vpop.f32.mrb[0].mxu0
    %362 = vmatprep.mubr.bf16.mxu0 0
    %363 = vmatmul.mubr.bf16.gmra.mrb[0].mxu0 %v272
    %v364 = vpop.f32.mrb[0].mxu0
    %v365 = vadd.f32 %v235, %v364
    %v366 = vpop.f32.mrb[0].mxu0
    %v367 = vpop.f32.mrb[0].mxu0
    %v368 = vadd.f32 %v235, %v367
    %v369 = vpop.f32.mrb[0].mxu0
    %370 = vdwg.mxu0
    %v371 = vmul.f32 %v309, 0.35355338
    %v372 = vmul.f32 %v312, 0.35355338
    %v373 = vmul.f32 %v317, 0.35355338
    %v374 = vmul.f32 %v320, 0.35355338
    %v375 = vmul.f32 %v325, 0.35355338
    %v376 = vmul.f32 %v328, 0.35355338
    %v377 = vmul.f32 %v333, 0.35355338
    %v378 = vmul.f32 %v336, 0.35355338
    %v379 = vmul.f32 %v341, 0.35355338
    %v380 = vmul.f32 %v344, 0.35355338
    %v381 = vmul.f32 %v349, 0.35355338
    %v382 = vmul.f32 %v352, 0.35355338
    %v383 = vmul.f32 %v357, 0.35355338
    %v384 = vmul.f32 %v360, 0.35355338
    %v385 = vmul.f32 %v365, 0.35355338
    %v386 = vmul.f32 %v368, 0.35355338
    %v387 = vpack.c.bf16 %v371, %v371
    %v388 = vpack.c.bf16 %v372, %v372
    %v389 = vpack.c.bf16 %v373, %v373
    %v390 = vpack.c.bf16 %v374, %v374
    %v391 = vpack.c.bf16 %v375, %v375
    %v392 = vpack.c.bf16 %v376, %v376
    %v393 = vpack.c.bf16 %v377, %v377
    %v394 = vpack.c.bf16 %v378, %v378
    %v395 = vpack.c.bf16 %v379, %v379
    %v396 = vpack.c.bf16 %v380, %v380
    %v397 = vpack.c.bf16 %v381, %v381
    %v398 = vpack.c.bf16 %v382, %v382
    %v399 = vpack.c.bf16 %v383, %v383
    %v400 = vpack.c.bf16 %v384, %v384
    %v401 = vpack.c.bf16 %v385, %v385
    %v402 = vpack.c.bf16 %v386, %v386
    %v403 = vpack.c.bf16 %v309, %v309
    %v404 = vpack.c.bf16 %v312, %v312
    %v405 = vpack.c.bf16 %v317, %v317
    %v406 = vpack.c.bf16 %v320, %v320
    %v407 = vpack.c.bf16 %v325, %v325
    %v408 = vpack.c.bf16 %v328, %v328
    %v409 = vpack.c.bf16 %v333, %v333
    %v410 = vpack.c.bf16 %v336, %v336
    %v411 = vpack.c.bf16 %v341, %v341
    %v412 = vpack.c.bf16 %v344, %v344
    %v413 = vpack.c.bf16 %v349, %v349
    %v414 = vpack.c.bf16 %v352, %v352
    %v415 = vpack.c.bf16 %v357, %v357
    %v416 = vpack.c.bf16 %v360, %v360
    %v417 = vpack.c.bf16 %v365, %v365
    %v418 = vpack.c.bf16 %v368, %v368
    %420 = vrot.lane.b32.xlu0 %v403, 96
    %v421 = vpop.permute.xlu0 %420
    %vm422 = vcmask 64512
    %v424 = vsel %vm422, %v387, 0
    %v427 = vsel %vm422, %v421, 0
    %429 = vmatprep.subr.bf16.mxu0 0
    %430 = vmatpush1.bf16.xpose.msra.mxu0 %v427
    %431 = vmatprep.subr.bf16.mxu0 0
    %432 = vmatpush1.bf16.xpose.msra.mxu0 0
    %433 = vmatprep.subr.bf16.mxu0 0
    %434 = vmatpush1.bf16.xpose.msra.mxu0 0
    %435 = vmatprep.subr.bf16.mxu0 0
    %436 = vmatpush1.bf16.xpose.msra.mxu0 0
    %437 = vmatprep.subr.bf16.mxu0 0
    %438 = vmatpush1.bf16.xpose.msra.mxu0 0
    %439 = vmatprep.subr.bf16.mxu0 0
    %440 = vmatpush1.bf16.xpose.msra.mxu0 0
    %441 = vmatprep.subr.bf16.mxu0 0
    %442 = vmatpush1.bf16.xpose.msra.mxu0 0
    %443 = vmatprep.subr.bf16.mxu0 0
    %444 = vmatpush1.bf16.xpose.msra.mxu0 0
    %445 = vmatprep.subr.bf16.mxu0 0
    %446 = vmatpush1.bf16.xpose.msra.mxu0 0
    %447 = vmatprep.subr.bf16.mxu0 0
    %448 = vmatpush1.bf16.xpose.msra.mxu0 0
    %449 = vmatprep.subr.bf16.mxu0 0
    %450 = vmatpush1.bf16.xpose.msra.mxu0 0
    %451 = vmatprep.subr.bf16.mxu0 0
    %452 = vmatpush1.bf16.xpose.msra.mxu0 0
    %453 = vmatprep.subr.bf16.mxu0 0
    %454 = vmatpush1.bf16.xpose.msra.mxu0 0
    %455 = vmatprep.subr.bf16.mxu0 0
    %456 = vmatpush1.bf16.xpose.msra.mxu0 0
    %457 = vmatprep.subr.bf16.mxu0 0
    %458 = vmatpush1.bf16.xpose.msra.mxu0 0
    %459 = vmatprep.subr.bf16.mxu0 0
    %460 = vmatpush1.bf16.xpose.msra.mxu0 0
    %461 = vmatprep.mubr.bf16.mxu0 0
    %462 = vmatmul.mubr.bf16.gmra.mrb[0].mxu0 %v424
    %v463 = vpop.f32.mrb[0].mxu0
    %v464 = vadd.f32 %v60, %v463
    %v465 = vpop.f32.mrb[0].mxu0
    %v466 = vpop.f32.mrb[0].mxu0
    %v467 = vpop.f32.mrb[0].mxu0
    %468 = vdwg.mxu0
    %470 = vrot.lane.b32.xlu0 %v404, 96
    %v471 = vpop.permute.xlu0 %470
    %v473 = vsel %vm422, %v388, 0
    %v476 = vsel %vm422, %v471, 0
    %478 = vmatprep.subr.bf16.mxu0 0
    %479 = vmatpush1.bf16.xpose.msra.mxu0 %v476
    %480 = vmatprep.subr.bf16.mxu0 0
    %481 = vmatpush1.bf16.xpose.msra.mxu0 0
    %482 = vmatprep.subr.bf16.mxu0 0
    %483 = vmatpush1.bf16.xpose.msra.mxu0 0
    %484 = vmatprep.subr.bf16.mxu0 0
    %485 = vmatpush1.bf16.xpose.msra.mxu0 0
    %486 = vmatprep.subr.bf16.mxu0 0
    %487 = vmatpush1.bf16.xpose.msra.mxu0 0
    %488 = vmatprep.subr.bf16.mxu0 0
    %489 = vmatpush1.bf16.xpose.msra.mxu0 0
    %490 = vmatprep.subr.bf16.mxu0 0
    %491 = vmatpush1.bf16.xpose.msra.mxu0 0
    %492 = vmatprep.subr.bf16.mxu0 0
    %493 = vmatpush1.bf16.xpose.msra.mxu0 0
    %494 = vmatprep.subr.bf16.mxu0 0
    %495 = vmatpush1.bf16.xpose.msra.mxu0 0
    %496 = vmatprep.subr.bf16.mxu0 0
    %497 = vmatpush1.bf16.xpose.msra.mxu0 0
    %498 = vmatprep.subr.bf16.mxu0 0
    %499 = vmatpush1.bf16.xpose.msra.mxu0 0
    %500 = vmatprep.subr.bf16.mxu0 0
    %501 = vmatpush1.bf16.xpose.msra.mxu0 0
    %502 = vmatprep.subr.bf16.mxu0 0
    %503 = vmatpush1.bf16.xpose.msra.mxu0 0
    %504 = vmatprep.subr.bf16.mxu0 0
    %505 = vmatpush1.bf16.xpose.msra.mxu0 0
    %506 = vmatprep.subr.bf16.mxu0 0
    %507 = vmatpush1.bf16.xpose.msra.mxu0 0
    %508 = vmatprep.subr.bf16.mxu0 0
    %509 = vmatpush1.bf16.xpose.msra.mxu0 0
    %510 = vmatprep.mubr.bf16.mxu0 0
    %511 = vmatmul.mubr.bf16.gmra.mrb[0].mxu0 %v473
    %v512 = vpop.f32.mrb[0].mxu0
    %v513 = vadd.f32 %v61, %v512
    %v514 = vpop.f32.mrb[0].mxu0
    %v515 = vpop.f32.mrb[0].mxu0
    %v516 = vpop.f32.mrb[0].mxu0
    %517 = vdwg.mxu0
    %519 = vrot.lane.b32.xlu0 %v405, 96
    %v520 = vpop.permute.xlu0 %519
    %v522 = vsel %vm422, %v389, 0
    %v525 = vsel %vm422, %v520, 0
    %527 = vmatprep.subr.bf16.mxu0 0
    %528 = vmatpush1.bf16.xpose.msra.mxu0 %v525
    %529 = vmatprep.subr.bf16.mxu0 0
    %530 = vmatpush1.bf16.xpose.msra.mxu0 0
    %531 = vmatprep.subr.bf16.mxu0 0
    %532 = vmatpush1.bf16.xpose.msra.mxu0 0
    %533 = vmatprep.subr.bf16.mxu0 0
    %534 = vmatpush1.bf16.xpose.msra.mxu0 0
    %535 = vmatprep.subr.bf16.mxu0 0
    %536 = vmatpush1.bf16.xpose.msra.mxu0 0
    %537 = vmatprep.subr.bf16.mxu0 0
    %538 = vmatpush1.bf16.xpose.msra.mxu0 0
    %539 = vmatprep.subr.bf16.mxu0 0
    %540 = vmatpush1.bf16.xpose.msra.mxu0 0
    %541 = vmatprep.subr.bf16.mxu0 0
    %542 = vmatpush1.bf16.xpose.msra.mxu0 0
    %543 = vmatprep.subr.bf16.mxu0 0
    %544 = vmatpush1.bf16.xpose.msra.mxu0 0
    %545 = vmatprep.subr.bf16.mxu0 0
    %546 = vmatpush1.bf16.xpose.msra.mxu0 0
    %547 = vmatprep.subr.bf16.mxu0 0
    %548 = vmatpush1.bf16.xpose.msra.mxu0 0
    %549 = vmatprep.subr.bf16.mxu0 0
    %550 = vmatpush1.bf16.xpose.msra.mxu0 0
    %551 = vmatprep.subr.bf16.mxu0 0
    %552 = vmatpush1.bf16.xpose.msra.mxu0 0
    %553 = vmatprep.subr.bf16.mxu0 0
    %554 = vmatpush1.bf16.xpose.msra.mxu0 0
    %555 = vmatprep.subr.bf16.mxu0 0
    %556 = vmatpush1.bf16.xpose.msra.mxu0 0
    %557 = vmatprep.subr.bf16.mxu0 0
    %558 = vmatpush1.bf16.xpose.msra.mxu0 0
    %559 = vmatprep.mubr.bf16.mxu0 0
    %560 = vmatmul.mubr.bf16.gmra.mrb[0].mxu0 %v522
    %v561 = vpop.f32.mrb[0].mxu0
    %v562 = vadd.f32 %v62, %v561
    %v563 = vpop.f32.mrb[0].mxu0
    %v564 = vpop.f32.mrb[0].mxu0
    %v565 = vpop.f32.mrb[0].mxu0
    %566 = vdwg.mxu0
    %568 = vrot.lane.b32.xlu0 %v406, 96
    %v569 = vpop.permute.xlu0 %568
    %v571 = vsel %vm422, %v390, 0
    %v574 = vsel %vm422, %v569, 0
    %576 = vmatprep.subr.bf16.mxu0 0
    %577 = vmatpush1.bf16.xpose.msra.mxu0 %v574
    %578 = vmatprep.subr.bf16.mxu0 0
    %579 = vmatpush1.bf16.xpose.msra.mxu0 0
    %580 = vmatprep.subr.bf16.mxu0 0
    %581 = vmatpush1.bf16.xpose.msra.mxu0 0
    %582 = vmatprep.subr.bf16.mxu0 0
    %583 = vmatpush1.bf16.xpose.msra.mxu0 0
    %584 = vmatprep.subr.bf16.mxu0 0
    %585 = vmatpush1.bf16.xpose.msra.mxu0 0
    %586 = vmatprep.subr.bf16.mxu0 0
    %587 = vmatpush1.bf16.xpose.msra.mxu0 0
    %588 = vmatprep.subr.bf16.mxu0 0
    %589 = vmatpush1.bf16.xpose.msra.mxu0 0
    %590 = vmatprep.subr.bf16.mxu0 0
    %591 = vmatpush1.bf16.xpose.msra.mxu0 0
    %592 = vmatprep.subr.bf16.mxu0 0
    %593 = vmatpush1.bf16.xpose.msra.mxu0 0
    %594 = vmatprep.subr.bf16.mxu0 0
    %595 = vmatpush1.bf16.xpose.msra.mxu0 0
    %596 = vmatprep.subr.bf16.mxu0 0
    %597 = vmatpush1.bf16.xpose.msra.mxu0 0
    %598 = vmatprep.subr.bf16.mxu0 0
    %599 = vmatpush1.bf16.xpose.msra.mxu0 0
    %600 = vmatprep.subr.bf16.mxu0 0
    %601 = vmatpush1.bf16.xpose.msra.mxu0 0
    %602 = vmatprep.subr.bf16.mxu0 0
    %603 = vmatpush1.bf16.xpose.msra.mxu0 0
    %604 = vmatprep.subr.bf16.mxu0 0
    %605 = vmatpush1.bf16.xpose.msra.mxu0 0
    %606 = vmatprep.subr.bf16.mxu0 0
    %607 = vmatpush1.bf16.xpose.msra.mxu0 0
    %608 = vmatprep.mubr.bf16.mxu0 0
    %609 = vmatmul.mubr.bf16.gmra.mrb[0].mxu0 %v571
    %v610 = vpop.f32.mrb[0].mxu0
    %v611 = vadd.f32 %v63, %v610
    %v612 = vpop.f32.mrb[0].mxu0
    %v613 = vpop.f32.mrb[0].mxu0
    %v614 = vpop.f32.mrb[0].mxu0
    %615 = vdwg.mxu0
    %617 = vrot.lane.b32.xlu0 %v407, 96
    %v618 = vpop.permute.xlu0 %617
    %v620 = vsel %vm422, %v391, 0
    %v623 = vsel %vm422, %v618, 0
    %625 = vmatprep.subr.bf16.mxu0 0
    %626 = vmatpush1.bf16.xpose.msra.mxu0 %v623
    %627 = vmatprep.subr.bf16.mxu0 0
    %628 = vmatpush1.bf16.xpose.msra.mxu0 0
    %629 = vmatprep.subr.bf16.mxu0 0
    %630 = vmatpush1.bf16.xpose.msra.mxu0 0
    %631 = vmatprep.subr.bf16.mxu0 0
    %632 = vmatpush1.bf16.xpose.msra.mxu0 0
    %633 = vmatprep.subr.bf16.mxu0 0
    %634 = vmatpush1.bf16.xpose.msra.mxu0 0
    %635 = vmatprep.subr.bf16.mxu0 0
    %636 = vmatpush1.bf16.xpose.msra.mxu0 0
    %637 = vmatprep.subr.bf16.mxu0 0
    %638 = vmatpush1.bf16.xpose.msra.mxu0 0
    %639 = vmatprep.subr.bf16.mxu0 0
    %640 = vmatpush1.bf16.xpose.msra.mxu0 0
    %641 = vmatprep.subr.bf16.mxu0 0
    %642 = vmatpush1.bf16.xpose.msra.mxu0 0
    %643 = vmatprep.subr.bf16.mxu0 0
    %644 = vmatpush1.bf16.xpose.msra.mxu0 0
    %645 = vmatprep.subr.bf16.mxu0 0
    %646 = vmatpush1.bf16.xpose.msra.mxu0 0
    %647 = vmatprep.subr.bf16.mxu0 0
    %648 = vmatpush1.bf16.xpose.msra.mxu0 0
    %649 = vmatprep.subr.bf16.mxu0 0
    %650 = vmatpush1.bf16.xpose.msra.mxu0 0
    %651 = vmatprep.subr.bf16.mxu0 0
    %652 = vmatpush1.bf16.xpose.msra.mxu0 0
    %653 = vmatprep.subr.bf16.mxu0 0
    %654 = vmatpush1.bf16.xpose.msra.mxu0 0
    %655 = vmatprep.subr.bf16.mxu0 0
    %656 = vmatpush1.bf16.xpose.msra.mxu0 0
    %657 = vmatprep.mubr.bf16.mxu0 0
    %658 = vmatmul.mubr.bf16.gmra.mrb[0].mxu0 %v620
    %v659 = vpop.f32.mrb[0].mxu0
    %v660 = vadd.f32 %v64, %v659
    %v661 = vpop.f32.mrb[0].mxu0
    %v662 = vpop.f32.mrb[0].mxu0
    %v663 = vpop.f32.mrb[0].mxu0
    %664 = vdwg.mxu0
    %666 = vrot.lane.b32.xlu0 %v408, 96
    %v667 = vpop.permute.xlu0 %666
    %v669 = vsel %vm422, %v392, 0
    %v672 = vsel %vm422, %v667, 0
    %674 = vmatprep.subr.bf16.mxu0 0
    %675 = vmatpush1.bf16.xpose.msra.mxu0 %v672
    %676 = vmatprep.subr.bf16.mxu0 0
    %677 = vmatpush1.bf16.xpose.msra.mxu0 0
    %678 = vmatprep.subr.bf16.mxu0 0
    %679 = vmatpush1.bf16.xpose.msra.mxu0 0
    %680 = vmatprep.subr.bf16.mxu0 0
    %681 = vmatpush1.bf16.xpose.msra.mxu0 0
    %682 = vmatprep.subr.bf16.mxu0 0
    %683 = vmatpush1.bf16.xpose.msra.mxu0 0
    %684 = vmatprep.subr.bf16.mxu0 0
    %685 = vmatpush1.bf16.xpose.msra.mxu0 0
    %686 = vmatprep.subr.bf16.mxu0 0
    %687 = vmatpush1.bf16.xpose.msra.mxu0 0
    %688 = vmatprep.subr.bf16.mxu0 0
    %689 = vmatpush1.bf16.xpose.msra.mxu0 0
    %690 = vmatprep.subr.bf16.mxu0 0
    %691 = vmatpush1.bf16.xpose.msra.mxu0 0
    %692 = vmatprep.subr.bf16.mxu0 0
    %693 = vmatpush1.bf16.xpose.msra.mxu0 0
    %694 = vmatprep.subr.bf16.mxu0 0
    %695 = vmatpush1.bf16.xpose.msra.mxu0 0
    %696 = vmatprep.subr.bf16.mxu0 0
    %697 = vmatpush1.bf16.xpose.msra.mxu0 0
    %698 = vmatprep.subr.bf16.mxu0 0
    %699 = vmatpush1.bf16.xpose.msra.mxu0 0
    %700 = vmatprep.subr.bf16.mxu0 0
    %701 = vmatpush1.bf16.xpose.msra.mxu0 0
    %702 = vmatprep.subr.bf16.mxu0 0
    %703 = vmatpush1.bf16.xpose.msra.mxu0 0
    %704 = vmatprep.subr.bf16.mxu0 0
    %705 = vmatpush1.bf16.xpose.msra.mxu0 0
    %706 = vmatprep.mubr.bf16.mxu0 0
    %707 = vmatmul.mubr.bf16.gmra.mrb[0].mxu0 %v669
    %v708 = vpop.f32.mrb[0].mxu0
    %v709 = vadd.f32 %v65, %v708
    %v710 = vpop.f32.mrb[0].mxu0
    %v711 = vpop.f32.mrb[0].mxu0
    %v712 = vpop.f32.mrb[0].mxu0
    %713 = vdwg.mxu0
    %715 = vrot.lane.b32.xlu0 %v409, 96
    %v716 = vpop.permute.xlu0 %715
    %v718 = vsel %vm422, %v393, 0
    %v721 = vsel %vm422, %v716, 0
    %723 = vmatprep.subr.bf16.mxu0 0
    %724 = vmatpush1.bf16.xpose.msra.mxu0 %v721
    %725 = vmatprep.subr.bf16.mxu0 0
    %726 = vmatpush1.bf16.xpose.msra.mxu0 0
    %727 = vmatprep.subr.bf16.mxu0 0
    %728 = vmatpush1.bf16.xpose.msra.mxu0 0
    %729 = vmatprep.subr.bf16.mxu0 0
    %730 = vmatpush1.bf16.xpose.msra.mxu0 0
    %731 = vmatprep.subr.bf16.mxu0 0
    %732 = vmatpush1.bf16.xpose.msra.mxu0 0
    %733 = vmatprep.subr.bf16.mxu0 0
    %734 = vmatpush1.bf16.xpose.msra.mxu0 0
    %735 = vmatprep.subr.bf16.mxu0 0
    %736 = vmatpush1.bf16.xpose.msra.mxu0 0
    %737 = vmatprep.subr.bf16.mxu0 0
    %738 = vmatpush1.bf16.xpose.msra.mxu0 0
    %739 = vmatprep.subr.bf16.mxu0 0
    %740 = vmatpush1.bf16.xpose.msra.mxu0 0
    %741 = vmatprep.subr.bf16.mxu0 0
    %742 = vmatpush1.bf16.xpose.msra.mxu0 0
    %743 = vmatprep.subr.bf16.mxu0 0
    %744 = vmatpush1.bf16.xpose.msra.mxu0 0
    %745 = vmatprep.subr.bf16.mxu0 0
    %746 = vmatpush1.bf16.xpose.msra.mxu0 0
    %747 = vmatprep.subr.bf16.mxu0 0
    %748 = vmatpush1.bf16.xpose.msra.mxu0 0
    %749 = vmatprep.subr.bf16.mxu0 0
    %750 = vmatpush1.bf16.xpose.msra.mxu0 0
    %751 = vmatprep.subr.bf16.mxu0 0
    %752 = vmatpush1.bf16.xpose.msra.mxu0 0
    %753 = vmatprep.subr.bf16.mxu0 0
    %754 = vmatpush1.bf16.xpose.msra.mxu0 0
    %755 = vmatprep.mubr.bf16.mxu0 0
    %756 = vmatmul.mubr.bf16.gmra.mrb[0].mxu0 %v718
    %v757 = vpop.f32.mrb[0].mxu0
    %v758 = vadd.f32 %v66, %v757
    %v759 = vpop.f32.mrb[0].mxu0
    %v760 = vpop.f32.mrb[0].mxu0
    %v761 = vpop.f32.mrb[0].mxu0
    %762 = vdwg.mxu0
    %764 = vrot.lane.b32.xlu0 %v410, 96
    %v765 = vpop.permute.xlu0 %764
    %v767 = vsel %vm422, %v394, 0
    %v770 = vsel %vm422, %v765, 0
    %772 = vmatprep.subr.bf16.mxu0 0
    %773 = vmatpush1.bf16.xpose.msra.mxu0 %v770
    %774 = vmatprep.subr.bf16.mxu0 0
    %775 = vmatpush1.bf16.xpose.msra.mxu0 0
    %776 = vmatprep.subr.bf16.mxu0 0
    %777 = vmatpush1.bf16.xpose.msra.mxu0 0
    %778 = vmatprep.subr.bf16.mxu0 0
    %779 = vmatpush1.bf16.xpose.msra.mxu0 0
    %780 = vmatprep.subr.bf16.mxu0 0
    %781 = vmatpush1.bf16.xpose.msra.mxu0 0
    %782 = vmatprep.subr.bf16.mxu0 0
    %783 = vmatpush1.bf16.xpose.msra.mxu0 0
    %784 = vmatprep.subr.bf16.mxu0 0
    %785 = vmatpush1.bf16.xpose.msra.mxu0 0
    %786 = vmatprep.subr.bf16.mxu0 0
    %787 = vmatpush1.bf16.xpose.msra.mxu0 0
    %788 = vmatprep.subr.bf16.mxu0 0
    %789 = vmatpush1.bf16.xpose.msra.mxu0 0
    %790 = vmatprep.subr.bf16.mxu0 0
    %791 = vmatpush1.bf16.xpose.msra.mxu0 0
    %792 = vmatprep.subr.bf16.mxu0 0
    %793 = vmatpush1.bf16.xpose.msra.mxu0 0
    %794 = vmatprep.subr.bf16.mxu0 0
    %795 = vmatpush1.bf16.xpose.msra.mxu0 0
    %796 = vmatprep.subr.bf16.mxu0 0
    %797 = vmatpush1.bf16.xpose.msra.mxu0 0
    %798 = vmatprep.subr.bf16.mxu0 0
    %799 = vmatpush1.bf16.xpose.msra.mxu0 0
    %800 = vmatprep.subr.bf16.mxu0 0
    %801 = vmatpush1.bf16.xpose.msra.mxu0 0
    %802 = vmatprep.subr.bf16.mxu0 0
    %803 = vmatpush1.bf16.xpose.msra.mxu0 0
    %804 = vmatprep.mubr.bf16.mxu0 0
    %805 = vmatmul.mubr.bf16.gmra.mrb[0].mxu0 %v767
    %v806 = vpop.f32.mrb[0].mxu0
    %v807 = vadd.f32 %v67, %v806
    %v808 = vpop.f32.mrb[0].mxu0
    %v809 = vpop.f32.mrb[0].mxu0
    %v810 = vpop.f32.mrb[0].mxu0
    %811 = vdwg.mxu0
    %813 = vrot.lane.b32.xlu0 %v411, 96
    %v814 = vpop.permute.xlu0 %813
    %v816 = vsel %vm422, %v395, 0
    %v819 = vsel %vm422, %v814, 0
    %821 = vmatprep.subr.bf16.mxu0 0
    %822 = vmatpush1.bf16.xpose.msra.mxu0 %v819
    %823 = vmatprep.subr.bf16.mxu0 0
    %824 = vmatpush1.bf16.xpose.msra.mxu0 0
    %825 = vmatprep.subr.bf16.mxu0 0
    %826 = vmatpush1.bf16.xpose.msra.mxu0 0
    %827 = vmatprep.subr.bf16.mxu0 0
    %828 = vmatpush1.bf16.xpose.msra.mxu0 0
    %829 = vmatprep.subr.bf16.mxu0 0
    %830 = vmatpush1.bf16.xpose.msra.mxu0 0
    %831 = vmatprep.subr.bf16.mxu0 0
    %832 = vmatpush1.bf16.xpose.msra.mxu0 0
    %833 = vmatprep.subr.bf16.mxu0 0
    %834 = vmatpush1.bf16.xpose.msra.mxu0 0
    %835 = vmatprep.subr.bf16.mxu0 0
    %836 = vmatpush1.bf16.xpose.msra.mxu0 0
    %837 = vmatprep.subr.bf16.mxu0 0
    %838 = vmatpush1.bf16.xpose.msra.mxu0 0
    %839 = vmatprep.subr.bf16.mxu0 0
    %840 = vmatpush1.bf16.xpose.msra.mxu0 0
    %841 = vmatprep.subr.bf16.mxu0 0
    %842 = vmatpush1.bf16.xpose.msra.mxu0 0
    %843 = vmatprep.subr.bf16.mxu0 0
    %844 = vmatpush1.bf16.xpose.msra.mxu0 0
    %845 = vmatprep.subr.bf16.mxu0 0
    %846 = vmatpush1.bf16.xpose.msra.mxu0 0
    %847 = vmatprep.subr.bf16.mxu0 0
    %848 = vmatpush1.bf16.xpose.msra.mxu0 0
    %849 = vmatprep.subr.bf16.mxu0 0
    %850 = vmatpush1.bf16.xpose.msra.mxu0 0
    %851 = vmatprep.subr.bf16.mxu0 0
    %852 = vmatpush1.bf16.xpose.msra.mxu0 0
    %853 = vmatprep.mubr.bf16.mxu0 0
    %854 = vmatmul.mubr.bf16.gmra.mrb[0].mxu0 %v816
    %v855 = vpop.f32.mrb[0].mxu0
    %v856 = vadd.f32 %v68, %v855
    %v857 = vpop.f32.mrb[0].mxu0
    %v858 = vpop.f32.mrb[0].mxu0
    %v859 = vpop.f32.mrb[0].mxu0
    %860 = vdwg.mxu0
    %862 = vrot.lane.b32.xlu0 %v412, 96
    %v863 = vpop.permute.xlu0 %862
    %v865 = vsel %vm422, %v396, 0
    %v868 = vsel %vm422, %v863, 0
    %870 = vmatprep.subr.bf16.mxu0 0
    %871 = vmatpush1.bf16.xpose.msra.mxu0 %v868
    %872 = vmatprep.subr.bf16.mxu0 0
    %873 = vmatpush1.bf16.xpose.msra.mxu0 0
    %874 = vmatprep.subr.bf16.mxu0 0
    %875 = vmatpush1.bf16.xpose.msra.mxu0 0
    %876 = vmatprep.subr.bf16.mxu0 0
    %877 = vmatpush1.bf16.xpose.msra.mxu0 0
    %878 = vmatprep.subr.bf16.mxu0 0
    %879 = vmatpush1.bf16.xpose.msra.mxu0 0
    %880 = vmatprep.subr.bf16.mxu0 0
    %881 = vmatpush1.bf16.xpose.msra.mxu0 0
    %882 = vmatprep.subr.bf16.mxu0 0
    %883 = vmatpush1.bf16.xpose.msra.mxu0 0
    %884 = vmatprep.subr.bf16.mxu0 0
    %885 = vmatpush1.bf16.xpose.msra.mxu0 0
    %886 = vmatprep.subr.bf16.mxu0 0
    %887 = vmatpush1.bf16.xpose.msra.mxu0 0
    %888 = vmatprep.subr.bf16.mxu0 0
    %889 = vmatpush1.bf16.xpose.msra.mxu0 0
    %890 = vmatprep.subr.bf16.mxu0 0
    %891 = vmatpush1.bf16.xpose.msra.mxu0 0
    %892 = vmatprep.subr.bf16.mxu0 0
    %893 = vmatpush1.bf16.xpose.msra.mxu0 0
    %894 = vmatprep.subr.bf16.mxu0 0
    %895 = vmatpush1.bf16.xpose.msra.mxu0 0
    %896 = vmatprep.subr.bf16.mxu0 0
    %897 = vmatpush1.bf16.xpose.msra.mxu0 0
    %898 = vmatprep.subr.bf16.mxu0 0
    %899 = vmatpush1.bf16.xpose.msra.mxu0 0
    %900 = vmatprep.subr.bf16.mxu0 0
    %901 = vmatpush1.bf16.xpose.msra.mxu0 0
    %902 = vmatprep.mubr.bf16.mxu0 0
    %903 = vmatmul.mubr.bf16.gmra.mrb[0].mxu0 %v865
    %v904 = vpop.f32.mrb[0].mxu0
    %v905 = vadd.f32 %v69, %v904
    %v906 = vpop.f32.mrb[0].mxu0
    %v907 = vpop.f32.mrb[0].mxu0
    %v908 = vpop.f32.mrb[0].mxu0
    %909 = vdwg.mxu0
    %911 = vrot.lane.b32.xlu0 %v413, 96
    %v912 = vpop.permute.xlu0 %911
    %v914 = vsel %vm422, %v397, 0
    %v917 = vsel %vm422, %v912, 0
    %919 = vmatprep.subr.bf16.mxu0 0
    %920 = vmatpush1.bf16.xpose.msra.mxu0 %v917
    %921 = vmatprep.subr.bf16.mxu0 0
    %922 = vmatpush1.bf16.xpose.msra.mxu0 0
    %923 = vmatprep.subr.bf16.mxu0 0
    %924 = vmatpush1.bf16.xpose.msra.mxu0 0
    %925 = vmatprep.subr.bf16.mxu0 0
    %926 = vmatpush1.bf16.xpose.msra.mxu0 0
    %927 = vmatprep.subr.bf16.mxu0 0
    %928 = vmatpush1.bf16.xpose.msra.mxu0 0
    %929 = vmatprep.subr.bf16.mxu0 0
    %930 = vmatpush1.bf16.xpose.msra.mxu0 0
    %931 = vmatprep.subr.bf16.mxu0 0
    %932 = vmatpush1.bf16.xpose.msra.mxu0 0
    %933 = vmatprep.subr.bf16.mxu0 0
    %934 = vmatpush1.bf16.xpose.msra.mxu0 0
    %935 = vmatprep.subr.bf16.mxu0 0
    %936 = vmatpush1.bf16.xpose.msra.mxu0 0
    %937 = vmatprep.subr.bf16.mxu0 0
    %938 = vmatpush1.bf16.xpose.msra.mxu0 0
    %939 = vmatprep.subr.bf16.mxu0 0
    %940 = vmatpush1.bf16.xpose.msra.mxu0 0
    %941 = vmatprep.subr.bf16.mxu0 0
    %942 = vmatpush1.bf16.xpose.msra.mxu0 0
    %943 = vmatprep.subr.bf16.mxu0 0
    %944 = vmatpush1.bf16.xpose.msra.mxu0 0
    %945 = vmatprep.subr.bf16.mxu0 0
    %946 = vmatpush1.bf16.xpose.msra.mxu0 0
    %947 = vmatprep.subr.bf16.mxu0 0
    %948 = vmatpush1.bf16.xpose.msra.mxu0 0
    %949 = vmatprep.subr.bf16.mxu0 0
    %950 = vmatpush1.bf16.xpose.msra.mxu0 0
    %951 = vmatprep.mubr.bf16.mxu0 0
    %952 = vmatmul.mubr.bf16.gmra.mrb[0].mxu0 %v914
    %v953 = vpop.f32.mrb[0].mxu0
    %v954 = vadd.f32 %v70, %v953
    %v955 = vpop.f32.mrb[0].mxu0
    %v956 = vpop.f32.mrb[0].mxu0
    %v957 = vpop.f32.mrb[0].mxu0
    %958 = vdwg.mxu0
    %960 = vrot.lane.b32.xlu0 %v414, 96
    %v961 = vpop.permute.xlu0 %960
    %v963 = vsel %vm422, %v398, 0
    %v966 = vsel %vm422, %v961, 0
    %968 = vmatprep.subr.bf16.mxu0 0
    %969 = vmatpush1.bf16.xpose.msra.mxu0 %v966
    %970 = vmatprep.subr.bf16.mxu0 0
    %971 = vmatpush1.bf16.xpose.msra.mxu0 0
    %972 = vmatprep.subr.bf16.mxu0 0
    %973 = vmatpush1.bf16.xpose.msra.mxu0 0
    %974 = vmatprep.subr.bf16.mxu0 0
    %975 = vmatpush1.bf16.xpose.msra.mxu0 0
    %976 = vmatprep.subr.bf16.mxu0 0
    %977 = vmatpush1.bf16.xpose.msra.mxu0 0
    %978 = vmatprep.subr.bf16.mxu0 0
    %979 = vmatpush1.bf16.xpose.msra.mxu0 0
    %980 = vmatprep.subr.bf16.mxu0 0
    %981 = vmatpush1.bf16.xpose.msra.mxu0 0
    %982 = vmatprep.subr.bf16.mxu0 0
    %983 = vmatpush1.bf16.xpose.msra.mxu0 0
    %984 = vmatprep.subr.bf16.mxu0 0
    %985 = vmatpush1.bf16.xpose.msra.mxu0 0
    %986 = vmatprep.subr.bf16.mxu0 0
    %987 = vmatpush1.bf16.xpose.msra.mxu0 0
    %988 = vmatprep.subr.bf16.mxu0 0
    %989 = vmatpush1.bf16.xpose.msra.mxu0 0
    %990 = vmatprep.subr.bf16.mxu0 0
    %991 = vmatpush1.bf16.xpose.msra.mxu0 0
    %992 = vmatprep.subr.bf16.mxu0 0
    %993 = vmatpush1.bf16.xpose.msra.mxu0 0
    %994 = vmatprep.subr.bf16.mxu0 0
    %995 = vmatpush1.bf16.xpose.msra.mxu0 0
    %996 = vmatprep.subr.bf16.mxu0 0
    %997 = vmatpush1.bf16.xpose.msra.mxu0 0
    %998 = vmatprep.subr.bf16.mxu0 0
    %999 = vmatpush1.bf16.xpose.msra.mxu0 0
    %1000 = vmatprep.mubr.bf16.mxu0 0
    %1001 = vmatmul.mubr.bf16.gmra.mrb[0].mxu0 %v963
    %v1002 = vpop.f32.mrb[0].mxu0
    %v1003 = vadd.f32 %v71, %v1002
    %v1004 = vpop.f32.mrb[0].mxu0
    %v1005 = vpop.f32.mrb[0].mxu0
    %v1006 = vpop.f32.mrb[0].mxu0
    %1007 = vdwg.mxu0
    %1009 = vrot.lane.b32.xlu0 %v415, 96
    %v1010 = vpop.permute.xlu0 %1009
    %v1012 = vsel %vm422, %v399, 0
    %v1015 = vsel %vm422, %v1010, 0
    %1017 = vmatprep.subr.bf16.mxu0 0
    %1018 = vmatpush1.bf16.xpose.msra.mxu0 %v1015
    %1019 = vmatprep.subr.bf16.mxu0 0
    %1020 = vmatpush1.bf16.xpose.msra.mxu0 0
    %1021 = vmatprep.subr.bf16.mxu0 0
    %1022 = vmatpush1.bf16.xpose.msra.mxu0 0
    %1023 = vmatprep.subr.bf16.mxu0 0
    %1024 = vmatpush1.bf16.xpose.msra.mxu0 0
    %1025 = vmatprep.subr.bf16.mxu0 0
    %1026 = vmatpush1.bf16.xpose.msra.mxu0 0
    %1027 = vmatprep.subr.bf16.mxu0 0
    %1028 = vmatpush1.bf16.xpose.msra.mxu0 0
    %1029 = vmatprep.subr.bf16.mxu0 0
    %1030 = vmatpush1.bf16.xpose.msra.mxu0 0
    %1031 = vmatprep.subr.bf16.mxu0 0
    %1032 = vmatpush1.bf16.xpose.msra.mxu0 0
    %1033 = vmatprep.subr.bf16.mxu0 0
    %1034 = vmatpush1.bf16.xpose.msra.mxu0 0
    %1035 = vmatprep.subr.bf16.mxu0 0
    %1036 = vmatpush1.bf16.xpose.msra.mxu0 0
    %1037 = vmatprep.subr.bf16.mxu0 0
    %1038 = vmatpush1.bf16.xpose.msra.mxu0 0
    %1039 = vmatprep.subr.bf16.mxu0 0
    %1040 = vmatpush1.bf16.xpose.msra.mxu0 0
    %1041 = vmatprep.subr.bf16.mxu0 0
    %1042 = vmatpush1.bf16.xpose.msra.mxu0 0
    %1043 = vmatprep.subr.bf16.mxu0 0
    %1044 = vmatpush1.bf16.xpose.msra.mxu0 0
    %1045 = vmatprep.subr.bf16.mxu0 0
    %1046 = vmatpush1.bf16.xpose.msra.mxu0 0
    %1047 = vmatprep.subr.bf16.mxu0 0
    %1048 = vmatpush1.bf16.xpose.msra.mxu0 0
    %1049 = vmatprep.mubr.bf16.mxu0 0
    %1050 = vmatmul.mubr.bf16.gmra.mrb[0].mxu0 %v1012
    %v1051 = vpop.f32.mrb[0].mxu0
    %v1052 = vadd.f32 %v72, %v1051
    %v1053 = vpop.f32.mrb[0].mxu0
    %v1054 = vpop.f32.mrb[0].mxu0
    %v1055 = vpop.f32.mrb[0].mxu0
    %1056 = vdwg.mxu0
    %1058 = vrot.lane.b32.xlu0 %v416, 96
    %v1059 = vpop.permute.xlu0 %1058
    %v1061 = vsel %vm422, %v400, 0
    %v1064 = vsel %vm422, %v1059, 0
    %1066 = vmatprep.subr.bf16.mxu0 0
    %1067 = vmatpush1.bf16.xpose.msra.mxu0 %v1064
    %1068 = vmatprep.subr.bf16.mxu0 0
    %1069 = vmatpush1.bf16.xpose.msra.mxu0 0
    %1070 = vmatprep.subr.bf16.mxu0 0
    %1071 = vmatpush1.bf16.xpose.msra.mxu0 0
    %1072 = vmatprep.subr.bf16.mxu0 0
    %1073 = vmatpush1.bf16.xpose.msra.mxu0 0
    %1074 = vmatprep.subr.bf16.mxu0 0
    %1075 = vmatpush1.bf16.xpose.msra.mxu0 0
    %1076 = vmatprep.subr.bf16.mxu0 0
    %1077 = vmatpush1.bf16.xpose.msra.mxu0 0
    %1078 = vmatprep.subr.bf16.mxu0 0
    %1079 = vmatpush1.bf16.xpose.msra.mxu0 0
    %1080 = vmatprep.subr.bf16.mxu0 0
    %1081 = vmatpush1.bf16.xpose.msra.mxu0 0
    %1082 = vmatprep.subr.bf16.mxu0 0
    %1083 = vmatpush1.bf16.xpose.msra.mxu0 0
    %1084 = vmatprep.subr.bf16.mxu0 0
    %1085 = vmatpush1.bf16.xpose.msra.mxu0 0
    %1086 = vmatprep.subr.bf16.mxu0 0
    %1087 = vmatpush1.bf16.xpose.msra.mxu0 0
    %1088 = vmatprep.subr.bf16.mxu0 0
    %1089 = vmatpush1.bf16.xpose.msra.mxu0 0
    %1090 = vmatprep.subr.bf16.mxu0 0
    %1091 = vmatpush1.bf16.xpose.msra.mxu0 0
    %1092 = vmatprep.subr.bf16.mxu0 0
    %1093 = vmatpush1.bf16.xpose.msra.mxu0 0
    %1094 = vmatprep.subr.bf16.mxu0 0
    %1095 = vmatpush1.bf16.xpose.msra.mxu0 0
    %1096 = vmatprep.subr.bf16.mxu0 0
    %1097 = vmatpush1.bf16.xpose.msra.mxu0 0
    %1098 = vmatprep.mubr.bf16.mxu0 0
    %1099 = vmatmul.mubr.bf16.gmra.mrb[0].mxu0 %v1061
    %v1100 = vpop.f32.mrb[0].mxu0
    %v1101 = vadd.f32 %v73, %v1100
    %v1102 = vpop.f32.mrb[0].mxu0
    %v1103 = vpop.f32.mrb[0].mxu0
    %v1104 = vpop.f32.mrb[0].mxu0
    %1105 = vdwg.mxu0
    %1107 = vrot.lane.b32.xlu0 %v417, 96
    %v1108 = vpop.permute.xlu0 %1107
    %v1110 = vsel %vm422, %v401, 0
    %v1113 = vsel %vm422, %v1108, 0
    %1115 = vmatprep.subr.bf16.mxu0 0
    %1116 = vmatpush1.bf16.xpose.msra.mxu0 %v1113
    %1117 = vmatprep.subr.bf16.mxu0 0
    %1118 = vmatpush1.bf16.xpose.msra.mxu0 0
    %1119 = vmatprep.subr.bf16.mxu0 0
    %1120 = vmatpush1.bf16.xpose.msra.mxu0 0
    %1121 = vmatprep.subr.bf16.mxu0 0
    %1122 = vmatpush1.bf16.xpose.msra.mxu0 0
    %1123 = vmatprep.subr.bf16.mxu0 0
    %1124 = vmatpush1.bf16.xpose.msra.mxu0 0
    %1125 = vmatprep.subr.bf16.mxu0 0
    %1126 = vmatpush1.bf16.xpose.msra.mxu0 0
    %1127 = vmatprep.subr.bf16.mxu0 0
    %1128 = vmatpush1.bf16.xpose.msra.mxu0 0
    %1129 = vmatprep.subr.bf16.mxu0 0
    %1130 = vmatpush1.bf16.xpose.msra.mxu0 0
    %1131 = vmatprep.subr.bf16.mxu0 0
    %1132 = vmatpush1.bf16.xpose.msra.mxu0 0
    %1133 = vmatprep.subr.bf16.mxu0 0
    %1134 = vmatpush1.bf16.xpose.msra.mxu0 0
    %1135 = vmatprep.subr.bf16.mxu0 0
    %1136 = vmatpush1.bf16.xpose.msra.mxu0 0
    %1137 = vmatprep.subr.bf16.mxu0 0
    %1138 = vmatpush1.bf16.xpose.msra.mxu0 0
    %1139 = vmatprep.subr.bf16.mxu0 0
    %1140 = vmatpush1.bf16.xpose.msra.mxu0 0
    %1141 = vmatprep.subr.bf16.mxu0 0
    %1142 = vmatpush1.bf16.xpose.msra.mxu0 0
    %1143 = vmatprep.subr.bf16.mxu0 0
    %1144 = vmatpush1.bf16.xpose.msra.mxu0 0
    %1145 = vmatprep.subr.bf16.mxu0 0
    %1146 = vmatpush1.bf16.xpose.msra.mxu0 0
    %1147 = vmatprep.mubr.bf16.mxu0 0
    %1148 = vmatmul.mubr.bf16.gmra.mrb[0].mxu0 %v1110
    %v1149 = vpop.f32.mrb[0].mxu0
    %v1150 = vadd.f32 %v74, %v1149
    %v1151 = vpop.f32.mrb[0].mxu0
    %v1152 = vpop.f32.mrb[0].mxu0
    %v1153 = vpop.f32.mrb[0].mxu0
    %1154 = vdwg.mxu0
    %1156 = vrot.lane.b32.xlu0 %v418, 96
    %v1157 = vpop.permute.xlu0 %1156
    %v1159 = vsel %vm422, %v402, 0
    %v1162 = vsel %vm422, %v1157, 0
    %1164 = vmatprep.subr.bf16.mxu0 0
    %1165 = vmatpush1.bf16.xpose.msra.mxu0 %v1162
    %1166 = vmatprep.subr.bf16.mxu0 0
    %1167 = vmatpush1.bf16.xpose.msra.mxu0 0
    %1168 = vmatprep.subr.bf16.mxu0 0
    %1169 = vmatpush1.bf16.xpose.msra.mxu0 0
    %1170 = vmatprep.subr.bf16.mxu0 0
    %1171 = vmatpush1.bf16.xpose.msra.mxu0 0
    %1172 = vmatprep.subr.bf16.mxu0 0
    %1173 = vmatpush1.bf16.xpose.msra.mxu0 0
    %1174 = vmatprep.subr.bf16.mxu0 0
    %1175 = vmatpush1.bf16.xpose.msra.mxu0 0
    %1176 = vmatprep.subr.bf16.mxu0 0
    %1177 = vmatpush1.bf16.xpose.msra.mxu0 0
    %1178 = vmatprep.subr.bf16.mxu0 0
    %1179 = vmatpush1.bf16.xpose.msra.mxu0 0
    %1180 = vmatprep.subr.bf16.mxu0 0
    %1181 = vmatpush1.bf16.xpose.msra.mxu0 0
    %1182 = vmatprep.subr.bf16.mxu0 0
    %1183 = vmatpush1.bf16.xpose.msra.mxu0 0
    %1184 = vmatprep.subr.bf16.mxu0 0
    %1185 = vmatpush1.bf16.xpose.msra.mxu0 0
    %1186 = vmatprep.subr.bf16.mxu0 0
    %1187 = vmatpush1.bf16.xpose.msra.mxu0 0
    %1188 = vmatprep.subr.bf16.mxu0 0
    %1189 = vmatpush1.bf16.xpose.msra.mxu0 0
    %1190 = vmatprep.subr.bf16.mxu0 0
    %1191 = vmatpush1.bf16.xpose.msra.mxu0 0
    %1192 = vmatprep.subr.bf16.mxu0 0
    %1193 = vmatpush1.bf16.xpose.msra.mxu0 0
    %1194 = vmatprep.subr.bf16.mxu0 0
    %1195 = vmatpush1.bf16.xpose.msra.mxu0 0
    %1196 = vmatprep.mubr.bf16.mxu0 0
    %1197 = vmatmul.mubr.bf16.gmra.mrb[0].mxu0 %v1159
    %v1198 = vpop.f32.mrb[0].mxu0
    %v1199 = vadd.f32 %v75, %v1198
    %v1200 = vpop.f32.mrb[0].mxu0
    %v1201 = vpop.f32.mrb[0].mxu0
    %v1202 = vpop.f32.mrb[0].mxu0
    %1203 = vdwg.mxu0
    %v1204 = vsel %vm422, %v464, -inf
    %1205 = vmax.xlane.f32.xlu0 %v1204
    %v1206 = vpop.xlane.xlu0 %1205
    %v1207 = vsel %vm422, %v513, -inf
    %1208 = vmax.xlane.f32.xlu0 %v1207
    %v1209 = vpop.xlane.xlu0 %1208
    %v1210 = vsel %vm422, %v562, -inf
    %1211 = vmax.xlane.f32.xlu0 %v1210
    %v1212 = vpop.xlane.xlu0 %1211
    %v1213 = vsel %vm422, %v611, -inf
    %1214 = vmax.xlane.f32.xlu0 %v1213
    %v1215 = vpop.xlane.xlu0 %1214
    %v1216 = vsel %vm422, %v660, -inf
    %1217 = vmax.xlane.f32.xlu0 %v1216
    %v1218 = vpop.xlane.xlu0 %1217
    %v1219 = vsel %vm422, %v709, -inf
    %1220 = vmax.xlane.f32.xlu0 %v1219
    %v1221 = vpop.xlane.xlu0 %1220
    %v1222 = vsel %vm422, %v758, -inf
    %1223 = vmax.xlane.f32.xlu0 %v1222
    %v1224 = vpop.xlane.xlu0 %1223
    %v1225 = vsel %vm422, %v807, -inf
    %1226 = vmax.xlane.f32.xlu0 %v1225
    %v1227 = vpop.xlane.xlu0 %1226
    %v1228 = vsel %vm422, %v856, -inf
    %1229 = vmax.xlane.f32.xlu0 %v1228
    %v1230 = vpop.xlane.xlu0 %1229
    %v1231 = vsel %vm422, %v905, -inf
    %1232 = vmax.xlane.f32.xlu0 %v1231
    %v1233 = vpop.xlane.xlu0 %1232
    %v1234 = vsel %vm422, %v954, -inf
    %1235 = vmax.xlane.f32.xlu0 %v1234
    %v1236 = vpop.xlane.xlu0 %1235
    %v1237 = vsel %vm422, %v1003, -inf
    %1238 = vmax.xlane.f32.xlu0 %v1237
    %v1239 = vpop.xlane.xlu0 %1238
    %v1240 = vsel %vm422, %v1052, -inf
    %1241 = vmax.xlane.f32.xlu0 %v1240
    %v1242 = vpop.xlane.xlu0 %1241
    %v1243 = vsel %vm422, %v1101, -inf
    %1244 = vmax.xlane.f32.xlu0 %v1243
    %v1245 = vpop.xlane.xlu0 %1244
    %v1246 = vsel %vm422, %v1150, -inf
    %1247 = vmax.xlane.f32.xlu0 %v1246
    %v1248 = vpop.xlane.xlu0 %1247
    %v1249 = vsel %vm422, %v1199, -inf
    %1250 = vmax.xlane.f32.xlu0 %v1249
    %v1251 = vpop.xlane.xlu0 %1250
    %v1252 = vsub.f32 %v464, %v1206
    %v1253 = vsub.f32 %v513, %v1209
    %v1254 = vsub.f32 %v562, %v1212
    %v1255 = vsub.f32 %v611, %v1215
    %v1256 = vsub.f32 %v660, %v1218
    %v1257 = vsub.f32 %v709, %v1221
    %v1258 = vsub.f32 %v758, %v1224
    %v1259 = vsub.f32 %v807, %v1227
    %v1260 = vsub.f32 %v856, %v1230
    %v1261 = vsub.f32 %v905, %v1233
    %v1262 = vsub.f32 %v954, %v1236
    %v1263 = vsub.f32 %v1003, %v1239
    %v1264 = vsub.f32 %v1052, %v1242
    %v1265 = vsub.f32 %v1101, %v1245
    %v1266 = vsub.f32 %v1150, %v1248
    %v1267 = vsub.f32 %v1199, %v1251
    %v1268 = vmul.f32 %v1252, 1.442695
    %v1269 = vpow.pop %v1268
    %v1270 = vmul.f32 %v1253, 1.442695
    %v1271 = vpow.pop %v1270
    %v1272 = vmul.f32 %v1254, 1.442695
    %v1273 = vpow.pop %v1272
    %v1274 = vmul.f32 %v1255, 1.442695
    %v1275 = vpow.pop %v1274
    %v1276 = vmul.f32 %v1256, 1.442695
    %v1277 = vpow.pop %v1276
    %v1278 = vmul.f32 %v1257, 1.442695
    %v1279 = vpow.pop %v1278
    %v1280 = vmul.f32 %v1258, 1.442695
    %v1281 = vpow.pop %v1280
    %v1282 = vmul.f32 %v1259, 1.442695
    %v1283 = vpow.pop %v1282
    %v1284 = vmul.f32 %v1260, 1.442695
    %v1285 = vpow.pop %v1284
    %v1286 = vmul.f32 %v1261, 1.442695
    %v1287 = vpow.pop %v1286
    %v1288 = vmul.f32 %v1262, 1.442695
    %v1289 = vpow.pop %v1288
    %v1290 = vmul.f32 %v1263, 1.442695
    %v1291 = vpow.pop %v1290
    %v1292 = vmul.f32 %v1264, 1.442695
    %v1293 = vpow.pop %v1292
    %v1294 = vmul.f32 %v1265, 1.442695
    %v1295 = vpow.pop %v1294
    %v1296 = vmul.f32 %v1266, 1.442695
    %v1297 = vpow.pop %v1296
    %v1298 = vmul.f32 %v1267, 1.442695
    %v1299 = vpow.pop %v1298
    %v1300 = vsel %vm422, %v1269, 0.0
    %1301 = vadd.xlane.f32.xlu0 %v1300
    %v1302 = vpop.xlane.xlu0 %1301
    %v1303 = vsel %vm422, %v1271, 0.0
    %1304 = vadd.xlane.f32.xlu0 %v1303
    %v1305 = vpop.xlane.xlu0 %1304
    %v1306 = vsel %vm422, %v1273, 0.0
    %1307 = vadd.xlane.f32.xlu0 %v1306
    %v1308 = vpop.xlane.xlu0 %1307
    %v1309 = vsel %vm422, %v1275, 0.0
    %1310 = vadd.xlane.f32.xlu0 %v1309
    %v1311 = vpop.xlane.xlu0 %1310
    %v1312 = vsel %vm422, %v1277, 0.0
    %1313 = vadd.xlane.f32.xlu0 %v1312
    %v1314 = vpop.xlane.xlu0 %1313
    %v1315 = vsel %vm422, %v1279, 0.0
    %1316 = vadd.xlane.f32.xlu0 %v1315
    %v1317 = vpop.xlane.xlu0 %1316
    %v1318 = vsel %vm422, %v1281, 0.0
    %1319 = vadd.xlane.f32.xlu0 %v1318
    %v1320 = vpop.xlane.xlu0 %1319
    %v1321 = vsel %vm422, %v1283, 0.0
    %1322 = vadd.xlane.f32.xlu0 %v1321
    %v1323 = vpop.xlane.xlu0 %1322
    %v1324 = vsel %vm422, %v1285, 0.0
    %1325 = vadd.xlane.f32.xlu0 %v1324
    %v1326 = vpop.xlane.xlu0 %1325
    %v1327 = vsel %vm422, %v1287, 0.0
    %1328 = vadd.xlane.f32.xlu0 %v1327
    %v1329 = vpop.xlane.xlu0 %1328
    %v1330 = vsel %vm422, %v1289, 0.0
    %1331 = vadd.xlane.f32.xlu0 %v1330
    %v1332 = vpop.xlane.xlu0 %1331
    %v1333 = vsel %vm422, %v1291, 0.0
    %1334 = vadd.xlane.f32.xlu0 %v1333
    %v1335 = vpop.xlane.xlu0 %1334
    %v1336 = vsel %vm422, %v1293, 0.0
    %1337 = vadd.xlane.f32.xlu0 %v1336
    %v1338 = vpop.xlane.xlu0 %1337
    %v1339 = vsel %vm422, %v1295, 0.0
    %1340 = vadd.xlane.f32.xlu0 %v1339
    %v1341 = vpop.xlane.xlu0 %1340
    %v1342 = vsel %vm422, %v1297, 0.0
    %1343 = vadd.xlane.f32.xlu0 %v1342
    %v1344 = vpop.xlane.xlu0 %1343
    %v1345 = vsel %vm422, %v1299, 0.0
    %1346 = vadd.xlane.f32.xlu0 %v1345
    %v1347 = vpop.xlane.xlu0 %1346
    %v1348 = vrcp.pop %v1302
    %v1349 = vrcp.pop %v1305
    %v1350 = vrcp.pop %v1308
    %v1351 = vrcp.pop %v1311
    %v1352 = vrcp.pop %v1314
    %v1353 = vrcp.pop %v1317
    %v1354 = vrcp.pop %v1320
    %v1355 = vrcp.pop %v1323
    %v1356 = vrcp.pop %v1326
    %v1357 = vrcp.pop %v1329
    %v1358 = vrcp.pop %v1332
    %v1359 = vrcp.pop %v1335
    %v1360 = vrcp.pop %v1338
    %v1361 = vrcp.pop %v1341
    %v1362 = vrcp.pop %v1344
    %v1363 = vrcp.pop %v1347
    %v1364 = vmul.f32 %v1269, %v1348
    %v1365 = vmul.f32 %v1271, %v1349
    %v1366 = vmul.f32 %v1273, %v1350
    %v1367 = vmul.f32 %v1275, %v1351
    %v1368 = vmul.f32 %v1277, %v1352
    %v1369 = vmul.f32 %v1279, %v1353
    %v1370 = vmul.f32 %v1281, %v1354
    %v1371 = vmul.f32 %v1283, %v1355
    %v1372 = vmul.f32 %v1285, %v1356
    %v1373 = vmul.f32 %v1287, %v1357
    %v1374 = vmul.f32 %v1289, %v1358
    %v1375 = vmul.f32 %v1291, %v1359
    %v1376 = vmul.f32 %v1293, %v1360
    %v1377 = vmul.f32 %v1295, %v1361
    %v1378 = vmul.f32 %v1297, %v1362
    %v1379 = vmul.f32 %v1299, %v1363
    %v1380 = vpack.c.bf16 %v1364, %v1364
    %v1381 = vpack.c.bf16 %v1365, %v1365
    %v1382 = vpack.c.bf16 %v1366, %v1366
    %v1383 = vpack.c.bf16 %v1367, %v1367
    %v1384 = vpack.c.bf16 %v1368, %v1368
    %v1385 = vpack.c.bf16 %v1369, %v1369
    %v1386 = vpack.c.bf16 %v1370, %v1370
    %v1387 = vpack.c.bf16 %v1371, %v1371
    %v1388 = vpack.c.bf16 %v1372, %v1372
    %v1389 = vpack.c.bf16 %v1373, %v1373
    %v1390 = vpack.c.bf16 %v1374, %v1374
    %v1391 = vpack.c.bf16 %v1375, %v1375
    %v1392 = vpack.c.bf16 %v1376, %v1376
    %v1393 = vpack.c.bf16 %v1377, %v1377
    %v1394 = vpack.c.bf16 %v1378, %v1378
    %v1395 = vpack.c.bf16 %v1379, %v1379
    %1396 = vrot.lane.b32.xlu0 %v403, 64
    %v1397 = vpop.permute.xlu0 %1396
    %v1399 = vsel %vm422, %v1380, 0
    %vm1401 = vcmask 1043456
    %v1403 = vsel %vm1401, %v1397, 0
    %1405 = vmatprep.subr.bf16.mxu0 0
    %1406 = vmatpush1.bf16.msra.mxu0 %v1403
    %1407 = vmatprep.subr.bf16.mxu0 0
    %1408 = vmatpush1.bf16.msra.mxu0 0
    %1409 = vmatprep.subr.bf16.mxu0 0
    %1410 = vmatpush1.bf16.msra.mxu0 0
    %1411 = vmatprep.subr.bf16.mxu0 0
    %1412 = vmatpush1.bf16.msra.mxu0 0
    %1413 = vmatprep.subr.bf16.mxu0 0
    %1414 = vmatpush1.bf16.msra.mxu0 0
    %1415 = vmatprep.subr.bf16.mxu0 0
    %1416 = vmatpush1.bf16.msra.mxu0 0
    %1417 = vmatprep.subr.bf16.mxu0 0
    %1418 = vmatpush1.bf16.msra.mxu0 0
    %1419 = vmatprep.subr.bf16.mxu0 0
    %1420 = vmatpush1.bf16.msra.mxu0 0
    %1421 = vmatprep.subr.bf16.mxu0 0
    %1422 = vmatpush1.bf16.msra.mxu0 0
    %1423 = vmatprep.subr.bf16.mxu0 0
    %1424 = vmatpush1.bf16.msra.mxu0 0
    %1425 = vmatprep.subr.bf16.mxu0 0
    %1426 = vmatpush1.bf16.msra.mxu0 0
    %1427 = vmatprep.subr.bf16.mxu0 0
    %1428 = vmatpush1.bf16.msra.mxu0 0
    %1429 = vmatprep.subr.bf16.mxu0 0
    %1430 = vmatpush1.bf16.msra.mxu0 0
    %1431 = vmatprep.subr.bf16.mxu0 0
    %1432 = vmatpush1.bf16.msra.mxu0 0
    %1433 = vmatprep.subr.bf16.mxu0 0
    %1434 = vmatpush1.bf16.msra.mxu0 0
    %1435 = vmatprep.subr.bf16.mxu0 0
    %1436 = vmatpush1.bf16.msra.mxu0 0
    %1437 = vmatprep.mubr.bf16.mxu0 0
    %1438 = vmatmul.mubr.bf16.gmra.mrb[0].mxu0 %v1399
    %v1439 = vpop.f32.mrb[0].mxu0
    %v1440 = vadd.f32 0.0, %v1439
    %v1441 = vpop.f32.mrb[0].mxu0
    %v1442 = vpop.f32.mrb[0].mxu0
    %v1443 = vpop.f32.mrb[0].mxu0
    %1444 = vdwg.mxu0
    %1445 = vrot.lane.b32.xlu0 %v404, 64
    %v1446 = vpop.permute.xlu0 %1445
    %v1448 = vsel %vm422, %v1381, 0
    %v1451 = vsel %vm1401, %v1446, 0
    %1453 = vmatprep.subr.bf16.mxu0 0
    %1454 = vmatpush1.bf16.msra.mxu0 %v1451
    %1455 = vmatprep.subr.bf16.mxu0 0
    %1456 = vmatpush1.bf16.msra.mxu0 0
    %1457 = vmatprep.subr.bf16.mxu0 0
    %1458 = vmatpush1.bf16.msra.mxu0 0
    %1459 = vmatprep.subr.bf16.mxu0 0
    %1460 = vmatpush1.bf16.msra.mxu0 0
    %1461 = vmatprep.subr.bf16.mxu0 0
    %1462 = vmatpush1.bf16.msra.mxu0 0
    %1463 = vmatprep.subr.bf16.mxu0 0
    %1464 = vmatpush1.bf16.msra.mxu0 0
    %1465 = vmatprep.subr.bf16.mxu0 0
    %1466 = vmatpush1.bf16.msra.mxu0 0
    %1467 = vmatprep.subr.bf16.mxu0 0
    %1468 = vmatpush1.bf16.msra.mxu0 0
    %1469 = vmatprep.subr.bf16.mxu0 0
    %1470 = vmatpush1.bf16.msra.mxu0 0
    %1471 = vmatprep.subr.bf16.mxu0 0
    %1472 = vmatpush1.bf16.msra.mxu0 0
    %1473 = vmatprep.subr.bf16.mxu0 0
    %1474 = vmatpush1.bf16.msra.mxu0 0
    %1475 = vmatprep.subr.bf16.mxu0 0
    %1476 = vmatpush1.bf16.msra.mxu0 0
    %1477 = vmatprep.subr.bf16.mxu0 0
    %1478 = vmatpush1.bf16.msra.mxu0 0
    %1479 = vmatprep.subr.bf16.mxu0 0
    %1480 = vmatpush1.bf16.msra.mxu0 0
    %1481 = vmatprep.subr.bf16.mxu0 0
    %1482 = vmatpush1.bf16.msra.mxu0 0
    %1483 = vmatprep.subr.bf16.mxu0 0
    %1484 = vmatpush1.bf16.msra.mxu0 0
    %1485 = vmatprep.mubr.bf16.mxu0 0
    %1486 = vmatmul.mubr.bf16.gmra.mrb[0].mxu0 %v1448
    %v1487 = vpop.f32.mrb[0].mxu0
    %v1488 = vadd.f32 0.0, %v1487
    %v1489 = vpop.f32.mrb[0].mxu0
    %v1490 = vpop.f32.mrb[0].mxu0
    %v1491 = vpop.f32.mrb[0].mxu0
    %1492 = vdwg.mxu0
    %1493 = vrot.lane.b32.xlu0 %v405, 64
    %v1494 = vpop.permute.xlu0 %1493
    %v1496 = vsel %vm422, %v1382, 0
    %v1499 = vsel %vm1401, %v1494, 0
    %1501 = vmatprep.subr.bf16.mxu0 0
    %1502 = vmatpush1.bf16.msra.mxu0 %v1499
    %1503 = vmatprep.subr.bf16.mxu0 0
    %1504 = vmatpush1.bf16.msra.mxu0 0
    %1505 = vmatprep.subr.bf16.mxu0 0
    %1506 = vmatpush1.bf16.msra.mxu0 0
    %1507 = vmatprep.subr.bf16.mxu0 0
    %1508 = vmatpush1.bf16.msra.mxu0 0
    %1509 = vmatprep.subr.bf16.mxu0 0
    %1510 = vmatpush1.bf16.msra.mxu0 0
    %1511 = vmatprep.subr.bf16.mxu0 0
    %1512 = vmatpush1.bf16.msra.mxu0 0
    %1513 = vmatprep.subr.bf16.mxu0 0
    %1514 = vmatpush1.bf16.msra.mxu0 0
    %1515 = vmatprep.subr.bf16.mxu0 0
    %1516 = vmatpush1.bf16.msra.mxu0 0
    %1517 = vmatprep.subr.bf16.mxu0 0
    %1518 = vmatpush1.bf16.msra.mxu0 0
    %1519 = vmatprep.subr.bf16.mxu0 0
    %1520 = vmatpush1.bf16.msra.mxu0 0
    %1521 = vmatprep.subr.bf16.mxu0 0
    %1522 = vmatpush1.bf16.msra.mxu0 0
    %1523 = vmatprep.subr.bf16.mxu0 0
    %1524 = vmatpush1.bf16.msra.mxu0 0
    %1525 = vmatprep.subr.bf16.mxu0 0
    %1526 = vmatpush1.bf16.msra.mxu0 0
    %1527 = vmatprep.subr.bf16.mxu0 0
    %1528 = vmatpush1.bf16.msra.mxu0 0
    %1529 = vmatprep.subr.bf16.mxu0 0
    %1530 = vmatpush1.bf16.msra.mxu0 0
    %1531 = vmatprep.subr.bf16.mxu0 0
    %1532 = vmatpush1.bf16.msra.mxu0 0
    %1533 = vmatprep.mubr.bf16.mxu0 0
    %1534 = vmatmul.mubr.bf16.gmra.mrb[0].mxu0 %v1496
    %v1535 = vpop.f32.mrb[0].mxu0
    %v1536 = vadd.f32 0.0, %v1535
    %v1537 = vpop.f32.mrb[0].mxu0
    %v1538 = vpop.f32.mrb[0].mxu0
    %v1539 = vpop.f32.mrb[0].mxu0
    %1540 = vdwg.mxu0
    %1541 = vrot.lane.b32.xlu0 %v406, 64
    %v1542 = vpop.permute.xlu0 %1541
    %v1544 = vsel %vm422, %v1383, 0
    %v1547 = vsel %vm1401, %v1542, 0
    %1549 = vmatprep.subr.bf16.mxu0 0
    %1550 = vmatpush1.bf16.msra.mxu0 %v1547
    %1551 = vmatprep.subr.bf16.mxu0 0
    %1552 = vmatpush1.bf16.msra.mxu0 0
    %1553 = vmatprep.subr.bf16.mxu0 0
    %1554 = vmatpush1.bf16.msra.mxu0 0
    %1555 = vmatprep.subr.bf16.mxu0 0
    %1556 = vmatpush1.bf16.msra.mxu0 0
    %1557 = vmatprep.subr.bf16.mxu0 0
    %1558 = vmatpush1.bf16.msra.mxu0 0
    %1559 = vmatprep.subr.bf16.mxu0 0
    %1560 = vmatpush1.bf16.msra.mxu0 0
    %1561 = vmatprep.subr.bf16.mxu0 0
    %1562 = vmatpush1.bf16.msra.mxu0 0
    %1563 = vmatprep.subr.bf16.mxu0 0
    %1564 = vmatpush1.bf16.msra.mxu0 0
    %1565 = vmatprep.subr.bf16.mxu0 0
    %1566 = vmatpush1.bf16.msra.mxu0 0
    %1567 = vmatprep.subr.bf16.mxu0 0
    %1568 = vmatpush1.bf16.msra.mxu0 0
    %1569 = vmatprep.subr.bf16.mxu0 0
    %1570 = vmatpush1.bf16.msra.mxu0 0
    %1571 = vmatprep.subr.bf16.mxu0 0
    %1572 = vmatpush1.bf16.msra.mxu0 0
    %1573 = vmatprep.subr.bf16.mxu0 0
    %1574 = vmatpush1.bf16.msra.mxu0 0
    %1575 = vmatprep.subr.bf16.mxu0 0
    %1576 = vmatpush1.bf16.msra.mxu0 0
    %1577 = vmatprep.subr.bf16.mxu0 0
    %1578 = vmatpush1.bf16.msra.mxu0 0
    %1579 = vmatprep.subr.bf16.mxu0 0
    %1580 = vmatpush1.bf16.msra.mxu0 0
    %1581 = vmatprep.mubr.bf16.mxu0 0
    %1582 = vmatmul.mubr.bf16.gmra.mrb[0].mxu0 %v1544
    %v1583 = vpop.f32.mrb[0].mxu0
    %v1584 = vadd.f32 0.0, %v1583
    %v1585 = vpop.f32.mrb[0].mxu0
    %v1586 = vpop.f32.mrb[0].mxu0
    %v1587 = vpop.f32.mrb[0].mxu0
    %1588 = vdwg.mxu0
    %1589 = vrot.lane.b32.xlu0 %v407, 64
    %v1590 = vpop.permute.xlu0 %1589
    %v1592 = vsel %vm422, %v1384, 0
    %v1595 = vsel %vm1401, %v1590, 0
    %1597 = vmatprep.subr.bf16.mxu0 0
    %1598 = vmatpush1.bf16.msra.mxu0 %v1595
    %1599 = vmatprep.subr.bf16.mxu0 0
    %1600 = vmatpush1.bf16.msra.mxu0 0
    %1601 = vmatprep.subr.bf16.mxu0 0
    %1602 = vmatpush1.bf16.msra.mxu0 0
    %1603 = vmatprep.subr.bf16.mxu0 0
    %1604 = vmatpush1.bf16.msra.mxu0 0
    %1605 = vmatprep.subr.bf16.mxu0 0
    %1606 = vmatpush1.bf16.msra.mxu0 0
    %1607 = vmatprep.subr.bf16.mxu0 0
    %1608 = vmatpush1.bf16.msra.mxu0 0
    %1609 = vmatprep.subr.bf16.mxu0 0
    %1610 = vmatpush1.bf16.msra.mxu0 0
    %1611 = vmatprep.subr.bf16.mxu0 0
    %1612 = vmatpush1.bf16.msra.mxu0 0
    %1613 = vmatprep.subr.bf16.mxu0 0
    %1614 = vmatpush1.bf16.msra.mxu0 0
    %1615 = vmatprep.subr.bf16.mxu0 0
    %1616 = vmatpush1.bf16.msra.mxu0 0
    %1617 = vmatprep.subr.bf16.mxu0 0
    %1618 = vmatpush1.bf16.msra.mxu0 0
    %1619 = vmatprep.subr.bf16.mxu0 0
    %1620 = vmatpush1.bf16.msra.mxu0 0
    %1621 = vmatprep.subr.bf16.mxu0 0
    %1622 = vmatpush1.bf16.msra.mxu0 0
    %1623 = vmatprep.subr.bf16.mxu0 0
    %1624 = vmatpush1.bf16.msra.mxu0 0
    %1625 = vmatprep.subr.bf16.mxu0 0
    %1626 = vmatpush1.bf16.msra.mxu0 0
    %1627 = vmatprep.subr.bf16.mxu0 0
    %1628 = vmatpush1.bf16.msra.mxu0 0
    %1629 = vmatprep.mubr.bf16.mxu0 0
    %1630 = vmatmul.mubr.bf16.gmra.mrb[0].mxu0 %v1592
    %v1631 = vpop.f32.mrb[0].mxu0
    %v1632 = vadd.f32 0.0, %v1631
    %v1633 = vpop.f32.mrb[0].mxu0
    %v1634 = vpop.f32.mrb[0].mxu0
    %v1635 = vpop.f32.mrb[0].mxu0
    %1636 = vdwg.mxu0
    %1637 = vrot.lane.b32.xlu0 %v408, 64
    %v1638 = vpop.permute.xlu0 %1637
    %v1640 = vsel %vm422, %v1385, 0
    %v1643 = vsel %vm1401, %v1638, 0
    %1645 = vmatprep.subr.bf16.mxu0 0
    %1646 = vmatpush1.bf16.msra.mxu0 %v1643
    %1647 = vmatprep.subr.bf16.mxu0 0
    %1648 = vmatpush1.bf16.msra.mxu0 0
    %1649 = vmatprep.subr.bf16.mxu0 0
    %1650 = vmatpush1.bf16.msra.mxu0 0
    %1651 = vmatprep.subr.bf16.mxu0 0
    %1652 = vmatpush1.bf16.msra.mxu0 0
    %1653 = vmatprep.subr.bf16.mxu0 0
    %1654 = vmatpush1.bf16.msra.mxu0 0
    %1655 = vmatprep.subr.bf16.mxu0 0
    %1656 = vmatpush1.bf16.msra.mxu0 0
    %1657 = vmatprep.subr.bf16.mxu0 0
    %1658 = vmatpush1.bf16.msra.mxu0 0
    %1659 = vmatprep.subr.bf16.mxu0 0
    %1660 = vmatpush1.bf16.msra.mxu0 0
    %1661 = vmatprep.subr.bf16.mxu0 0
    %1662 = vmatpush1.bf16.msra.mxu0 0
    %1663 = vmatprep.subr.bf16.mxu0 0
    %1664 = vmatpush1.bf16.msra.mxu0 0
    %1665 = vmatprep.subr.bf16.mxu0 0
    %1666 = vmatpush1.bf16.msra.mxu0 0
    %1667 = vmatprep.subr.bf16.mxu0 0
    %1668 = vmatpush1.bf16.msra.mxu0 0
    %1669 = vmatprep.subr.bf16.mxu0 0
    %1670 = vmatpush1.bf16.msra.mxu0 0
    %1671 = vmatprep.subr.bf16.mxu0 0
    %1672 = vmatpush1.bf16.msra.mxu0 0
    %1673 = vmatprep.subr.bf16.mxu0 0
    %1674 = vmatpush1.bf16.msra.mxu0 0
    %1675 = vmatprep.subr.bf16.mxu0 0
    %1676 = vmatpush1.bf16.msra.mxu0 0
    %1677 = vmatprep.mubr.bf16.mxu0 0
    %1678 = vmatmul.mubr.bf16.gmra.mrb[0].mxu0 %v1640
    %v1679 = vpop.f32.mrb[0].mxu0
    %v1680 = vadd.f32 0.0, %v1679
    %v1681 = vpop.f32.mrb[0].mxu0
    %v1682 = vpop.f32.mrb[0].mxu0
    %v1683 = vpop.f32.mrb[0].mxu0
    %1684 = vdwg.mxu0
    %1685 = vrot.lane.b32.xlu0 %v409, 64
    %v1686 = vpop.permute.xlu0 %1685
    %v1688 = vsel %vm422, %v1386, 0
    %v1691 = vsel %vm1401, %v1686, 0
    %1693 = vmatprep.subr.bf16.mxu0 0
    %1694 = vmatpush1.bf16.msra.mxu0 %v1691
    %1695 = vmatprep.subr.bf16.mxu0 0
    %1696 = vmatpush1.bf16.msra.mxu0 0
    %1697 = vmatprep.subr.bf16.mxu0 0
    %1698 = vmatpush1.bf16.msra.mxu0 0
    %1699 = vmatprep.subr.bf16.mxu0 0
    %1700 = vmatpush1.bf16.msra.mxu0 0
    %1701 = vmatprep.subr.bf16.mxu0 0
    %1702 = vmatpush1.bf16.msra.mxu0 0
    %1703 = vmatprep.subr.bf16.mxu0 0
    %1704 = vmatpush1.bf16.msra.mxu0 0
    %1705 = vmatprep.subr.bf16.mxu0 0
    %1706 = vmatpush1.bf16.msra.mxu0 0
    %1707 = vmatprep.subr.bf16.mxu0 0
    %1708 = vmatpush1.bf16.msra.mxu0 0
    %1709 = vmatprep.subr.bf16.mxu0 0
    %1710 = vmatpush1.bf16.msra.mxu0 0
    %1711 = vmatprep.subr.bf16.mxu0 0
    %1712 = vmatpush1.bf16.msra.mxu0 0
    %1713 = vmatprep.subr.bf16.mxu0 0
    %1714 = vmatpush1.bf16.msra.mxu0 0
    %1715 = vmatprep.subr.bf16.mxu0 0
    %1716 = vmatpush1.bf16.msra.mxu0 0
    %1717 = vmatprep.subr.bf16.mxu0 0
    %1718 = vmatpush1.bf16.msra.mxu0 0
    %1719 = vmatprep.subr.bf16.mxu0 0
    %1720 = vmatpush1.bf16.msra.mxu0 0
    %1721 = vmatprep.subr.bf16.mxu0 0
    %1722 = vmatpush1.bf16.msra.mxu0 0
    %1723 = vmatprep.subr.bf16.mxu0 0
    %1724 = vmatpush1.bf16.msra.mxu0 0
    %1725 = vmatprep.mubr.bf16.mxu0 0
    %1726 = vmatmul.mubr.bf16.gmra.mrb[0].mxu0 %v1688
    %v1727 = vpop.f32.mrb[0].mxu0
    %v1728 = vadd.f32 0.0, %v1727
    %v1729 = vpop.f32.mrb[0].mxu0
    %v1730 = vpop.f32.mrb[0].mxu0
    %v1731 = vpop.f32.mrb[0].mxu0
    %1732 = vdwg.mxu0
    %1733 = vrot.lane.b32.xlu0 %v410, 64
    %v1734 = vpop.permute.xlu0 %1733
    %v1736 = vsel %vm422, %v1387, 0
    %v1739 = vsel %vm1401, %v1734, 0
    %1741 = vmatprep.subr.bf16.mxu0 0
    %1742 = vmatpush1.bf16.msra.mxu0 %v1739
    %1743 = vmatprep.subr.bf16.mxu0 0
    %1744 = vmatpush1.bf16.msra.mxu0 0
    %1745 = vmatprep.subr.bf16.mxu0 0
    %1746 = vmatpush1.bf16.msra.mxu0 0
    %1747 = vmatprep.subr.bf16.mxu0 0
    %1748 = vmatpush1.bf16.msra.mxu0 0
    %1749 = vmatprep.subr.bf16.mxu0 0
    %1750 = vmatpush1.bf16.msra.mxu0 0
    %1751 = vmatprep.subr.bf16.mxu0 0
    %1752 = vmatpush1.bf16.msra.mxu0 0
    %1753 = vmatprep.subr.bf16.mxu0 0
    %1754 = vmatpush1.bf16.msra.mxu0 0
    %1755 = vmatprep.subr.bf16.mxu0 0
    %1756 = vmatpush1.bf16.msra.mxu0 0
    %1757 = vmatprep.subr.bf16.mxu0 0
    %1758 = vmatpush1.bf16.msra.mxu0 0
    %1759 = vmatprep.subr.bf16.mxu0 0
    %1760 = vmatpush1.bf16.msra.mxu0 0
    %1761 = vmatprep.subr.bf16.mxu0 0
    %1762 = vmatpush1.bf16.msra.mxu0 0
    %1763 = vmatprep.subr.bf16.mxu0 0
    %1764 = vmatpush1.bf16.msra.mxu0 0
    %1765 = vmatprep.subr.bf16.mxu0 0
    %1766 = vmatpush1.bf16.msra.mxu0 0
    %1767 = vmatprep.subr.bf16.mxu0 0
    %1768 = vmatpush1.bf16.msra.mxu0 0
    %1769 = vmatprep.subr.bf16.mxu0 0
    %1770 = vmatpush1.bf16.msra.mxu0 0
    %1771 = vmatprep.subr.bf16.mxu0 0
    %1772 = vmatpush1.bf16.msra.mxu0 0
    %1773 = vmatprep.mubr.bf16.mxu0 0
    %1774 = vmatmul.mubr.bf16.gmra.mrb[0].mxu0 %v1736
    %v1775 = vpop.f32.mrb[0].mxu0
    %v1776 = vadd.f32 0.0, %v1775
    %v1777 = vpop.f32.mrb[0].mxu0
    %v1778 = vpop.f32.mrb[0].mxu0
    %v1779 = vpop.f32.mrb[0].mxu0
    %1780 = vdwg.mxu0
    %1781 = vrot.lane.b32.xlu0 %v411, 64
    %v1782 = vpop.permute.xlu0 %1781
    %v1784 = vsel %vm422, %v1388, 0
    %v1787 = vsel %vm1401, %v1782, 0
    %1789 = vmatprep.subr.bf16.mxu0 0
    %1790 = vmatpush1.bf16.msra.mxu0 %v1787
    %1791 = vmatprep.subr.bf16.mxu0 0
    %1792 = vmatpush1.bf16.msra.mxu0 0
    %1793 = vmatprep.subr.bf16.mxu0 0
    %1794 = vmatpush1.bf16.msra.mxu0 0
    %1795 = vmatprep.subr.bf16.mxu0 0
    %1796 = vmatpush1.bf16.msra.mxu0 0
    %1797 = vmatprep.subr.bf16.mxu0 0
    %1798 = vmatpush1.bf16.msra.mxu0 0
    %1799 = vmatprep.subr.bf16.mxu0 0
    %1800 = vmatpush1.bf16.msra.mxu0 0
    %1801 = vmatprep.subr.bf16.mxu0 0
    %1802 = vmatpush1.bf16.msra.mxu0 0
    %1803 = vmatprep.subr.bf16.mxu0 0
    %1804 = vmatpush1.bf16.msra.mxu0 0
    %1805 = vmatprep.subr.bf16.mxu0 0
    %1806 = vmatpush1.bf16.msra.mxu0 0
    %1807 = vmatprep.subr.bf16.mxu0 0
    %1808 = vmatpush1.bf16.msra.mxu0 0
    %1809 = vmatprep.subr.bf16.mxu0 0
    %1810 = vmatpush1.bf16.msra.mxu0 0
    %1811 = vmatprep.subr.bf16.mxu0 0
    %1812 = vmatpush1.bf16.msra.mxu0 0
    %1813 = vmatprep.subr.bf16.mxu0 0
    %1814 = vmatpush1.bf16.msra.mxu0 0
    %1815 = vmatprep.subr.bf16.mxu0 0
    %1816 = vmatpush1.bf16.msra.mxu0 0
    %1817 = vmatprep.subr.bf16.mxu0 0
    %1818 = vmatpush1.bf16.msra.mxu0 0
    %1819 = vmatprep.subr.bf16.mxu0 0
    %1820 = vmatpush1.bf16.msra.mxu0 0
    %1821 = vmatprep.mubr.bf16.mxu0 0
    %1822 = vmatmul.mubr.bf16.gmra.mrb[0].mxu0 %v1784
    %v1823 = vpop.f32.mrb[0].mxu0
    %v1824 = vadd.f32 0.0, %v1823
    %v1825 = vpop.f32.mrb[0].mxu0
    %v1826 = vpop.f32.mrb[0].mxu0
    %v1827 = vpop.f32.mrb[0].mxu0
    %1828 = vdwg.mxu0
    %1829 = vrot.lane.b32.xlu0 %v412, 64
    %v1830 = vpop.permute.xlu0 %1829
    %v1832 = vsel %vm422, %v1389, 0
    %v1835 = vsel %vm1401, %v1830, 0
    %1837 = vmatprep.subr.bf16.mxu0 0
    %1838 = vmatpush1.bf16.msra.mxu0 %v1835
    %1839 = vmatprep.subr.bf16.mxu0 0
    %1840 = vmatpush1.bf16.msra.mxu0 0
    %1841 = vmatprep.subr.bf16.mxu0 0
    %1842 = vmatpush1.bf16.msra.mxu0 0
    %1843 = vmatprep.subr.bf16.mxu0 0
    %1844 = vmatpush1.bf16.msra.mxu0 0
    %1845 = vmatprep.subr.bf16.mxu0 0
    %1846 = vmatpush1.bf16.msra.mxu0 0
    %1847 = vmatprep.subr.bf16.mxu0 0
    %1848 = vmatpush1.bf16.msra.mxu0 0
    %1849 = vmatprep.subr.bf16.mxu0 0
    %1850 = vmatpush1.bf16.msra.mxu0 0
    %1851 = vmatprep.subr.bf16.mxu0 0
    %1852 = vmatpush1.bf16.msra.mxu0 0
    %1853 = vmatprep.subr.bf16.mxu0 0
    %1854 = vmatpush1.bf16.msra.mxu0 0
    %1855 = vmatprep.subr.bf16.mxu0 0
    %1856 = vmatpush1.bf16.msra.mxu0 0
    %1857 = vmatprep.subr.bf16.mxu0 0
    %1858 = vmatpush1.bf16.msra.mxu0 0
    %1859 = vmatprep.subr.bf16.mxu0 0
    %1860 = vmatpush1.bf16.msra.mxu0 0
    %1861 = vmatprep.subr.bf16.mxu0 0
    %1862 = vmatpush1.bf16.msra.mxu0 0
    %1863 = vmatprep.subr.bf16.mxu0 0
    %1864 = vmatpush1.bf16.msra.mxu0 0
    %1865 = vmatprep.subr.bf16.mxu0 0
    %1866 = vmatpush1.bf16.msra.mxu0 0
    %1867 = vmatprep.subr.bf16.mxu0 0
    %1868 = vmatpush1.bf16.msra.mxu0 0
    %1869 = vmatprep.mubr.bf16.mxu0 0
    %1870 = vmatmul.mubr.bf16.gmra.mrb[0].mxu0 %v1832
    %v1871 = vpop.f32.mrb[0].mxu0
    %v1872 = vadd.f32 0.0, %v1871
    %v1873 = vpop.f32.mrb[0].mxu0
    %v1874 = vpop.f32.mrb[0].mxu0
    %v1875 = vpop.f32.mrb[0].mxu0
    %1876 = vdwg.mxu0
    %1877 = vrot.lane.b32.xlu0 %v413, 64
    %v1878 = vpop.permute.xlu0 %1877
    %v1880 = vsel %vm422, %v1390, 0
    %v1883 = vsel %vm1401, %v1878, 0
    %1885 = vmatprep.subr.bf16.mxu0 0
    %1886 = vmatpush1.bf16.msra.mxu0 %v1883
    %1887 = vmatprep.subr.bf16.mxu0 0
    %1888 = vmatpush1.bf16.msra.mxu0 0
    %1889 = vmatprep.subr.bf16.mxu0 0
    %1890 = vmatpush1.bf16.msra.mxu0 0
    %1891 = vmatprep.subr.bf16.mxu0 0
    %1892 = vmatpush1.bf16.msra.mxu0 0
    %1893 = vmatprep.subr.bf16.mxu0 0
    %1894 = vmatpush1.bf16.msra.mxu0 0
    %1895 = vmatprep.subr.bf16.mxu0 0
    %1896 = vmatpush1.bf16.msra.mxu0 0
    %1897 = vmatprep.subr.bf16.mxu0 0
    %1898 = vmatpush1.bf16.msra.mxu0 0
    %1899 = vmatprep.subr.bf16.mxu0 0
    %1900 = vmatpush1.bf16.msra.mxu0 0
    %1901 = vmatprep.subr.bf16.mxu0 0
    %1902 = vmatpush1.bf16.msra.mxu0 0
    %1903 = vmatprep.subr.bf16.mxu0 0
    %1904 = vmatpush1.bf16.msra.mxu0 0
    %1905 = vmatprep.subr.bf16.mxu0 0
    %1906 = vmatpush1.bf16.msra.mxu0 0
    %1907 = vmatprep.subr.bf16.mxu0 0
    %1908 = vmatpush1.bf16.msra.mxu0 0
    %1909 = vmatprep.subr.bf16.mxu0 0
    %1910 = vmatpush1.bf16.msra.mxu0 0
    %1911 = vmatprep.subr.bf16.mxu0 0
    %1912 = vmatpush1.bf16.msra.mxu0 0
    %1913 = vmatprep.subr.bf16.mxu0 0
    %1914 = vmatpush1.bf16.msra.mxu0 0
    %1915 = vmatprep.subr.bf16.mxu0 0
    %1916 = vmatpush1.bf16.msra.mxu0 0
    %1917 = vmatprep.mubr.bf16.mxu0 0
    %1918 = vmatmul.mubr.bf16.gmra.mrb[0].mxu0 %v1880
    %v1919 = vpop.f32.mrb[0].mxu0
    %v1920 = vadd.f32 0.0, %v1919
    %v1921 = vpop.f32.mrb[0].mxu0
    %v1922 = vpop.f32.mrb[0].mxu0
    %v1923 = vpop.f32.mrb[0].mxu0
    %1924 = vdwg.mxu0
    %1925 = vrot.lane.b32.xlu0 %v414, 64
    %v1926 = vpop.permute.xlu0 %1925
    %v1928 = vsel %vm422, %v1391, 0
    %v1931 = vsel %vm1401, %v1926, 0
    %1933 = vmatprep.subr.bf16.mxu0 0
    %1934 = vmatpush1.bf16.msra.mxu0 %v1931
    %1935 = vmatprep.subr.bf16.mxu0 0
    %1936 = vmatpush1.bf16.msra.mxu0 0
    %1937 = vmatprep.subr.bf16.mxu0 0
    %1938 = vmatpush1.bf16.msra.mxu0 0
    %1939 = vmatprep.subr.bf16.mxu0 0
    %1940 = vmatpush1.bf16.msra.mxu0 0
    %1941 = vmatprep.subr.bf16.mxu0 0
    %1942 = vmatpush1.bf16.msra.mxu0 0
    %1943 = vmatprep.subr.bf16.mxu0 0
    %1944 = vmatpush1.bf16.msra.mxu0 0
    %1945 = vmatprep.subr.bf16.mxu0 0
    %1946 = vmatpush1.bf16.msra.mxu0 0
    %1947 = vmatprep.subr.bf16.mxu0 0
    %1948 = vmatpush1.bf16.msra.mxu0 0
    %1949 = vmatprep.subr.bf16.mxu0 0
    %1950 = vmatpush1.bf16.msra.mxu0 0
    %1951 = vmatprep.subr.bf16.mxu0 0
    %1952 = vmatpush1.bf16.msra.mxu0 0
    %1953 = vmatprep.subr.bf16.mxu0 0
    %1954 = vmatpush1.bf16.msra.mxu0 0
    %1955 = vmatprep.subr.bf16.mxu0 0
    %1956 = vmatpush1.bf16.msra.mxu0 0
    %1957 = vmatprep.subr.bf16.mxu0 0
    %1958 = vmatpush1.bf16.msra.mxu0 0
    %1959 = vmatprep.subr.bf16.mxu0 0
    %1960 = vmatpush1.bf16.msra.mxu0 0
    %1961 = vmatprep.subr.bf16.mxu0 0
    %1962 = vmatpush1.bf16.msra.mxu0 0
    %1963 = vmatprep.subr.bf16.mxu0 0
    %1964 = vmatpush1.bf16.msra.mxu0 0
    %1965 = vmatprep.mubr.bf16.mxu0 0
    %1966 = vmatmul.mubr.bf16.gmra.mrb[0].mxu0 %v1928
    %v1967 = vpop.f32.mrb[0].mxu0
    %v1968 = vadd.f32 0.0, %v1967
    %v1969 = vpop.f32.mrb[0].mxu0
    %v1970 = vpop.f32.mrb[0].mxu0
    %v1971 = vpop.f32.mrb[0].mxu0
    %1972 = vdwg.mxu0
    %1973 = vrot.lane.b32.xlu0 %v415, 64
    %v1974 = vpop.permute.xlu0 %1973
    %v1976 = vsel %vm422, %v1392, 0
    %v1979 = vsel %vm1401, %v1974, 0
    %1981 = vmatprep.subr.bf16.mxu0 0
    %1982 = vmatpush1.bf16.msra.mxu0 %v1979
    %1983 = vmatprep.subr.bf16.mxu0 0
    %1984 = vmatpush1.bf16.msra.mxu0 0
    %1985 = vmatprep.subr.bf16.mxu0 0
    %1986 = vmatpush1.bf16.msra.mxu0 0
    %1987 = vmatprep.subr.bf16.mxu0 0
    %1988 = vmatpush1.bf16.msra.mxu0 0
    %1989 = vmatprep.subr.bf16.mxu0 0
    %1990 = vmatpush1.bf16.msra.mxu0 0
    %1991 = vmatprep.subr.bf16.mxu0 0
    %1992 = vmatpush1.bf16.msra.mxu0 0
    %1993 = vmatprep.subr.bf16.mxu0 0
    %1994 = vmatpush1.bf16.msra.mxu0 0
    %1995 = vmatprep.subr.bf16.mxu0 0
    %1996 = vmatpush1.bf16.msra.mxu0 0
    %1997 = vmatprep.subr.bf16.mxu0 0
    %1998 = vmatpush1.bf16.msra.mxu0 0
    %1999 = vmatprep.subr.bf16.mxu0 0
    %2000 = vmatpush1.bf16.msra.mxu0 0
    %2001 = vmatprep.subr.bf16.mxu0 0
    %2002 = vmatpush1.bf16.msra.mxu0 0
    %2003 = vmatprep.subr.bf16.mxu0 0
    %2004 = vmatpush1.bf16.msra.mxu0 0
    %2005 = vmatprep.subr.bf16.mxu0 0
    %2006 = vmatpush1.bf16.msra.mxu0 0
    %2007 = vmatprep.subr.bf16.mxu0 0
    %2008 = vmatpush1.bf16.msra.mxu0 0
    %2009 = vmatprep.subr.bf16.mxu0 0
    %2010 = vmatpush1.bf16.msra.mxu0 0
    %2011 = vmatprep.subr.bf16.mxu0 0
    %2012 = vmatpush1.bf16.msra.mxu0 0
    %2013 = vmatprep.mubr.bf16.mxu0 0
    %2014 = vmatmul.mubr.bf16.gmra.mrb[0].mxu0 %v1976
    %v2015 = vpop.f32.mrb[0].mxu0
    %v2016 = vadd.f32 0.0, %v2015
    %v2017 = vpop.f32.mrb[0].mxu0
    %v2018 = vpop.f32.mrb[0].mxu0
    %v2019 = vpop.f32.mrb[0].mxu0
    %2020 = vdwg.mxu0
    %2021 = vrot.lane.b32.xlu0 %v416, 64
    %v2022 = vpop.permute.xlu0 %2021
    %v2024 = vsel %vm422, %v1393, 0
    %v2027 = vsel %vm1401, %v2022, 0
    %2029 = vmatprep.subr.bf16.mxu0 0
    %2030 = vmatpush1.bf16.msra.mxu0 %v2027
    %2031 = vmatprep.subr.bf16.mxu0 0
    %2032 = vmatpush1.bf16.msra.mxu0 0
    %2033 = vmatprep.subr.bf16.mxu0 0
    %2034 = vmatpush1.bf16.msra.mxu0 0
    %2035 = vmatprep.subr.bf16.mxu0 0
    %2036 = vmatpush1.bf16.msra.mxu0 0
    %2037 = vmatprep.subr.bf16.mxu0 0
    %2038 = vmatpush1.bf16.msra.mxu0 0
    %2039 = vmatprep.subr.bf16.mxu0 0
    %2040 = vmatpush1.bf16.msra.mxu0 0
    %2041 = vmatprep.subr.bf16.mxu0 0
    %2042 = vmatpush1.bf16.msra.mxu0 0
    %2043 = vmatprep.subr.bf16.mxu0 0
    %2044 = vmatpush1.bf16.msra.mxu0 0
    %2045 = vmatprep.subr.bf16.mxu0 0
    %2046 = vmatpush1.bf16.msra.mxu0 0
    %2047 = vmatprep.subr.bf16.mxu0 0
    %2048 = vmatpush1.bf16.msra.mxu0 0
    %2049 = vmatprep.subr.bf16.mxu0 0
    %2050 = vmatpush1.bf16.msra.mxu0 0
    %2051 = vmatprep.subr.bf16.mxu0 0
    %2052 = vmatpush1.bf16.msra.mxu0 0
    %2053 = vmatprep.subr.bf16.mxu0 0
    %2054 = vmatpush1.bf16.msra.mxu0 0
    %2055 = vmatprep.subr.bf16.mxu0 0
    %2056 = vmatpush1.bf16.msra.mxu0 0
    %2057 = vmatprep.subr.bf16.mxu0 0
    %2058 = vmatpush1.bf16.msra.mxu0 0
    %2059 = vmatprep.subr.bf16.mxu0 0
    %2060 = vmatpush1.bf16.msra.mxu0 0
    %2061 = vmatprep.mubr.bf16.mxu0 0
    %2062 = vmatmul.mubr.bf16.gmra.mrb[0].mxu0 %v2024
    %v2063 = vpop.f32.mrb[0].mxu0
    %v2064 = vadd.f32 0.0, %v2063
    %v2065 = vpop.f32.mrb[0].mxu0
    %v2066 = vpop.f32.mrb[0].mxu0
    %v2067 = vpop.f32.mrb[0].mxu0
    %2068 = vdwg.mxu0
    %2069 = vrot.lane.b32.xlu0 %v417, 64
    %v2070 = vpop.permute.xlu0 %2069
    %v2072 = vsel %vm422, %v1394, 0
    %v2075 = vsel %vm1401, %v2070, 0
    %2077 = vmatprep.subr.bf16.mxu0 0
    %2078 = vmatpush1.bf16.msra.mxu0 %v2075
    %2079 = vmatprep.subr.bf16.mxu0 0
    %2080 = vmatpush1.bf16.msra.mxu0 0
    %2081 = vmatprep.subr.bf16.mxu0 0
    %2082 = vmatpush1.bf16.msra.mxu0 0
    %2083 = vmatprep.subr.bf16.mxu0 0
    %2084 = vmatpush1.bf16.msra.mxu0 0
    %2085 = vmatprep.subr.bf16.mxu0 0
    %2086 = vmatpush1.bf16.msra.mxu0 0
    %2087 = vmatprep.subr.bf16.mxu0 0
    %2088 = vmatpush1.bf16.msra.mxu0 0
    %2089 = vmatprep.subr.bf16.mxu0 0
    %2090 = vmatpush1.bf16.msra.mxu0 0
    %2091 = vmatprep.subr.bf16.mxu0 0
    %2092 = vmatpush1.bf16.msra.mxu0 0
    %2093 = vmatprep.subr.bf16.mxu0 0
    %2094 = vmatpush1.bf16.msra.mxu0 0
    %2095 = vmatprep.subr.bf16.mxu0 0
    %2096 = vmatpush1.bf16.msra.mxu0 0
    %2097 = vmatprep.subr.bf16.mxu0 0
    %2098 = vmatpush1.bf16.msra.mxu0 0
    %2099 = vmatprep.subr.bf16.mxu0 0
    %2100 = vmatpush1.bf16.msra.mxu0 0
    %2101 = vmatprep.subr.bf16.mxu0 0
    %2102 = vmatpush1.bf16.msra.mxu0 0
    %2103 = vmatprep.subr.bf16.mxu0 0
    %2104 = vmatpush1.bf16.msra.mxu0 0
    %2105 = vmatprep.subr.bf16.mxu0 0
    %2106 = vmatpush1.bf16.msra.mxu0 0
    %2107 = vmatprep.subr.bf16.mxu0 0
    %2108 = vmatpush1.bf16.msra.mxu0 0
    %2109 = vmatprep.mubr.bf16.mxu0 0
    %2110 = vmatmul.mubr.bf16.gmra.mrb[0].mxu0 %v2072
    %v2111 = vpop.f32.mrb[0].mxu0
    %v2112 = vadd.f32 0.0, %v2111
    %v2113 = vpop.f32.mrb[0].mxu0
    %v2114 = vpop.f32.mrb[0].mxu0
    %v2115 = vpop.f32.mrb[0].mxu0
    %2116 = vdwg.mxu0
    %2117 = vrot.lane.b32.xlu0 %v418, 64
    %v2118 = vpop.permute.xlu0 %2117
    %v2120 = vsel %vm422, %v1395, 0
    %v2123 = vsel %vm1401, %v2118, 0
    %2125 = vmatprep.subr.bf16.mxu0 0
    %2126 = vmatpush1.bf16.msra.mxu0 %v2123
    %2127 = vmatprep.subr.bf16.mxu0 0
    %2128 = vmatpush1.bf16.msra.mxu0 0
    %2129 = vmatprep.subr.bf16.mxu0 0
    %2130 = vmatpush1.bf16.msra.mxu0 0
    %2131 = vmatprep.subr.bf16.mxu0 0
    %2132 = vmatpush1.bf16.msra.mxu0 0
    %2133 = vmatprep.subr.bf16.mxu0 0
    %2134 = vmatpush1.bf16.msra.mxu0 0
    %2135 = vmatprep.subr.bf16.mxu0 0
    %2136 = vmatpush1.bf16.msra.mxu0 0
    %2137 = vmatprep.subr.bf16.mxu0 0
    %2138 = vmatpush1.bf16.msra.mxu0 0
    %2139 = vmatprep.subr.bf16.mxu0 0
    %2140 = vmatpush1.bf16.msra.mxu0 0
    %2141 = vmatprep.subr.bf16.mxu0 0
    %2142 = vmatpush1.bf16.msra.mxu0 0
    %2143 = vmatprep.subr.bf16.mxu0 0
    %2144 = vmatpush1.bf16.msra.mxu0 0
    %2145 = vmatprep.subr.bf16.mxu0 0
    %2146 = vmatpush1.bf16.msra.mxu0 0
    %2147 = vmatprep.subr.bf16.mxu0 0
    %2148 = vmatpush1.bf16.msra.mxu0 0
    %2149 = vmatprep.subr.bf16.mxu0 0
    %2150 = vmatpush1.bf16.msra.mxu0 0
    %2151 = vmatprep.subr.bf16.mxu0 0
    %2152 = vmatpush1.bf16.msra.mxu0 0
    %2153 = vmatprep.subr.bf16.mxu0 0
    %2154 = vmatpush1.bf16.msra.mxu0 0
    %2155 = vmatprep.subr.bf16.mxu0 0
    %2156 = vmatpush1.bf16.msra.mxu0 0
    %2157 = vmatprep.mubr.bf16.mxu0 0
    %2158 = vmatmul.mubr.bf16.gmra.mrb[0].mxu0 %v2120
    %v2159 = vpop.f32.mrb[0].mxu0
    %v2160 = vadd.f32 0.0, %v2159
    %v2161 = vpop.f32.mrb[0].mxu0
    %v2162 = vpop.f32.mrb[0].mxu0
    %v2163 = vpop.f32.mrb[0].mxu0
    %2164 = vdwg.mxu0
    %2166 = vrot.lane.b32.xlu0 %v387, 120
    %v2167 = vpop.permute.xlu0 %2166
    %2168 = vrot.lane.b32.xlu0 %v403, 88
    %v2169 = vpop.permute.xlu0 %2168
    %v2171 = vsel %vm422, %v2167, 0
    %v2174 = vsel %vm422, %v2169, 0
    %2176 = vmatprep.subr.bf16.mxu0 0
    %2177 = vmatpush1.bf16.xpose.msra.mxu0 %v2174
    %2178 = vmatprep.subr.bf16.mxu0 0
    %2179 = vmatpush1.bf16.xpose.msra.mxu0 0
    %2180 = vmatprep.subr.bf16.mxu0 0
    %2181 = vmatpush1.bf16.xpose.msra.mxu0 0
    %2182 = vmatprep.subr.bf16.mxu0 0
    %2183 = vmatpush1.bf16.xpose.msra.mxu0 0
    %2184 = vmatprep.subr.bf16.mxu0 0
    %2185 = vmatpush1.bf16.xpose.msra.mxu0 0
    %2186 = vmatprep.subr.bf16.mxu0 0
    %2187 = vmatpush1.bf16.xpose.msra.mxu0 0
    %2188 = vmatprep.subr.bf16.mxu0 0
    %2189 = vmatpush1.bf16.xpose.msra.mxu0 0
    %2190 = vmatprep.subr.bf16.mxu0 0
    %2191 = vmatpush1.bf16.xpose.msra.mxu0 0
    %2192 = vmatprep.subr.bf16.mxu0 0
    %2193 = vmatpush1.bf16.xpose.msra.mxu0 0
    %2194 = vmatprep.subr.bf16.mxu0 0
    %2195 = vmatpush1.bf16.xpose.msra.mxu0 0
    %2196 = vmatprep.subr.bf16.mxu0 0
    %2197 = vmatpush1.bf16.xpose.msra.mxu0 0
    %2198 = vmatprep.subr.bf16.mxu0 0
    %2199 = vmatpush1.bf16.xpose.msra.mxu0 0
    %2200 = vmatprep.subr.bf16.mxu0 0
    %2201 = vmatpush1.bf16.xpose.msra.mxu0 0
    %2202 = vmatprep.subr.bf16.mxu0 0
    %2203 = vmatpush1.bf16.xpose.msra.mxu0 0
    %2204 = vmatprep.subr.bf16.mxu0 0
    %2205 = vmatpush1.bf16.xpose.msra.mxu0 0
    %2206 = vmatprep.subr.bf16.mxu0 0
    %2207 = vmatpush1.bf16.xpose.msra.mxu0 0
    %2208 = vmatprep.mubr.bf16.mxu0 0
    %2209 = vmatmul.mubr.bf16.gmra.mrb[0].mxu0 %v2171
    %v2210 = vpop.f32.mrb[0].mxu0
    %v2211 = vadd.f32 %v60, %v2210
    %v2212 = vpop.f32.mrb[0].mxu0
    %v2213 = vpop.f32.mrb[0].mxu0
    %v2214 = vpop.f32.mrb[0].mxu0
    %2215 = vdwg.mxu0
    %2217 = vrot.lane.b32.xlu0 %v388, 120
    %v2218 = vpop.permute.xlu0 %2217
    %2219 = vrot.lane.b32.xlu0 %v404, 88
    %v2220 = vpop.permute.xlu0 %2219
    %v2222 = vsel %vm422, %v2218, 0
    %v2225 = vsel %vm422, %v2220, 0
    %2227 = vmatprep.subr.bf16.mxu0 0
    %2228 = vmatpush1.bf16.xpose.msra.mxu0 %v2225
    %2229 = vmatprep.subr.bf16.mxu0 0
    %2230 = vmatpush1.bf16.xpose.msra.mxu0 0
    %2231 = vmatprep.subr.bf16.mxu0 0
    %2232 = vmatpush1.bf16.xpose.msra.mxu0 0
    %2233 = vmatprep.subr.bf16.mxu0 0
    %2234 = vmatpush1.bf16.xpose.msra.mxu0 0
    %2235 = vmatprep.subr.bf16.mxu0 0
    %2236 = vmatpush1.bf16.xpose.msra.mxu0 0
    %2237 = vmatprep.subr.bf16.mxu0 0
    %2238 = vmatpush1.bf16.xpose.msra.mxu0 0
    %2239 = vmatprep.subr.bf16.mxu0 0
    %2240 = vmatpush1.bf16.xpose.msra.mxu0 0
    %2241 = vmatprep.subr.bf16.mxu0 0
    %2242 = vmatpush1.bf16.xpose.msra.mxu0 0
    %2243 = vmatprep.subr.bf16.mxu0 0
    %2244 = vmatpush1.bf16.xpose.msra.mxu0 0
    %2245 = vmatprep.subr.bf16.mxu0 0
    %2246 = vmatpush1.bf16.xpose.msra.mxu0 0
    %2247 = vmatprep.subr.bf16.mxu0 0
    %2248 = vmatpush1.bf16.xpose.msra.mxu0 0
    %2249 = vmatprep.subr.bf16.mxu0 0
    %2250 = vmatpush1.bf16.xpose.msra.mxu0 0
    %2251 = vmatprep.subr.bf16.mxu0 0
    %2252 = vmatpush1.bf16.xpose.msra.mxu0 0
    %2253 = vmatprep.subr.bf16.mxu0 0
    %2254 = vmatpush1.bf16.xpose.msra.mxu0 0
    %2255 = vmatprep.subr.bf16.mxu0 0
    %2256 = vmatpush1.bf16.xpose.msra.mxu0 0
    %2257 = vmatprep.subr.bf16.mxu0 0
    %2258 = vmatpush1.bf16.xpose.msra.mxu0 0
    %2259 = vmatprep.mubr.bf16.mxu0 0
    %2260 = vmatmul.mubr.bf16.gmra.mrb[0].mxu0 %v2222
    %v2261 = vpop.f32.mrb[0].mxu0
    %v2262 = vadd.f32 %v61, %v2261
    %v2263 = vpop.f32.mrb[0].mxu0
    %v2264 = vpop.f32.mrb[0].mxu0
    %v2265 = vpop.f32.mrb[0].mxu0
    %2266 = vdwg.mxu0
    %2268 = vrot.lane.b32.xlu0 %v389, 120
    %v2269 = vpop.permute.xlu0 %2268
    %2270 = vrot.lane.b32.xlu0 %v405, 88
    %v2271 = vpop.permute.xlu0 %2270
    %v2273 = vsel %vm422, %v2269, 0
    %v2276 = vsel %vm422, %v2271, 0
    %2278 = vmatprep.subr.bf16.mxu0 0
    %2279 = vmatpush1.bf16.xpose.msra.mxu0 %v2276
    %2280 = vmatprep.subr.bf16.mxu0 0
    %2281 = vmatpush1.bf16.xpose.msra.mxu0 0
    %2282 = vmatprep.subr.bf16.mxu0 0
    %2283 = vmatpush1.bf16.xpose.msra.mxu0 0
    %2284 = vmatprep.subr.bf16.mxu0 0
    %2285 = vmatpush1.bf16.xpose.msra.mxu0 0
    %2286 = vmatprep.subr.bf16.mxu0 0
    %2287 = vmatpush1.bf16.xpose.msra.mxu0 0
    %2288 = vmatprep.subr.bf16.mxu0 0
    %2289 = vmatpush1.bf16.xpose.msra.mxu0 0
    %2290 = vmatprep.subr.bf16.mxu0 0
    %2291 = vmatpush1.bf16.xpose.msra.mxu0 0
    %2292 = vmatprep.subr.bf16.mxu0 0
    %2293 = vmatpush1.bf16.xpose.msra.mxu0 0
    %2294 = vmatprep.subr.bf16.mxu0 0
    %2295 = vmatpush1.bf16.xpose.msra.mxu0 0
    %2296 = vmatprep.subr.bf16.mxu0 0
    %2297 = vmatpush1.bf16.xpose.msra.mxu0 0
    %2298 = vmatprep.subr.bf16.mxu0 0
    %2299 = vmatpush1.bf16.xpose.msra.mxu0 0
    %2300 = vmatprep.subr.bf16.mxu0 0
    %2301 = vmatpush1.bf16.xpose.msra.mxu0 0
    %2302 = vmatprep.subr.bf16.mxu0 0
    %2303 = vmatpush1.bf16.xpose.msra.mxu0 0
    %2304 = vmatprep.subr.bf16.mxu0 0
    %2305 = vmatpush1.bf16.xpose.msra.mxu0 0
    %2306 = vmatprep.subr.bf16.mxu0 0
    %2307 = vmatpush1.bf16.xpose.msra.mxu0 0
    %2308 = vmatprep.subr.bf16.mxu0 0
    %2309 = vmatpush1.bf16.xpose.msra.mxu0 0
    %2310 = vmatprep.mubr.bf16.mxu0 0
    %2311 = vmatmul.mubr.bf16.gmra.mrb[0].mxu0 %v2273
    %v2312 = vpop.f32.mrb[0].mxu0
    %v2313 = vadd.f32 %v62, %v2312
    %v2314 = vpop.f32.mrb[0].mxu0
    %v2315 = vpop.f32.mrb[0].mxu0
    %v2316 = vpop.f32.mrb[0].mxu0
    %2317 = vdwg.mxu0
    %2319 = vrot.lane.b32.xlu0 %v390, 120
    %v2320 = vpop.permute.xlu0 %2319
    %2321 = vrot.lane.b32.xlu0 %v406, 88
    %v2322 = vpop.permute.xlu0 %2321
    %v2324 = vsel %vm422, %v2320, 0
    %v2327 = vsel %vm422, %v2322, 0
    %2329 = vmatprep.subr.bf16.mxu0 0
    %2330 = vmatpush1.bf16.xpose.msra.mxu0 %v2327
    %2331 = vmatprep.subr.bf16.mxu0 0
    %2332 = vmatpush1.bf16.xpose.msra.mxu0 0
    %2333 = vmatprep.subr.bf16.mxu0 0
    %2334 = vmatpush1.bf16.xpose.msra.mxu0 0
    %2335 = vmatprep.subr.bf16.mxu0 0
    %2336 = vmatpush1.bf16.xpose.msra.mxu0 0
    %2337 = vmatprep.subr.bf16.mxu0 0
    %2338 = vmatpush1.bf16.xpose.msra.mxu0 0
    %2339 = vmatprep.subr.bf16.mxu0 0
    %2340 = vmatpush1.bf16.xpose.msra.mxu0 0
    %2341 = vmatprep.subr.bf16.mxu0 0
    %2342 = vmatpush1.bf16.xpose.msra.mxu0 0
    %2343 = vmatprep.subr.bf16.mxu0 0
    %2344 = vmatpush1.bf16.xpose.msra.mxu0 0
    %2345 = vmatprep.subr.bf16.mxu0 0
    %2346 = vmatpush1.bf16.xpose.msra.mxu0 0
    %2347 = vmatprep.subr.bf16.mxu0 0
    %2348 = vmatpush1.bf16.xpose.msra.mxu0 0
    %2349 = vmatprep.subr.bf16.mxu0 0
    %2350 = vmatpush1.bf16.xpose.msra.mxu0 0
    %2351 = vmatprep.subr.bf16.mxu0 0
    %2352 = vmatpush1.bf16.xpose.msra.mxu0 0
    %2353 = vmatprep.subr.bf16.mxu0 0
    %2354 = vmatpush1.bf16.xpose.msra.mxu0 0
    %2355 = vmatprep.subr.bf16.mxu0 0
    %2356 = vmatpush1.bf16.xpose.msra.mxu0 0
    %2357 = vmatprep.subr.bf16.mxu0 0
    %2358 = vmatpush1.bf16.xpose.msra.mxu0 0
    %2359 = vmatprep.subr.bf16.mxu0 0
    %2360 = vmatpush1.bf16.xpose.msra.mxu0 0
    %2361 = vmatprep.mubr.bf16.mxu0 0
    %2362 = vmatmul.mubr.bf16.gmra.mrb[0].mxu0 %v2324
    %v2363 = vpop.f32.mrb[0].mxu0
    %v2364 = vadd.f32 %v63, %v2363
    %v2365 = vpop.f32.mrb[0].mxu0
    %v2366 = vpop.f32.mrb[0].mxu0
    %v2367 = vpop.f32.mrb[0].mxu0
    %2368 = vdwg.mxu0
    %2370 = vrot.lane.b32.xlu0 %v391, 120
    %v2371 = vpop.permute.xlu0 %2370
    %2372 = vrot.lane.b32.xlu0 %v407, 88
    %v2373 = vpop.permute.xlu0 %2372
    %v2375 = vsel %vm422, %v2371, 0
    %v2378 = vsel %vm422, %v2373, 0
    %2380 = vmatprep.subr.bf16.mxu0 0
    %2381 = vmatpush1.bf16.xpose.msra.mxu0 %v2378
    %2382 = vmatprep.subr.bf16.mxu0 0
    %2383 = vmatpush1.bf16.xpose.msra.mxu0 0
    %2384 = vmatprep.subr.bf16.mxu0 0
    %2385 = vmatpush1.bf16.xpose.msra.mxu0 0
    %2386 = vmatprep.subr.bf16.mxu0 0
    %2387 = vmatpush1.bf16.xpose.msra.mxu0 0
    %2388 = vmatprep.subr.bf16.mxu0 0
    %2389 = vmatpush1.bf16.xpose.msra.mxu0 0
    %2390 = vmatprep.subr.bf16.mxu0 0
    %2391 = vmatpush1.bf16.xpose.msra.mxu0 0
    %2392 = vmatprep.subr.bf16.mxu0 0
    %2393 = vmatpush1.bf16.xpose.msra.mxu0 0
    %2394 = vmatprep.subr.bf16.mxu0 0
    %2395 = vmatpush1.bf16.xpose.msra.mxu0 0
    %2396 = vmatprep.subr.bf16.mxu0 0
    %2397 = vmatpush1.bf16.xpose.msra.mxu0 0
    %2398 = vmatprep.subr.bf16.mxu0 0
    %2399 = vmatpush1.bf16.xpose.msra.mxu0 0
    %2400 = vmatprep.subr.bf16.mxu0 0
    %2401 = vmatpush1.bf16.xpose.msra.mxu0 0
    %2402 = vmatprep.subr.bf16.mxu0 0
    %2403 = vmatpush1.bf16.xpose.msra.mxu0 0
    %2404 = vmatprep.subr.bf16.mxu0 0
    %2405 = vmatpush1.bf16.xpose.msra.mxu0 0
    %2406 = vmatprep.subr.bf16.mxu0 0
    %2407 = vmatpush1.bf16.xpose.msra.mxu0 0
    %2408 = vmatprep.subr.bf16.mxu0 0
    %2409 = vmatpush1.bf16.xpose.msra.mxu0 0
    %2410 = vmatprep.subr.bf16.mxu0 0
    %2411 = vmatpush1.bf16.xpose.msra.mxu0 0
    %2412 = vmatprep.mubr.bf16.mxu0 0
    %2413 = vmatmul.mubr.bf16.gmra.mrb[0].mxu0 %v2375
    %v2414 = vpop.f32.mrb[0].mxu0
    %v2415 = vadd.f32 %v64, %v2414
    %v2416 = vpop.f32.mrb[0].mxu0
    %v2417 = vpop.f32.mrb[0].mxu0
    %v2418 = vpop.f32.mrb[0].mxu0
    %2419 = vdwg.mxu0
    %2421 = vrot.lane.b32.xlu0 %v392, 120
    %v2422 = vpop.permute.xlu0 %2421
    %2423 = vrot.lane.b32.xlu0 %v408, 88
    %v2424 = vpop.permute.xlu0 %2423
    %v2426 = vsel %vm422, %v2422, 0
    %v2429 = vsel %vm422, %v2424, 0
    %2431 = vmatprep.subr.bf16.mxu0 0
    %2432 = vmatpush1.bf16.xpose.msra.mxu0 %v2429
    %2433 = vmatprep.subr.bf16.mxu0 0
    %2434 = vmatpush1.bf16.xpose.msra.mxu0 0
    %2435 = vmatprep.subr.bf16.mxu0 0
    %2436 = vmatpush1.bf16.xpose.msra.mxu0 0
    %2437 = vmatprep.subr.bf16.mxu0 0
    %2438 = vmatpush1.bf16.xpose.msra.mxu0 0
    %2439 = vmatprep.subr.bf16.mxu0 0
    %2440 = vmatpush1.bf16.xpose.msra.mxu0 0
    %2441 = vmatprep.subr.bf16.mxu0 0
    %2442 = vmatpush1.bf16.xpose.msra.mxu0 0
    %2443 = vmatprep.subr.bf16.mxu0 0
    %2444 = vmatpush1.bf16.xpose.msra.mxu0 0
    %2445 = vmatprep.subr.bf16.mxu0 0
    %2446 = vmatpush1.bf16.xpose.msra.mxu0 0
    %2447 = vmatprep.subr.bf16.mxu0 0
    %2448 = vmatpush1.bf16.xpose.msra.mxu0 0
    %2449 = vmatprep.subr.bf16.mxu0 0
    %2450 = vmatpush1.bf16.xpose.msra.mxu0 0
    %2451 = vmatprep.subr.bf16.mxu0 0
    %2452 = vmatpush1.bf16.xpose.msra.mxu0 0
    %2453 = vmatprep.subr.bf16.mxu0 0
    %2454 = vmatpush1.bf16.xpose.msra.mxu0 0
    %2455 = vmatprep.subr.bf16.mxu0 0
    %2456 = vmatpush1.bf16.xpose.msra.mxu0 0
    %2457 = vmatprep.subr.bf16.mxu0 0
    %2458 = vmatpush1.bf16.xpose.msra.mxu0 0
    %2459 = vmatprep.subr.bf16.mxu0 0
    %2460 = vmatpush1.bf16.xpose.msra.mxu0 0
    %2461 = vmatprep.subr.bf16.mxu0 0
    %2462 = vmatpush1.bf16.xpose.msra.mxu0 0
    %2463 = vmatprep.mubr.bf16.mxu0 0
    %2464 = vmatmul.mubr.bf16.gmra.mrb[0].mxu0 %v2426
    %v2465 = vpop.f32.mrb[0].mxu0
    %v2466 = vadd.f32 %v65, %v2465
    %v2467 = vpop.f32.mrb[0].mxu0
    %v2468 = vpop.f32.mrb[0].mxu0
    %v2469 = vpop.f32.mrb[0].mxu0
    %2470 = vdwg.mxu0
    %2472 = vrot.lane.b32.xlu0 %v393, 120
    %v2473 = vpop.permute.xlu0 %2472
    %2474 = vrot.lane.b32.xlu0 %v409, 88
    %v2475 = vpop.permute.xlu0 %2474
    %v2477 = vsel %vm422, %v2473, 0
    %v2480 = vsel %vm422, %v2475, 0
    %2482 = vmatprep.subr.bf16.mxu0 0
    %2483 = vmatpush1.bf16.xpose.msra.mxu0 %v2480
    %2484 = vmatprep.subr.bf16.mxu0 0
    %2485 = vmatpush1.bf16.xpose.msra.mxu0 0
    %2486 = vmatprep.subr.bf16.mxu0 0
    %2487 = vmatpush1.bf16.xpose.msra.mxu0 0
    %2488 = vmatprep.subr.bf16.mxu0 0
    %2489 = vmatpush1.bf16.xpose.msra.mxu0 0
    %2490 = vmatprep.subr.bf16.mxu0 0
    %2491 = vmatpush1.bf16.xpose.msra.mxu0 0
    %2492 = vmatprep.subr.bf16.mxu0 0
    %2493 = vmatpush1.bf16.xpose.msra.mxu0 0
    %2494 = vmatprep.subr.bf16.mxu0 0
    %2495 = vmatpush1.bf16.xpose.msra.mxu0 0
    %2496 = vmatprep.subr.bf16.mxu0 0
    %2497 = vmatpush1.bf16.xpose.msra.mxu0 0
    %2498 = vmatprep.subr.bf16.mxu0 0
    %2499 = vmatpush1.bf16.xpose.msra.mxu0 0
    %2500 = vmatprep.subr.bf16.mxu0 0
    %2501 = vmatpush1.bf16.xpose.msra.mxu0 0
    %2502 = vmatprep.subr.bf16.mxu0 0
    %2503 = vmatpush1.bf16.xpose.msra.mxu0 0
    %2504 = vmatprep.subr.bf16.mxu0 0
    %2505 = vmatpush1.bf16.xpose.msra.mxu0 0
    %2506 = vmatprep.subr.bf16.mxu0 0
    %2507 = vmatpush1.bf16.xpose.msra.mxu0 0
    %2508 = vmatprep.subr.bf16.mxu0 0
    %2509 = vmatpush1.bf16.xpose.msra.mxu0 0
    %2510 = vmatprep.subr.bf16.mxu0 0
    %2511 = vmatpush1.bf16.xpose.msra.mxu0 0
    %2512 = vmatprep.subr.bf16.mxu0 0
    %2513 = vmatpush1.bf16.xpose.msra.mxu0 0
    %2514 = vmatprep.mubr.bf16.mxu0 0
    %2515 = vmatmul.mubr.bf16.gmra.mrb[0].mxu0 %v2477
    %v2516 = vpop.f32.mrb[0].mxu0
    %v2517 = vadd.f32 %v66, %v2516
    %v2518 = vpop.f32.mrb[0].mxu0
    %v2519 = vpop.f32.mrb[0].mxu0
    %v2520 = vpop.f32.mrb[0].mxu0
    %2521 = vdwg.mxu0
    %2523 = vrot.lane.b32.xlu0 %v394, 120
    %v2524 = vpop.permute.xlu0 %2523
    %2525 = vrot.lane.b32.xlu0 %v410, 88
    %v2526 = vpop.permute.xlu0 %2525
    %v2528 = vsel %vm422, %v2524, 0
    %v2531 = vsel %vm422, %v2526, 0
    %2533 = vmatprep.subr.bf16.mxu0 0
    %2534 = vmatpush1.bf16.xpose.msra.mxu0 %v2531
    %2535 = vmatprep.subr.bf16.mxu0 0
    %2536 = vmatpush1.bf16.xpose.msra.mxu0 0
    %2537 = vmatprep.subr.bf16.mxu0 0
    %2538 = vmatpush1.bf16.xpose.msra.mxu0 0
    %2539 = vmatprep.subr.bf16.mxu0 0
    %2540 = vmatpush1.bf16.xpose.msra.mxu0 0
    %2541 = vmatprep.subr.bf16.mxu0 0
    %2542 = vmatpush1.bf16.xpose.msra.mxu0 0
    %2543 = vmatprep.subr.bf16.mxu0 0
    %2544 = vmatpush1.bf16.xpose.msra.mxu0 0
    %2545 = vmatprep.subr.bf16.mxu0 0
    %2546 = vmatpush1.bf16.xpose.msra.mxu0 0
    %2547 = vmatprep.subr.bf16.mxu0 0
    %2548 = vmatpush1.bf16.xpose.msra.mxu0 0
    %2549 = vmatprep.subr.bf16.mxu0 0
    %2550 = vmatpush1.bf16.xpose.msra.mxu0 0
    %2551 = vmatprep.subr.bf16.mxu0 0
    %2552 = vmatpush1.bf16.xpose.msra.mxu0 0
    %2553 = vmatprep.subr.bf16.mxu0 0
    %2554 = vmatpush1.bf16.xpose.msra.mxu0 0
    %2555 = vmatprep.subr.bf16.mxu0 0
    %2556 = vmatpush1.bf16.xpose.msra.mxu0 0
    %2557 = vmatprep.subr.bf16.mxu0 0
    %2558 = vmatpush1.bf16.xpose.msra.mxu0 0
    %2559 = vmatprep.subr.bf16.mxu0 0
    %2560 = vmatpush1.bf16.xpose.msra.mxu0 0
    %2561 = vmatprep.subr.bf16.mxu0 0
    %2562 = vmatpush1.bf16.xpose.msra.mxu0 0
    %2563 = vmatprep.subr.bf16.mxu0 0
    %2564 = vmatpush1.bf16.xpose.msra.mxu0 0
    %2565 = vmatprep.mubr.bf16.mxu0 0
    %2566 = vmatmul.mubr.bf16.gmra.mrb[0].mxu0 %v2528
    %v2567 = vpop.f32.mrb[0].mxu0
    %v2568 = vadd.f32 %v67, %v2567
    %v2569 = vpop.f32.mrb[0].mxu0
    %v2570 = vpop.f32.mrb[0].mxu0
    %v2571 = vpop.f32.mrb[0].mxu0
    %2572 = vdwg.mxu0
    %2574 = vrot.lane.b32.xlu0 %v395, 120
    %v2575 = vpop.permute.xlu0 %2574
    %2576 = vrot.lane.b32.xlu0 %v411, 88
    %v2577 = vpop.permute.xlu0 %2576
    %v2579 = vsel %vm422, %v2575, 0
    %v2582 = vsel %vm422, %v2577, 0
    %2584 = vmatprep.subr.bf16.mxu0 0
    %2585 = vmatpush1.bf16.xpose.msra.mxu0 %v2582
    %2586 = vmatprep.subr.bf16.mxu0 0
    %2587 = vmatpush1.bf16.xpose.msra.mxu0 0
    %2588 = vmatprep.subr.bf16.mxu0 0
    %2589 = vmatpush1.bf16.xpose.msra.mxu0 0
    %2590 = vmatprep.subr.bf16.mxu0 0
    %2591 = vmatpush1.bf16.xpose.msra.mxu0 0
    %2592 = vmatprep.subr.bf16.mxu0 0
    %2593 = vmatpush1.bf16.xpose.msra.mxu0 0
    %2594 = vmatprep.subr.bf16.mxu0 0
    %2595 = vmatpush1.bf16.xpose.msra.mxu0 0
    %2596 = vmatprep.subr.bf16.mxu0 0
    %2597 = vmatpush1.bf16.xpose.msra.mxu0 0
    %2598 = vmatprep.subr.bf16.mxu0 0
    %2599 = vmatpush1.bf16.xpose.msra.mxu0 0
    %2600 = vmatprep.subr.bf16.mxu0 0
    %2601 = vmatpush1.bf16.xpose.msra.mxu0 0
    %2602 = vmatprep.subr.bf16.mxu0 0
    %2603 = vmatpush1.bf16.xpose.msra.mxu0 0
    %2604 = vmatprep.subr.bf16.mxu0 0
    %2605 = vmatpush1.bf16.xpose.msra.mxu0 0
    %2606 = vmatprep.subr.bf16.mxu0 0
    %2607 = vmatpush1.bf16.xpose.msra.mxu0 0
    %2608 = vmatprep.subr.bf16.mxu0 0
    %2609 = vmatpush1.bf16.xpose.msra.mxu0 0
    %2610 = vmatprep.subr.bf16.mxu0 0
    %2611 = vmatpush1.bf16.xpose.msra.mxu0 0
    %2612 = vmatprep.subr.bf16.mxu0 0
    %2613 = vmatpush1.bf16.xpose.msra.mxu0 0
    %2614 = vmatprep.subr.bf16.mxu0 0
    %2615 = vmatpush1.bf16.xpose.msra.mxu0 0
    %2616 = vmatprep.mubr.bf16.mxu0 0
    %2617 = vmatmul.mubr.bf16.gmra.mrb[0].mxu0 %v2579
    %v2618 = vpop.f32.mrb[0].mxu0
    %v2619 = vadd.f32 %v68, %v2618
    %v2620 = vpop.f32.mrb[0].mxu0
    %v2621 = vpop.f32.mrb[0].mxu0
    %v2622 = vpop.f32.mrb[0].mxu0
    %2623 = vdwg.mxu0
    %2625 = vrot.lane.b32.xlu0 %v396, 120
    %v2626 = vpop.permute.xlu0 %2625
    %2627 = vrot.lane.b32.xlu0 %v412, 88
    %v2628 = vpop.permute.xlu0 %2627
    %v2630 = vsel %vm422, %v2626, 0
    %v2633 = vsel %vm422, %v2628, 0
    %2635 = vmatprep.subr.bf16.mxu0 0
    %2636 = vmatpush1.bf16.xpose.msra.mxu0 %v2633
    %2637 = vmatprep.subr.bf16.mxu0 0
    %2638 = vmatpush1.bf16.xpose.msra.mxu0 0
    %2639 = vmatprep.subr.bf16.mxu0 0
    %2640 = vmatpush1.bf16.xpose.msra.mxu0 0
    %2641 = vmatprep.subr.bf16.mxu0 0
    %2642 = vmatpush1.bf16.xpose.msra.mxu0 0
    %2643 = vmatprep.subr.bf16.mxu0 0
    %2644 = vmatpush1.bf16.xpose.msra.mxu0 0
    %2645 = vmatprep.subr.bf16.mxu0 0
    %2646 = vmatpush1.bf16.xpose.msra.mxu0 0
    %2647 = vmatprep.subr.bf16.mxu0 0
    %2648 = vmatpush1.bf16.xpose.msra.mxu0 0
    %2649 = vmatprep.subr.bf16.mxu0 0
    %2650 = vmatpush1.bf16.xpose.msra.mxu0 0
    %2651 = vmatprep.subr.bf16.mxu0 0
    %2652 = vmatpush1.bf16.xpose.msra.mxu0 0
    %2653 = vmatprep.subr.bf16.mxu0 0
    %2654 = vmatpush1.bf16.xpose.msra.mxu0 0
    %2655 = vmatprep.subr.bf16.mxu0 0
    %2656 = vmatpush1.bf16.xpose.msra.mxu0 0
    %2657 = vmatprep.subr.bf16.mxu0 0
    %2658 = vmatpush1.bf16.xpose.msra.mxu0 0
    %2659 = vmatprep.subr.bf16.mxu0 0
    %2660 = vmatpush1.bf16.xpose.msra.mxu0 0
    %2661 = vmatprep.subr.bf16.mxu0 0
    %2662 = vmatpush1.bf16.xpose.msra.mxu0 0
    %2663 = vmatprep.subr.bf16.mxu0 0
    %2664 = vmatpush1.bf16.xpose.msra.mxu0 0
    %2665 = vmatprep.subr.bf16.mxu0 0
    %2666 = vmatpush1.bf16.xpose.msra.mxu0 0
    %2667 = vmatprep.mubr.bf16.mxu0 0
    %2668 = vmatmul.mubr.bf16.gmra.mrb[0].mxu0 %v2630
    %v2669 = vpop.f32.mrb[0].mxu0
    %v2670 = vadd.f32 %v69, %v2669
    %v2671 = vpop.f32.mrb[0].mxu0
    %v2672 = vpop.f32.mrb[0].mxu0
    %v2673 = vpop.f32.mrb[0].mxu0
    %2674 = vdwg.mxu0
    %2676 = vrot.lane.b32.xlu0 %v397, 120
    %v2677 = vpop.permute.xlu0 %2676
    %2678 = vrot.lane.b32.xlu0 %v413, 88
    %v2679 = vpop.permute.xlu0 %2678
    %v2681 = vsel %vm422, %v2677, 0
    %v2684 = vsel %vm422, %v2679, 0
    %2686 = vmatprep.subr.bf16.mxu0 0
    %2687 = vmatpush1.bf16.xpose.msra.mxu0 %v2684
    %2688 = vmatprep.subr.bf16.mxu0 0
    %2689 = vmatpush1.bf16.xpose.msra.mxu0 0
    %2690 = vmatprep.subr.bf16.mxu0 0
    %2691 = vmatpush1.bf16.xpose.msra.mxu0 0
    %2692 = vmatprep.subr.bf16.mxu0 0
    %2693 = vmatpush1.bf16.xpose.msra.mxu0 0
    %2694 = vmatprep.subr.bf16.mxu0 0
    %2695 = vmatpush1.bf16.xpose.msra.mxu0 0
    %2696 = vmatprep.subr.bf16.mxu0 0
    %2697 = vmatpush1.bf16.xpose.msra.mxu0 0
    %2698 = vmatprep.subr.bf16.mxu0 0
    %2699 = vmatpush1.bf16.xpose.msra.mxu0 0
    %2700 = vmatprep.subr.bf16.mxu0 0
    %2701 = vmatpush1.bf16.xpose.msra.mxu0 0
    %2702 = vmatprep.subr.bf16.mxu0 0
    %2703 = vmatpush1.bf16.xpose.msra.mxu0 0
    %2704 = vmatprep.subr.bf16.mxu0 0
    %2705 = vmatpush1.bf16.xpose.msra.mxu0 0
    %2706 = vmatprep.subr.bf16.mxu0 0
    %2707 = vmatpush1.bf16.xpose.msra.mxu0 0
    %2708 = vmatprep.subr.bf16.mxu0 0
    %2709 = vmatpush1.bf16.xpose.msra.mxu0 0
    %2710 = vmatprep.subr.bf16.mxu0 0
    %2711 = vmatpush1.bf16.xpose.msra.mxu0 0
    %2712 = vmatprep.subr.bf16.mxu0 0
    %2713 = vmatpush1.bf16.xpose.msra.mxu0 0
    %2714 = vmatprep.subr.bf16.mxu0 0
    %2715 = vmatpush1.bf16.xpose.msra.mxu0 0
    %2716 = vmatprep.subr.bf16.mxu0 0
    %2717 = vmatpush1.bf16.xpose.msra.mxu0 0
    %2718 = vmatprep.mubr.bf16.mxu0 0
    %2719 = vmatmul.mubr.bf16.gmra.mrb[0].mxu0 %v2681
    %v2720 = vpop.f32.mrb[0].mxu0
    %v2721 = vadd.f32 %v70, %v2720
    %v2722 = vpop.f32.mrb[0].mxu0
    %v2723 = vpop.f32.mrb[0].mxu0
    %v2724 = vpop.f32.mrb[0].mxu0
    %2725 = vdwg.mxu0
    %2727 = vrot.lane.b32.xlu0 %v398, 120
    %v2728 = vpop.permute.xlu0 %2727
    %2729 = vrot.lane.b32.xlu0 %v414, 88
    %v2730 = vpop.permute.xlu0 %2729
    %v2732 = vsel %vm422, %v2728, 0
    %v2735 = vsel %vm422, %v2730, 0
    %2737 = vmatprep.subr.bf16.mxu0 0
    %2738 = vmatpush1.bf16.xpose.msra.mxu0 %v2735
    %2739 = vmatprep.subr.bf16.mxu0 0
    %2740 = vmatpush1.bf16.xpose.msra.mxu0 0
    %2741 = vmatprep.subr.bf16.mxu0 0
    %2742 = vmatpush1.bf16.xpose.msra.mxu0 0
    %2743 = vmatprep.subr.bf16.mxu0 0
    %2744 = vmatpush1.bf16.xpose.msra.mxu0 0
    %2745 = vmatprep.subr.bf16.mxu0 0
    %2746 = vmatpush1.bf16.xpose.msra.mxu0 0
    %2747 = vmatprep.subr.bf16.mxu0 0
    %2748 = vmatpush1.bf16.xpose.msra.mxu0 0
    %2749 = vmatprep.subr.bf16.mxu0 0
    %2750 = vmatpush1.bf16.xpose.msra.mxu0 0
    %2751 = vmatprep.subr.bf16.mxu0 0
    %2752 = vmatpush1.bf16.xpose.msra.mxu0 0
    %2753 = vmatprep.subr.bf16.mxu0 0
    %2754 = vmatpush1.bf16.xpose.msra.mxu0 0
    %2755 = vmatprep.subr.bf16.mxu0 0
    %2756 = vmatpush1.bf16.xpose.msra.mxu0 0
    %2757 = vmatprep.subr.bf16.mxu0 0
    %2758 = vmatpush1.bf16.xpose.msra.mxu0 0
    %2759 = vmatprep.subr.bf16.mxu0 0
    %2760 = vmatpush1.bf16.xpose.msra.mxu0 0
    %2761 = vmatprep.subr.bf16.mxu0 0
    %2762 = vmatpush1.bf16.xpose.msra.mxu0 0
    %2763 = vmatprep.subr.bf16.mxu0 0
    %2764 = vmatpush1.bf16.xpose.msra.mxu0 0
    %2765 = vmatprep.subr.bf16.mxu0 0
    %2766 = vmatpush1.bf16.xpose.msra.mxu0 0
    %2767 = vmatprep.subr.bf16.mxu0 0
    %2768 = vmatpush1.bf16.xpose.msra.mxu0 0
    %2769 = vmatprep.mubr.bf16.mxu0 0
    %2770 = vmatmul.mubr.bf16.gmra.mrb[0].mxu0 %v2732
    %v2771 = vpop.f32.mrb[0].mxu0
    %v2772 = vadd.f32 %v71, %v2771
    %v2773 = vpop.f32.mrb[0].mxu0
    %v2774 = vpop.f32.mrb[0].mxu0
    %v2775 = vpop.f32.mrb[0].mxu0
    %2776 = vdwg.mxu0
    %2778 = vrot.lane.b32.xlu0 %v399, 120
    %v2779 = vpop.permute.xlu0 %2778
    %2780 = vrot.lane.b32.xlu0 %v415, 88
    %v2781 = vpop.permute.xlu0 %2780
    %v2783 = vsel %vm422, %v2779, 0
    %v2786 = vsel %vm422, %v2781, 0
    %2788 = vmatprep.subr.bf16.mxu0 0
    %2789 = vmatpush1.bf16.xpose.msra.mxu0 %v2786
    %2790 = vmatprep.subr.bf16.mxu0 0
    %2791 = vmatpush1.bf16.xpose.msra.mxu0 0
    %2792 = vmatprep.subr.bf16.mxu0 0
    %2793 = vmatpush1.bf16.xpose.msra.mxu0 0
    %2794 = vmatprep.subr.bf16.mxu0 0
    %2795 = vmatpush1.bf16.xpose.msra.mxu0 0
    %2796 = vmatprep.subr.bf16.mxu0 0
    %2797 = vmatpush1.bf16.xpose.msra.mxu0 0
    %2798 = vmatprep.subr.bf16.mxu0 0
    %2799 = vmatpush1.bf16.xpose.msra.mxu0 0
    %2800 = vmatprep.subr.bf16.mxu0 0
    %2801 = vmatpush1.bf16.xpose.msra.mxu0 0
    %2802 = vmatprep.subr.bf16.mxu0 0
    %2803 = vmatpush1.bf16.xpose.msra.mxu0 0
    %2804 = vmatprep.subr.bf16.mxu0 0
    %2805 = vmatpush1.bf16.xpose.msra.mxu0 0
    %2806 = vmatprep.subr.bf16.mxu0 0
    %2807 = vmatpush1.bf16.xpose.msra.mxu0 0
    %2808 = vmatprep.subr.bf16.mxu0 0
    %2809 = vmatpush1.bf16.xpose.msra.mxu0 0
    %2810 = vmatprep.subr.bf16.mxu0 0
    %2811 = vmatpush1.bf16.xpose.msra.mxu0 0
    %2812 = vmatprep.subr.bf16.mxu0 0
    %2813 = vmatpush1.bf16.xpose.msra.mxu0 0
    %2814 = vmatprep.subr.bf16.mxu0 0
    %2815 = vmatpush1.bf16.xpose.msra.mxu0 0
    %2816 = vmatprep.subr.bf16.mxu0 0
    %2817 = vmatpush1.bf16.xpose.msra.mxu0 0
    %2818 = vmatprep.subr.bf16.mxu0 0
    %2819 = vmatpush1.bf16.xpose.msra.mxu0 0
    %2820 = vmatprep.mubr.bf16.mxu0 0
    %2821 = vmatmul.mubr.bf16.gmra.mrb[0].mxu0 %v2783
    %v2822 = vpop.f32.mrb[0].mxu0
    %v2823 = vadd.f32 %v72, %v2822
    %v2824 = vpop.f32.mrb[0].mxu0
    %v2825 = vpop.f32.mrb[0].mxu0
    %v2826 = vpop.f32.mrb[0].mxu0
    %2827 = vdwg.mxu0
    %2829 = vrot.lane.b32.xlu0 %v400, 120
    %v2830 = vpop.permute.xlu0 %2829
    %2831 = vrot.lane.b32.xlu0 %v416, 88
    %v2832 = vpop.permute.xlu0 %2831
    %v2834 = vsel %vm422, %v2830, 0
    %v2837 = vsel %vm422, %v2832, 0
    %2839 = vmatprep.subr.bf16.mxu0 0
    %2840 = vmatpush1.bf16.xpose.msra.mxu0 %v2837
    %2841 = vmatprep.subr.bf16.mxu0 0
    %2842 = vmatpush1.bf16.xpose.msra.mxu0 0
    %2843 = vmatprep.subr.bf16.mxu0 0
    %2844 = vmatpush1.bf16.xpose.msra.mxu0 0
    %2845 = vmatprep.subr.bf16.mxu0 0
    %2846 = vmatpush1.bf16.xpose.msra.mxu0 0
    %2847 = vmatprep.subr.bf16.mxu0 0
    %2848 = vmatpush1.bf16.xpose.msra.mxu0 0
    %2849 = vmatprep.subr.bf16.mxu0 0
    %2850 = vmatpush1.bf16.xpose.msra.mxu0 0
    %2851 = vmatprep.subr.bf16.mxu0 0
    %2852 = vmatpush1.bf16.xpose.msra.mxu0 0
    %2853 = vmatprep.subr.bf16.mxu0 0
    %2854 = vmatpush1.bf16.xpose.msra.mxu0 0
    %2855 = vmatprep.subr.bf16.mxu0 0
    %2856 = vmatpush1.bf16.xpose.msra.mxu0 0
    %2857 = vmatprep.subr.bf16.mxu0 0
    %2858 = vmatpush1.bf16.xpose.msra.mxu0 0
    %2859 = vmatprep.subr.bf16.mxu0 0
    %2860 = vmatpush1.bf16.xpose.msra.mxu0 0
    %2861 = vmatprep.subr.bf16.mxu0 0
    %2862 = vmatpush1.bf16.xpose.msra.mxu0 0
    %2863 = vmatprep.subr.bf16.mxu0 0
    %2864 = vmatpush1.bf16.xpose.msra.mxu0 0
    %2865 = vmatprep.subr.bf16.mxu0 0
    %2866 = vmatpush1.bf16.xpose.msra.mxu0 0
    %2867 = vmatprep.subr.bf16.mxu0 0
    %2868 = vmatpush1.bf16.xpose.msra.mxu0 0
    %2869 = vmatprep.subr.bf16.mxu0 0
    %2870 = vmatpush1.bf16.xpose.msra.mxu0 0
    %2871 = vmatprep.mubr.bf16.mxu0 0
    %2872 = vmatmul.mubr.bf16.gmra.mrb[0].mxu0 %v2834
    %v2873 = vpop.f32.mrb[0].mxu0
    %v2874 = vadd.f32 %v73, %v2873
    %v2875 = vpop.f32.mrb[0].mxu0
    %v2876 = vpop.f32.mrb[0].mxu0
    %v2877 = vpop.f32.mrb[0].mxu0
    %2878 = vdwg.mxu0
    %2880 = vrot.lane.b32.xlu0 %v401, 120
    %v2881 = vpop.permute.xlu0 %2880
    %2882 = vrot.lane.b32.xlu0 %v417, 88
    %v2883 = vpop.permute.xlu0 %2882
    %v2885 = vsel %vm422, %v2881, 0
    %v2888 = vsel %vm422, %v2883, 0
    %2890 = vmatprep.subr.bf16.mxu0 0
    %2891 = vmatpush1.bf16.xpose.msra.mxu0 %v2888
    %2892 = vmatprep.subr.bf16.mxu0 0
    %2893 = vmatpush1.bf16.xpose.msra.mxu0 0
    %2894 = vmatprep.subr.bf16.mxu0 0
    %2895 = vmatpush1.bf16.xpose.msra.mxu0 0
    %2896 = vmatprep.subr.bf16.mxu0 0
    %2897 = vmatpush1.bf16.xpose.msra.mxu0 0
    %2898 = vmatprep.subr.bf16.mxu0 0
    %2899 = vmatpush1.bf16.xpose.msra.mxu0 0
    %2900 = vmatprep.subr.bf16.mxu0 0
    %2901 = vmatpush1.bf16.xpose.msra.mxu0 0
    %2902 = vmatprep.subr.bf16.mxu0 0
    %2903 = vmatpush1.bf16.xpose.msra.mxu0 0
    %2904 = vmatprep.subr.bf16.mxu0 0
    %2905 = vmatpush1.bf16.xpose.msra.mxu0 0
    %2906 = vmatprep.subr.bf16.mxu0 0
    %2907 = vmatpush1.bf16.xpose.msra.mxu0 0
    %2908 = vmatprep.subr.bf16.mxu0 0
    %2909 = vmatpush1.bf16.xpose.msra.mxu0 0
    %2910 = vmatprep.subr.bf16.mxu0 0
    %2911 = vmatpush1.bf16.xpose.msra.mxu0 0
    %2912 = vmatprep.subr.bf16.mxu0 0
    %2913 = vmatpush1.bf16.xpose.msra.mxu0 0
    %2914 = vmatprep.subr.bf16.mxu0 0
    %2915 = vmatpush1.bf16.xpose.msra.mxu0 0
    %2916 = vmatprep.subr.bf16.mxu0 0
    %2917 = vmatpush1.bf16.xpose.msra.mxu0 0
    %2918 = vmatprep.subr.bf16.mxu0 0
    %2919 = vmatpush1.bf16.xpose.msra.mxu0 0
    %2920 = vmatprep.subr.bf16.mxu0 0
    %2921 = vmatpush1.bf16.xpose.msra.mxu0 0
    %2922 = vmatprep.mubr.bf16.mxu0 0
    %2923 = vmatmul.mubr.bf16.gmra.mrb[0].mxu0 %v2885
    %v2924 = vpop.f32.mrb[0].mxu0
    %v2925 = vadd.f32 %v74, %v2924
    %v2926 = vpop.f32.mrb[0].mxu0
    %v2927 = vpop.f32.mrb[0].mxu0
    %v2928 = vpop.f32.mrb[0].mxu0
    %2929 = vdwg.mxu0
    %2931 = vrot.lane.b32.xlu0 %v402, 120
    %v2932 = vpop.permute.xlu0 %2931
    %2933 = vrot.lane.b32.xlu0 %v418, 88
    %v2934 = vpop.permute.xlu0 %2933
    %v2936 = vsel %vm422, %v2932, 0
    %v2939 = vsel %vm422, %v2934, 0
    %2941 = vmatprep.subr.bf16.mxu0 0
    %2942 = vmatpush1.bf16.xpose.msra.mxu0 %v2939
    %2943 = vmatprep.subr.bf16.mxu0 0
    %2944 = vmatpush1.bf16.xpose.msra.mxu0 0
    %2945 = vmatprep.subr.bf16.mxu0 0
    %2946 = vmatpush1.bf16.xpose.msra.mxu0 0
    %2947 = vmatprep.subr.bf16.mxu0 0
    %2948 = vmatpush1.bf16.xpose.msra.mxu0 0
    %2949 = vmatprep.subr.bf16.mxu0 0
    %2950 = vmatpush1.bf16.xpose.msra.mxu0 0
    %2951 = vmatprep.subr.bf16.mxu0 0
    %2952 = vmatpush1.bf16.xpose.msra.mxu0 0
    %2953 = vmatprep.subr.bf16.mxu0 0
    %2954 = vmatpush1.bf16.xpose.msra.mxu0 0
    %2955 = vmatprep.subr.bf16.mxu0 0
    %2956 = vmatpush1.bf16.xpose.msra.mxu0 0
    %2957 = vmatprep.subr.bf16.mxu0 0
    %2958 = vmatpush1.bf16.xpose.msra.mxu0 0
    %2959 = vmatprep.subr.bf16.mxu0 0
    %2960 = vmatpush1.bf16.xpose.msra.mxu0 0
    %2961 = vmatprep.subr.bf16.mxu0 0
    %2962 = vmatpush1.bf16.xpose.msra.mxu0 0
    %2963 = vmatprep.subr.bf16.mxu0 0
    %2964 = vmatpush1.bf16.xpose.msra.mxu0 0
    %2965 = vmatprep.subr.bf16.mxu0 0
    %2966 = vmatpush1.bf16.xpose.msra.mxu0 0
    %2967 = vmatprep.subr.bf16.mxu0 0
    %2968 = vmatpush1.bf16.xpose.msra.mxu0 0
    %2969 = vmatprep.subr.bf16.mxu0 0
    %2970 = vmatpush1.bf16.xpose.msra.mxu0 0
    %2971 = vmatprep.subr.bf16.mxu0 0
    %2972 = vmatpush1.bf16.xpose.msra.mxu0 0
    %2973 = vmatprep.mubr.bf16.mxu0 0
    %2974 = vmatmul.mubr.bf16.gmra.mrb[0].mxu0 %v2936
    %v2975 = vpop.f32.mrb[0].mxu0
    %v2976 = vadd.f32 %v75, %v2975
    %v2977 = vpop.f32.mrb[0].mxu0
    %v2978 = vpop.f32.mrb[0].mxu0
    %v2979 = vpop.f32.mrb[0].mxu0
    %2980 = vdwg.mxu0
    %v2981 = vsel %vm422, %v2211, -inf
    %2982 = vmax.xlane.f32.xlu0 %v2981
    %v2983 = vpop.xlane.xlu0 %2982
    %v2984 = vsel %vm422, %v2262, -inf
    %2985 = vmax.xlane.f32.xlu0 %v2984
    %v2986 = vpop.xlane.xlu0 %2985
    %v2987 = vsel %vm422, %v2313, -inf
    %2988 = vmax.xlane.f32.xlu0 %v2987
    %v2989 = vpop.xlane.xlu0 %2988
    %v2990 = vsel %vm422, %v2364, -inf
    %2991 = vmax.xlane.f32.xlu0 %v2990
    %v2992 = vpop.xlane.xlu0 %2991
    %v2993 = vsel %vm422, %v2415, -inf
    %2994 = vmax.xlane.f32.xlu0 %v2993
    %v2995 = vpop.xlane.xlu0 %2994
    %v2996 = vsel %vm422, %v2466, -inf
    %2997 = vmax.xlane.f32.xlu0 %v2996
    %v2998 = vpop.xlane.xlu0 %2997
    %v2999 = vsel %vm422, %v2517, -inf
    %3000 = vmax.xlane.f32.xlu0 %v2999
    %v3001 = vpop.xlane.xlu0 %3000
    %v3002 = vsel %vm422, %v2568, -inf
    %3003 = vmax.xlane.f32.xlu0 %v3002
    %v3004 = vpop.xlane.xlu0 %3003
    %v3005 = vsel %vm422, %v2619, -inf
    %3006 = vmax.xlane.f32.xlu0 %v3005
    %v3007 = vpop.xlane.xlu0 %3006
    %v3008 = vsel %vm422, %v2670, -inf
    %3009 = vmax.xlane.f32.xlu0 %v3008
    %v3010 = vpop.xlane.xlu0 %3009
    %v3011 = vsel %vm422, %v2721, -inf
    %3012 = vmax.xlane.f32.xlu0 %v3011
    %v3013 = vpop.xlane.xlu0 %3012
    %v3014 = vsel %vm422, %v2772, -inf
    %3015 = vmax.xlane.f32.xlu0 %v3014
    %v3016 = vpop.xlane.xlu0 %3015
    %v3017 = vsel %vm422, %v2823, -inf
    %3018 = vmax.xlane.f32.xlu0 %v3017
    %v3019 = vpop.xlane.xlu0 %3018
    %v3020 = vsel %vm422, %v2874, -inf
    %3021 = vmax.xlane.f32.xlu0 %v3020
    %v3022 = vpop.xlane.xlu0 %3021
    %v3023 = vsel %vm422, %v2925, -inf
    %3024 = vmax.xlane.f32.xlu0 %v3023
    %v3025 = vpop.xlane.xlu0 %3024
    %v3026 = vsel %vm422, %v2976, -inf
    %3027 = vmax.xlane.f32.xlu0 %v3026
    %v3028 = vpop.xlane.xlu0 %3027
    %v3029 = vsub.f32 %v2211, %v2983
    %v3030 = vsub.f32 %v2262, %v2986
    %v3031 = vsub.f32 %v2313, %v2989
    %v3032 = vsub.f32 %v2364, %v2992
    %v3033 = vsub.f32 %v2415, %v2995
    %v3034 = vsub.f32 %v2466, %v2998
    %v3035 = vsub.f32 %v2517, %v3001
    %v3036 = vsub.f32 %v2568, %v3004
    %v3037 = vsub.f32 %v2619, %v3007
    %v3038 = vsub.f32 %v2670, %v3010
    %v3039 = vsub.f32 %v2721, %v3013
    %v3040 = vsub.f32 %v2772, %v3016
    %v3041 = vsub.f32 %v2823, %v3019
    %v3042 = vsub.f32 %v2874, %v3022
    %v3043 = vsub.f32 %v2925, %v3025
    %v3044 = vsub.f32 %v2976, %v3028
    %v3045 = vmul.f32 %v3029, 1.442695
    %v3046 = vpow.pop %v3045
    %v3047 = vmul.f32 %v3030, 1.442695
    %v3048 = vpow.pop %v3047
    %v3049 = vmul.f32 %v3031, 1.442695
    %v3050 = vpow.pop %v3049
    %v3051 = vmul.f32 %v3032, 1.442695
    %v3052 = vpow.pop %v3051
    %v3053 = vmul.f32 %v3033, 1.442695
    %v3054 = vpow.pop %v3053
    %v3055 = vmul.f32 %v3034, 1.442695
    %v3056 = vpow.pop %v3055
    %v3057 = vmul.f32 %v3035, 1.442695
    %v3058 = vpow.pop %v3057
    %v3059 = vmul.f32 %v3036, 1.442695
    %v3060 = vpow.pop %v3059
    %v3061 = vmul.f32 %v3037, 1.442695
    %v3062 = vpow.pop %v3061
    %v3063 = vmul.f32 %v3038, 1.442695
    %v3064 = vpow.pop %v3063
    %v3065 = vmul.f32 %v3039, 1.442695
    %v3066 = vpow.pop %v3065
    %v3067 = vmul.f32 %v3040, 1.442695
    %v3068 = vpow.pop %v3067
    %v3069 = vmul.f32 %v3041, 1.442695
    %v3070 = vpow.pop %v3069
    %v3071 = vmul.f32 %v3042, 1.442695
    %v3072 = vpow.pop %v3071
    %v3073 = vmul.f32 %v3043, 1.442695
    %v3074 = vpow.pop %v3073
    %v3075 = vmul.f32 %v3044, 1.442695
    %v3076 = vpow.pop %v3075
    %v3077 = vsel %vm422, %v3046, 0.0
    %3078 = vadd.xlane.f32.xlu0 %v3077
    %v3079 = vpop.xlane.xlu0 %3078
    %v3080 = vsel %vm422, %v3048, 0.0
    %3081 = vadd.xlane.f32.xlu0 %v3080
    %v3082 = vpop.xlane.xlu0 %3081
    %v3083 = vsel %vm422, %v3050, 0.0
    %3084 = vadd.xlane.f32.xlu0 %v3083
    %v3085 = vpop.xlane.xlu0 %3084
    %v3086 = vsel %vm422, %v3052, 0.0
    %3087 = vadd.xlane.f32.xlu0 %v3086
    %v3088 = vpop.xlane.xlu0 %3087
    %v3089 = vsel %vm422, %v3054, 0.0
    %3090 = vadd.xlane.f32.xlu0 %v3089
    %v3091 = vpop.xlane.xlu0 %3090
    %v3092 = vsel %vm422, %v3056, 0.0
    %3093 = vadd.xlane.f32.xlu0 %v3092
    %v3094 = vpop.xlane.xlu0 %3093
    %v3095 = vsel %vm422, %v3058, 0.0
    %3096 = vadd.xlane.f32.xlu0 %v3095
    %v3097 = vpop.xlane.xlu0 %3096
    %v3098 = vsel %vm422, %v3060, 0.0
    %3099 = vadd.xlane.f32.xlu0 %v3098
    %v3100 = vpop.xlane.xlu0 %3099
    %v3101 = vsel %vm422, %v3062, 0.0
    %3102 = vadd.xlane.f32.xlu0 %v3101
    %v3103 = vpop.xlane.xlu0 %3102
    %v3104 = vsel %vm422, %v3064, 0.0
    %3105 = vadd.xlane.f32.xlu0 %v3104
    %v3106 = vpop.xlane.xlu0 %3105
    %v3107 = vsel %vm422, %v3066, 0.0
    %3108 = vadd.xlane.f32.xlu0 %v3107
    %v3109 = vpop.xlane.xlu0 %3108
    %v3110 = vsel %vm422, %v3068, 0.0
    %3111 = vadd.xlane.f32.xlu0 %v3110
    %v3112 = vpop.xlane.xlu0 %3111
    %v3113 = vsel %vm422, %v3070, 0.0
    %3114 = vadd.xlane.f32.xlu0 %v3113
    %v3115 = vpop.xlane.xlu0 %3114
    %v3116 = vsel %vm422, %v3072, 0.0
    %3117 = vadd.xlane.f32.xlu0 %v3116
    %v3118 = vpop.xlane.xlu0 %3117
    %v3119 = vsel %vm422, %v3074, 0.0
    %3120 = vadd.xlane.f32.xlu0 %v3119
    %v3121 = vpop.xlane.xlu0 %3120
    %v3122 = vsel %vm422, %v3076, 0.0
    %3123 = vadd.xlane.f32.xlu0 %v3122
    %v3124 = vpop.xlane.xlu0 %3123
    %v3125 = vrcp.pop %v3079
    %v3126 = vrcp.pop %v3082
    %v3127 = vrcp.pop %v3085
    %v3128 = vrcp.pop %v3088
    %v3129 = vrcp.pop %v3091
    %v3130 = vrcp.pop %v3094
    %v3131 = vrcp.pop %v3097
    %v3132 = vrcp.pop %v3100
    %v3133 = vrcp.pop %v3103
    %v3134 = vrcp.pop %v3106
    %v3135 = vrcp.pop %v3109
    %v3136 = vrcp.pop %v3112
    %v3137 = vrcp.pop %v3115
    %v3138 = vrcp.pop %v3118
    %v3139 = vrcp.pop %v3121
    %v3140 = vrcp.pop %v3124
    %v3141 = vmul.f32 %v3046, %v3125
    %v3142 = vmul.f32 %v3048, %v3126
    %v3143 = vmul.f32 %v3050, %v3127
    %v3144 = vmul.f32 %v3052, %v3128
    %v3145 = vmul.f32 %v3054, %v3129
    %v3146 = vmul.f32 %v3056, %v3130
    %v3147 = vmul.f32 %v3058, %v3131
    %v3148 = vmul.f32 %v3060, %v3132
    %v3149 = vmul.f32 %v3062, %v3133
    %v3150 = vmul.f32 %v3064, %v3134
    %v3151 = vmul.f32 %v3066, %v3135
    %v3152 = vmul.f32 %v3068, %v3136
    %v3153 = vmul.f32 %v3070, %v3137
    %v3154 = vmul.f32 %v3072, %v3138
    %v3155 = vmul.f32 %v3074, %v3139
    %v3156 = vmul.f32 %v3076, %v3140
    %v3157 = vpack.c.bf16 %v3141, %v3141
    %v3158 = vpack.c.bf16 %v3142, %v3142
    %v3159 = vpack.c.bf16 %v3143, %v3143
    %v3160 = vpack.c.bf16 %v3144, %v3144
    %v3161 = vpack.c.bf16 %v3145, %v3145
    %v3162 = vpack.c.bf16 %v3146, %v3146
    %v3163 = vpack.c.bf16 %v3147, %v3147
    %v3164 = vpack.c.bf16 %v3148, %v3148
    %v3165 = vpack.c.bf16 %v3149, %v3149
    %v3166 = vpack.c.bf16 %v3150, %v3150
    %v3167 = vpack.c.bf16 %v3151, %v3151
    %v3168 = vpack.c.bf16 %v3152, %v3152
    %v3169 = vpack.c.bf16 %v3153, %v3153
    %v3170 = vpack.c.bf16 %v3154, %v3154
    %v3171 = vpack.c.bf16 %v3155, %v3155
    %v3172 = vpack.c.bf16 %v3156, %v3156
    %3173 = vrot.lane.b32.xlu0 %v403, 56
    %v3174 = vpop.permute.xlu0 %3173
    %v3176 = vsel %vm422, %v3157, 0
    %v3179 = vsel %vm1401, %v3174, 0
    %3181 = vmatprep.subr.bf16.mxu0 0
    %3182 = vmatpush1.bf16.msra.mxu0 %v3179
    %3183 = vmatprep.subr.bf16.mxu0 0
    %3184 = vmatpush1.bf16.msra.mxu0 0
    %3185 = vmatprep.subr.bf16.mxu0 0
    %3186 = vmatpush1.bf16.msra.mxu0 0
    %3187 = vmatprep.subr.bf16.mxu0 0
    %3188 = vmatpush1.bf16.msra.mxu0 0
    %3189 = vmatprep.subr.bf16.mxu0 0
    %3190 = vmatpush1.bf16.msra.mxu0 0
    %3191 = vmatprep.subr.bf16.mxu0 0
    %3192 = vmatpush1.bf16.msra.mxu0 0
    %3193 = vmatprep.subr.bf16.mxu0 0
    %3194 = vmatpush1.bf16.msra.mxu0 0
    %3195 = vmatprep.subr.bf16.mxu0 0
    %3196 = vmatpush1.bf16.msra.mxu0 0
    %3197 = vmatprep.subr.bf16.mxu0 0
    %3198 = vmatpush1.bf16.msra.mxu0 0
    %3199 = vmatprep.subr.bf16.mxu0 0
    %3200 = vmatpush1.bf16.msra.mxu0 0
    %3201 = vmatprep.subr.bf16.mxu0 0
    %3202 = vmatpush1.bf16.msra.mxu0 0
    %3203 = vmatprep.subr.bf16.mxu0 0
    %3204 = vmatpush1.bf16.msra.mxu0 0
    %3205 = vmatprep.subr.bf16.mxu0 0
    %3206 = vmatpush1.bf16.msra.mxu0 0
    %3207 = vmatprep.subr.bf16.mxu0 0
    %3208 = vmatpush1.bf16.msra.mxu0 0
    %3209 = vmatprep.subr.bf16.mxu0 0
    %3210 = vmatpush1.bf16.msra.mxu0 0
    %3211 = vmatprep.subr.bf16.mxu0 0
    %3212 = vmatpush1.bf16.msra.mxu0 0
    %3213 = vmatprep.mubr.bf16.mxu0 0
    %3214 = vmatmul.mubr.bf16.gmra.mrb[0].mxu0 %v3176
    %v3215 = vpop.f32.mrb[0].mxu0
    %v3216 = vadd.f32 0.0, %v3215
    %v3217 = vpop.f32.mrb[0].mxu0
    %v3218 = vpop.f32.mrb[0].mxu0
    %v3219 = vpop.f32.mrb[0].mxu0
    %3220 = vdwg.mxu0
    %3221 = vrot.lane.b32.xlu0 %v404, 56
    %v3222 = vpop.permute.xlu0 %3221
    %v3224 = vsel %vm422, %v3158, 0
    %v3227 = vsel %vm1401, %v3222, 0
    %3229 = vmatprep.subr.bf16.mxu0 0
    %3230 = vmatpush1.bf16.msra.mxu0 %v3227
    %3231 = vmatprep.subr.bf16.mxu0 0
    %3232 = vmatpush1.bf16.msra.mxu0 0
    %3233 = vmatprep.subr.bf16.mxu0 0
    %3234 = vmatpush1.bf16.msra.mxu0 0
    %3235 = vmatprep.subr.bf16.mxu0 0
    %3236 = vmatpush1.bf16.msra.mxu0 0
    %3237 = vmatprep.subr.bf16.mxu0 0
    %3238 = vmatpush1.bf16.msra.mxu0 0
    %3239 = vmatprep.subr.bf16.mxu0 0
    %3240 = vmatpush1.bf16.msra.mxu0 0
    %3241 = vmatprep.subr.bf16.mxu0 0
    %3242 = vmatpush1.bf16.msra.mxu0 0
    %3243 = vmatprep.subr.bf16.mxu0 0
    %3244 = vmatpush1.bf16.msra.mxu0 0
    %3245 = vmatprep.subr.bf16.mxu0 0
    %3246 = vmatpush1.bf16.msra.mxu0 0
    %3247 = vmatprep.subr.bf16.mxu0 0
    %3248 = vmatpush1.bf16.msra.mxu0 0
    %3249 = vmatprep.subr.bf16.mxu0 0
    %3250 = vmatpush1.bf16.msra.mxu0 0
    %3251 = vmatprep.subr.bf16.mxu0 0
    %3252 = vmatpush1.bf16.msra.mxu0 0
    %3253 = vmatprep.subr.bf16.mxu0 0
    %3254 = vmatpush1.bf16.msra.mxu0 0
    %3255 = vmatprep.subr.bf16.mxu0 0
    %3256 = vmatpush1.bf16.msra.mxu0 0
    %3257 = vmatprep.subr.bf16.mxu0 0
    %3258 = vmatpush1.bf16.msra.mxu0 0
    %3259 = vmatprep.subr.bf16.mxu0 0
    %3260 = vmatpush1.bf16.msra.mxu0 0
    %3261 = vmatprep.mubr.bf16.mxu0 0
    %3262 = vmatmul.mubr.bf16.gmra.mrb[0].mxu0 %v3224
    %v3263 = vpop.f32.mrb[0].mxu0
    %v3264 = vadd.f32 0.0, %v3263
    %v3265 = vpop.f32.mrb[0].mxu0
    %v3266 = vpop.f32.mrb[0].mxu0
    %v3267 = vpop.f32.mrb[0].mxu0
    %3268 = vdwg.mxu0
    %3269 = vrot.lane.b32.xlu0 %v405, 56
    %v3270 = vpop.permute.xlu0 %3269
    %v3272 = vsel %vm422, %v3159, 0
    %v3275 = vsel %vm1401, %v3270, 0
    %3277 = vmatprep.subr.bf16.mxu0 0
    %3278 = vmatpush1.bf16.msra.mxu0 %v3275
    %3279 = vmatprep.subr.bf16.mxu0 0
    %3280 = vmatpush1.bf16.msra.mxu0 0
    %3281 = vmatprep.subr.bf16.mxu0 0
    %3282 = vmatpush1.bf16.msra.mxu0 0
    %3283 = vmatprep.subr.bf16.mxu0 0
    %3284 = vmatpush1.bf16.msra.mxu0 0
    %3285 = vmatprep.subr.bf16.mxu0 0
    %3286 = vmatpush1.bf16.msra.mxu0 0
    %3287 = vmatprep.subr.bf16.mxu0 0
    %3288 = vmatpush1.bf16.msra.mxu0 0
    %3289 = vmatprep.subr.bf16.mxu0 0
    %3290 = vmatpush1.bf16.msra.mxu0 0
    %3291 = vmatprep.subr.bf16.mxu0 0
    %3292 = vmatpush1.bf16.msra.mxu0 0
    %3293 = vmatprep.subr.bf16.mxu0 0
    %3294 = vmatpush1.bf16.msra.mxu0 0
    %3295 = vmatprep.subr.bf16.mxu0 0
    %3296 = vmatpush1.bf16.msra.mxu0 0
    %3297 = vmatprep.subr.bf16.mxu0 0
    %3298 = vmatpush1.bf16.msra.mxu0 0
    %3299 = vmatprep.subr.bf16.mxu0 0
    %3300 = vmatpush1.bf16.msra.mxu0 0
    %3301 = vmatprep.subr.bf16.mxu0 0
    %3302 = vmatpush1.bf16.msra.mxu0 0
    %3303 = vmatprep.subr.bf16.mxu0 0
    %3304 = vmatpush1.bf16.msra.mxu0 0
    %3305 = vmatprep.subr.bf16.mxu0 0
    %3306 = vmatpush1.bf16.msra.mxu0 0
    %3307 = vmatprep.subr.bf16.mxu0 0
    %3308 = vmatpush1.bf16.msra.mxu0 0
    %3309 = vmatprep.mubr.bf16.mxu0 0
    %3310 = vmatmul.mubr.bf16.gmra.mrb[0].mxu0 %v3272
    %v3311 = vpop.f32.mrb[0].mxu0
    %v3312 = vadd.f32 0.0, %v3311
    %v3313 = vpop.f32.mrb[0].mxu0
    %v3314 = vpop.f32.mrb[0].mxu0
    %v3315 = vpop.f32.mrb[0].mxu0
    %3316 = vdwg.mxu0
    %3317 = vrot.lane.b32.xlu0 %v406, 56
    %v3318 = vpop.permute.xlu0 %3317
    %v3320 = vsel %vm422, %v3160, 0
    %v3323 = vsel %vm1401, %v3318, 0
    %3325 = vmatprep.subr.bf16.mxu0 0
    %3326 = vmatpush1.bf16.msra.mxu0 %v3323
    %3327 = vmatprep.subr.bf16.mxu0 0
    %3328 = vmatpush1.bf16.msra.mxu0 0
    %3329 = vmatprep.subr.bf16.mxu0 0
    %3330 = vmatpush1.bf16.msra.mxu0 0
    %3331 = vmatprep.subr.bf16.mxu0 0
    %3332 = vmatpush1.bf16.msra.mxu0 0
    %3333 = vmatprep.subr.bf16.mxu0 0
    %3334 = vmatpush1.bf16.msra.mxu0 0
    %3335 = vmatprep.subr.bf16.mxu0 0
    %3336 = vmatpush1.bf16.msra.mxu0 0
    %3337 = vmatprep.subr.bf16.mxu0 0
    %3338 = vmatpush1.bf16.msra.mxu0 0
    %3339 = vmatprep.subr.bf16.mxu0 0
    %3340 = vmatpush1.bf16.msra.mxu0 0
    %3341 = vmatprep.subr.bf16.mxu0 0
    %3342 = vmatpush1.bf16.msra.mxu0 0
    %3343 = vmatprep.subr.bf16.mxu0 0
    %3344 = vmatpush1.bf16.msra.mxu0 0
    %3345 = vmatprep.subr.bf16.mxu0 0
    %3346 = vmatpush1.bf16.msra.mxu0 0
    %3347 = vmatprep.subr.bf16.mxu0 0
    %3348 = vmatpush1.bf16.msra.mxu0 0
    %3349 = vmatprep.subr.bf16.mxu0 0
    %3350 = vmatpush1.bf16.msra.mxu0 0
    %3351 = vmatprep.subr.bf16.mxu0 0
    %3352 = vmatpush1.bf16.msra.mxu0 0
    %3353 = vmatprep.subr.bf16.mxu0 0
    %3354 = vmatpush1.bf16.msra.mxu0 0
    %3355 = vmatprep.subr.bf16.mxu0 0
    %3356 = vmatpush1.bf16.msra.mxu0 0
    %3357 = vmatprep.mubr.bf16.mxu0 0
    %3358 = vmatmul.mubr.bf16.gmra.mrb[0].mxu0 %v3320
    %v3359 = vpop.f32.mrb[0].mxu0
    %v3360 = vadd.f32 0.0, %v3359
    %v3361 = vpop.f32.mrb[0].mxu0
    %v3362 = vpop.f32.mrb[0].mxu0
    %v3363 = vpop.f32.mrb[0].mxu0
    %3364 = vdwg.mxu0
    %3365 = vrot.lane.b32.xlu0 %v407, 56
    %v3366 = vpop.permute.xlu0 %3365
    %v3368 = vsel %vm422, %v3161, 0
    %v3371 = vsel %vm1401, %v3366, 0
    %3373 = vmatprep.subr.bf16.mxu0 0
    %3374 = vmatpush1.bf16.msra.mxu0 %v3371
    %3375 = vmatprep.subr.bf16.mxu0 0
    %3376 = vmatpush1.bf16.msra.mxu0 0
    %3377 = vmatprep.subr.bf16.mxu0 0
    %3378 = vmatpush1.bf16.msra.mxu0 0
    %3379 = vmatprep.subr.bf16.mxu0 0
    %3380 = vmatpush1.bf16.msra.mxu0 0
    %3381 = vmatprep.subr.bf16.mxu0 0
    %3382 = vmatpush1.bf16.msra.mxu0 0
    %3383 = vmatprep.subr.bf16.mxu0 0
    %3384 = vmatpush1.bf16.msra.mxu0 0
    %3385 = vmatprep.subr.bf16.mxu0 0
    %3386 = vmatpush1.bf16.msra.mxu0 0
    %3387 = vmatprep.subr.bf16.mxu0 0
    %3388 = vmatpush1.bf16.msra.mxu0 0
    %3389 = vmatprep.subr.bf16.mxu0 0
    %3390 = vmatpush1.bf16.msra.mxu0 0
    %3391 = vmatprep.subr.bf16.mxu0 0
    %3392 = vmatpush1.bf16.msra.mxu0 0
    %3393 = vmatprep.subr.bf16.mxu0 0
    %3394 = vmatpush1.bf16.msra.mxu0 0
    %3395 = vmatprep.subr.bf16.mxu0 0
    %3396 = vmatpush1.bf16.msra.mxu0 0
    %3397 = vmatprep.subr.bf16.mxu0 0
    %3398 = vmatpush1.bf16.msra.mxu0 0
    %3399 = vmatprep.subr.bf16.mxu0 0
    %3400 = vmatpush1.bf16.msra.mxu0 0
    %3401 = vmatprep.subr.bf16.mxu0 0
    %3402 = vmatpush1.bf16.msra.mxu0 0
    %3403 = vmatprep.subr.bf16.mxu0 0
    %3404 = vmatpush1.bf16.msra.mxu0 0
    %3405 = vmatprep.mubr.bf16.mxu0 0
    %3406 = vmatmul.mubr.bf16.gmra.mrb[0].mxu0 %v3368
    %v3407 = vpop.f32.mrb[0].mxu0
    %v3408 = vadd.f32 0.0, %v3407
    %v3409 = vpop.f32.mrb[0].mxu0
    %v3410 = vpop.f32.mrb[0].mxu0
    %v3411 = vpop.f32.mrb[0].mxu0
    %3412 = vdwg.mxu0
    %3413 = vrot.lane.b32.xlu0 %v408, 56
    %v3414 = vpop.permute.xlu0 %3413
    %v3416 = vsel %vm422, %v3162, 0
    %v3419 = vsel %vm1401, %v3414, 0
    %3421 = vmatprep.subr.bf16.mxu0 0
    %3422 = vmatpush1.bf16.msra.mxu0 %v3419
    %3423 = vmatprep.subr.bf16.mxu0 0
    %3424 = vmatpush1.bf16.msra.mxu0 0
    %3425 = vmatprep.subr.bf16.mxu0 0
    %3426 = vmatpush1.bf16.msra.mxu0 0
    %3427 = vmatprep.subr.bf16.mxu0 0
    %3428 = vmatpush1.bf16.msra.mxu0 0
    %3429 = vmatprep.subr.bf16.mxu0 0
    %3430 = vmatpush1.bf16.msra.mxu0 0
    %3431 = vmatprep.subr.bf16.mxu0 0
    %3432 = vmatpush1.bf16.msra.mxu0 0
    %3433 = vmatprep.subr.bf16.mxu0 0
    %3434 = vmatpush1.bf16.msra.mxu0 0
    %3435 = vmatprep.subr.bf16.mxu0 0
    %3436 = vmatpush1.bf16.msra.mxu0 0
    %3437 = vmatprep.subr.bf16.mxu0 0
    %3438 = vmatpush1.bf16.msra.mxu0 0
    %3439 = vmatprep.subr.bf16.mxu0 0
    %3440 = vmatpush1.bf16.msra.mxu0 0
    %3441 = vmatprep.subr.bf16.mxu0 0
    %3442 = vmatpush1.bf16.msra.mxu0 0
    %3443 = vmatprep.subr.bf16.mxu0 0
    %3444 = vmatpush1.bf16.msra.mxu0 0
    %3445 = vmatprep.subr.bf16.mxu0 0
    %3446 = vmatpush1.bf16.msra.mxu0 0
    %3447 = vmatprep.subr.bf16.mxu0 0
    %3448 = vmatpush1.bf16.msra.mxu0 0
    %3449 = vmatprep.subr.bf16.mxu0 0
    %3450 = vmatpush1.bf16.msra.mxu0 0
    %3451 = vmatprep.subr.bf16.mxu0 0
    %3452 = vmatpush1.bf16.msra.mxu0 0
    %3453 = vmatprep.mubr.bf16.mxu0 0
    %3454 = vmatmul.mubr.bf16.gmra.mrb[0].mxu0 %v3416
    %v3455 = vpop.f32.mrb[0].mxu0
    %v3456 = vadd.f32 0.0, %v3455
    %v3457 = vpop.f32.mrb[0].mxu0
    %v3458 = vpop.f32.mrb[0].mxu0
    %v3459 = vpop.f32.mrb[0].mxu0
    %3460 = vdwg.mxu0
    %3461 = vrot.lane.b32.xlu0 %v409, 56
    %v3462 = vpop.permute.xlu0 %3461
    %v3464 = vsel %vm422, %v3163, 0
    %v3467 = vsel %vm1401, %v3462, 0
    %3469 = vmatprep.subr.bf16.mxu0 0
    %3470 = vmatpush1.bf16.msra.mxu0 %v3467
    %3471 = vmatprep.subr.bf16.mxu0 0
    %3472 = vmatpush1.bf16.msra.mxu0 0
    %3473 = vmatprep.subr.bf16.mxu0 0
    %3474 = vmatpush1.bf16.msra.mxu0 0
    %3475 = vmatprep.subr.bf16.mxu0 0
    %3476 = vmatpush1.bf16.msra.mxu0 0
    %3477 = vmatprep.subr.bf16.mxu0 0
    %3478 = vmatpush1.bf16.msra.mxu0 0
    %3479 = vmatprep.subr.bf16.mxu0 0
    %3480 = vmatpush1.bf16.msra.mxu0 0
    %3481 = vmatprep.subr.bf16.mxu0 0
    %3482 = vmatpush1.bf16.msra.mxu0 0
    %3483 = vmatprep.subr.bf16.mxu0 0
    %3484 = vmatpush1.bf16.msra.mxu0 0
    %3485 = vmatprep.subr.bf16.mxu0 0
    %3486 = vmatpush1.bf16.msra.mxu0 0
    %3487 = vmatprep.subr.bf16.mxu0 0
    %3488 = vmatpush1.bf16.msra.mxu0 0
    %3489 = vmatprep.subr.bf16.mxu0 0
    %3490 = vmatpush1.bf16.msra.mxu0 0
    %3491 = vmatprep.subr.bf16.mxu0 0
    %3492 = vmatpush1.bf16.msra.mxu0 0
    %3493 = vmatprep.subr.bf16.mxu0 0
    %3494 = vmatpush1.bf16.msra.mxu0 0
    %3495 = vmatprep.subr.bf16.mxu0 0
    %3496 = vmatpush1.bf16.msra.mxu0 0
    %3497 = vmatprep.subr.bf16.mxu0 0
    %3498 = vmatpush1.bf16.msra.mxu0 0
    %3499 = vmatprep.subr.bf16.mxu0 0
    %3500 = vmatpush1.bf16.msra.mxu0 0
    %3501 = vmatprep.mubr.bf16.mxu0 0
    %3502 = vmatmul.mubr.bf16.gmra.mrb[0].mxu0 %v3464
    %v3503 = vpop.f32.mrb[0].mxu0
    %v3504 = vadd.f32 0.0, %v3503
    %v3505 = vpop.f32.mrb[0].mxu0
    %v3506 = vpop.f32.mrb[0].mxu0
    %v3507 = vpop.f32.mrb[0].mxu0
    %3508 = vdwg.mxu0
    %3509 = vrot.lane.b32.xlu0 %v410, 56
    %v3510 = vpop.permute.xlu0 %3509
    %v3512 = vsel %vm422, %v3164, 0
    %v3515 = vsel %vm1401, %v3510, 0
    %3517 = vmatprep.subr.bf16.mxu0 0
    %3518 = vmatpush1.bf16.msra.mxu0 %v3515
    %3519 = vmatprep.subr.bf16.mxu0 0
    %3520 = vmatpush1.bf16.msra.mxu0 0
    %3521 = vmatprep.subr.bf16.mxu0 0
    %3522 = vmatpush1.bf16.msra.mxu0 0
    %3523 = vmatprep.subr.bf16.mxu0 0
    %3524 = vmatpush1.bf16.msra.mxu0 0
    %3525 = vmatprep.subr.bf16.mxu0 0
    %3526 = vmatpush1.bf16.msra.mxu0 0
    %3527 = vmatprep.subr.bf16.mxu0 0
    %3528 = vmatpush1.bf16.msra.mxu0 0
    %3529 = vmatprep.subr.bf16.mxu0 0
    %3530 = vmatpush1.bf16.msra.mxu0 0
    %3531 = vmatprep.subr.bf16.mxu0 0
    %3532 = vmatpush1.bf16.msra.mxu0 0
    %3533 = vmatprep.subr.bf16.mxu0 0
    %3534 = vmatpush1.bf16.msra.mxu0 0
    %3535 = vmatprep.subr.bf16.mxu0 0
    %3536 = vmatpush1.bf16.msra.mxu0 0
    %3537 = vmatprep.subr.bf16.mxu0 0
    %3538 = vmatpush1.bf16.msra.mxu0 0
    %3539 = vmatprep.subr.bf16.mxu0 0
    %3540 = vmatpush1.bf16.msra.mxu0 0
    %3541 = vmatprep.subr.bf16.mxu0 0
    %3542 = vmatpush1.bf16.msra.mxu0 0
    %3543 = vmatprep.subr.bf16.mxu0 0
    %3544 = vmatpush1.bf16.msra.mxu0 0
    %3545 = vmatprep.subr.bf16.mxu0 0
    %3546 = vmatpush1.bf16.msra.mxu0 0
    %3547 = vmatprep.subr.bf16.mxu0 0
    %3548 = vmatpush1.bf16.msra.mxu0 0
    %3549 = vmatprep.mubr.bf16.mxu0 0
    %3550 = vmatmul.mubr.bf16.gmra.mrb[0].mxu0 %v3512
    %v3551 = vpop.f32.mrb[0].mxu0
    %v3552 = vadd.f32 0.0, %v3551
    %v3553 = vpop.f32.mrb[0].mxu0
    %v3554 = vpop.f32.mrb[0].mxu0
    %v3555 = vpop.f32.mrb[0].mxu0
    %3556 = vdwg.mxu0
    %3557 = vrot.lane.b32.xlu0 %v411, 56
    %v3558 = vpop.permute.xlu0 %3557
    %v3560 = vsel %vm422, %v3165, 0
    %v3563 = vsel %vm1401, %v3558, 0
    %3565 = vmatprep.subr.bf16.mxu0 0
    %3566 = vmatpush1.bf16.msra.mxu0 %v3563
    %3567 = vmatprep.subr.bf16.mxu0 0
    %3568 = vmatpush1.bf16.msra.mxu0 0
    %3569 = vmatprep.subr.bf16.mxu0 0
    %3570 = vmatpush1.bf16.msra.mxu0 0
    %3571 = vmatprep.subr.bf16.mxu0 0
    %3572 = vmatpush1.bf16.msra.mxu0 0
    %3573 = vmatprep.subr.bf16.mxu0 0
    %3574 = vmatpush1.bf16.msra.mxu0 0
    %3575 = vmatprep.subr.bf16.mxu0 0
    %3576 = vmatpush1.bf16.msra.mxu0 0
    %3577 = vmatprep.subr.bf16.mxu0 0
    %3578 = vmatpush1.bf16.msra.mxu0 0
    %3579 = vmatprep.subr.bf16.mxu0 0
    %3580 = vmatpush1.bf16.msra.mxu0 0
    %3581 = vmatprep.subr.bf16.mxu0 0
    %3582 = vmatpush1.bf16.msra.mxu0 0
    %3583 = vmatprep.subr.bf16.mxu0 0
    %3584 = vmatpush1.bf16.msra.mxu0 0
    %3585 = vmatprep.subr.bf16.mxu0 0
    %3586 = vmatpush1.bf16.msra.mxu0 0
    %3587 = vmatprep.subr.bf16.mxu0 0
    %3588 = vmatpush1.bf16.msra.mxu0 0
    %3589 = vmatprep.subr.bf16.mxu0 0
    %3590 = vmatpush1.bf16.msra.mxu0 0
    %3591 = vmatprep.subr.bf16.mxu0 0
    %3592 = vmatpush1.bf16.msra.mxu0 0
    %3593 = vmatprep.subr.bf16.mxu0 0
    %3594 = vmatpush1.bf16.msra.mxu0 0
    %3595 = vmatprep.subr.bf16.mxu0 0
    %3596 = vmatpush1.bf16.msra.mxu0 0
    %3597 = vmatprep.mubr.bf16.mxu0 0
    %3598 = vmatmul.mubr.bf16.gmra.mrb[0].mxu0 %v3560
    %v3599 = vpop.f32.mrb[0].mxu0
    %v3600 = vadd.f32 0.0, %v3599
    %v3601 = vpop.f32.mrb[0].mxu0
    %v3602 = vpop.f32.mrb[0].mxu0
    %v3603 = vpop.f32.mrb[0].mxu0
    %3604 = vdwg.mxu0
    %3605 = vrot.lane.b32.xlu0 %v412, 56
    %v3606 = vpop.permute.xlu0 %3605
    %v3608 = vsel %vm422, %v3166, 0
    %v3611 = vsel %vm1401, %v3606, 0
    %3613 = vmatprep.subr.bf16.mxu0 0
    %3614 = vmatpush1.bf16.msra.mxu0 %v3611
    %3615 = vmatprep.subr.bf16.mxu0 0
    %3616 = vmatpush1.bf16.msra.mxu0 0
    %3617 = vmatprep.subr.bf16.mxu0 0
    %3618 = vmatpush1.bf16.msra.mxu0 0
    %3619 = vmatprep.subr.bf16.mxu0 0
    %3620 = vmatpush1.bf16.msra.mxu0 0
    %3621 = vmatprep.subr.bf16.mxu0 0
    %3622 = vmatpush1.bf16.msra.mxu0 0
    %3623 = vmatprep.subr.bf16.mxu0 0
    %3624 = vmatpush1.bf16.msra.mxu0 0
    %3625 = vmatprep.subr.bf16.mxu0 0
    %3626 = vmatpush1.bf16.msra.mxu0 0
    %3627 = vmatprep.subr.bf16.mxu0 0
    %3628 = vmatpush1.bf16.msra.mxu0 0
    %3629 = vmatprep.subr.bf16.mxu0 0
    %3630 = vmatpush1.bf16.msra.mxu0 0
    %3631 = vmatprep.subr.bf16.mxu0 0
    %3632 = vmatpush1.bf16.msra.mxu0 0
    %3633 = vmatprep.subr.bf16.mxu0 0
    %3634 = vmatpush1.bf16.msra.mxu0 0
    %3635 = vmatprep.subr.bf16.mxu0 0
    %3636 = vmatpush1.bf16.msra.mxu0 0
    %3637 = vmatprep.subr.bf16.mxu0 0
    %3638 = vmatpush1.bf16.msra.mxu0 0
    %3639 = vmatprep.subr.bf16.mxu0 0
    %3640 = vmatpush1.bf16.msra.mxu0 0
    %3641 = vmatprep.subr.bf16.mxu0 0
    %3642 = vmatpush1.bf16.msra.mxu0 0
    %3643 = vmatprep.subr.bf16.mxu0 0
    %3644 = vmatpush1.bf16.msra.mxu0 0
    %3645 = vmatprep.mubr.bf16.mxu0 0
    %3646 = vmatmul.mubr.bf16.gmra.mrb[0].mxu0 %v3608
    %v3647 = vpop.f32.mrb[0].mxu0
    %v3648 = vadd.f32 0.0, %v3647
    %v3649 = vpop.f32.mrb[0].mxu0
    %v3650 = vpop.f32.mrb[0].mxu0
    %v3651 = vpop.f32.mrb[0].mxu0
    %3652 = vdwg.mxu0
    %3653 = vrot.lane.b32.xlu0 %v413, 56
    %v3654 = vpop.permute.xlu0 %3653
    %v3656 = vsel %vm422, %v3167, 0
    %v3659 = vsel %vm1401, %v3654, 0
    %3661 = vmatprep.subr.bf16.mxu0 0
    %3662 = vmatpush1.bf16.msra.mxu0 %v3659
    %3663 = vmatprep.subr.bf16.mxu0 0
    %3664 = vmatpush1.bf16.msra.mxu0 0
    %3665 = vmatprep.subr.bf16.mxu0 0
    %3666 = vmatpush1.bf16.msra.mxu0 0
    %3667 = vmatprep.subr.bf16.mxu0 0
    %3668 = vmatpush1.bf16.msra.mxu0 0
    %3669 = vmatprep.subr.bf16.mxu0 0
    %3670 = vmatpush1.bf16.msra.mxu0 0
    %3671 = vmatprep.subr.bf16.mxu0 0
    %3672 = vmatpush1.bf16.msra.mxu0 0
    %3673 = vmatprep.subr.bf16.mxu0 0
    %3674 = vmatpush1.bf16.msra.mxu0 0
    %3675 = vmatprep.subr.bf16.mxu0 0
    %3676 = vmatpush1.bf16.msra.mxu0 0
    %3677 = vmatprep.subr.bf16.mxu0 0
    %3678 = vmatpush1.bf16.msra.mxu0 0
    %3679 = vmatprep.subr.bf16.mxu0 0
    %3680 = vmatpush1.bf16.msra.mxu0 0
    %3681 = vmatprep.subr.bf16.mxu0 0
    %3682 = vmatpush1.bf16.msra.mxu0 0
    %3683 = vmatprep.subr.bf16.mxu0 0
    %3684 = vmatpush1.bf16.msra.mxu0 0
    %3685 = vmatprep.subr.bf16.mxu0 0
    %3686 = vmatpush1.bf16.msra.mxu0 0
    %3687 = vmatprep.subr.bf16.mxu0 0
    %3688 = vmatpush1.bf16.msra.mxu0 0
    %3689 = vmatprep.subr.bf16.mxu0 0
    %3690 = vmatpush1.bf16.msra.mxu0 0
    %3691 = vmatprep.subr.bf16.mxu0 0
    %3692 = vmatpush1.bf16.msra.mxu0 0
    %3693 = vmatprep.mubr.bf16.mxu0 0
    %3694 = vmatmul.mubr.bf16.gmra.mrb[0].mxu0 %v3656
    %v3695 = vpop.f32.mrb[0].mxu0
    %v3696 = vadd.f32 0.0, %v3695
    %v3697 = vpop.f32.mrb[0].mxu0
    %v3698 = vpop.f32.mrb[0].mxu0
    %v3699 = vpop.f32.mrb[0].mxu0
    %3700 = vdwg.mxu0
    %3701 = vrot.lane.b32.xlu0 %v414, 56
    %v3702 = vpop.permute.xlu0 %3701
    %v3704 = vsel %vm422, %v3168, 0
    %v3707 = vsel %vm1401, %v3702, 0
    %3709 = vmatprep.subr.bf16.mxu0 0
    %3710 = vmatpush1.bf16.msra.mxu0 %v3707
    %3711 = vmatprep.subr.bf16.mxu0 0
    %3712 = vmatpush1.bf16.msra.mxu0 0
    %3713 = vmatprep.subr.bf16.mxu0 0
    %3714 = vmatpush1.bf16.msra.mxu0 0
    %3715 = vmatprep.subr.bf16.mxu0 0
    %3716 = vmatpush1.bf16.msra.mxu0 0
    %3717 = vmatprep.subr.bf16.mxu0 0
    %3718 = vmatpush1.bf16.msra.mxu0 0
    %3719 = vmatprep.subr.bf16.mxu0 0
    %3720 = vmatpush1.bf16.msra.mxu0 0
    %3721 = vmatprep.subr.bf16.mxu0 0
    %3722 = vmatpush1.bf16.msra.mxu0 0
    %3723 = vmatprep.subr.bf16.mxu0 0
    %3724 = vmatpush1.bf16.msra.mxu0 0
    %3725 = vmatprep.subr.bf16.mxu0 0
    %3726 = vmatpush1.bf16.msra.mxu0 0
    %3727 = vmatprep.subr.bf16.mxu0 0
    %3728 = vmatpush1.bf16.msra.mxu0 0
    %3729 = vmatprep.subr.bf16.mxu0 0
    %3730 = vmatpush1.bf16.msra.mxu0 0
    %3731 = vmatprep.subr.bf16.mxu0 0
    %3732 = vmatpush1.bf16.msra.mxu0 0
    %3733 = vmatprep.subr.bf16.mxu0 0
    %3734 = vmatpush1.bf16.msra.mxu0 0
    %3735 = vmatprep.subr.bf16.mxu0 0
    %3736 = vmatpush1.bf16.msra.mxu0 0
    %3737 = vmatprep.subr.bf16.mxu0 0
    %3738 = vmatpush1.bf16.msra.mxu0 0
    %3739 = vmatprep.subr.bf16.mxu0 0
    %3740 = vmatpush1.bf16.msra.mxu0 0
    %3741 = vmatprep.mubr.bf16.mxu0 0
    %3742 = vmatmul.mubr.bf16.gmra.mrb[0].mxu0 %v3704
    %v3743 = vpop.f32.mrb[0].mxu0
    %v3744 = vadd.f32 0.0, %v3743
    %v3745 = vpop.f32.mrb[0].mxu0
    %v3746 = vpop.f32.mrb[0].mxu0
    %v3747 = vpop.f32.mrb[0].mxu0
    %3748 = vdwg.mxu0
    %3749 = vrot.lane.b32.xlu0 %v415, 56
    %v3750 = vpop.permute.xlu0 %3749
    %v3752 = vsel %vm422, %v3169, 0
    %v3755 = vsel %vm1401, %v3750, 0
    %3757 = vmatprep.subr.bf16.mxu0 0
    %3758 = vmatpush1.bf16.msra.mxu0 %v3755
    %3759 = vmatprep.subr.bf16.mxu0 0
    %3760 = vmatpush1.bf16.msra.mxu0 0
    %3761 = vmatprep.subr.bf16.mxu0 0
    %3762 = vmatpush1.bf16.msra.mxu0 0
    %3763 = vmatprep.subr.bf16.mxu0 0
    %3764 = vmatpush1.bf16.msra.mxu0 0
    %3765 = vmatprep.subr.bf16.mxu0 0
    %3766 = vmatpush1.bf16.msra.mxu0 0
    %3767 = vmatprep.subr.bf16.mxu0 0
    %3768 = vmatpush1.bf16.msra.mxu0 0
    %3769 = vmatprep.subr.bf16.mxu0 0
    %3770 = vmatpush1.bf16.msra.mxu0 0
    %3771 = vmatprep.subr.bf16.mxu0 0
    %3772 = vmatpush1.bf16.msra.mxu0 0
    %3773 = vmatprep.subr.bf16.mxu0 0
    %3774 = vmatpush1.bf16.msra.mxu0 0
    %3775 = vmatprep.subr.bf16.mxu0 0
    %3776 = vmatpush1.bf16.msra.mxu0 0
    %3777 = vmatprep.subr.bf16.mxu0 0
    %3778 = vmatpush1.bf16.msra.mxu0 0
    %3779 = vmatprep.subr.bf16.mxu0 0
    %3780 = vmatpush1.bf16.msra.mxu0 0
    %3781 = vmatprep.subr.bf16.mxu0 0
    %3782 = vmatpush1.bf16.msra.mxu0 0
    %3783 = vmatprep.subr.bf16.mxu0 0
    %3784 = vmatpush1.bf16.msra.mxu0 0
    %3785 = vmatprep.subr.bf16.mxu0 0
    %3786 = vmatpush1.bf16.msra.mxu0 0
    %3787 = vmatprep.subr.bf16.mxu0 0
    %3788 = vmatpush1.bf16.msra.mxu0 0
    %3789 = vmatprep.mubr.bf16.mxu0 0
    %3790 = vmatmul.mubr.bf16.gmra.mrb[0].mxu0 %v3752
    %v3791 = vpop.f32.mrb[0].mxu0
    %v3792 = vadd.f32 0.0, %v3791
    %v3793 = vpop.f32.mrb[0].mxu0
    %v3794 = vpop.f32.mrb[0].mxu0
    %v3795 = vpop.f32.mrb[0].mxu0
    %3796 = vdwg.mxu0
    %3797 = vrot.lane.b32.xlu0 %v416, 56
    %v3798 = vpop.permute.xlu0 %3797
    %v3800 = vsel %vm422, %v3170, 0
    %v3803 = vsel %vm1401, %v3798, 0
    %3805 = vmatprep.subr.bf16.mxu0 0
    %3806 = vmatpush1.bf16.msra.mxu0 %v3803
    %3807 = vmatprep.subr.bf16.mxu0 0
    %3808 = vmatpush1.bf16.msra.mxu0 0
    %3809 = vmatprep.subr.bf16.mxu0 0
    %3810 = vmatpush1.bf16.msra.mxu0 0
    %3811 = vmatprep.subr.bf16.mxu0 0
    %3812 = vmatpush1.bf16.msra.mxu0 0
    %3813 = vmatprep.subr.bf16.mxu0 0
    %3814 = vmatpush1.bf16.msra.mxu0 0
    %3815 = vmatprep.subr.bf16.mxu0 0
    %3816 = vmatpush1.bf16.msra.mxu0 0
    %3817 = vmatprep.subr.bf16.mxu0 0
    %3818 = vmatpush1.bf16.msra.mxu0 0
    %3819 = vmatprep.subr.bf16.mxu0 0
    %3820 = vmatpush1.bf16.msra.mxu0 0
    %3821 = vmatprep.subr.bf16.mxu0 0
    %3822 = vmatpush1.bf16.msra.mxu0 0
    %3823 = vmatprep.subr.bf16.mxu0 0
    %3824 = vmatpush1.bf16.msra.mxu0 0
    %3825 = vmatprep.subr.bf16.mxu0 0
    %3826 = vmatpush1.bf16.msra.mxu0 0
    %3827 = vmatprep.subr.bf16.mxu0 0
    %3828 = vmatpush1.bf16.msra.mxu0 0
    %3829 = vmatprep.subr.bf16.mxu0 0
    %3830 = vmatpush1.bf16.msra.mxu0 0
    %3831 = vmatprep.subr.bf16.mxu0 0
    %3832 = vmatpush1.bf16.msra.mxu0 0
    %3833 = vmatprep.subr.bf16.mxu0 0
    %3834 = vmatpush1.bf16.msra.mxu0 0
    %3835 = vmatprep.subr.bf16.mxu0 0
    %3836 = vmatpush1.bf16.msra.mxu0 0
    %3837 = vmatprep.mubr.bf16.mxu0 0
    %3838 = vmatmul.mubr.bf16.gmra.mrb[0].mxu0 %v3800
    %v3839 = vpop.f32.mrb[0].mxu0
    %v3840 = vadd.f32 0.0, %v3839
    %v3841 = vpop.f32.mrb[0].mxu0
    %v3842 = vpop.f32.mrb[0].mxu0
    %v3843 = vpop.f32.mrb[0].mxu0
    %3844 = vdwg.mxu0
    %3845 = vrot.lane.b32.xlu0 %v417, 56
    %v3846 = vpop.permute.xlu0 %3845
    %v3848 = vsel %vm422, %v3171, 0
    %v3851 = vsel %vm1401, %v3846, 0
    %3853 = vmatprep.subr.bf16.mxu0 0
    %3854 = vmatpush1.bf16.msra.mxu0 %v3851
    %3855 = vmatprep.subr.bf16.mxu0 0
    %3856 = vmatpush1.bf16.msra.mxu0 0
    %3857 = vmatprep.subr.bf16.mxu0 0
    %3858 = vmatpush1.bf16.msra.mxu0 0
    %3859 = vmatprep.subr.bf16.mxu0 0
    %3860 = vmatpush1.bf16.msra.mxu0 0
    %3861 = vmatprep.subr.bf16.mxu0 0
    %3862 = vmatpush1.bf16.msra.mxu0 0
    %3863 = vmatprep.subr.bf16.mxu0 0
    %3864 = vmatpush1.bf16.msra.mxu0 0
    %3865 = vmatprep.subr.bf16.mxu0 0
    %3866 = vmatpush1.bf16.msra.mxu0 0
    %3867 = vmatprep.subr.bf16.mxu0 0
    %3868 = vmatpush1.bf16.msra.mxu0 0
    %3869 = vmatprep.subr.bf16.mxu0 0
    %3870 = vmatpush1.bf16.msra.mxu0 0
    %3871 = vmatprep.subr.bf16.mxu0 0
    %3872 = vmatpush1.bf16.msra.mxu0 0
    %3873 = vmatprep.subr.bf16.mxu0 0
    %3874 = vmatpush1.bf16.msra.mxu0 0
    %3875 = vmatprep.subr.bf16.mxu0 0
    %3876 = vmatpush1.bf16.msra.mxu0 0
    %3877 = vmatprep.subr.bf16.mxu0 0
    %3878 = vmatpush1.bf16.msra.mxu0 0
    %3879 = vmatprep.subr.bf16.mxu0 0
    %3880 = vmatpush1.bf16.msra.mxu0 0
    %3881 = vmatprep.subr.bf16.mxu0 0
    %3882 = vmatpush1.bf16.msra.mxu0 0
    %3883 = vmatprep.subr.bf16.mxu0 0
    %3884 = vmatpush1.bf16.msra.mxu0 0
    %3885 = vmatprep.mubr.bf16.mxu0 0
    %3886 = vmatmul.mubr.bf16.gmra.mrb[0].mxu0 %v3848
    %v3887 = vpop.f32.mrb[0].mxu0
    %v3888 = vadd.f32 0.0, %v3887
    %v3889 = vpop.f32.mrb[0].mxu0
    %v3890 = vpop.f32.mrb[0].mxu0
    %v3891 = vpop.f32.mrb[0].mxu0
    %3892 = vdwg.mxu0
    %3893 = vrot.lane.b32.xlu0 %v418, 56
    %v3894 = vpop.permute.xlu0 %3893
    %v3896 = vsel %vm422, %v3172, 0
    %v3899 = vsel %vm1401, %v3894, 0
    %3901 = vmatprep.subr.bf16.mxu0 0
    %3902 = vmatpush1.bf16.msra.mxu0 %v3899
    %3903 = vmatprep.subr.bf16.mxu0 0
    %3904 = vmatpush1.bf16.msra.mxu0 0
    %3905 = vmatprep.subr.bf16.mxu0 0
    %3906 = vmatpush1.bf16.msra.mxu0 0
    %3907 = vmatprep.subr.bf16.mxu0 0
    %3908 = vmatpush1.bf16.msra.mxu0 0
    %3909 = vmatprep.subr.bf16.mxu0 0
    %3910 = vmatpush1.bf16.msra.mxu0 0
    %3911 = vmatprep.subr.bf16.mxu0 0
    %3912 = vmatpush1.bf16.msra.mxu0 0
    %3913 = vmatprep.subr.bf16.mxu0 0
    %3914 = vmatpush1.bf16.msra.mxu0 0
    %3915 = vmatprep.subr.bf16.mxu0 0
    %3916 = vmatpush1.bf16.msra.mxu0 0
    %3917 = vmatprep.subr.bf16.mxu0 0
    %3918 = vmatpush1.bf16.msra.mxu0 0
    %3919 = vmatprep.subr.bf16.mxu0 0
    %3920 = vmatpush1.bf16.msra.mxu0 0
    %3921 = vmatprep.subr.bf16.mxu0 0
    %3922 = vmatpush1.bf16.msra.mxu0 0
    %3923 = vmatprep.subr.bf16.mxu0 0
    %3924 = vmatpush1.bf16.msra.mxu0 0
    %3925 = vmatprep.subr.bf16.mxu0 0
    %3926 = vmatpush1.bf16.msra.mxu0 0
    %3927 = vmatprep.subr.bf16.mxu0 0
    %3928 = vmatpush1.bf16.msra.mxu0 0
    %3929 = vmatprep.subr.bf16.mxu0 0
    %3930 = vmatpush1.bf16.msra.mxu0 0
    %3931 = vmatprep.subr.bf16.mxu0 0
    %3932 = vmatpush1.bf16.msra.mxu0 0
    %3933 = vmatprep.mubr.bf16.mxu0 0
    %3934 = vmatmul.mubr.bf16.gmra.mrb[0].mxu0 %v3896
    %v3935 = vpop.f32.mrb[0].mxu0
    %v3936 = vadd.f32 0.0, %v3935
    %v3937 = vpop.f32.mrb[0].mxu0
    %v3938 = vpop.f32.mrb[0].mxu0
    %v3939 = vpop.f32.mrb[0].mxu0
    %3940 = vdwg.mxu0
    %3941 = vrot.lane.b32.xlu0 %v387, 112
    %v3942 = vpop.permute.xlu0 %3941
    %3943 = vrot.lane.b32.xlu0 %v403, 80
    %v3944 = vpop.permute.xlu0 %3943
    %v3946 = vsel %vm422, %v3942, 0
    %v3949 = vsel %vm422, %v3944, 0
    %3951 = vmatprep.subr.bf16.mxu0 0
    %3952 = vmatpush1.bf16.xpose.msra.mxu0 %v3949
    %3953 = vmatprep.subr.bf16.mxu0 0
    %3954 = vmatpush1.bf16.xpose.msra.mxu0 0
    %3955 = vmatprep.subr.bf16.mxu0 0
    %3956 = vmatpush1.bf16.xpose.msra.mxu0 0
    %3957 = vmatprep.subr.bf16.mxu0 0
    %3958 = vmatpush1.bf16.xpose.msra.mxu0 0
    %3959 = vmatprep.subr.bf16.mxu0 0
    %3960 = vmatpush1.bf16.xpose.msra.mxu0 0
    %3961 = vmatprep.subr.bf16.mxu0 0
    %3962 = vmatpush1.bf16.xpose.msra.mxu0 0
    %3963 = vmatprep.subr.bf16.mxu0 0
    %3964 = vmatpush1.bf16.xpose.msra.mxu0 0
    %3965 = vmatprep.subr.bf16.mxu0 0
    %3966 = vmatpush1.bf16.xpose.msra.mxu0 0
    %3967 = vmatprep.subr.bf16.mxu0 0
    %3968 = vmatpush1.bf16.xpose.msra.mxu0 0
    %3969 = vmatprep.subr.bf16.mxu0 0
    %3970 = vmatpush1.bf16.xpose.msra.mxu0 0
    %3971 = vmatprep.subr.bf16.mxu0 0
    %3972 = vmatpush1.bf16.xpose.msra.mxu0 0
    %3973 = vmatprep.subr.bf16.mxu0 0
    %3974 = vmatpush1.bf16.xpose.msra.mxu0 0
    %3975 = vmatprep.subr.bf16.mxu0 0
    %3976 = vmatpush1.bf16.xpose.msra.mxu0 0
    %3977 = vmatprep.subr.bf16.mxu0 0
    %3978 = vmatpush1.bf16.xpose.msra.mxu0 0
    %3979 = vmatprep.subr.bf16.mxu0 0
    %3980 = vmatpush1.bf16.xpose.msra.mxu0 0
    %3981 = vmatprep.subr.bf16.mxu0 0
    %3982 = vmatpush1.bf16.xpose.msra.mxu0 0
    %3983 = vmatprep.mubr.bf16.mxu0 0
    %3984 = vmatmul.mubr.bf16.gmra.mrb[0].mxu0 %v3946
    %v3985 = vpop.f32.mrb[0].mxu0
    %v3986 = vadd.f32 %v60, %v3985
    %v3987 = vpop.f32.mrb[0].mxu0
    %v3988 = vpop.f32.mrb[0].mxu0
    %v3989 = vpop.f32.mrb[0].mxu0
    %3990 = vdwg.mxu0
    %3991 = vrot.lane.b32.xlu0 %v388, 112
    %v3992 = vpop.permute.xlu0 %3991
    %3993 = vrot.lane.b32.xlu0 %v404, 80
    %v3994 = vpop.permute.xlu0 %3993
    %v3996 = vsel %vm422, %v3992, 0
    %v3999 = vsel %vm422, %v3994, 0
    %4001 = vmatprep.subr.bf16.mxu0 0
    %4002 = vmatpush1.bf16.xpose.msra.mxu0 %v3999
    %4003 = vmatprep.subr.bf16.mxu0 0
    %4004 = vmatpush1.bf16.xpose.msra.mxu0 0
    %4005 = vmatprep.subr.bf16.mxu0 0
    %4006 = vmatpush1.bf16.xpose.msra.mxu0 0
    %4007 = vmatprep.subr.bf16.mxu0 0
    %4008 = vmatpush1.bf16.xpose.msra.mxu0 0
    %4009 = vmatprep.subr.bf16.mxu0 0
    %4010 = vmatpush1.bf16.xpose.msra.mxu0 0
    %4011 = vmatprep.subr.bf16.mxu0 0
    %4012 = vmatpush1.bf16.xpose.msra.mxu0 0
    %4013 = vmatprep.subr.bf16.mxu0 0
    %4014 = vmatpush1.bf16.xpose.msra.mxu0 0
    %4015 = vmatprep.subr.bf16.mxu0 0
    %4016 = vmatpush1.bf16.xpose.msra.mxu0 0
    %4017 = vmatprep.subr.bf16.mxu0 0
    %4018 = vmatpush1.bf16.xpose.msra.mxu0 0
    %4019 = vmatprep.subr.bf16.mxu0 0
    %4020 = vmatpush1.bf16.xpose.msra.mxu0 0
    %4021 = vmatprep.subr.bf16.mxu0 0
    %4022 = vmatpush1.bf16.xpose.msra.mxu0 0
    %4023 = vmatprep.subr.bf16.mxu0 0
    %4024 = vmatpush1.bf16.xpose.msra.mxu0 0
    %4025 = vmatprep.subr.bf16.mxu0 0
    %4026 = vmatpush1.bf16.xpose.msra.mxu0 0
    %4027 = vmatprep.subr.bf16.mxu0 0
    %4028 = vmatpush1.bf16.xpose.msra.mxu0 0
    %4029 = vmatprep.subr.bf16.mxu0 0
    %4030 = vmatpush1.bf16.xpose.msra.mxu0 0
    %4031 = vmatprep.subr.bf16.mxu0 0
    %4032 = vmatpush1.bf16.xpose.msra.mxu0 0
    %4033 = vmatprep.mubr.bf16.mxu0 0
    %4034 = vmatmul.mubr.bf16.gmra.mrb[0].mxu0 %v3996
    %v4035 = vpop.f32.mrb[0].mxu0
    %v4036 = vadd.f32 %v61, %v4035
    %v4037 = vpop.f32.mrb[0].mxu0
    %v4038 = vpop.f32.mrb[0].mxu0
    %v4039 = vpop.f32.mrb[0].mxu0
    %4040 = vdwg.mxu0
    %4041 = vrot.lane.b32.xlu0 %v389, 112
    %v4042 = vpop.permute.xlu0 %4041
    %4043 = vrot.lane.b32.xlu0 %v405, 80
    %v4044 = vpop.permute.xlu0 %4043
    %v4046 = vsel %vm422, %v4042, 0
    %v4049 = vsel %vm422, %v4044, 0
    %4051 = vmatprep.subr.bf16.mxu0 0
    %4052 = vmatpush1.bf16.xpose.msra.mxu0 %v4049
    %4053 = vmatprep.subr.bf16.mxu0 0
    %4054 = vmatpush1.bf16.xpose.msra.mxu0 0
    %4055 = vmatprep.subr.bf16.mxu0 0
    %4056 = vmatpush1.bf16.xpose.msra.mxu0 0
    %4057 = vmatprep.subr.bf16.mxu0 0
    %4058 = vmatpush1.bf16.xpose.msra.mxu0 0
    %4059 = vmatprep.subr.bf16.mxu0 0
    %4060 = vmatpush1.bf16.xpose.msra.mxu0 0
    %4061 = vmatprep.subr.bf16.mxu0 0
    %4062 = vmatpush1.bf16.xpose.msra.mxu0 0
    %4063 = vmatprep.subr.bf16.mxu0 0
    %4064 = vmatpush1.bf16.xpose.msra.mxu0 0
    %4065 = vmatprep.subr.bf16.mxu0 0
    %4066 = vmatpush1.bf16.xpose.msra.mxu0 0
    %4067 = vmatprep.subr.bf16.mxu0 0
    %4068 = vmatpush1.bf16.xpose.msra.mxu0 0
    %4069 = vmatprep.subr.bf16.mxu0 0
    %4070 = vmatpush1.bf16.xpose.msra.mxu0 0
    %4071 = vmatprep.subr.bf16.mxu0 0
    %4072 = vmatpush1.bf16.xpose.msra.mxu0 0
    %4073 = vmatprep.subr.bf16.mxu0 0
    %4074 = vmatpush1.bf16.xpose.msra.mxu0 0
    %4075 = vmatprep.subr.bf16.mxu0 0
    %4076 = vmatpush1.bf16.xpose.msra.mxu0 0
    %4077 = vmatprep.subr.bf16.mxu0 0
    %4078 = vmatpush1.bf16.xpose.msra.mxu0 0
    %4079 = vmatprep.subr.bf16.mxu0 0
    %4080 = vmatpush1.bf16.xpose.msra.mxu0 0
    %4081 = vmatprep.subr.bf16.mxu0 0
    %4082 = vmatpush1.bf16.xpose.msra.mxu0 0
    %4083 = vmatprep.mubr.bf16.mxu0 0
    %4084 = vmatmul.mubr.bf16.gmra.mrb[0].mxu0 %v4046
    %v4085 = vpop.f32.mrb[0].mxu0
    %v4086 = vadd.f32 %v62, %v4085
    %v4087 = vpop.f32.mrb[0].mxu0
    %v4088 = vpop.f32.mrb[0].mxu0
    %v4089 = vpop.f32.mrb[0].mxu0
    %4090 = vdwg.mxu0
    %4091 = vrot.lane.b32.xlu0 %v390, 112
    %v4092 = vpop.permute.xlu0 %4091
    %4093 = vrot.lane.b32.xlu0 %v406, 80
    %v4094 = vpop.permute.xlu0 %4093
    %v4096 = vsel %vm422, %v4092, 0
    %v4099 = vsel %vm422, %v4094, 0
    %4101 = vmatprep.subr.bf16.mxu0 0
    %4102 = vmatpush1.bf16.xpose.msra.mxu0 %v4099
    %4103 = vmatprep.subr.bf16.mxu0 0
    %4104 = vmatpush1.bf16.xpose.msra.mxu0 0
    %4105 = vmatprep.subr.bf16.mxu0 0
    %4106 = vmatpush1.bf16.xpose.msra.mxu0 0
    %4107 = vmatprep.subr.bf16.mxu0 0
    %4108 = vmatpush1.bf16.xpose.msra.mxu0 0
    %4109 = vmatprep.subr.bf16.mxu0 0
    %4110 = vmatpush1.bf16.xpose.msra.mxu0 0
    %4111 = vmatprep.subr.bf16.mxu0 0
    %4112 = vmatpush1.bf16.xpose.msra.mxu0 0
    %4113 = vmatprep.subr.bf16.mxu0 0
    %4114 = vmatpush1.bf16.xpose.msra.mxu0 0
    %4115 = vmatprep.subr.bf16.mxu0 0
    %4116 = vmatpush1.bf16.xpose.msra.mxu0 0
    %4117 = vmatprep.subr.bf16.mxu0 0
    %4118 = vmatpush1.bf16.xpose.msra.mxu0 0
    %4119 = vmatprep.subr.bf16.mxu0 0
    %4120 = vmatpush1.bf16.xpose.msra.mxu0 0
    %4121 = vmatprep.subr.bf16.mxu0 0
    %4122 = vmatpush1.bf16.xpose.msra.mxu0 0
    %4123 = vmatprep.subr.bf16.mxu0 0
    %4124 = vmatpush1.bf16.xpose.msra.mxu0 0
    %4125 = vmatprep.subr.bf16.mxu0 0
    %4126 = vmatpush1.bf16.xpose.msra.mxu0 0
    %4127 = vmatprep.subr.bf16.mxu0 0
    %4128 = vmatpush1.bf16.xpose.msra.mxu0 0
    %4129 = vmatprep.subr.bf16.mxu0 0
    %4130 = vmatpush1.bf16.xpose.msra.mxu0 0
    %4131 = vmatprep.subr.bf16.mxu0 0
    %4132 = vmatpush1.bf16.xpose.msra.mxu0 0
    %4133 = vmatprep.mubr.bf16.mxu0 0
    %4134 = vmatmul.mubr.bf16.gmra.mrb[0].mxu0 %v4096
    %v4135 = vpop.f32.mrb[0].mxu0
    %v4136 = vadd.f32 %v63, %v4135
    %v4137 = vpop.f32.mrb[0].mxu0
    %v4138 = vpop.f32.mrb[0].mxu0
    %v4139 = vpop.f32.mrb[0].mxu0
    %4140 = vdwg.mxu0
    %4141 = vrot.lane.b32.xlu0 %v391, 112
    %v4142 = vpop.permute.xlu0 %4141
    %4143 = vrot.lane.b32.xlu0 %v407, 80
    %v4144 = vpop.permute.xlu0 %4143
    %v4146 = vsel %vm422, %v4142, 0
    %v4149 = vsel %vm422, %v4144, 0
    %4151 = vmatprep.subr.bf16.mxu0 0
    %4152 = vmatpush1.bf16.xpose.msra.mxu0 %v4149
    %4153 = vmatprep.subr.bf16.mxu0 0
    %4154 = vmatpush1.bf16.xpose.msra.mxu0 0
    %4155 = vmatprep.subr.bf16.mxu0 0
    %4156 = vmatpush1.bf16.xpose.msra.mxu0 0
    %4157 = vmatprep.subr.bf16.mxu0 0
    %4158 = vmatpush1.bf16.xpose.msra.mxu0 0
    %4159 = vmatprep.subr.bf16.mxu0 0
    %4160 = vmatpush1.bf16.xpose.msra.mxu0 0
    %4161 = vmatprep.subr.bf16.mxu0 0
    %4162 = vmatpush1.bf16.xpose.msra.mxu0 0
    %4163 = vmatprep.subr.bf16.mxu0 0
    %4164 = vmatpush1.bf16.xpose.msra.mxu0 0
    %4165 = vmatprep.subr.bf16.mxu0 0
    %4166 = vmatpush1.bf16.xpose.msra.mxu0 0
    %4167 = vmatprep.subr.bf16.mxu0 0
    %4168 = vmatpush1.bf16.xpose.msra.mxu0 0
    %4169 = vmatprep.subr.bf16.mxu0 0
    %4170 = vmatpush1.bf16.xpose.msra.mxu0 0
    %4171 = vmatprep.subr.bf16.mxu0 0
    %4172 = vmatpush1.bf16.xpose.msra.mxu0 0
    %4173 = vmatprep.subr.bf16.mxu0 0
    %4174 = vmatpush1.bf16.xpose.msra.mxu0 0
    %4175 = vmatprep.subr.bf16.mxu0 0
    %4176 = vmatpush1.bf16.xpose.msra.mxu0 0
    %4177 = vmatprep.subr.bf16.mxu0 0
    %4178 = vmatpush1.bf16.xpose.msra.mxu0 0
    %4179 = vmatprep.subr.bf16.mxu0 0
    %4180 = vmatpush1.bf16.xpose.msra.mxu0 0
    %4181 = vmatprep.subr.bf16.mxu0 0
    %4182 = vmatpush1.bf16.xpose.msra.mxu0 0
    %4183 = vmatprep.mubr.bf16.mxu0 0
    %4184 = vmatmul.mubr.bf16.gmra.mrb[0].mxu0 %v4146
    %v4185 = vpop.f32.mrb[0].mxu0
    %v4186 = vadd.f32 %v64, %v4185
    %v4187 = vpop.f32.mrb[0].mxu0
    %v4188 = vpop.f32.mrb[0].mxu0
    %v4189 = vpop.f32.mrb[0].mxu0
    %4190 = vdwg.mxu0
    %4191 = vrot.lane.b32.xlu0 %v392, 112
    %v4192 = vpop.permute.xlu0 %4191
    %4193 = vrot.lane.b32.xlu0 %v408, 80
    %v4194 = vpop.permute.xlu0 %4193
    %v4196 = vsel %vm422, %v4192, 0
    %v4199 = vsel %vm422, %v4194, 0
    %4201 = vmatprep.subr.bf16.mxu0 0
    %4202 = vmatpush1.bf16.xpose.msra.mxu0 %v4199
    %4203 = vmatprep.subr.bf16.mxu0 0
    %4204 = vmatpush1.bf16.xpose.msra.mxu0 0
    %4205 = vmatprep.subr.bf16.mxu0 0
    %4206 = vmatpush1.bf16.xpose.msra.mxu0 0
    %4207 = vmatprep.subr.bf16.mxu0 0
    %4208 = vmatpush1.bf16.xpose.msra.mxu0 0
    %4209 = vmatprep.subr.bf16.mxu0 0
    %4210 = vmatpush1.bf16.xpose.msra.mxu0 0
    %4211 = vmatprep.subr.bf16.mxu0 0
    %4212 = vmatpush1.bf16.xpose.msra.mxu0 0
    %4213 = vmatprep.subr.bf16.mxu0 0
    %4214 = vmatpush1.bf16.xpose.msra.mxu0 0
    %4215 = vmatprep.subr.bf16.mxu0 0
    %4216 = vmatpush1.bf16.xpose.msra.mxu0 0
    %4217 = vmatprep.subr.bf16.mxu0 0
    %4218 = vmatpush1.bf16.xpose.msra.mxu0 0
    %4219 = vmatprep.subr.bf16.mxu0 0
    %4220 = vmatpush1.bf16.xpose.msra.mxu0 0
    %4221 = vmatprep.subr.bf16.mxu0 0
    %4222 = vmatpush1.bf16.xpose.msra.mxu0 0
    %4223 = vmatprep.subr.bf16.mxu0 0
    %4224 = vmatpush1.bf16.xpose.msra.mxu0 0
    %4225 = vmatprep.subr.bf16.mxu0 0
    %4226 = vmatpush1.bf16.xpose.msra.mxu0 0
    %4227 = vmatprep.subr.bf16.mxu0 0
    %4228 = vmatpush1.bf16.xpose.msra.mxu0 0
    %4229 = vmatprep.subr.bf16.mxu0 0
    %4230 = vmatpush1.bf16.xpose.msra.mxu0 0
    %4231 = vmatprep.subr.bf16.mxu0 0
    %4232 = vmatpush1.bf16.xpose.msra.mxu0 0
    %4233 = vmatprep.mubr.bf16.mxu0 0
    %4234 = vmatmul.mubr.bf16.gmra.mrb[0].mxu0 %v4196
    %v4235 = vpop.f32.mrb[0].mxu0
    %v4236 = vadd.f32 %v65, %v4235
    %v4237 = vpop.f32.mrb[0].mxu0
    %v4238 = vpop.f32.mrb[0].mxu0
    %v4239 = vpop.f32.mrb[0].mxu0
    %4240 = vdwg.mxu0
    %4241 = vrot.lane.b32.xlu0 %v393, 112
    %v4242 = vpop.permute.xlu0 %4241
    %4243 = vrot.lane.b32.xlu0 %v409, 80
    %v4244 = vpop.permute.xlu0 %4243
    %v4246 = vsel %vm422, %v4242, 0
    %v4249 = vsel %vm422, %v4244, 0
    %4251 = vmatprep.subr.bf16.mxu0 0
    %4252 = vmatpush1.bf16.xpose.msra.mxu0 %v4249
    %4253 = vmatprep.subr.bf16.mxu0 0
    %4254 = vmatpush1.bf16.xpose.msra.mxu0 0
    %4255 = vmatprep.subr.bf16.mxu0 0
    %4256 = vmatpush1.bf16.xpose.msra.mxu0 0
    %4257 = vmatprep.subr.bf16.mxu0 0
    %4258 = vmatpush1.bf16.xpose.msra.mxu0 0
    %4259 = vmatprep.subr.bf16.mxu0 0
    %4260 = vmatpush1.bf16.xpose.msra.mxu0 0
    %4261 = vmatprep.subr.bf16.mxu0 0
    %4262 = vmatpush1.bf16.xpose.msra.mxu0 0
    %4263 = vmatprep.subr.bf16.mxu0 0
    %4264 = vmatpush1.bf16.xpose.msra.mxu0 0
    %4265 = vmatprep.subr.bf16.mxu0 0
    %4266 = vmatpush1.bf16.xpose.msra.mxu0 0
    %4267 = vmatprep.subr.bf16.mxu0 0
    %4268 = vmatpush1.bf16.xpose.msra.mxu0 0
    %4269 = vmatprep.subr.bf16.mxu0 0
    %4270 = vmatpush1.bf16.xpose.msra.mxu0 0
    %4271 = vmatprep.subr.bf16.mxu0 0
    %4272 = vmatpush1.bf16.xpose.msra.mxu0 0
    %4273 = vmatprep.subr.bf16.mxu0 0
    %4274 = vmatpush1.bf16.xpose.msra.mxu0 0
    %4275 = vmatprep.subr.bf16.mxu0 0
    %4276 = vmatpush1.bf16.xpose.msra.mxu0 0
    %4277 = vmatprep.subr.bf16.mxu0 0
    %4278 = vmatpush1.bf16.xpose.msra.mxu0 0
    %4279 = vmatprep.subr.bf16.mxu0 0
    %4280 = vmatpush1.bf16.xpose.msra.mxu0 0
    %4281 = vmatprep.subr.bf16.mxu0 0
    %4282 = vmatpush1.bf16.xpose.msra.mxu0 0
    %4283 = vmatprep.mubr.bf16.mxu0 0
    %4284 = vmatmul.mubr.bf16.gmra.mrb[0].mxu0 %v4246
    %v4285 = vpop.f32.mrb[0].mxu0
    %v4286 = vadd.f32 %v66, %v4285
    %v4287 = vpop.f32.mrb[0].mxu0
    %v4288 = vpop.f32.mrb[0].mxu0
    %v4289 = vpop.f32.mrb[0].mxu0
    %4290 = vdwg.mxu0
    %4291 = vrot.lane.b32.xlu0 %v394, 112
    %v4292 = vpop.permute.xlu0 %4291
    %4293 = vrot.lane.b32.xlu0 %v410, 80
    %v4294 = vpop.permute.xlu0 %4293
    %v4296 = vsel %vm422, %v4292, 0
    %v4299 = vsel %vm422, %v4294, 0
    %4301 = vmatprep.subr.bf16.mxu0 0
    %4302 = vmatpush1.bf16.xpose.msra.mxu0 %v4299
    %4303 = vmatprep.subr.bf16.mxu0 0
    %4304 = vmatpush1.bf16.xpose.msra.mxu0 0
    %4305 = vmatprep.subr.bf16.mxu0 0
    %4306 = vmatpush1.bf16.xpose.msra.mxu0 0
    %4307 = vmatprep.subr.bf16.mxu0 0
    %4308 = vmatpush1.bf16.xpose.msra.mxu0 0
    %4309 = vmatprep.subr.bf16.mxu0 0
    %4310 = vmatpush1.bf16.xpose.msra.mxu0 0
    %4311 = vmatprep.subr.bf16.mxu0 0
    %4312 = vmatpush1.bf16.xpose.msra.mxu0 0
    %4313 = vmatprep.subr.bf16.mxu0 0
    %4314 = vmatpush1.bf16.xpose.msra.mxu0 0
    %4315 = vmatprep.subr.bf16.mxu0 0
    %4316 = vmatpush1.bf16.xpose.msra.mxu0 0
    %4317 = vmatprep.subr.bf16.mxu0 0
    %4318 = vmatpush1.bf16.xpose.msra.mxu0 0
    %4319 = vmatprep.subr.bf16.mxu0 0
    %4320 = vmatpush1.bf16.xpose.msra.mxu0 0
    %4321 = vmatprep.subr.bf16.mxu0 0
    %4322 = vmatpush1.bf16.xpose.msra.mxu0 0
    %4323 = vmatprep.subr.bf16.mxu0 0
    %4324 = vmatpush1.bf16.xpose.msra.mxu0 0
    %4325 = vmatprep.subr.bf16.mxu0 0
    %4326 = vmatpush1.bf16.xpose.msra.mxu0 0
    %4327 = vmatprep.subr.bf16.mxu0 0
    %4328 = vmatpush1.bf16.xpose.msra.mxu0 0
    %4329 = vmatprep.subr.bf16.mxu0 0
    %4330 = vmatpush1.bf16.xpose.msra.mxu0 0
    %4331 = vmatprep.subr.bf16.mxu0 0
    %4332 = vmatpush1.bf16.xpose.msra.mxu0 0
    %4333 = vmatprep.mubr.bf16.mxu0 0
    %4334 = vmatmul.mubr.bf16.gmra.mrb[0].mxu0 %v4296
    %v4335 = vpop.f32.mrb[0].mxu0
    %v4336 = vadd.f32 %v67, %v4335
    %v4337 = vpop.f32.mrb[0].mxu0
    %v4338 = vpop.f32.mrb[0].mxu0
    %v4339 = vpop.f32.mrb[0].mxu0
    %4340 = vdwg.mxu0
    %4341 = vrot.lane.b32.xlu0 %v395, 112
    %v4342 = vpop.permute.xlu0 %4341
    %4343 = vrot.lane.b32.xlu0 %v411, 80
    %v4344 = vpop.permute.xlu0 %4343
    %v4346 = vsel %vm422, %v4342, 0
    %v4349 = vsel %vm422, %v4344, 0
    %4351 = vmatprep.subr.bf16.mxu0 0
    %4352 = vmatpush1.bf16.xpose.msra.mxu0 %v4349
    %4353 = vmatprep.subr.bf16.mxu0 0
    %4354 = vmatpush1.bf16.xpose.msra.mxu0 0
    %4355 = vmatprep.subr.bf16.mxu0 0
    %4356 = vmatpush1.bf16.xpose.msra.mxu0 0
    %4357 = vmatprep.subr.bf16.mxu0 0
    %4358 = vmatpush1.bf16.xpose.msra.mxu0 0
    %4359 = vmatprep.subr.bf16.mxu0 0
    %4360 = vmatpush1.bf16.xpose.msra.mxu0 0
    %4361 = vmatprep.subr.bf16.mxu0 0
    %4362 = vmatpush1.bf16.xpose.msra.mxu0 0
    %4363 = vmatprep.subr.bf16.mxu0 0
    %4364 = vmatpush1.bf16.xpose.msra.mxu0 0
    %4365 = vmatprep.subr.bf16.mxu0 0
    %4366 = vmatpush1.bf16.xpose.msra.mxu0 0
    %4367 = vmatprep.subr.bf16.mxu0 0
    %4368 = vmatpush1.bf16.xpose.msra.mxu0 0
    %4369 = vmatprep.subr.bf16.mxu0 0
    %4370 = vmatpush1.bf16.xpose.msra.mxu0 0
    %4371 = vmatprep.subr.bf16.mxu0 0
    %4372 = vmatpush1.bf16.xpose.msra.mxu0 0
    %4373 = vmatprep.subr.bf16.mxu0 0
    %4374 = vmatpush1.bf16.xpose.msra.mxu0 0
    %4375 = vmatprep.subr.bf16.mxu0 0
    %4376 = vmatpush1.bf16.xpose.msra.mxu0 0
    %4377 = vmatprep.subr.bf16.mxu0 0
    %4378 = vmatpush1.bf16.xpose.msra.mxu0 0
    %4379 = vmatprep.subr.bf16.mxu0 0
    %4380 = vmatpush1.bf16.xpose.msra.mxu0 0
    %4381 = vmatprep.subr.bf16.mxu0 0
    %4382 = vmatpush1.bf16.xpose.msra.mxu0 0
    %4383 = vmatprep.mubr.bf16.mxu0 0
    %4384 = vmatmul.mubr.bf16.gmra.mrb[0].mxu0 %v4346
    %v4385 = vpop.f32.mrb[0].mxu0
    %v4386 = vadd.f32 %v68, %v4385
    %v4387 = vpop.f32.mrb[0].mxu0
    %v4388 = vpop.f32.mrb[0].mxu0
    %v4389 = vpop.f32.mrb[0].mxu0
    %4390 = vdwg.mxu0
    %4391 = vrot.lane.b32.xlu0 %v396, 112
    %v4392 = vpop.permute.xlu0 %4391
    %4393 = vrot.lane.b32.xlu0 %v412, 80
    %v4394 = vpop.permute.xlu0 %4393
    %v4396 = vsel %vm422, %v4392, 0
    %v4399 = vsel %vm422, %v4394, 0
    %4401 = vmatprep.subr.bf16.mxu0 0
    %4402 = vmatpush1.bf16.xpose.msra.mxu0 %v4399
    %4403 = vmatprep.subr.bf16.mxu0 0
    %4404 = vmatpush1.bf16.xpose.msra.mxu0 0
    %4405 = vmatprep.subr.bf16.mxu0 0
    %4406 = vmatpush1.bf16.xpose.msra.mxu0 0
    %4407 = vmatprep.subr.bf16.mxu0 0
    %4408 = vmatpush1.bf16.xpose.msra.mxu0 0
    %4409 = vmatprep.subr.bf16.mxu0 0
    %4410 = vmatpush1.bf16.xpose.msra.mxu0 0
    %4411 = vmatprep.subr.bf16.mxu0 0
    %4412 = vmatpush1.bf16.xpose.msra.mxu0 0
    %4413 = vmatprep.subr.bf16.mxu0 0
    %4414 = vmatpush1.bf16.xpose.msra.mxu0 0
    %4415 = vmatprep.subr.bf16.mxu0 0
    %4416 = vmatpush1.bf16.xpose.msra.mxu0 0
    %4417 = vmatprep.subr.bf16.mxu0 0
    %4418 = vmatpush1.bf16.xpose.msra.mxu0 0
    %4419 = vmatprep.subr.bf16.mxu0 0
    %4420 = vmatpush1.bf16.xpose.msra.mxu0 0
    %4421 = vmatprep.subr.bf16.mxu0 0
    %4422 = vmatpush1.bf16.xpose.msra.mxu0 0
    %4423 = vmatprep.subr.bf16.mxu0 0
    %4424 = vmatpush1.bf16.xpose.msra.mxu0 0
    %4425 = vmatprep.subr.bf16.mxu0 0
    %4426 = vmatpush1.bf16.xpose.msra.mxu0 0
    %4427 = vmatprep.subr.bf16.mxu0 0
    %4428 = vmatpush1.bf16.xpose.msra.mxu0 0
    %4429 = vmatprep.subr.bf16.mxu0 0
    %4430 = vmatpush1.bf16.xpose.msra.mxu0 0
    %4431 = vmatprep.subr.bf16.mxu0 0
    %4432 = vmatpush1.bf16.xpose.msra.mxu0 0
    %4433 = vmatprep.mubr.bf16.mxu0 0
    %4434 = vmatmul.mubr.bf16.gmra.mrb[0].mxu0 %v4396
    %v4435 = vpop.f32.mrb[0].mxu0
    %v4436 = vadd.f32 %v69, %v4435
    %v4437 = vpop.f32.mrb[0].mxu0
    %v4438 = vpop.f32.mrb[0].mxu0
    %v4439 = vpop.f32.mrb[0].mxu0
    %4440 = vdwg.mxu0
    %4441 = vrot.lane.b32.xlu0 %v397, 112
    %v4442 = vpop.permute.xlu0 %4441
    %4443 = vrot.lane.b32.xlu0 %v413, 80
    %v4444 = vpop.permute.xlu0 %4443
    %v4446 = vsel %vm422, %v4442, 0
    %v4449 = vsel %vm422, %v4444, 0
    %4451 = vmatprep.subr.bf16.mxu0 0
    %4452 = vmatpush1.bf16.xpose.msra.mxu0 %v4449
    %4453 = vmatprep.subr.bf16.mxu0 0
    %4454 = vmatpush1.bf16.xpose.msra.mxu0 0
    %4455 = vmatprep.subr.bf16.mxu0 0
    %4456 = vmatpush1.bf16.xpose.msra.mxu0 0
    %4457 = vmatprep.subr.bf16.mxu0 0
    %4458 = vmatpush1.bf16.xpose.msra.mxu0 0
    %4459 = vmatprep.subr.bf16.mxu0 0
    %4460 = vmatpush1.bf16.xpose.msra.mxu0 0
    %4461 = vmatprep.subr.bf16.mxu0 0
    %4462 = vmatpush1.bf16.xpose.msra.mxu0 0
    %4463 = vmatprep.subr.bf16.mxu0 0
    %4464 = vmatpush1.bf16.xpose.msra.mxu0 0
    %4465 = vmatprep.subr.bf16.mxu0 0
    %4466 = vmatpush1.bf16.xpose.msra.mxu0 0
    %4467 = vmatprep.subr.bf16.mxu0 0
    %4468 = vmatpush1.bf16.xpose.msra.mxu0 0
    %4469 = vmatprep.subr.bf16.mxu0 0
    %4470 = vmatpush1.bf16.xpose.msra.mxu0 0
    %4471 = vmatprep.subr.bf16.mxu0 0
    %4472 = vmatpush1.bf16.xpose.msra.mxu0 0
    %4473 = vmatprep.subr.bf16.mxu0 0
    %4474 = vmatpush1.bf16.xpose.msra.mxu0 0
    %4475 = vmatprep.subr.bf16.mxu0 0
    %4476 = vmatpush1.bf16.xpose.msra.mxu0 0
    %4477 = vmatprep.subr.bf16.mxu0 0
    %4478 = vmatpush1.bf16.xpose.msra.mxu0 0
    %4479 = vmatprep.subr.bf16.mxu0 0
    %4480 = vmatpush1.bf16.xpose.msra.mxu0 0
    %4481 = vmatprep.subr.bf16.mxu0 0
    %4482 = vmatpush1.bf16.xpose.msra.mxu0 0
    %4483 = vmatprep.mubr.bf16.mxu0 0
    %4484 = vmatmul.mubr.bf16.gmra.mrb[0].mxu0 %v4446
    %v4485 = vpop.f32.mrb[0].mxu0
    %v4486 = vadd.f32 %v70, %v4485
    %v4487 = vpop.f32.mrb[0].mxu0
    %v4488 = vpop.f32.mrb[0].mxu0
    %v4489 = vpop.f32.mrb[0].mxu0
    %4490 = vdwg.mxu0
    %4491 = vrot.lane.b32.xlu0 %v398, 112
    %v4492 = vpop.permute.xlu0 %4491
    %4493 = vrot.lane.b32.xlu0 %v414, 80
    %v4494 = vpop.permute.xlu0 %4493
    %v4496 = vsel %vm422, %v4492, 0
    %v4499 = vsel %vm422, %v4494, 0
    %4501 = vmatprep.subr.bf16.mxu0 0
    %4502 = vmatpush1.bf16.xpose.msra.mxu0 %v4499
    %4503 = vmatprep.subr.bf16.mxu0 0
    %4504 = vmatpush1.bf16.xpose.msra.mxu0 0
    %4505 = vmatprep.subr.bf16.mxu0 0
    %4506 = vmatpush1.bf16.xpose.msra.mxu0 0
    %4507 = vmatprep.subr.bf16.mxu0 0
    %4508 = vmatpush1.bf16.xpose.msra.mxu0 0
    %4509 = vmatprep.subr.bf16.mxu0 0
    %4510 = vmatpush1.bf16.xpose.msra.mxu0 0
    %4511 = vmatprep.subr.bf16.mxu0 0
    %4512 = vmatpush1.bf16.xpose.msra.mxu0 0
    %4513 = vmatprep.subr.bf16.mxu0 0
    %4514 = vmatpush1.bf16.xpose.msra.mxu0 0
    %4515 = vmatprep.subr.bf16.mxu0 0
    %4516 = vmatpush1.bf16.xpose.msra.mxu0 0
    %4517 = vmatprep.subr.bf16.mxu0 0
    %4518 = vmatpush1.bf16.xpose.msra.mxu0 0
    %4519 = vmatprep.subr.bf16.mxu0 0
    %4520 = vmatpush1.bf16.xpose.msra.mxu0 0
    %4521 = vmatprep.subr.bf16.mxu0 0
    %4522 = vmatpush1.bf16.xpose.msra.mxu0 0
    %4523 = vmatprep.subr.bf16.mxu0 0
    %4524 = vmatpush1.bf16.xpose.msra.mxu0 0
    %4525 = vmatprep.subr.bf16.mxu0 0
    %4526 = vmatpush1.bf16.xpose.msra.mxu0 0
    %4527 = vmatprep.subr.bf16.mxu0 0
    %4528 = vmatpush1.bf16.xpose.msra.mxu0 0
    %4529 = vmatprep.subr.bf16.mxu0 0
    %4530 = vmatpush1.bf16.xpose.msra.mxu0 0
    %4531 = vmatprep.subr.bf16.mxu0 0
    %4532 = vmatpush1.bf16.xpose.msra.mxu0 0
    %4533 = vmatprep.mubr.bf16.mxu0 0
    %4534 = vmatmul.mubr.bf16.gmra.mrb[0].mxu0 %v4496
    %v4535 = vpop.f32.mrb[0].mxu0
    %v4536 = vadd.f32 %v71, %v4535
    %v4537 = vpop.f32.mrb[0].mxu0
    %v4538 = vpop.f32.mrb[0].mxu0
    %v4539 = vpop.f32.mrb[0].mxu0
    %4540 = vdwg.mxu0
    %4541 = vrot.lane.b32.xlu0 %v399, 112
    %v4542 = vpop.permute.xlu0 %4541
    %4543 = vrot.lane.b32.xlu0 %v415, 80
    %v4544 = vpop.permute.xlu0 %4543
    %v4546 = vsel %vm422, %v4542, 0
    %v4549 = vsel %vm422, %v4544, 0
    %4551 = vmatprep.subr.bf16.mxu0 0
    %4552 = vmatpush1.bf16.xpose.msra.mxu0 %v4549
    %4553 = vmatprep.subr.bf16.mxu0 0
    %4554 = vmatpush1.bf16.xpose.msra.mxu0 0
    %4555 = vmatprep.subr.bf16.mxu0 0
    %4556 = vmatpush1.bf16.xpose.msra.mxu0 0
    %4557 = vmatprep.subr.bf16.mxu0 0
    %4558 = vmatpush1.bf16.xpose.msra.mxu0 0
    %4559 = vmatprep.subr.bf16.mxu0 0
    %4560 = vmatpush1.bf16.xpose.msra.mxu0 0
    %4561 = vmatprep.subr.bf16.mxu0 0
    %4562 = vmatpush1.bf16.xpose.msra.mxu0 0
    %4563 = vmatprep.subr.bf16.mxu0 0
    %4564 = vmatpush1.bf16.xpose.msra.mxu0 0
    %4565 = vmatprep.subr.bf16.mxu0 0
    %4566 = vmatpush1.bf16.xpose.msra.mxu0 0
    %4567 = vmatprep.subr.bf16.mxu0 0
    %4568 = vmatpush1.bf16.xpose.msra.mxu0 0
    %4569 = vmatprep.subr.bf16.mxu0 0
    %4570 = vmatpush1.bf16.xpose.msra.mxu0 0
    %4571 = vmatprep.subr.bf16.mxu0 0
    %4572 = vmatpush1.bf16.xpose.msra.mxu0 0
    %4573 = vmatprep.subr.bf16.mxu0 0
    %4574 = vmatpush1.bf16.xpose.msra.mxu0 0
    %4575 = vmatprep.subr.bf16.mxu0 0
    %4576 = vmatpush1.bf16.xpose.msra.mxu0 0
    %4577 = vmatprep.subr.bf16.mxu0 0
    %4578 = vmatpush1.bf16.xpose.msra.mxu0 0
    %4579 = vmatprep.subr.bf16.mxu0 0
    %4580 = vmatpush1.bf16.xpose.msra.mxu0 0
    %4581 = vmatprep.subr.bf16.mxu0 0
    %4582 = vmatpush1.bf16.xpose.msra.mxu0 0
    %4583 = vmatprep.mubr.bf16.mxu0 0
    %4584 = vmatmul.mubr.bf16.gmra.mrb[0].mxu0 %v4546
    %v4585 = vpop.f32.mrb[0].mxu0
    %v4586 = vadd.f32 %v72, %v4585
    %v4587 = vpop.f32.mrb[0].mxu0
    %v4588 = vpop.f32.mrb[0].mxu0
    %v4589 = vpop.f32.mrb[0].mxu0
    %4590 = vdwg.mxu0
    %4591 = vrot.lane.b32.xlu0 %v400, 112
    %v4592 = vpop.permute.xlu0 %4591
    %4593 = vrot.lane.b32.xlu0 %v416, 80
    %v4594 = vpop.permute.xlu0 %4593
    %v4596 = vsel %vm422, %v4592, 0
    %v4599 = vsel %vm422, %v4594, 0
    %4601 = vmatprep.subr.bf16.mxu0 0
    %4602 = vmatpush1.bf16.xpose.msra.mxu0 %v4599
    %4603 = vmatprep.subr.bf16.mxu0 0
    %4604 = vmatpush1.bf16.xpose.msra.mxu0 0
    %4605 = vmatprep.subr.bf16.mxu0 0
    %4606 = vmatpush1.bf16.xpose.msra.mxu0 0
    %4607 = vmatprep.subr.bf16.mxu0 0
    %4608 = vmatpush1.bf16.xpose.msra.mxu0 0
    %4609 = vmatprep.subr.bf16.mxu0 0
    %4610 = vmatpush1.bf16.xpose.msra.mxu0 0
    %4611 = vmatprep.subr.bf16.mxu0 0
    %4612 = vmatpush1.bf16.xpose.msra.mxu0 0
    %4613 = vmatprep.subr.bf16.mxu0 0
    %4614 = vmatpush1.bf16.xpose.msra.mxu0 0
    %4615 = vmatprep.subr.bf16.mxu0 0
    %4616 = vmatpush1.bf16.xpose.msra.mxu0 0
    %4617 = vmatprep.subr.bf16.mxu0 0
    %4618 = vmatpush1.bf16.xpose.msra.mxu0 0
    %4619 = vmatprep.subr.bf16.mxu0 0
    %4620 = vmatpush1.bf16.xpose.msra.mxu0 0
    %4621 = vmatprep.subr.bf16.mxu0 0
    %4622 = vmatpush1.bf16.xpose.msra.mxu0 0
    %4623 = vmatprep.subr.bf16.mxu0 0
    %4624 = vmatpush1.bf16.xpose.msra.mxu0 0
    %4625 = vmatprep.subr.bf16.mxu0 0
    %4626 = vmatpush1.bf16.xpose.msra.mxu0 0
    %4627 = vmatprep.subr.bf16.mxu0 0
    %4628 = vmatpush1.bf16.xpose.msra.mxu0 0
    %4629 = vmatprep.subr.bf16.mxu0 0
    %4630 = vmatpush1.bf16.xpose.msra.mxu0 0
    %4631 = vmatprep.subr.bf16.mxu0 0
    %4632 = vmatpush1.bf16.xpose.msra.mxu0 0
    %4633 = vmatprep.mubr.bf16.mxu0 0
    %4634 = vmatmul.mubr.bf16.gmra.mrb[0].mxu0 %v4596
    %v4635 = vpop.f32.mrb[0].mxu0
    %v4636 = vadd.f32 %v73, %v4635
    %v4637 = vpop.f32.mrb[0].mxu0
    %v4638 = vpop.f32.mrb[0].mxu0
    %v4639 = vpop.f32.mrb[0].mxu0
    %4640 = vdwg.mxu0
    %4641 = vrot.lane.b32.xlu0 %v401, 112
    %v4642 = vpop.permute.xlu0 %4641
    %4643 = vrot.lane.b32.xlu0 %v417, 80
    %v4644 = vpop.permute.xlu0 %4643
    %v4646 = vsel %vm422, %v4642, 0
    %v4649 = vsel %vm422, %v4644, 0
    %4651 = vmatprep.subr.bf16.mxu0 0
    %4652 = vmatpush1.bf16.xpose.msra.mxu0 %v4649
    %4653 = vmatprep.subr.bf16.mxu0 0
    %4654 = vmatpush1.bf16.xpose.msra.mxu0 0
    %4655 = vmatprep.subr.bf16.mxu0 0
    %4656 = vmatpush1.bf16.xpose.msra.mxu0 0
    %4657 = vmatprep.subr.bf16.mxu0 0
    %4658 = vmatpush1.bf16.xpose.msra.mxu0 0
    %4659 = vmatprep.subr.bf16.mxu0 0
    %4660 = vmatpush1.bf16.xpose.msra.mxu0 0
    %4661 = vmatprep.subr.bf16.mxu0 0
    %4662 = vmatpush1.bf16.xpose.msra.mxu0 0
    %4663 = vmatprep.subr.bf16.mxu0 0
    %4664 = vmatpush1.bf16.xpose.msra.mxu0 0
    %4665 = vmatprep.subr.bf16.mxu0 0
    %4666 = vmatpush1.bf16.xpose.msra.mxu0 0
    %4667 = vmatprep.subr.bf16.mxu0 0
    %4668 = vmatpush1.bf16.xpose.msra.mxu0 0
    %4669 = vmatprep.subr.bf16.mxu0 0
    %4670 = vmatpush1.bf16.xpose.msra.mxu0 0
    %4671 = vmatprep.subr.bf16.mxu0 0
    %4672 = vmatpush1.bf16.xpose.msra.mxu0 0
    %4673 = vmatprep.subr.bf16.mxu0 0
    %4674 = vmatpush1.bf16.xpose.msra.mxu0 0
    %4675 = vmatprep.subr.bf16.mxu0 0
    %4676 = vmatpush1.bf16.xpose.msra.mxu0 0
    %4677 = vmatprep.subr.bf16.mxu0 0
    %4678 = vmatpush1.bf16.xpose.msra.mxu0 0
    %4679 = vmatprep.subr.bf16.mxu0 0
    %4680 = vmatpush1.bf16.xpose.msra.mxu0 0
    %4681 = vmatprep.subr.bf16.mxu0 0
    %4682 = vmatpush1.bf16.xpose.msra.mxu0 0
    %4683 = vmatprep.mubr.bf16.mxu0 0
    %4684 = vmatmul.mubr.bf16.gmra.mrb[0].mxu0 %v4646
    %v4685 = vpop.f32.mrb[0].mxu0
    %v4686 = vadd.f32 %v74, %v4685
    %v4687 = vpop.f32.mrb[0].mxu0
    %v4688 = vpop.f32.mrb[0].mxu0
    %v4689 = vpop.f32.mrb[0].mxu0
    %4690 = vdwg.mxu0
    %4691 = vrot.lane.b32.xlu0 %v402, 112
    %v4692 = vpop.permute.xlu0 %4691
    %4693 = vrot.lane.b32.xlu0 %v418, 80
    %v4694 = vpop.permute.xlu0 %4693
    %v4696 = vsel %vm422, %v4692, 0
    %v4699 = vsel %vm422, %v4694, 0
    %4701 = vmatprep.subr.bf16.mxu0 0
    %4702 = vmatpush1.bf16.xpose.msra.mxu0 %v4699
    %4703 = vmatprep.subr.bf16.mxu0 0
    %4704 = vmatpush1.bf16.xpose.msra.mxu0 0
    %4705 = vmatprep.subr.bf16.mxu0 0
    %4706 = vmatpush1.bf16.xpose.msra.mxu0 0
    %4707 = vmatprep.subr.bf16.mxu0 0
    %4708 = vmatpush1.bf16.xpose.msra.mxu0 0
    %4709 = vmatprep.subr.bf16.mxu0 0
    %4710 = vmatpush1.bf16.xpose.msra.mxu0 0
    %4711 = vmatprep.subr.bf16.mxu0 0
    %4712 = vmatpush1.bf16.xpose.msra.mxu0 0
    %4713 = vmatprep.subr.bf16.mxu0 0
    %4714 = vmatpush1.bf16.xpose.msra.mxu0 0
    %4715 = vmatprep.subr.bf16.mxu0 0
    %4716 = vmatpush1.bf16.xpose.msra.mxu0 0
    %4717 = vmatprep.subr.bf16.mxu0 0
    %4718 = vmatpush1.bf16.xpose.msra.mxu0 0
    %4719 = vmatprep.subr.bf16.mxu0 0
    %4720 = vmatpush1.bf16.xpose.msra.mxu0 0
    %4721 = vmatprep.subr.bf16.mxu0 0
    %4722 = vmatpush1.bf16.xpose.msra.mxu0 0
    %4723 = vmatprep.subr.bf16.mxu0 0
    %4724 = vmatpush1.bf16.xpose.msra.mxu0 0
    %4725 = vmatprep.subr.bf16.mxu0 0
    %4726 = vmatpush1.bf16.xpose.msra.mxu0 0
    %4727 = vmatprep.subr.bf16.mxu0 0
    %4728 = vmatpush1.bf16.xpose.msra.mxu0 0
    %4729 = vmatprep.subr.bf16.mxu0 0
    %4730 = vmatpush1.bf16.xpose.msra.mxu0 0
    %4731 = vmatprep.subr.bf16.mxu0 0
    %4732 = vmatpush1.bf16.xpose.msra.mxu0 0
    %4733 = vmatprep.mubr.bf16.mxu0 0
    %4734 = vmatmul.mubr.bf16.gmra.mrb[0].mxu0 %v4696
    %v4735 = vpop.f32.mrb[0].mxu0
    %v4736 = vadd.f32 %v75, %v4735
    %v4737 = vpop.f32.mrb[0].mxu0
    %v4738 = vpop.f32.mrb[0].mxu0
    %v4739 = vpop.f32.mrb[0].mxu0
    %4740 = vdwg.mxu0
    %v4741 = vsel %vm422, %v3986, -inf
    %4742 = vmax.xlane.f32.xlu0 %v4741
    %v4743 = vpop.xlane.xlu0 %4742
    %v4744 = vsel %vm422, %v4036, -inf
    %4745 = vmax.xlane.f32.xlu0 %v4744
    %v4746 = vpop.xlane.xlu0 %4745
    %v4747 = vsel %vm422, %v4086, -inf
    %4748 = vmax.xlane.f32.xlu0 %v4747
    %v4749 = vpop.xlane.xlu0 %4748
    %v4750 = vsel %vm422, %v4136, -inf
    %4751 = vmax.xlane.f32.xlu0 %v4750
    %v4752 = vpop.xlane.xlu0 %4751
    %v4753 = vsel %vm422, %v4186, -inf
    %4754 = vmax.xlane.f32.xlu0 %v4753
    %v4755 = vpop.xlane.xlu0 %4754
    %v4756 = vsel %vm422, %v4236, -inf
    %4757 = vmax.xlane.f32.xlu0 %v4756
    %v4758 = vpop.xlane.xlu0 %4757
    %v4759 = vsel %vm422, %v4286, -inf
    %4760 = vmax.xlane.f32.xlu0 %v4759
    %v4761 = vpop.xlane.xlu0 %4760
    %v4762 = vsel %vm422, %v4336, -inf
    %4763 = vmax.xlane.f32.xlu0 %v4762
    %v4764 = vpop.xlane.xlu0 %4763
    %v4765 = vsel %vm422, %v4386, -inf
    %4766 = vmax.xlane.f32.xlu0 %v4765
    %v4767 = vpop.xlane.xlu0 %4766
    %v4768 = vsel %vm422, %v4436, -inf
    %4769 = vmax.xlane.f32.xlu0 %v4768
    %v4770 = vpop.xlane.xlu0 %4769
    %v4771 = vsel %vm422, %v4486, -inf
    %4772 = vmax.xlane.f32.xlu0 %v4771
    %v4773 = vpop.xlane.xlu0 %4772
    %v4774 = vsel %vm422, %v4536, -inf
    %4775 = vmax.xlane.f32.xlu0 %v4774
    %v4776 = vpop.xlane.xlu0 %4775
    %v4777 = vsel %vm422, %v4586, -inf
    %4778 = vmax.xlane.f32.xlu0 %v4777
    %v4779 = vpop.xlane.xlu0 %4778
    %v4780 = vsel %vm422, %v4636, -inf
    %4781 = vmax.xlane.f32.xlu0 %v4780
    %v4782 = vpop.xlane.xlu0 %4781
    %v4783 = vsel %vm422, %v4686, -inf
    %4784 = vmax.xlane.f32.xlu0 %v4783
    %v4785 = vpop.xlane.xlu0 %4784
    %v4786 = vsel %vm422, %v4736, -inf
    %4787 = vmax.xlane.f32.xlu0 %v4786
    %v4788 = vpop.xlane.xlu0 %4787
    %v4789 = vsub.f32 %v3986, %v4743
    %v4790 = vsub.f32 %v4036, %v4746
    %v4791 = vsub.f32 %v4086, %v4749
    %v4792 = vsub.f32 %v4136, %v4752
    %v4793 = vsub.f32 %v4186, %v4755
    %v4794 = vsub.f32 %v4236, %v4758
    %v4795 = vsub.f32 %v4286, %v4761
    %v4796 = vsub.f32 %v4336, %v4764
    %v4797 = vsub.f32 %v4386, %v4767
    %v4798 = vsub.f32 %v4436, %v4770
    %v4799 = vsub.f32 %v4486, %v4773
    %v4800 = vsub.f32 %v4536, %v4776
    %v4801 = vsub.f32 %v4586, %v4779
    %v4802 = vsub.f32 %v4636, %v4782
    %v4803 = vsub.f32 %v4686, %v4785
    %v4804 = vsub.f32 %v4736, %v4788
    %v4805 = vmul.f32 %v4789, 1.442695
    %v4806 = vpow.pop %v4805
    %v4807 = vmul.f32 %v4790, 1.442695
    %v4808 = vpow.pop %v4807
    %v4809 = vmul.f32 %v4791, 1.442695
    %v4810 = vpow.pop %v4809
    %v4811 = vmul.f32 %v4792, 1.442695
    %v4812 = vpow.pop %v4811
    %v4813 = vmul.f32 %v4793, 1.442695
    %v4814 = vpow.pop %v4813
    %v4815 = vmul.f32 %v4794, 1.442695
    %v4816 = vpow.pop %v4815
    %v4817 = vmul.f32 %v4795, 1.442695
    %v4818 = vpow.pop %v4817
    %v4819 = vmul.f32 %v4796, 1.442695
    %v4820 = vpow.pop %v4819
    %v4821 = vmul.f32 %v4797, 1.442695
    %v4822 = vpow.pop %v4821
    %v4823 = vmul.f32 %v4798, 1.442695
    %v4824 = vpow.pop %v4823
    %v4825 = vmul.f32 %v4799, 1.442695
    %v4826 = vpow.pop %v4825
    %v4827 = vmul.f32 %v4800, 1.442695
    %v4828 = vpow.pop %v4827
    %v4829 = vmul.f32 %v4801, 1.442695
    %v4830 = vpow.pop %v4829
    %v4831 = vmul.f32 %v4802, 1.442695
    %v4832 = vpow.pop %v4831
    %v4833 = vmul.f32 %v4803, 1.442695
    %v4834 = vpow.pop %v4833
    %v4835 = vmul.f32 %v4804, 1.442695
    %v4836 = vpow.pop %v4835
    %v4837 = vsel %vm422, %v4806, 0.0
    %4838 = vadd.xlane.f32.xlu0 %v4837
    %v4839 = vpop.xlane.xlu0 %4838
    %v4840 = vsel %vm422, %v4808, 0.0
    %4841 = vadd.xlane.f32.xlu0 %v4840
    %v4842 = vpop.xlane.xlu0 %4841
    %v4843 = vsel %vm422, %v4810, 0.0
    %4844 = vadd.xlane.f32.xlu0 %v4843
    %v4845 = vpop.xlane.xlu0 %4844
    %v4846 = vsel %vm422, %v4812, 0.0
    %4847 = vadd.xlane.f32.xlu0 %v4846
    %v4848 = vpop.xlane.xlu0 %4847
    %v4849 = vsel %vm422, %v4814, 0.0
    %4850 = vadd.xlane.f32.xlu0 %v4849
    %v4851 = vpop.xlane.xlu0 %4850
    %v4852 = vsel %vm422, %v4816, 0.0
    %4853 = vadd.xlane.f32.xlu0 %v4852
    %v4854 = vpop.xlane.xlu0 %4853
    %v4855 = vsel %vm422, %v4818, 0.0
    %4856 = vadd.xlane.f32.xlu0 %v4855
    %v4857 = vpop.xlane.xlu0 %4856
    %v4858 = vsel %vm422, %v4820, 0.0
    %4859 = vadd.xlane.f32.xlu0 %v4858
    %v4860 = vpop.xlane.xlu0 %4859
    %v4861 = vsel %vm422, %v4822, 0.0
    %4862 = vadd.xlane.f32.xlu0 %v4861
    %v4863 = vpop.xlane.xlu0 %4862
    %v4864 = vsel %vm422, %v4824, 0.0
    %4865 = vadd.xlane.f32.xlu0 %v4864
    %v4866 = vpop.xlane.xlu0 %4865
    %v4867 = vsel %vm422, %v4826, 0.0
    %4868 = vadd.xlane.f32.xlu0 %v4867
    %v4869 = vpop.xlane.xlu0 %4868
    %v4870 = vsel %vm422, %v4828, 0.0
    %4871 = vadd.xlane.f32.xlu0 %v4870
    %v4872 = vpop.xlane.xlu0 %4871
    %v4873 = vsel %vm422, %v4830, 0.0
    %4874 = vadd.xlane.f32.xlu0 %v4873
    %v4875 = vpop.xlane.xlu0 %4874
    %v4876 = vsel %vm422, %v4832, 0.0
    %4877 = vadd.xlane.f32.xlu0 %v4876
    %v4878 = vpop.xlane.xlu0 %4877
    %v4879 = vsel %vm422, %v4834, 0.0
    %4880 = vadd.xlane.f32.xlu0 %v4879
    %v4881 = vpop.xlane.xlu0 %4880
    %v4882 = vsel %vm422, %v4836, 0.0
    %4883 = vadd.xlane.f32.xlu0 %v4882
    %v4884 = vpop.xlane.xlu0 %4883
    %v4885 = vrcp.pop %v4839
    %v4886 = vrcp.pop %v4842
    %v4887 = vrcp.pop %v4845
    %v4888 = vrcp.pop %v4848
    %v4889 = vrcp.pop %v4851
    %v4890 = vrcp.pop %v4854
    %v4891 = vrcp.pop %v4857
    %v4892 = vrcp.pop %v4860
    %v4893 = vrcp.pop %v4863
    %v4894 = vrcp.pop %v4866
    %v4895 = vrcp.pop %v4869
    %v4896 = vrcp.pop %v4872
    %v4897 = vrcp.pop %v4875
    %v4898 = vrcp.pop %v4878
    %v4899 = vrcp.pop %v4881
    %v4900 = vrcp.pop %v4884
    %v4901 = vmul.f32 %v4806, %v4885
    %v4902 = vmul.f32 %v4808, %v4886
    %v4903 = vmul.f32 %v4810, %v4887
    %v4904 = vmul.f32 %v4812, %v4888
    %v4905 = vmul.f32 %v4814, %v4889
    %v4906 = vmul.f32 %v4816, %v4890
    %v4907 = vmul.f32 %v4818, %v4891
    %v4908 = vmul.f32 %v4820, %v4892
    %v4909 = vmul.f32 %v4822, %v4893
    %v4910 = vmul.f32 %v4824, %v4894
    %v4911 = vmul.f32 %v4826, %v4895
    %v4912 = vmul.f32 %v4828, %v4896
    %v4913 = vmul.f32 %v4830, %v4897
    %v4914 = vmul.f32 %v4832, %v4898
    %v4915 = vmul.f32 %v4834, %v4899
    %v4916 = vmul.f32 %v4836, %v4900
    %v4917 = vpack.c.bf16 %v4901, %v4901
    %v4918 = vpack.c.bf16 %v4902, %v4902
    %v4919 = vpack.c.bf16 %v4903, %v4903
    %v4920 = vpack.c.bf16 %v4904, %v4904
    %v4921 = vpack.c.bf16 %v4905, %v4905
    %v4922 = vpack.c.bf16 %v4906, %v4906
    %v4923 = vpack.c.bf16 %v4907, %v4907
    %v4924 = vpack.c.bf16 %v4908, %v4908
    %v4925 = vpack.c.bf16 %v4909, %v4909
    %v4926 = vpack.c.bf16 %v4910, %v4910
    %v4927 = vpack.c.bf16 %v4911, %v4911
    %v4928 = vpack.c.bf16 %v4912, %v4912
    %v4929 = vpack.c.bf16 %v4913, %v4913
    %v4930 = vpack.c.bf16 %v4914, %v4914
    %v4931 = vpack.c.bf16 %v4915, %v4915
    %v4932 = vpack.c.bf16 %v4916, %v4916
    %4933 = vrot.lane.b32.xlu0 %v403, 48
    %v4934 = vpop.permute.xlu0 %4933
    %v4936 = vsel %vm422, %v4917, 0
    %v4939 = vsel %vm1401, %v4934, 0
    %4941 = vmatprep.subr.bf16.mxu0 0
    %4942 = vmatpush1.bf16.msra.mxu0 %v4939
    %4943 = vmatprep.subr.bf16.mxu0 0
    %4944 = vmatpush1.bf16.msra.mxu0 0
    %4945 = vmatprep.subr.bf16.mxu0 0
    %4946 = vmatpush1.bf16.msra.mxu0 0
    %4947 = vmatprep.subr.bf16.mxu0 0
    %4948 = vmatpush1.bf16.msra.mxu0 0
    %4949 = vmatprep.subr.bf16.mxu0 0
    %4950 = vmatpush1.bf16.msra.mxu0 0
    %4951 = vmatprep.subr.bf16.mxu0 0
    %4952 = vmatpush1.bf16.msra.mxu0 0
    %4953 = vmatprep.subr.bf16.mxu0 0
    %4954 = vmatpush1.bf16.msra.mxu0 0
    %4955 = vmatprep.subr.bf16.mxu0 0
    %4956 = vmatpush1.bf16.msra.mxu0 0
    %4957 = vmatprep.subr.bf16.mxu0 0
    %4958 = vmatpush1.bf16.msra.mxu0 0
    %4959 = vmatprep.subr.bf16.mxu0 0
    %4960 = vmatpush1.bf16.msra.mxu0 0
    %4961 = vmatprep.subr.bf16.mxu0 0
    %4962 = vmatpush1.bf16.msra.mxu0 0
    %4963 = vmatprep.subr.bf16.mxu0 0
    %4964 = vmatpush1.bf16.msra.mxu0 0
    %4965 = vmatprep.subr.bf16.mxu0 0
    %4966 = vmatpush1.bf16.msra.mxu0 0
    %4967 = vmatprep.subr.bf16.mxu0 0
    %4968 = vmatpush1.bf16.msra.mxu0 0
    %4969 = vmatprep.subr.bf16.mxu0 0
    %4970 = vmatpush1.bf16.msra.mxu0 0
    %4971 = vmatprep.subr.bf16.mxu0 0
    %4972 = vmatpush1.bf16.msra.mxu0 0
    %4973 = vmatprep.mubr.bf16.mxu0 0
    %4974 = vmatmul.mubr.bf16.gmra.mrb[0].mxu0 %v4936
    %v4975 = vpop.f32.mrb[0].mxu0
    %v4976 = vadd.f32 0.0, %v4975
    %v4977 = vpop.f32.mrb[0].mxu0
    %v4978 = vpop.f32.mrb[0].mxu0
    %v4979 = vpop.f32.mrb[0].mxu0
    %4980 = vdwg.mxu0
    %4981 = vrot.lane.b32.xlu0 %v404, 48
    %v4982 = vpop.permute.xlu0 %4981
    %v4984 = vsel %vm422, %v4918, 0
    %v4987 = vsel %vm1401, %v4982, 0
    %4989 = vmatprep.subr.bf16.mxu0 0
    %4990 = vmatpush1.bf16.msra.mxu0 %v4987
    %4991 = vmatprep.subr.bf16.mxu0 0
    %4992 = vmatpush1.bf16.msra.mxu0 0
    %4993 = vmatprep.subr.bf16.mxu0 0
    %4994 = vmatpush1.bf16.msra.mxu0 0
    %4995 = vmatprep.subr.bf16.mxu0 0
    %4996 = vmatpush1.bf16.msra.mxu0 0
    %4997 = vmatprep.subr.bf16.mxu0 0
    %4998 = vmatpush1.bf16.msra.mxu0 0
    %4999 = vmatprep.subr.bf16.mxu0 0
    %5000 = vmatpush1.bf16.msra.mxu0 0
    %5001 = vmatprep.subr.bf16.mxu0 0
    %5002 = vmatpush1.bf16.msra.mxu0 0
    %5003 = vmatprep.subr.bf16.mxu0 0
    %5004 = vmatpush1.bf16.msra.mxu0 0
    %5005 = vmatprep.subr.bf16.mxu0 0
    %5006 = vmatpush1.bf16.msra.mxu0 0
    %5007 = vmatprep.subr.bf16.mxu0 0
    %5008 = vmatpush1.bf16.msra.mxu0 0
    %5009 = vmatprep.subr.bf16.mxu0 0
    %5010 = vmatpush1.bf16.msra.mxu0 0
    %5011 = vmatprep.subr.bf16.mxu0 0
    %5012 = vmatpush1.bf16.msra.mxu0 0
    %5013 = vmatprep.subr.bf16.mxu0 0
    %5014 = vmatpush1.bf16.msra.mxu0 0
    %5015 = vmatprep.subr.bf16.mxu0 0
    %5016 = vmatpush1.bf16.msra.mxu0 0
    %5017 = vmatprep.subr.bf16.mxu0 0
    %5018 = vmatpush1.bf16.msra.mxu0 0
    %5019 = vmatprep.subr.bf16.mxu0 0
    %5020 = vmatpush1.bf16.msra.mxu0 0
    %5021 = vmatprep.mubr.bf16.mxu0 0
    %5022 = vmatmul.mubr.bf16.gmra.mrb[0].mxu0 %v4984
    %v5023 = vpop.f32.mrb[0].mxu0
    %v5024 = vadd.f32 0.0, %v5023
    %v5025 = vpop.f32.mrb[0].mxu0
    %v5026 = vpop.f32.mrb[0].mxu0
    %v5027 = vpop.f32.mrb[0].mxu0
    %5028 = vdwg.mxu0
    %5029 = vrot.lane.b32.xlu0 %v405, 48
    %v5030 = vpop.permute.xlu0 %5029
    %v5032 = vsel %vm422, %v4919, 0
    %v5035 = vsel %vm1401, %v5030, 0
    %5037 = vmatprep.subr.bf16.mxu0 0
    %5038 = vmatpush1.bf16.msra.mxu0 %v5035
    %5039 = vmatprep.subr.bf16.mxu0 0
    %5040 = vmatpush1.bf16.msra.mxu0 0
    %5041 = vmatprep.subr.bf16.mxu0 0
    %5042 = vmatpush1.bf16.msra.mxu0 0
    %5043 = vmatprep.subr.bf16.mxu0 0
    %5044 = vmatpush1.bf16.msra.mxu0 0
    %5045 = vmatprep.subr.bf16.mxu0 0
    %5046 = vmatpush1.bf16.msra.mxu0 0
    %5047 = vmatprep.subr.bf16.mxu0 0
    %5048 = vmatpush1.bf16.msra.mxu0 0
    %5049 = vmatprep.subr.bf16.mxu0 0
    %5050 = vmatpush1.bf16.msra.mxu0 0
    %5051 = vmatprep.subr.bf16.mxu0 0
    %5052 = vmatpush1.bf16.msra.mxu0 0
    %5053 = vmatprep.subr.bf16.mxu0 0
    %5054 = vmatpush1.bf16.msra.mxu0 0
    %5055 = vmatprep.subr.bf16.mxu0 0
    %5056 = vmatpush1.bf16.msra.mxu0 0
    %5057 = vmatprep.subr.bf16.mxu0 0
    %5058 = vmatpush1.bf16.msra.mxu0 0
    %5059 = vmatprep.subr.bf16.mxu0 0
    %5060 = vmatpush1.bf16.msra.mxu0 0
    %5061 = vmatprep.subr.bf16.mxu0 0
    %5062 = vmatpush1.bf16.msra.mxu0 0
    %5063 = vmatprep.subr.bf16.mxu0 0
    %5064 = vmatpush1.bf16.msra.mxu0 0
    %5065 = vmatprep.subr.bf16.mxu0 0
    %5066 = vmatpush1.bf16.msra.mxu0 0
    %5067 = vmatprep.subr.bf16.mxu0 0
    %5068 = vmatpush1.bf16.msra.mxu0 0
    %5069 = vmatprep.mubr.bf16.mxu0 0
    %5070 = vmatmul.mubr.bf16.gmra.mrb[0].mxu0 %v5032
    %v5071 = vpop.f32.mrb[0].mxu0
    %v5072 = vadd.f32 0.0, %v5071
    %v5073 = vpop.f32.mrb[0].mxu0
    %v5074 = vpop.f32.mrb[0].mxu0
    %v5075 = vpop.f32.mrb[0].mxu0
    %5076 = vdwg.mxu0
    %5077 = vrot.lane.b32.xlu0 %v406, 48
    %v5078 = vpop.permute.xlu0 %5077
    %v5080 = vsel %vm422, %v4920, 0
    %v5083 = vsel %vm1401, %v5078, 0
    %5085 = vmatprep.subr.bf16.mxu0 0
    %5086 = vmatpush1.bf16.msra.mxu0 %v5083
    %5087 = vmatprep.subr.bf16.mxu0 0
    %5088 = vmatpush1.bf16.msra.mxu0 0
    %5089 = vmatprep.subr.bf16.mxu0 0
    %5090 = vmatpush1.bf16.msra.mxu0 0
    %5091 = vmatprep.subr.bf16.mxu0 0
    %5092 = vmatpush1.bf16.msra.mxu0 0
    %5093 = vmatprep.subr.bf16.mxu0 0
    %5094 = vmatpush1.bf16.msra.mxu0 0
    %5095 = vmatprep.subr.bf16.mxu0 0
    %5096 = vmatpush1.bf16.msra.mxu0 0
    %5097 = vmatprep.subr.bf16.mxu0 0
    %5098 = vmatpush1.bf16.msra.mxu0 0
    %5099 = vmatprep.subr.bf16.mxu0 0
    %5100 = vmatpush1.bf16.msra.mxu0 0
    %5101 = vmatprep.subr.bf16.mxu0 0
    %5102 = vmatpush1.bf16.msra.mxu0 0
    %5103 = vmatprep.subr.bf16.mxu0 0
    %5104 = vmatpush1.bf16.msra.mxu0 0
    %5105 = vmatprep.subr.bf16.mxu0 0
    %5106 = vmatpush1.bf16.msra.mxu0 0
    %5107 = vmatprep.subr.bf16.mxu0 0
    %5108 = vmatpush1.bf16.msra.mxu0 0
    %5109 = vmatprep.subr.bf16.mxu0 0
    %5110 = vmatpush1.bf16.msra.mxu0 0
    %5111 = vmatprep.subr.bf16.mxu0 0
    %5112 = vmatpush1.bf16.msra.mxu0 0
    %5113 = vmatprep.subr.bf16.mxu0 0
    %5114 = vmatpush1.bf16.msra.mxu0 0
    %5115 = vmatprep.subr.bf16.mxu0 0
    %5116 = vmatpush1.bf16.msra.mxu0 0
    %5117 = vmatprep.mubr.bf16.mxu0 0
    %5118 = vmatmul.mubr.bf16.gmra.mrb[0].mxu0 %v5080
    %v5119 = vpop.f32.mrb[0].mxu0
    %v5120 = vadd.f32 0.0, %v5119
    %v5121 = vpop.f32.mrb[0].mxu0
    %v5122 = vpop.f32.mrb[0].mxu0
    %v5123 = vpop.f32.mrb[0].mxu0
    %5124 = vdwg.mxu0
    %5125 = vrot.lane.b32.xlu0 %v407, 48
    %v5126 = vpop.permute.xlu0 %5125
    %v5128 = vsel %vm422, %v4921, 0
    %v5131 = vsel %vm1401, %v5126, 0
    %5133 = vmatprep.subr.bf16.mxu0 0
    %5134 = vmatpush1.bf16.msra.mxu0 %v5131
    %5135 = vmatprep.subr.bf16.mxu0 0
    %5136 = vmatpush1.bf16.msra.mxu0 0
    %5137 = vmatprep.subr.bf16.mxu0 0
    %5138 = vmatpush1.bf16.msra.mxu0 0
    %5139 = vmatprep.subr.bf16.mxu0 0
    %5140 = vmatpush1.bf16.msra.mxu0 0
    %5141 = vmatprep.subr.bf16.mxu0 0
    %5142 = vmatpush1.bf16.msra.mxu0 0
    %5143 = vmatprep.subr.bf16.mxu0 0
    %5144 = vmatpush1.bf16.msra.mxu0 0
    %5145 = vmatprep.subr.bf16.mxu0 0
    %5146 = vmatpush1.bf16.msra.mxu0 0
    %5147 = vmatprep.subr.bf16.mxu0 0
    %5148 = vmatpush1.bf16.msra.mxu0 0
    %5149 = vmatprep.subr.bf16.mxu0 0
    %5150 = vmatpush1.bf16.msra.mxu0 0
    %5151 = vmatprep.subr.bf16.mxu0 0
    %5152 = vmatpush1.bf16.msra.mxu0 0
    %5153 = vmatprep.subr.bf16.mxu0 0
    %5154 = vmatpush1.bf16.msra.mxu0 0
    %5155 = vmatprep.subr.bf16.mxu0 0
    %5156 = vmatpush1.bf16.msra.mxu0 0
    %5157 = vmatprep.subr.bf16.mxu0 0
    %5158 = vmatpush1.bf16.msra.mxu0 0
    %5159 = vmatprep.subr.bf16.mxu0 0
    %5160 = vmatpush1.bf16.msra.mxu0 0
    %5161 = vmatprep.subr.bf16.mxu0 0
    %5162 = vmatpush1.bf16.msra.mxu0 0
    %5163 = vmatprep.subr.bf16.mxu0 0
    %5164 = vmatpush1.bf16.msra.mxu0 0
    %5165 = vmatprep.mubr.bf16.mxu0 0
    %5166 = vmatmul.mubr.bf16.gmra.mrb[0].mxu0 %v5128
    %v5167 = vpop.f32.mrb[0].mxu0
    %v5168 = vadd.f32 0.0, %v5167
    %v5169 = vpop.f32.mrb[0].mxu0
    %v5170 = vpop.f32.mrb[0].mxu0
    %v5171 = vpop.f32.mrb[0].mxu0
    %5172 = vdwg.mxu0
    %5173 = vrot.lane.b32.xlu0 %v408, 48
    %v5174 = vpop.permute.xlu0 %5173
    %v5176 = vsel %vm422, %v4922, 0
    %v5179 = vsel %vm1401, %v5174, 0
    %5181 = vmatprep.subr.bf16.mxu0 0
    %5182 = vmatpush1.bf16.msra.mxu0 %v5179
    %5183 = vmatprep.subr.bf16.mxu0 0
    %5184 = vmatpush1.bf16.msra.mxu0 0
    %5185 = vmatprep.subr.bf16.mxu0 0
    %5186 = vmatpush1.bf16.msra.mxu0 0
    %5187 = vmatprep.subr.bf16.mxu0 0
    %5188 = vmatpush1.bf16.msra.mxu0 0
    %5189 = vmatprep.subr.bf16.mxu0 0
    %5190 = vmatpush1.bf16.msra.mxu0 0
    %5191 = vmatprep.subr.bf16.mxu0 0
    %5192 = vmatpush1.bf16.msra.mxu0 0
    %5193 = vmatprep.subr.bf16.mxu0 0
    %5194 = vmatpush1.bf16.msra.mxu0 0
    %5195 = vmatprep.subr.bf16.mxu0 0
    %5196 = vmatpush1.bf16.msra.mxu0 0
    %5197 = vmatprep.subr.bf16.mxu0 0
    %5198 = vmatpush1.bf16.msra.mxu0 0
    %5199 = vmatprep.subr.bf16.mxu0 0
    %5200 = vmatpush1.bf16.msra.mxu0 0
    %5201 = vmatprep.subr.bf16.mxu0 0
    %5202 = vmatpush1.bf16.msra.mxu0 0
    %5203 = vmatprep.subr.bf16.mxu0 0
    %5204 = vmatpush1.bf16.msra.mxu0 0
    %5205 = vmatprep.subr.bf16.mxu0 0
    %5206 = vmatpush1.bf16.msra.mxu0 0
    %5207 = vmatprep.subr.bf16.mxu0 0
    %5208 = vmatpush1.bf16.msra.mxu0 0
    %5209 = vmatprep.subr.bf16.mxu0 0
    %5210 = vmatpush1.bf16.msra.mxu0 0
    %5211 = vmatprep.subr.bf16.mxu0 0
    %5212 = vmatpush1.bf16.msra.mxu0 0
    %5213 = vmatprep.mubr.bf16.mxu0 0
    %5214 = vmatmul.mubr.bf16.gmra.mrb[0].mxu0 %v5176
    %v5215 = vpop.f32.mrb[0].mxu0
    %v5216 = vadd.f32 0.0, %v5215
    %v5217 = vpop.f32.mrb[0].mxu0
    %v5218 = vpop.f32.mrb[0].mxu0
    %v5219 = vpop.f32.mrb[0].mxu0
    %5220 = vdwg.mxu0
    %5221 = vrot.lane.b32.xlu0 %v409, 48
    %v5222 = vpop.permute.xlu0 %5221
    %v5224 = vsel %vm422, %v4923, 0
    %v5227 = vsel %vm1401, %v5222, 0
    %5229 = vmatprep.subr.bf16.mxu0 0
    %5230 = vmatpush1.bf16.msra.mxu0 %v5227
    %5231 = vmatprep.subr.bf16.mxu0 0
    %5232 = vmatpush1.bf16.msra.mxu0 0
    %5233 = vmatprep.subr.bf16.mxu0 0
    %5234 = vmatpush1.bf16.msra.mxu0 0
    %5235 = vmatprep.subr.bf16.mxu0 0
    %5236 = vmatpush1.bf16.msra.mxu0 0
    %5237 = vmatprep.subr.bf16.mxu0 0
    %5238 = vmatpush1.bf16.msra.mxu0 0
    %5239 = vmatprep.subr.bf16.mxu0 0
    %5240 = vmatpush1.bf16.msra.mxu0 0
    %5241 = vmatprep.subr.bf16.mxu0 0
    %5242 = vmatpush1.bf16.msra.mxu0 0
    %5243 = vmatprep.subr.bf16.mxu0 0
    %5244 = vmatpush1.bf16.msra.mxu0 0
    %5245 = vmatprep.subr.bf16.mxu0 0
    %5246 = vmatpush1.bf16.msra.mxu0 0
    %5247 = vmatprep.subr.bf16.mxu0 0
    %5248 = vmatpush1.bf16.msra.mxu0 0
    %5249 = vmatprep.subr.bf16.mxu0 0
    %5250 = vmatpush1.bf16.msra.mxu0 0
    %5251 = vmatprep.subr.bf16.mxu0 0
    %5252 = vmatpush1.bf16.msra.mxu0 0
    %5253 = vmatprep.subr.bf16.mxu0 0
    %5254 = vmatpush1.bf16.msra.mxu0 0
    %5255 = vmatprep.subr.bf16.mxu0 0
    %5256 = vmatpush1.bf16.msra.mxu0 0
    %5257 = vmatprep.subr.bf16.mxu0 0
    %5258 = vmatpush1.bf16.msra.mxu0 0
    %5259 = vmatprep.subr.bf16.mxu0 0
    %5260 = vmatpush1.bf16.msra.mxu0 0
    %5261 = vmatprep.mubr.bf16.mxu0 0
    %5262 = vmatmul.mubr.bf16.gmra.mrb[0].mxu0 %v5224
    %v5263 = vpop.f32.mrb[0].mxu0
    %v5264 = vadd.f32 0.0, %v5263
    %v5265 = vpop.f32.mrb[0].mxu0
    %v5266 = vpop.f32.mrb[0].mxu0
    %v5267 = vpop.f32.mrb[0].mxu0
    %5268 = vdwg.mxu0
    %5269 = vrot.lane.b32.xlu0 %v410, 48
    %v5270 = vpop.permute.xlu0 %5269
    %v5272 = vsel %vm422, %v4924, 0
    %v5275 = vsel %vm1401, %v5270, 0
    %5277 = vmatprep.subr.bf16.mxu0 0
    %5278 = vmatpush1.bf16.msra.mxu0 %v5275
    %5279 = vmatprep.subr.bf16.mxu0 0
    %5280 = vmatpush1.bf16.msra.mxu0 0
    %5281 = vmatprep.subr.bf16.mxu0 0
    %5282 = vmatpush1.bf16.msra.mxu0 0
    %5283 = vmatprep.subr.bf16.mxu0 0
    %5284 = vmatpush1.bf16.msra.mxu0 0
    %5285 = vmatprep.subr.bf16.mxu0 0
    %5286 = vmatpush1.bf16.msra.mxu0 0
    %5287 = vmatprep.subr.bf16.mxu0 0
    %5288 = vmatpush1.bf16.msra.mxu0 0
    %5289 = vmatprep.subr.bf16.mxu0 0
    %5290 = vmatpush1.bf16.msra.mxu0 0
    %5291 = vmatprep.subr.bf16.mxu0 0
    %5292 = vmatpush1.bf16.msra.mxu0 0
    %5293 = vmatprep.subr.bf16.mxu0 0
    %5294 = vmatpush1.bf16.msra.mxu0 0
    %5295 = vmatprep.subr.bf16.mxu0 0
    %5296 = vmatpush1.bf16.msra.mxu0 0
    %5297 = vmatprep.subr.bf16.mxu0 0
    %5298 = vmatpush1.bf16.msra.mxu0 0
    %5299 = vmatprep.subr.bf16.mxu0 0
    %5300 = vmatpush1.bf16.msra.mxu0 0
    %5301 = vmatprep.subr.bf16.mxu0 0
    %5302 = vmatpush1.bf16.msra.mxu0 0
    %5303 = vmatprep.subr.bf16.mxu0 0
    %5304 = vmatpush1.bf16.msra.mxu0 0
    %5305 = vmatprep.subr.bf16.mxu0 0
    %5306 = vmatpush1.bf16.msra.mxu0 0
    %5307 = vmatprep.subr.bf16.mxu0 0
    %5308 = vmatpush1.bf16.msra.mxu0 0
    %5309 = vmatprep.mubr.bf16.mxu0 0
    %5310 = vmatmul.mubr.bf16.gmra.mrb[0].mxu0 %v5272
    %v5311 = vpop.f32.mrb[0].mxu0
    %v5312 = vadd.f32 0.0, %v5311
    %v5313 = vpop.f32.mrb[0].mxu0
    %v5314 = vpop.f32.mrb[0].mxu0
    %v5315 = vpop.f32.mrb[0].mxu0
    %5316 = vdwg.mxu0
    %5317 = vrot.lane.b32.xlu0 %v411, 48
    %v5318 = vpop.permute.xlu0 %5317
    %v5320 = vsel %vm422, %v4925, 0
    %v5323 = vsel %vm1401, %v5318, 0
    %5325 = vmatprep.subr.bf16.mxu0 0
    %5326 = vmatpush1.bf16.msra.mxu0 %v5323
    %5327 = vmatprep.subr.bf16.mxu0 0
    %5328 = vmatpush1.bf16.msra.mxu0 0
    %5329 = vmatprep.subr.bf16.mxu0 0
    %5330 = vmatpush1.bf16.msra.mxu0 0
    %5331 = vmatprep.subr.bf16.mxu0 0
    %5332 = vmatpush1.bf16.msra.mxu0 0
    %5333 = vmatprep.subr.bf16.mxu0 0
    %5334 = vmatpush1.bf16.msra.mxu0 0
    %5335 = vmatprep.subr.bf16.mxu0 0
    %5336 = vmatpush1.bf16.msra.mxu0 0
    %5337 = vmatprep.subr.bf16.mxu0 0
    %5338 = vmatpush1.bf16.msra.mxu0 0
    %5339 = vmatprep.subr.bf16.mxu0 0
    %5340 = vmatpush1.bf16.msra.mxu0 0
    %5341 = vmatprep.subr.bf16.mxu0 0
    %5342 = vmatpush1.bf16.msra.mxu0 0
    %5343 = vmatprep.subr.bf16.mxu0 0
    %5344 = vmatpush1.bf16.msra.mxu0 0
    %5345 = vmatprep.subr.bf16.mxu0 0
    %5346 = vmatpush1.bf16.msra.mxu0 0
    %5347 = vmatprep.subr.bf16.mxu0 0
    %5348 = vmatpush1.bf16.msra.mxu0 0
    %5349 = vmatprep.subr.bf16.mxu0 0
    %5350 = vmatpush1.bf16.msra.mxu0 0
    %5351 = vmatprep.subr.bf16.mxu0 0
    %5352 = vmatpush1.bf16.msra.mxu0 0
    %5353 = vmatprep.subr.bf16.mxu0 0
    %5354 = vmatpush1.bf16.msra.mxu0 0
    %5355 = vmatprep.subr.bf16.mxu0 0
    %5356 = vmatpush1.bf16.msra.mxu0 0
    %5357 = vmatprep.mubr.bf16.mxu0 0
    %5358 = vmatmul.mubr.bf16.gmra.mrb[0].mxu0 %v5320
    %v5359 = vpop.f32.mrb[0].mxu0
    %v5360 = vadd.f32 0.0, %v5359
    %v5361 = vpop.f32.mrb[0].mxu0
    %v5362 = vpop.f32.mrb[0].mxu0
    %v5363 = vpop.f32.mrb[0].mxu0
    %5364 = vdwg.mxu0
    %5365 = vrot.lane.b32.xlu0 %v412, 48
    %v5366 = vpop.permute.xlu0 %5365
    %v5368 = vsel %vm422, %v4926, 0
    %v5371 = vsel %vm1401, %v5366, 0
    %5373 = vmatprep.subr.bf16.mxu0 0
    %5374 = vmatpush1.bf16.msra.mxu0 %v5371
    %5375 = vmatprep.subr.bf16.mxu0 0
    %5376 = vmatpush1.bf16.msra.mxu0 0
    %5377 = vmatprep.subr.bf16.mxu0 0
    %5378 = vmatpush1.bf16.msra.mxu0 0
    %5379 = vmatprep.subr.bf16.mxu0 0
    %5380 = vmatpush1.bf16.msra.mxu0 0
    %5381 = vmatprep.subr.bf16.mxu0 0
    %5382 = vmatpush1.bf16.msra.mxu0 0
    %5383 = vmatprep.subr.bf16.mxu0 0
    %5384 = vmatpush1.bf16.msra.mxu0 0
    %5385 = vmatprep.subr.bf16.mxu0 0
    %5386 = vmatpush1.bf16.msra.mxu0 0
    %5387 = vmatprep.subr.bf16.mxu0 0
    %5388 = vmatpush1.bf16.msra.mxu0 0
    %5389 = vmatprep.subr.bf16.mxu0 0
    %5390 = vmatpush1.bf16.msra.mxu0 0
    %5391 = vmatprep.subr.bf16.mxu0 0
    %5392 = vmatpush1.bf16.msra.mxu0 0
    %5393 = vmatprep.subr.bf16.mxu0 0
    %5394 = vmatpush1.bf16.msra.mxu0 0
    %5395 = vmatprep.subr.bf16.mxu0 0
    %5396 = vmatpush1.bf16.msra.mxu0 0
    %5397 = vmatprep.subr.bf16.mxu0 0
    %5398 = vmatpush1.bf16.msra.mxu0 0
    %5399 = vmatprep.subr.bf16.mxu0 0
    %5400 = vmatpush1.bf16.msra.mxu0 0
    %5401 = vmatprep.subr.bf16.mxu0 0
    %5402 = vmatpush1.bf16.msra.mxu0 0
    %5403 = vmatprep.subr.bf16.mxu0 0
    %5404 = vmatpush1.bf16.msra.mxu0 0
    %5405 = vmatprep.mubr.bf16.mxu0 0
    %5406 = vmatmul.mubr.bf16.gmra.mrb[0].mxu0 %v5368
    %v5407 = vpop.f32.mrb[0].mxu0
    %v5408 = vadd.f32 0.0, %v5407
    %v5409 = vpop.f32.mrb[0].mxu0
    %v5410 = vpop.f32.mrb[0].mxu0
    %v5411 = vpop.f32.mrb[0].mxu0
    %5412 = vdwg.mxu0
    %5413 = vrot.lane.b32.xlu0 %v413, 48
    %v5414 = vpop.permute.xlu0 %5413
    %v5416 = vsel %vm422, %v4927, 0
    %v5419 = vsel %vm1401, %v5414, 0
    %5421 = vmatprep.subr.bf16.mxu0 0
    %5422 = vmatpush1.bf16.msra.mxu0 %v5419
    %5423 = vmatprep.subr.bf16.mxu0 0
    %5424 = vmatpush1.bf16.msra.mxu0 0
    %5425 = vmatprep.subr.bf16.mxu0 0
    %5426 = vmatpush1.bf16.msra.mxu0 0
    %5427 = vmatprep.subr.bf16.mxu0 0
    %5428 = vmatpush1.bf16.msra.mxu0 0
    %5429 = vmatprep.subr.bf16.mxu0 0
    %5430 = vmatpush1.bf16.msra.mxu0 0
    %5431 = vmatprep.subr.bf16.mxu0 0
    %5432 = vmatpush1.bf16.msra.mxu0 0
    %5433 = vmatprep.subr.bf16.mxu0 0
    %5434 = vmatpush1.bf16.msra.mxu0 0
    %5435 = vmatprep.subr.bf16.mxu0 0
    %5436 = vmatpush1.bf16.msra.mxu0 0
    %5437 = vmatprep.subr.bf16.mxu0 0
    %5438 = vmatpush1.bf16.msra.mxu0 0
    %5439 = vmatprep.subr.bf16.mxu0 0
    %5440 = vmatpush1.bf16.msra.mxu0 0
    %5441 = vmatprep.subr.bf16.mxu0 0
    %5442 = vmatpush1.bf16.msra.mxu0 0
    %5443 = vmatprep.subr.bf16.mxu0 0
    %5444 = vmatpush1.bf16.msra.mxu0 0
    %5445 = vmatprep.subr.bf16.mxu0 0
    %5446 = vmatpush1.bf16.msra.mxu0 0
    %5447 = vmatprep.subr.bf16.mxu0 0
    %5448 = vmatpush1.bf16.msra.mxu0 0
    %5449 = vmatprep.subr.bf16.mxu0 0
    %5450 = vmatpush1.bf16.msra.mxu0 0
    %5451 = vmatprep.subr.bf16.mxu0 0
    %5452 = vmatpush1.bf16.msra.mxu0 0
    %5453 = vmatprep.mubr.bf16.mxu0 0
    %5454 = vmatmul.mubr.bf16.gmra.mrb[0].mxu0 %v5416
    %v5455 = vpop.f32.mrb[0].mxu0
    %v5456 = vadd.f32 0.0, %v5455
    %v5457 = vpop.f32.mrb[0].mxu0
    %v5458 = vpop.f32.mrb[0].mxu0
    %v5459 = vpop.f32.mrb[0].mxu0
    %5460 = vdwg.mxu0
    %5461 = vrot.lane.b32.xlu0 %v414, 48
    %v5462 = vpop.permute.xlu0 %5461
    %v5464 = vsel %vm422, %v4928, 0
    %v5467 = vsel %vm1401, %v5462, 0
    %5469 = vmatprep.subr.bf16.mxu0 0
    %5470 = vmatpush1.bf16.msra.mxu0 %v5467
    %5471 = vmatprep.subr.bf16.mxu0 0
    %5472 = vmatpush1.bf16.msra.mxu0 0
    %5473 = vmatprep.subr.bf16.mxu0 0
    %5474 = vmatpush1.bf16.msra.mxu0 0
    %5475 = vmatprep.subr.bf16.mxu0 0
    %5476 = vmatpush1.bf16.msra.mxu0 0
    %5477 = vmatprep.subr.bf16.mxu0 0
    %5478 = vmatpush1.bf16.msra.mxu0 0
    %5479 = vmatprep.subr.bf16.mxu0 0
    %5480 = vmatpush1.bf16.msra.mxu0 0
    %5481 = vmatprep.subr.bf16.mxu0 0
    %5482 = vmatpush1.bf16.msra.mxu0 0
    %5483 = vmatprep.subr.bf16.mxu0 0
    %5484 = vmatpush1.bf16.msra.mxu0 0
    %5485 = vmatprep.subr.bf16.mxu0 0
    %5486 = vmatpush1.bf16.msra.mxu0 0
    %5487 = vmatprep.subr.bf16.mxu0 0
    %5488 = vmatpush1.bf16.msra.mxu0 0
    %5489 = vmatprep.subr.bf16.mxu0 0
    %5490 = vmatpush1.bf16.msra.mxu0 0
    %5491 = vmatprep.subr.bf16.mxu0 0
    %5492 = vmatpush1.bf16.msra.mxu0 0
    %5493 = vmatprep.subr.bf16.mxu0 0
    %5494 = vmatpush1.bf16.msra.mxu0 0
    %5495 = vmatprep.subr.bf16.mxu0 0
    %5496 = vmatpush1.bf16.msra.mxu0 0
    %5497 = vmatprep.subr.bf16.mxu0 0
    %5498 = vmatpush1.bf16.msra.mxu0 0
    %5499 = vmatprep.subr.bf16.mxu0 0
    %5500 = vmatpush1.bf16.msra.mxu0 0
    %5501 = vmatprep.mubr.bf16.mxu0 0
    %5502 = vmatmul.mubr.bf16.gmra.mrb[0].mxu0 %v5464
    %v5503 = vpop.f32.mrb[0].mxu0
    %v5504 = vadd.f32 0.0, %v5503
    %v5505 = vpop.f32.mrb[0].mxu0
    %v5506 = vpop.f32.mrb[0].mxu0
    %v5507 = vpop.f32.mrb[0].mxu0
    %5508 = vdwg.mxu0
    %5509 = vrot.lane.b32.xlu0 %v415, 48
    %v5510 = vpop.permute.xlu0 %5509
    %v5512 = vsel %vm422, %v4929, 0
    %v5515 = vsel %vm1401, %v5510, 0
    %5517 = vmatprep.subr.bf16.mxu0 0
    %5518 = vmatpush1.bf16.msra.mxu0 %v5515
    %5519 = vmatprep.subr.bf16.mxu0 0
    %5520 = vmatpush1.bf16.msra.mxu0 0
    %5521 = vmatprep.subr.bf16.mxu0 0
    %5522 = vmatpush1.bf16.msra.mxu0 0
    %5523 = vmatprep.subr.bf16.mxu0 0
    %5524 = vmatpush1.bf16.msra.mxu0 0
    %5525 = vmatprep.subr.bf16.mxu0 0
    %5526 = vmatpush1.bf16.msra.mxu0 0
    %5527 = vmatprep.subr.bf16.mxu0 0
    %5528 = vmatpush1.bf16.msra.mxu0 0
    %5529 = vmatprep.subr.bf16.mxu0 0
    %5530 = vmatpush1.bf16.msra.mxu0 0
    %5531 = vmatprep.subr.bf16.mxu0 0
    %5532 = vmatpush1.bf16.msra.mxu0 0
    %5533 = vmatprep.subr.bf16.mxu0 0
    %5534 = vmatpush1.bf16.msra.mxu0 0
    %5535 = vmatprep.subr.bf16.mxu0 0
    %5536 = vmatpush1.bf16.msra.mxu0 0
    %5537 = vmatprep.subr.bf16.mxu0 0
    %5538 = vmatpush1.bf16.msra.mxu0 0
    %5539 = vmatprep.subr.bf16.mxu0 0
    %5540 = vmatpush1.bf16.msra.mxu0 0
    %5541 = vmatprep.subr.bf16.mxu0 0
    %5542 = vmatpush1.bf16.msra.mxu0 0
    %5543 = vmatprep.subr.bf16.mxu0 0
    %5544 = vmatpush1.bf16.msra.mxu0 0
    %5545 = vmatprep.subr.bf16.mxu0 0
    %5546 = vmatpush1.bf16.msra.mxu0 0
    %5547 = vmatprep.subr.bf16.mxu0 0
    %5548 = vmatpush1.bf16.msra.mxu0 0
    %5549 = vmatprep.mubr.bf16.mxu0 0
    %5550 = vmatmul.mubr.bf16.gmra.mrb[0].mxu0 %v5512
    %v5551 = vpop.f32.mrb[0].mxu0
    %v5552 = vadd.f32 0.0, %v5551
    %v5553 = vpop.f32.mrb[0].mxu0
    %v5554 = vpop.f32.mrb[0].mxu0
    %v5555 = vpop.f32.mrb[0].mxu0
    %5556 = vdwg.mxu0
    %5557 = vrot.lane.b32.xlu0 %v416, 48
    %v5558 = vpop.permute.xlu0 %5557
    %v5560 = vsel %vm422, %v4930, 0
    %v5563 = vsel %vm1401, %v5558, 0
    %5565 = vmatprep.subr.bf16.mxu0 0
    %5566 = vmatpush1.bf16.msra.mxu0 %v5563
    %5567 = vmatprep.subr.bf16.mxu0 0
    %5568 = vmatpush1.bf16.msra.mxu0 0
    %5569 = vmatprep.subr.bf16.mxu0 0
    %5570 = vmatpush1.bf16.msra.mxu0 0
    %5571 = vmatprep.subr.bf16.mxu0 0
    %5572 = vmatpush1.bf16.msra.mxu0 0
    %5573 = vmatprep.subr.bf16.mxu0 0
    %5574 = vmatpush1.bf16.msra.mxu0 0
    %5575 = vmatprep.subr.bf16.mxu0 0
    %5576 = vmatpush1.bf16.msra.mxu0 0
    %5577 = vmatprep.subr.bf16.mxu0 0
    %5578 = vmatpush1.bf16.msra.mxu0 0
    %5579 = vmatprep.subr.bf16.mxu0 0
    %5580 = vmatpush1.bf16.msra.mxu0 0
    %5581 = vmatprep.subr.bf16.mxu0 0
    %5582 = vmatpush1.bf16.msra.mxu0 0
    %5583 = vmatprep.subr.bf16.mxu0 0
    %5584 = vmatpush1.bf16.msra.mxu0 0
    %5585 = vmatprep.subr.bf16.mxu0 0
    %5586 = vmatpush1.bf16.msra.mxu0 0
    %5587 = vmatprep.subr.bf16.mxu0 0
    %5588 = vmatpush1.bf16.msra.mxu0 0
    %5589 = vmatprep.subr.bf16.mxu0 0
    %5590 = vmatpush1.bf16.msra.mxu0 0
    %5591 = vmatprep.subr.bf16.mxu0 0
    %5592 = vmatpush1.bf16.msra.mxu0 0
    %5593 = vmatprep.subr.bf16.mxu0 0
    %5594 = vmatpush1.bf16.msra.mxu0 0
    %5595 = vmatprep.subr.bf16.mxu0 0
    %5596 = vmatpush1.bf16.msra.mxu0 0
    %5597 = vmatprep.mubr.bf16.mxu0 0
    %5598 = vmatmul.mubr.bf16.gmra.mrb[0].mxu0 %v5560
    %v5599 = vpop.f32.mrb[0].mxu0
    %v5600 = vadd.f32 0.0, %v5599
    %v5601 = vpop.f32.mrb[0].mxu0
    %v5602 = vpop.f32.mrb[0].mxu0
    %v5603 = vpop.f32.mrb[0].mxu0
    %5604 = vdwg.mxu0
    %5605 = vrot.lane.b32.xlu0 %v417, 48
    %v5606 = vpop.permute.xlu0 %5605
    %v5608 = vsel %vm422, %v4931, 0
    %v5611 = vsel %vm1401, %v5606, 0
    %5613 = vmatprep.subr.bf16.mxu0 0
    %5614 = vmatpush1.bf16.msra.mxu0 %v5611
    %5615 = vmatprep.subr.bf16.mxu0 0
    %5616 = vmatpush1.bf16.msra.mxu0 0
    %5617 = vmatprep.subr.bf16.mxu0 0
    %5618 = vmatpush1.bf16.msra.mxu0 0
    %5619 = vmatprep.subr.bf16.mxu0 0
    %5620 = vmatpush1.bf16.msra.mxu0 0
    %5621 = vmatprep.subr.bf16.mxu0 0
    %5622 = vmatpush1.bf16.msra.mxu0 0
    %5623 = vmatprep.subr.bf16.mxu0 0
    %5624 = vmatpush1.bf16.msra.mxu0 0
    %5625 = vmatprep.subr.bf16.mxu0 0
    %5626 = vmatpush1.bf16.msra.mxu0 0
    %5627 = vmatprep.subr.bf16.mxu0 0
    %5628 = vmatpush1.bf16.msra.mxu0 0
    %5629 = vmatprep.subr.bf16.mxu0 0
    %5630 = vmatpush1.bf16.msra.mxu0 0
    %5631 = vmatprep.subr.bf16.mxu0 0
    %5632 = vmatpush1.bf16.msra.mxu0 0
    %5633 = vmatprep.subr.bf16.mxu0 0
    %5634 = vmatpush1.bf16.msra.mxu0 0
    %5635 = vmatprep.subr.bf16.mxu0 0
    %5636 = vmatpush1.bf16.msra.mxu0 0
    %5637 = vmatprep.subr.bf16.mxu0 0
    %5638 = vmatpush1.bf16.msra.mxu0 0
    %5639 = vmatprep.subr.bf16.mxu0 0
    %5640 = vmatpush1.bf16.msra.mxu0 0
    %5641 = vmatprep.subr.bf16.mxu0 0
    %5642 = vmatpush1.bf16.msra.mxu0 0
    %5643 = vmatprep.subr.bf16.mxu0 0
    %5644 = vmatpush1.bf16.msra.mxu0 0
    %5645 = vmatprep.mubr.bf16.mxu0 0
    %5646 = vmatmul.mubr.bf16.gmra.mrb[0].mxu0 %v5608
    %v5647 = vpop.f32.mrb[0].mxu0
    %v5648 = vadd.f32 0.0, %v5647
    %v5649 = vpop.f32.mrb[0].mxu0
    %v5650 = vpop.f32.mrb[0].mxu0
    %v5651 = vpop.f32.mrb[0].mxu0
    %5652 = vdwg.mxu0
    %5653 = vrot.lane.b32.xlu0 %v418, 48
    %v5654 = vpop.permute.xlu0 %5653
    %v5656 = vsel %vm422, %v4932, 0
    %v5659 = vsel %vm1401, %v5654, 0
    %5661 = vmatprep.subr.bf16.mxu0 0
    %5662 = vmatpush1.bf16.msra.mxu0 %v5659
    %5663 = vmatprep.subr.bf16.mxu0 0
    %5664 = vmatpush1.bf16.msra.mxu0 0
    %5665 = vmatprep.subr.bf16.mxu0 0
    %5666 = vmatpush1.bf16.msra.mxu0 0
    %5667 = vmatprep.subr.bf16.mxu0 0
    %5668 = vmatpush1.bf16.msra.mxu0 0
    %5669 = vmatprep.subr.bf16.mxu0 0
    %5670 = vmatpush1.bf16.msra.mxu0 0
    %5671 = vmatprep.subr.bf16.mxu0 0
    %5672 = vmatpush1.bf16.msra.mxu0 0
    %5673 = vmatprep.subr.bf16.mxu0 0
    %5674 = vmatpush1.bf16.msra.mxu0 0
    %5675 = vmatprep.subr.bf16.mxu0 0
    %5676 = vmatpush1.bf16.msra.mxu0 0
    %5677 = vmatprep.subr.bf16.mxu0 0
    %5678 = vmatpush1.bf16.msra.mxu0 0
    %5679 = vmatprep.subr.bf16.mxu0 0
    %5680 = vmatpush1.bf16.msra.mxu0 0
    %5681 = vmatprep.subr.bf16.mxu0 0
    %5682 = vmatpush1.bf16.msra.mxu0 0
    %5683 = vmatprep.subr.bf16.mxu0 0
    %5684 = vmatpush1.bf16.msra.mxu0 0
    %5685 = vmatprep.subr.bf16.mxu0 0
    %5686 = vmatpush1.bf16.msra.mxu0 0
    %5687 = vmatprep.subr.bf16.mxu0 0
    %5688 = vmatpush1.bf16.msra.mxu0 0
    %5689 = vmatprep.subr.bf16.mxu0 0
    %5690 = vmatpush1.bf16.msra.mxu0 0
    %5691 = vmatprep.subr.bf16.mxu0 0
    %5692 = vmatpush1.bf16.msra.mxu0 0
    %5693 = vmatprep.mubr.bf16.mxu0 0
    %5694 = vmatmul.mubr.bf16.gmra.mrb[0].mxu0 %v5656
    %v5695 = vpop.f32.mrb[0].mxu0
    %v5696 = vadd.f32 0.0, %v5695
    %v5697 = vpop.f32.mrb[0].mxu0
    %v5698 = vpop.f32.mrb[0].mxu0
    %v5699 = vpop.f32.mrb[0].mxu0
    %5700 = vdwg.mxu0
    %5701 = vrot.lane.b32.xlu0 %v387, 104
    %v5702 = vpop.permute.xlu0 %5701
    %5703 = vrot.lane.b32.xlu0 %v403, 72
    %v5704 = vpop.permute.xlu0 %5703
    %v5706 = vsel %vm422, %v5702, 0
    %v5709 = vsel %vm422, %v5704, 0
    %5711 = vmatprep.subr.bf16.mxu0 0
    %5712 = vmatpush1.bf16.xpose.msra.mxu0 %v5709
    %5713 = vmatprep.subr.bf16.mxu0 0
    %5714 = vmatpush1.bf16.xpose.msra.mxu0 0
    %5715 = vmatprep.subr.bf16.mxu0 0
    %5716 = vmatpush1.bf16.xpose.msra.mxu0 0
    %5717 = vmatprep.subr.bf16.mxu0 0
    %5718 = vmatpush1.bf16.xpose.msra.mxu0 0
    %5719 = vmatprep.subr.bf16.mxu0 0
    %5720 = vmatpush1.bf16.xpose.msra.mxu0 0
    %5721 = vmatprep.subr.bf16.mxu0 0
    %5722 = vmatpush1.bf16.xpose.msra.mxu0 0
    %5723 = vmatprep.subr.bf16.mxu0 0
    %5724 = vmatpush1.bf16.xpose.msra.mxu0 0
    %5725 = vmatprep.subr.bf16.mxu0 0
    %5726 = vmatpush1.bf16.xpose.msra.mxu0 0
    %5727 = vmatprep.subr.bf16.mxu0 0
    %5728 = vmatpush1.bf16.xpose.msra.mxu0 0
    %5729 = vmatprep.subr.bf16.mxu0 0
    %5730 = vmatpush1.bf16.xpose.msra.mxu0 0
    %5731 = vmatprep.subr.bf16.mxu0 0
    %5732 = vmatpush1.bf16.xpose.msra.mxu0 0
    %5733 = vmatprep.subr.bf16.mxu0 0
    %5734 = vmatpush1.bf16.xpose.msra.mxu0 0
    %5735 = vmatprep.subr.bf16.mxu0 0
    %5736 = vmatpush1.bf16.xpose.msra.mxu0 0
    %5737 = vmatprep.subr.bf16.mxu0 0
    %5738 = vmatpush1.bf16.xpose.msra.mxu0 0
    %5739 = vmatprep.subr.bf16.mxu0 0
    %5740 = vmatpush1.bf16.xpose.msra.mxu0 0
    %5741 = vmatprep.subr.bf16.mxu0 0
    %5742 = vmatpush1.bf16.xpose.msra.mxu0 0
    %5743 = vmatprep.mubr.bf16.mxu0 0
    %5744 = vmatmul.mubr.bf16.gmra.mrb[0].mxu0 %v5706
    %v5745 = vpop.f32.mrb[0].mxu0
    %v5746 = vadd.f32 %v60, %v5745
    %v5747 = vpop.f32.mrb[0].mxu0
    %v5748 = vpop.f32.mrb[0].mxu0
    %v5749 = vpop.f32.mrb[0].mxu0
    %5750 = vdwg.mxu0
    %5751 = vrot.lane.b32.xlu0 %v388, 104
    %v5752 = vpop.permute.xlu0 %5751
    %5753 = vrot.lane.b32.xlu0 %v404, 72
    %v5754 = vpop.permute.xlu0 %5753
    %v5756 = vsel %vm422, %v5752, 0
    %v5759 = vsel %vm422, %v5754, 0
    %5761 = vmatprep.subr.bf16.mxu0 0
    %5762 = vmatpush1.bf16.xpose.msra.mxu0 %v5759
    %5763 = vmatprep.subr.bf16.mxu0 0
    %5764 = vmatpush1.bf16.xpose.msra.mxu0 0
    %5765 = vmatprep.subr.bf16.mxu0 0
    %5766 = vmatpush1.bf16.xpose.msra.mxu0 0
    %5767 = vmatprep.subr.bf16.mxu0 0
    %5768 = vmatpush1.bf16.xpose.msra.mxu0 0
    %5769 = vmatprep.subr.bf16.mxu0 0
    %5770 = vmatpush1.bf16.xpose.msra.mxu0 0
    %5771 = vmatprep.subr.bf16.mxu0 0
    %5772 = vmatpush1.bf16.xpose.msra.mxu0 0
    %5773 = vmatprep.subr.bf16.mxu0 0
    %5774 = vmatpush1.bf16.xpose.msra.mxu0 0
    %5775 = vmatprep.subr.bf16.mxu0 0
    %5776 = vmatpush1.bf16.xpose.msra.mxu0 0
    %5777 = vmatprep.subr.bf16.mxu0 0
    %5778 = vmatpush1.bf16.xpose.msra.mxu0 0
    %5779 = vmatprep.subr.bf16.mxu0 0
    %5780 = vmatpush1.bf16.xpose.msra.mxu0 0
    %5781 = vmatprep.subr.bf16.mxu0 0
    %5782 = vmatpush1.bf16.xpose.msra.mxu0 0
    %5783 = vmatprep.subr.bf16.mxu0 0
    %5784 = vmatpush1.bf16.xpose.msra.mxu0 0
    %5785 = vmatprep.subr.bf16.mxu0 0
    %5786 = vmatpush1.bf16.xpose.msra.mxu0 0
    %5787 = vmatprep.subr.bf16.mxu0 0
    %5788 = vmatpush1.bf16.xpose.msra.mxu0 0
    %5789 = vmatprep.subr.bf16.mxu0 0
    %5790 = vmatpush1.bf16.xpose.msra.mxu0 0
    %5791 = vmatprep.subr.bf16.mxu0 0
    %5792 = vmatpush1.bf16.xpose.msra.mxu0 0
    %5793 = vmatprep.mubr.bf16.mxu0 0
    %5794 = vmatmul.mubr.bf16.gmra.mrb[0].mxu0 %v5756
    %v5795 = vpop.f32.mrb[0].mxu0
    %v5796 = vadd.f32 %v61, %v5795
    %v5797 = vpop.f32.mrb[0].mxu0
    %v5798 = vpop.f32.mrb[0].mxu0
    %v5799 = vpop.f32.mrb[0].mxu0
    %5800 = vdwg.mxu0
    %5801 = vrot.lane.b32.xlu0 %v389, 104
    %v5802 = vpop.permute.xlu0 %5801
    %5803 = vrot.lane.b32.xlu0 %v405, 72
    %v5804 = vpop.permute.xlu0 %5803
    %v5806 = vsel %vm422, %v5802, 0
    %v5809 = vsel %vm422, %v5804, 0
    %5811 = vmatprep.subr.bf16.mxu0 0
    %5812 = vmatpush1.bf16.xpose.msra.mxu0 %v5809
    %5813 = vmatprep.subr.bf16.mxu0 0
    %5814 = vmatpush1.bf16.xpose.msra.mxu0 0
    %5815 = vmatprep.subr.bf16.mxu0 0
    %5816 = vmatpush1.bf16.xpose.msra.mxu0 0
    %5817 = vmatprep.subr.bf16.mxu0 0
    %5818 = vmatpush1.bf16.xpose.msra.mxu0 0
    %5819 = vmatprep.subr.bf16.mxu0 0
    %5820 = vmatpush1.bf16.xpose.msra.mxu0 0
    %5821 = vmatprep.subr.bf16.mxu0 0
    %5822 = vmatpush1.bf16.xpose.msra.mxu0 0
    %5823 = vmatprep.subr.bf16.mxu0 0
    %5824 = vmatpush1.bf16.xpose.msra.mxu0 0
    %5825 = vmatprep.subr.bf16.mxu0 0
    %5826 = vmatpush1.bf16.xpose.msra.mxu0 0
    %5827 = vmatprep.subr.bf16.mxu0 0
    %5828 = vmatpush1.bf16.xpose.msra.mxu0 0
    %5829 = vmatprep.subr.bf16.mxu0 0
    %5830 = vmatpush1.bf16.xpose.msra.mxu0 0
    %5831 = vmatprep.subr.bf16.mxu0 0
    %5832 = vmatpush1.bf16.xpose.msra.mxu0 0
    %5833 = vmatprep.subr.bf16.mxu0 0
    %5834 = vmatpush1.bf16.xpose.msra.mxu0 0
    %5835 = vmatprep.subr.bf16.mxu0 0
    %5836 = vmatpush1.bf16.xpose.msra.mxu0 0
    %5837 = vmatprep.subr.bf16.mxu0 0
    %5838 = vmatpush1.bf16.xpose.msra.mxu0 0
    %5839 = vmatprep.subr.bf16.mxu0 0
    %5840 = vmatpush1.bf16.xpose.msra.mxu0 0
    %5841 = vmatprep.subr.bf16.mxu0 0
    %5842 = vmatpush1.bf16.xpose.msra.mxu0 0
    %5843 = vmatprep.mubr.bf16.mxu0 0
    %5844 = vmatmul.mubr.bf16.gmra.mrb[0].mxu0 %v5806
    %v5845 = vpop.f32.mrb[0].mxu0
    %v5846 = vadd.f32 %v62, %v5845
    %v5847 = vpop.f32.mrb[0].mxu0
    %v5848 = vpop.f32.mrb[0].mxu0
    %v5849 = vpop.f32.mrb[0].mxu0
    %5850 = vdwg.mxu0
    %5851 = vrot.lane.b32.xlu0 %v390, 104
    %v5852 = vpop.permute.xlu0 %5851
    %5853 = vrot.lane.b32.xlu0 %v406, 72
    %v5854 = vpop.permute.xlu0 %5853
    %v5856 = vsel %vm422, %v5852, 0
    %v5859 = vsel %vm422, %v5854, 0
    %5861 = vmatprep.subr.bf16.mxu0 0
    %5862 = vmatpush1.bf16.xpose.msra.mxu0 %v5859
    %5863 = vmatprep.subr.bf16.mxu0 0
    %5864 = vmatpush1.bf16.xpose.msra.mxu0 0
    %5865 = vmatprep.subr.bf16.mxu0 0
    %5866 = vmatpush1.bf16.xpose.msra.mxu0 0
    %5867 = vmatprep.subr.bf16.mxu0 0
    %5868 = vmatpush1.bf16.xpose.msra.mxu0 0
    %5869 = vmatprep.subr.bf16.mxu0 0
    %5870 = vmatpush1.bf16.xpose.msra.mxu0 0
    %5871 = vmatprep.subr.bf16.mxu0 0
    %5872 = vmatpush1.bf16.xpose.msra.mxu0 0
    %5873 = vmatprep.subr.bf16.mxu0 0
    %5874 = vmatpush1.bf16.xpose.msra.mxu0 0
    %5875 = vmatprep.subr.bf16.mxu0 0
    %5876 = vmatpush1.bf16.xpose.msra.mxu0 0
    %5877 = vmatprep.subr.bf16.mxu0 0
    %5878 = vmatpush1.bf16.xpose.msra.mxu0 0
    %5879 = vmatprep.subr.bf16.mxu0 0
    %5880 = vmatpush1.bf16.xpose.msra.mxu0 0
    %5881 = vmatprep.subr.bf16.mxu0 0
    %5882 = vmatpush1.bf16.xpose.msra.mxu0 0
    %5883 = vmatprep.subr.bf16.mxu0 0
    %5884 = vmatpush1.bf16.xpose.msra.mxu0 0
    %5885 = vmatprep.subr.bf16.mxu0 0
    %5886 = vmatpush1.bf16.xpose.msra.mxu0 0
    %5887 = vmatprep.subr.bf16.mxu0 0
    %5888 = vmatpush1.bf16.xpose.msra.mxu0 0
    %5889 = vmatprep.subr.bf16.mxu0 0
    %5890 = vmatpush1.bf16.xpose.msra.mxu0 0
    %5891 = vmatprep.subr.bf16.mxu0 0
    %5892 = vmatpush1.bf16.xpose.msra.mxu0 0
    %5893 = vmatprep.mubr.bf16.mxu0 0
    %5894 = vmatmul.mubr.bf16.gmra.mrb[0].mxu0 %v5856
    %v5895 = vpop.f32.mrb[0].mxu0
    %v5896 = vadd.f32 %v63, %v5895
    %v5897 = vpop.f32.mrb[0].mxu0
    %v5898 = vpop.f32.mrb[0].mxu0
    %v5899 = vpop.f32.mrb[0].mxu0
    %5900 = vdwg.mxu0
    %5901 = vrot.lane.b32.xlu0 %v391, 104
    %v5902 = vpop.permute.xlu0 %5901
    %5903 = vrot.lane.b32.xlu0 %v407, 72
    %v5904 = vpop.permute.xlu0 %5903
    %v5906 = vsel %vm422, %v5902, 0
    %v5909 = vsel %vm422, %v5904, 0
    %5911 = vmatprep.subr.bf16.mxu0 0
    %5912 = vmatpush1.bf16.xpose.msra.mxu0 %v5909
    %5913 = vmatprep.subr.bf16.mxu0 0
    %5914 = vmatpush1.bf16.xpose.msra.mxu0 0
    %5915 = vmatprep.subr.bf16.mxu0 0
    %5916 = vmatpush1.bf16.xpose.msra.mxu0 0
    %5917 = vmatprep.subr.bf16.mxu0 0
    %5918 = vmatpush1.bf16.xpose.msra.mxu0 0
    %5919 = vmatprep.subr.bf16.mxu0 0
    %5920 = vmatpush1.bf16.xpose.msra.mxu0 0
    %5921 = vmatprep.subr.bf16.mxu0 0
    %5922 = vmatpush1.bf16.xpose.msra.mxu0 0
    %5923 = vmatprep.subr.bf16.mxu0 0
    %5924 = vmatpush1.bf16.xpose.msra.mxu0 0
    %5925 = vmatprep.subr.bf16.mxu0 0
    %5926 = vmatpush1.bf16.xpose.msra.mxu0 0
    %5927 = vmatprep.subr.bf16.mxu0 0
    %5928 = vmatpush1.bf16.xpose.msra.mxu0 0
    %5929 = vmatprep.subr.bf16.mxu0 0
    %5930 = vmatpush1.bf16.xpose.msra.mxu0 0
    %5931 = vmatprep.subr.bf16.mxu0 0
    %5932 = vmatpush1.bf16.xpose.msra.mxu0 0
    %5933 = vmatprep.subr.bf16.mxu0 0
    %5934 = vmatpush1.bf16.xpose.msra.mxu0 0
    %5935 = vmatprep.subr.bf16.mxu0 0
    %5936 = vmatpush1.bf16.xpose.msra.mxu0 0
    %5937 = vmatprep.subr.bf16.mxu0 0
    %5938 = vmatpush1.bf16.xpose.msra.mxu0 0
    %5939 = vmatprep.subr.bf16.mxu0 0
    %5940 = vmatpush1.bf16.xpose.msra.mxu0 0
    %5941 = vmatprep.subr.bf16.mxu0 0
    %5942 = vmatpush1.bf16.xpose.msra.mxu0 0
    %5943 = vmatprep.mubr.bf16.mxu0 0
    %5944 = vmatmul.mubr.bf16.gmra.mrb[0].mxu0 %v5906
    %v5945 = vpop.f32.mrb[0].mxu0
    %v5946 = vadd.f32 %v64, %v5945
    %v5947 = vpop.f32.mrb[0].mxu0
    %v5948 = vpop.f32.mrb[0].mxu0
    %v5949 = vpop.f32.mrb[0].mxu0
    %5950 = vdwg.mxu0
    %5951 = vrot.lane.b32.xlu0 %v392, 104
    %v5952 = vpop.permute.xlu0 %5951
    %5953 = vrot.lane.b32.xlu0 %v408, 72
    %v5954 = vpop.permute.xlu0 %5953
    %v5956 = vsel %vm422, %v5952, 0
    %v5959 = vsel %vm422, %v5954, 0
    %5961 = vmatprep.subr.bf16.mxu0 0
    %5962 = vmatpush1.bf16.xpose.msra.mxu0 %v5959
    %5963 = vmatprep.subr.bf16.mxu0 0
    %5964 = vmatpush1.bf16.xpose.msra.mxu0 0
    %5965 = vmatprep.subr.bf16.mxu0 0
    %5966 = vmatpush1.bf16.xpose.msra.mxu0 0
    %5967 = vmatprep.subr.bf16.mxu0 0
    %5968 = vmatpush1.bf16.xpose.msra.mxu0 0
    %5969 = vmatprep.subr.bf16.mxu0 0
    %5970 = vmatpush1.bf16.xpose.msra.mxu0 0
    %5971 = vmatprep.subr.bf16.mxu0 0
    %5972 = vmatpush1.bf16.xpose.msra.mxu0 0
    %5973 = vmatprep.subr.bf16.mxu0 0
    %5974 = vmatpush1.bf16.xpose.msra.mxu0 0
    %5975 = vmatprep.subr.bf16.mxu0 0
    %5976 = vmatpush1.bf16.xpose.msra.mxu0 0
    %5977 = vmatprep.subr.bf16.mxu0 0
    %5978 = vmatpush1.bf16.xpose.msra.mxu0 0
    %5979 = vmatprep.subr.bf16.mxu0 0
    %5980 = vmatpush1.bf16.xpose.msra.mxu0 0
    %5981 = vmatprep.subr.bf16.mxu0 0
    %5982 = vmatpush1.bf16.xpose.msra.mxu0 0
    %5983 = vmatprep.subr.bf16.mxu0 0
    %5984 = vmatpush1.bf16.xpose.msra.mxu0 0
    %5985 = vmatprep.subr.bf16.mxu0 0
    %5986 = vmatpush1.bf16.xpose.msra.mxu0 0
    %5987 = vmatprep.subr.bf16.mxu0 0
    %5988 = vmatpush1.bf16.xpose.msra.mxu0 0
    %5989 = vmatprep.subr.bf16.mxu0 0
    %5990 = vmatpush1.bf16.xpose.msra.mxu0 0
    %5991 = vmatprep.subr.bf16.mxu0 0
    %5992 = vmatpush1.bf16.xpose.msra.mxu0 0
    %5993 = vmatprep.mubr.bf16.mxu0 0
    %5994 = vmatmul.mubr.bf16.gmra.mrb[0].mxu0 %v5956
    %v5995 = vpop.f32.mrb[0].mxu0
    %v5996 = vadd.f32 %v65, %v5995
    %v5997 = vpop.f32.mrb[0].mxu0
    %v5998 = vpop.f32.mrb[0].mxu0
    %v5999 = vpop.f32.mrb[0].mxu0
    %6000 = vdwg.mxu0
    %6001 = vrot.lane.b32.xlu0 %v393, 104
    %v6002 = vpop.permute.xlu0 %6001
    %6003 = vrot.lane.b32.xlu0 %v409, 72
    %v6004 = vpop.permute.xlu0 %6003
    %v6006 = vsel %vm422, %v6002, 0
    %v6009 = vsel %vm422, %v6004, 0
    %6011 = vmatprep.subr.bf16.mxu0 0
    %6012 = vmatpush1.bf16.xpose.msra.mxu0 %v6009
    %6013 = vmatprep.subr.bf16.mxu0 0
    %6014 = vmatpush1.bf16.xpose.msra.mxu0 0
    %6015 = vmatprep.subr.bf16.mxu0 0
    %6016 = vmatpush1.bf16.xpose.msra.mxu0 0
    %6017 = vmatprep.subr.bf16.mxu0 0
    %6018 = vmatpush1.bf16.xpose.msra.mxu0 0
    %6019 = vmatprep.subr.bf16.mxu0 0
    %6020 = vmatpush1.bf16.xpose.msra.mxu0 0
    %6021 = vmatprep.subr.bf16.mxu0 0
    %6022 = vmatpush1.bf16.xpose.msra.mxu0 0
    %6023 = vmatprep.subr.bf16.mxu0 0
    %6024 = vmatpush1.bf16.xpose.msra.mxu0 0
    %6025 = vmatprep.subr.bf16.mxu0 0
    %6026 = vmatpush1.bf16.xpose.msra.mxu0 0
    %6027 = vmatprep.subr.bf16.mxu0 0
    %6028 = vmatpush1.bf16.xpose.msra.mxu0 0
    %6029 = vmatprep.subr.bf16.mxu0 0
    %6030 = vmatpush1.bf16.xpose.msra.mxu0 0
    %6031 = vmatprep.subr.bf16.mxu0 0
    %6032 = vmatpush1.bf16.xpose.msra.mxu0 0
    %6033 = vmatprep.subr.bf16.mxu0 0
    %6034 = vmatpush1.bf16.xpose.msra.mxu0 0
    %6035 = vmatprep.subr.bf16.mxu0 0
    %6036 = vmatpush1.bf16.xpose.msra.mxu0 0
    %6037 = vmatprep.subr.bf16.mxu0 0
    %6038 = vmatpush1.bf16.xpose.msra.mxu0 0
    %6039 = vmatprep.subr.bf16.mxu0 0
    %6040 = vmatpush1.bf16.xpose.msra.mxu0 0
    %6041 = vmatprep.subr.bf16.mxu0 0
    %6042 = vmatpush1.bf16.xpose.msra.mxu0 0
    %6043 = vmatprep.mubr.bf16.mxu0 0
    %6044 = vmatmul.mubr.bf16.gmra.mrb[0].mxu0 %v6006
    %v6045 = vpop.f32.mrb[0].mxu0
    %v6046 = vadd.f32 %v66, %v6045
    %v6047 = vpop.f32.mrb[0].mxu0
    %v6048 = vpop.f32.mrb[0].mxu0
    %v6049 = vpop.f32.mrb[0].mxu0
    %6050 = vdwg.mxu0
    %6051 = vrot.lane.b32.xlu0 %v394, 104
    %v6052 = vpop.permute.xlu0 %6051
    %6053 = vrot.lane.b32.xlu0 %v410, 72
    %v6054 = vpop.permute.xlu0 %6053
    %v6056 = vsel %vm422, %v6052, 0
    %v6059 = vsel %vm422, %v6054, 0
    %6061 = vmatprep.subr.bf16.mxu0 0
    %6062 = vmatpush1.bf16.xpose.msra.mxu0 %v6059
    %6063 = vmatprep.subr.bf16.mxu0 0
    %6064 = vmatpush1.bf16.xpose.msra.mxu0 0
    %6065 = vmatprep.subr.bf16.mxu0 0
    %6066 = vmatpush1.bf16.xpose.msra.mxu0 0
    %6067 = vmatprep.subr.bf16.mxu0 0
    %6068 = vmatpush1.bf16.xpose.msra.mxu0 0
    %6069 = vmatprep.subr.bf16.mxu0 0
    %6070 = vmatpush1.bf16.xpose.msra.mxu0 0
    %6071 = vmatprep.subr.bf16.mxu0 0
    %6072 = vmatpush1.bf16.xpose.msra.mxu0 0
    %6073 = vmatprep.subr.bf16.mxu0 0
    %6074 = vmatpush1.bf16.xpose.msra.mxu0 0
    %6075 = vmatprep.subr.bf16.mxu0 0
    %6076 = vmatpush1.bf16.xpose.msra.mxu0 0
    %6077 = vmatprep.subr.bf16.mxu0 0
    %6078 = vmatpush1.bf16.xpose.msra.mxu0 0
    %6079 = vmatprep.subr.bf16.mxu0 0
    %6080 = vmatpush1.bf16.xpose.msra.mxu0 0
    %6081 = vmatprep.subr.bf16.mxu0 0
    %6082 = vmatpush1.bf16.xpose.msra.mxu0 0
    %6083 = vmatprep.subr.bf16.mxu0 0
    %6084 = vmatpush1.bf16.xpose.msra.mxu0 0
    %6085 = vmatprep.subr.bf16.mxu0 0
    %6086 = vmatpush1.bf16.xpose.msra.mxu0 0
    %6087 = vmatprep.subr.bf16.mxu0 0
    %6088 = vmatpush1.bf16.xpose.msra.mxu0 0
    %6089 = vmatprep.subr.bf16.mxu0 0
    %6090 = vmatpush1.bf16.xpose.msra.mxu0 0
    %6091 = vmatprep.subr.bf16.mxu0 0
    %6092 = vmatpush1.bf16.xpose.msra.mxu0 0
    %6093 = vmatprep.mubr.bf16.mxu0 0
    %6094 = vmatmul.mubr.bf16.gmra.mrb[0].mxu0 %v6056
    %v6095 = vpop.f32.mrb[0].mxu0
    %v6096 = vadd.f32 %v67, %v6095
    %v6097 = vpop.f32.mrb[0].mxu0
    %v6098 = vpop.f32.mrb[0].mxu0
    %v6099 = vpop.f32.mrb[0].mxu0
    %6100 = vdwg.mxu0
    %6101 = vrot.lane.b32.xlu0 %v395, 104
    %v6102 = vpop.permute.xlu0 %6101
    %6103 = vrot.lane.b32.xlu0 %v411, 72
    %v6104 = vpop.permute.xlu0 %6103
    %v6106 = vsel %vm422, %v6102, 0
    %v6109 = vsel %vm422, %v6104, 0
    %6111 = vmatprep.subr.bf16.mxu0 0
    %6112 = vmatpush1.bf16.xpose.msra.mxu0 %v6109
    %6113 = vmatprep.subr.bf16.mxu0 0
    %6114 = vmatpush1.bf16.xpose.msra.mxu0 0
    %6115 = vmatprep.subr.bf16.mxu0 0
    %6116 = vmatpush1.bf16.xpose.msra.mxu0 0
    %6117 = vmatprep.subr.bf16.mxu0 0
    %6118 = vmatpush1.bf16.xpose.msra.mxu0 0
    %6119 = vmatprep.subr.bf16.mxu0 0
    %6120 = vmatpush1.bf16.xpose.msra.mxu0 0
    %6121 = vmatprep.subr.bf16.mxu0 0
    %6122 = vmatpush1.bf16.xpose.msra.mxu0 0
    %6123 = vmatprep.subr.bf16.mxu0 0
    %6124 = vmatpush1.bf16.xpose.msra.mxu0 0
    %6125 = vmatprep.subr.bf16.mxu0 0
    %6126 = vmatpush1.bf16.xpose.msra.mxu0 0
    %6127 = vmatprep.subr.bf16.mxu0 0
    %6128 = vmatpush1.bf16.xpose.msra.mxu0 0
    %6129 = vmatprep.subr.bf16.mxu0 0
    %6130 = vmatpush1.bf16.xpose.msra.mxu0 0
    %6131 = vmatprep.subr.bf16.mxu0 0
    %6132 = vmatpush1.bf16.xpose.msra.mxu0 0
    %6133 = vmatprep.subr.bf16.mxu0 0
    %6134 = vmatpush1.bf16.xpose.msra.mxu0 0
    %6135 = vmatprep.subr.bf16.mxu0 0
    %6136 = vmatpush1.bf16.xpose.msra.mxu0 0
    %6137 = vmatprep.subr.bf16.mxu0 0
    %6138 = vmatpush1.bf16.xpose.msra.mxu0 0
    %6139 = vmatprep.subr.bf16.mxu0 0
    %6140 = vmatpush1.bf16.xpose.msra.mxu0 0
    %6141 = vmatprep.subr.bf16.mxu0 0
    %6142 = vmatpush1.bf16.xpose.msra.mxu0 0
    %6143 = vmatprep.mubr.bf16.mxu0 0
    %6144 = vmatmul.mubr.bf16.gmra.mrb[0].mxu0 %v6106
    %v6145 = vpop.f32.mrb[0].mxu0
    %v6146 = vadd.f32 %v68, %v6145
    %v6147 = vpop.f32.mrb[0].mxu0
    %v6148 = vpop.f32.mrb[0].mxu0
    %v6149 = vpop.f32.mrb[0].mxu0
    %6150 = vdwg.mxu0
    %6151 = vrot.lane.b32.xlu0 %v396, 104
    %v6152 = vpop.permute.xlu0 %6151
    %6153 = vrot.lane.b32.xlu0 %v412, 72
    %v6154 = vpop.permute.xlu0 %6153
    %v6156 = vsel %vm422, %v6152, 0
    %v6159 = vsel %vm422, %v6154, 0
    %6161 = vmatprep.subr.bf16.mxu0 0
    %6162 = vmatpush1.bf16.xpose.msra.mxu0 %v6159
    %6163 = vmatprep.subr.bf16.mxu0 0
    %6164 = vmatpush1.bf16.xpose.msra.mxu0 0
    %6165 = vmatprep.subr.bf16.mxu0 0
    %6166 = vmatpush1.bf16.xpose.msra.mxu0 0
    %6167 = vmatprep.subr.bf16.mxu0 0
    %6168 = vmatpush1.bf16.xpose.msra.mxu0 0
    %6169 = vmatprep.subr.bf16.mxu0 0
    %6170 = vmatpush1.bf16.xpose.msra.mxu0 0
    %6171 = vmatprep.subr.bf16.mxu0 0
    %6172 = vmatpush1.bf16.xpose.msra.mxu0 0
    %6173 = vmatprep.subr.bf16.mxu0 0
    %6174 = vmatpush1.bf16.xpose.msra.mxu0 0
    %6175 = vmatprep.subr.bf16.mxu0 0
    %6176 = vmatpush1.bf16.xpose.msra.mxu0 0
    %6177 = vmatprep.subr.bf16.mxu0 0
    %6178 = vmatpush1.bf16.xpose.msra.mxu0 0
    %6179 = vmatprep.subr.bf16.mxu0 0
    %6180 = vmatpush1.bf16.xpose.msra.mxu0 0
    %6181 = vmatprep.subr.bf16.mxu0 0
    %6182 = vmatpush1.bf16.xpose.msra.mxu0 0
    %6183 = vmatprep.subr.bf16.mxu0 0
    %6184 = vmatpush1.bf16.xpose.msra.mxu0 0
    %6185 = vmatprep.subr.bf16.mxu0 0
    %6186 = vmatpush1.bf16.xpose.msra.mxu0 0
    %6187 = vmatprep.subr.bf16.mxu0 0
    %6188 = vmatpush1.bf16.xpose.msra.mxu0 0
    %6189 = vmatprep.subr.bf16.mxu0 0
    %6190 = vmatpush1.bf16.xpose.msra.mxu0 0
    %6191 = vmatprep.subr.bf16.mxu0 0
    %6192 = vmatpush1.bf16.xpose.msra.mxu0 0
    %6193 = vmatprep.mubr.bf16.mxu0 0
    %6194 = vmatmul.mubr.bf16.gmra.mrb[0].mxu0 %v6156
    %v6195 = vpop.f32.mrb[0].mxu0
    %v6196 = vadd.f32 %v69, %v6195
    %v6197 = vpop.f32.mrb[0].mxu0
    %v6198 = vpop.f32.mrb[0].mxu0
    %v6199 = vpop.f32.mrb[0].mxu0
    %6200 = vdwg.mxu0
    %6201 = vrot.lane.b32.xlu0 %v397, 104
    %v6202 = vpop.permute.xlu0 %6201
    %6203 = vrot.lane.b32.xlu0 %v413, 72
    %v6204 = vpop.permute.xlu0 %6203
    %v6206 = vsel %vm422, %v6202, 0
    %v6209 = vsel %vm422, %v6204, 0
    %6211 = vmatprep.subr.bf16.mxu0 0
    %6212 = vmatpush1.bf16.xpose.msra.mxu0 %v6209
    %6213 = vmatprep.subr.bf16.mxu0 0
    %6214 = vmatpush1.bf16.xpose.msra.mxu0 0
    %6215 = vmatprep.subr.bf16.mxu0 0
    %6216 = vmatpush1.bf16.xpose.msra.mxu0 0
    %6217 = vmatprep.subr.bf16.mxu0 0
    %6218 = vmatpush1.bf16.xpose.msra.mxu0 0
    %6219 = vmatprep.subr.bf16.mxu0 0
    %6220 = vmatpush1.bf16.xpose.msra.mxu0 0
    %6221 = vmatprep.subr.bf16.mxu0 0
    %6222 = vmatpush1.bf16.xpose.msra.mxu0 0
    %6223 = vmatprep.subr.bf16.mxu0 0
    %6224 = vmatpush1.bf16.xpose.msra.mxu0 0
    %6225 = vmatprep.subr.bf16.mxu0 0
    %6226 = vmatpush1.bf16.xpose.msra.mxu0 0
    %6227 = vmatprep.subr.bf16.mxu0 0
    %6228 = vmatpush1.bf16.xpose.msra.mxu0 0
    %6229 = vmatprep.subr.bf16.mxu0 0
    %6230 = vmatpush1.bf16.xpose.msra.mxu0 0
    %6231 = vmatprep.subr.bf16.mxu0 0
    %6232 = vmatpush1.bf16.xpose.msra.mxu0 0
    %6233 = vmatprep.subr.bf16.mxu0 0
    %6234 = vmatpush1.bf16.xpose.msra.mxu0 0
    %6235 = vmatprep.subr.bf16.mxu0 0
    %6236 = vmatpush1.bf16.xpose.msra.mxu0 0
    %6237 = vmatprep.subr.bf16.mxu0 0
    %6238 = vmatpush1.bf16.xpose.msra.mxu0 0
    %6239 = vmatprep.subr.bf16.mxu0 0
    %6240 = vmatpush1.bf16.xpose.msra.mxu0 0
    %6241 = vmatprep.subr.bf16.mxu0 0
    %6242 = vmatpush1.bf16.xpose.msra.mxu0 0
    %6243 = vmatprep.mubr.bf16.mxu0 0
    %6244 = vmatmul.mubr.bf16.gmra.mrb[0].mxu0 %v6206
    %v6245 = vpop.f32.mrb[0].mxu0
    %v6246 = vadd.f32 %v70, %v6245
    %v6247 = vpop.f32.mrb[0].mxu0
    %v6248 = vpop.f32.mrb[0].mxu0
    %v6249 = vpop.f32.mrb[0].mxu0
    %6250 = vdwg.mxu0
    %6251 = vrot.lane.b32.xlu0 %v398, 104
    %v6252 = vpop.permute.xlu0 %6251
    %6253 = vrot.lane.b32.xlu0 %v414, 72
    %v6254 = vpop.permute.xlu0 %6253
    %v6256 = vsel %vm422, %v6252, 0
    %v6259 = vsel %vm422, %v6254, 0
    %6261 = vmatprep.subr.bf16.mxu0 0
    %6262 = vmatpush1.bf16.xpose.msra.mxu0 %v6259
    %6263 = vmatprep.subr.bf16.mxu0 0
    %6264 = vmatpush1.bf16.xpose.msra.mxu0 0
    %6265 = vmatprep.subr.bf16.mxu0 0
    %6266 = vmatpush1.bf16.xpose.msra.mxu0 0
    %6267 = vmatprep.subr.bf16.mxu0 0
    %6268 = vmatpush1.bf16.xpose.msra.mxu0 0
    %6269 = vmatprep.subr.bf16.mxu0 0
    %6270 = vmatpush1.bf16.xpose.msra.mxu0 0
    %6271 = vmatprep.subr.bf16.mxu0 0
    %6272 = vmatpush1.bf16.xpose.msra.mxu0 0
    %6273 = vmatprep.subr.bf16.mxu0 0
    %6274 = vmatpush1.bf16.xpose.msra.mxu0 0
    %6275 = vmatprep.subr.bf16.mxu0 0
    %6276 = vmatpush1.bf16.xpose.msra.mxu0 0
    %6277 = vmatprep.subr.bf16.mxu0 0
    %6278 = vmatpush1.bf16.xpose.msra.mxu0 0
    %6279 = vmatprep.subr.bf16.mxu0 0
    %6280 = vmatpush1.bf16.xpose.msra.mxu0 0
    %6281 = vmatprep.subr.bf16.mxu0 0
    %6282 = vmatpush1.bf16.xpose.msra.mxu0 0
    %6283 = vmatprep.subr.bf16.mxu0 0
    %6284 = vmatpush1.bf16.xpose.msra.mxu0 0
    %6285 = vmatprep.subr.bf16.mxu0 0
    %6286 = vmatpush1.bf16.xpose.msra.mxu0 0
    %6287 = vmatprep.subr.bf16.mxu0 0
    %6288 = vmatpush1.bf16.xpose.msra.mxu0 0
    %6289 = vmatprep.subr.bf16.mxu0 0
    %6290 = vmatpush1.bf16.xpose.msra.mxu0 0
    %6291 = vmatprep.subr.bf16.mxu0 0
    %6292 = vmatpush1.bf16.xpose.msra.mxu0 0
    %6293 = vmatprep.mubr.bf16.mxu0 0
    %6294 = vmatmul.mubr.bf16.gmra.mrb[0].mxu0 %v6256
    %v6295 = vpop.f32.mrb[0].mxu0
    %v6296 = vadd.f32 %v71, %v6295
    %v6297 = vpop.f32.mrb[0].mxu0
    %v6298 = vpop.f32.mrb[0].mxu0
    %v6299 = vpop.f32.mrb[0].mxu0
    %6300 = vdwg.mxu0
    %6301 = vrot.lane.b32.xlu0 %v399, 104
    %v6302 = vpop.permute.xlu0 %6301
    %6303 = vrot.lane.b32.xlu0 %v415, 72
    %v6304 = vpop.permute.xlu0 %6303
    %v6306 = vsel %vm422, %v6302, 0
    %v6309 = vsel %vm422, %v6304, 0
    %6311 = vmatprep.subr.bf16.mxu0 0
    %6312 = vmatpush1.bf16.xpose.msra.mxu0 %v6309
    %6313 = vmatprep.subr.bf16.mxu0 0
    %6314 = vmatpush1.bf16.xpose.msra.mxu0 0
    %6315 = vmatprep.subr.bf16.mxu0 0
    %6316 = vmatpush1.bf16.xpose.msra.mxu0 0
    %6317 = vmatprep.subr.bf16.mxu0 0
    %6318 = vmatpush1.bf16.xpose.msra.mxu0 0
    %6319 = vmatprep.subr.bf16.mxu0 0
    %6320 = vmatpush1.bf16.xpose.msra.mxu0 0
    %6321 = vmatprep.subr.bf16.mxu0 0
    %6322 = vmatpush1.bf16.xpose.msra.mxu0 0
    %6323 = vmatprep.subr.bf16.mxu0 0
    %6324 = vmatpush1.bf16.xpose.msra.mxu0 0
    %6325 = vmatprep.subr.bf16.mxu0 0
    %6326 = vmatpush1.bf16.xpose.msra.mxu0 0
    %6327 = vmatprep.subr.bf16.mxu0 0
    %6328 = vmatpush1.bf16.xpose.msra.mxu0 0
    %6329 = vmatprep.subr.bf16.mxu0 0
    %6330 = vmatpush1.bf16.xpose.msra.mxu0 0
    %6331 = vmatprep.subr.bf16.mxu0 0
    %6332 = vmatpush1.bf16.xpose.msra.mxu0 0
    %6333 = vmatprep.subr.bf16.mxu0 0
    %6334 = vmatpush1.bf16.xpose.msra.mxu0 0
    %6335 = vmatprep.subr.bf16.mxu0 0
    %6336 = vmatpush1.bf16.xpose.msra.mxu0 0
    %6337 = vmatprep.subr.bf16.mxu0 0
    %6338 = vmatpush1.bf16.xpose.msra.mxu0 0
    %6339 = vmatprep.subr.bf16.mxu0 0
    %6340 = vmatpush1.bf16.xpose.msra.mxu0 0
    %6341 = vmatprep.subr.bf16.mxu0 0
    %6342 = vmatpush1.bf16.xpose.msra.mxu0 0
    %6343 = vmatprep.mubr.bf16.mxu0 0
    %6344 = vmatmul.mubr.bf16.gmra.mrb[0].mxu0 %v6306
    %v6345 = vpop.f32.mrb[0].mxu0
    %v6346 = vadd.f32 %v72, %v6345
    %v6347 = vpop.f32.mrb[0].mxu0
    %v6348 = vpop.f32.mrb[0].mxu0
    %v6349 = vpop.f32.mrb[0].mxu0
    %6350 = vdwg.mxu0
    %6351 = vrot.lane.b32.xlu0 %v400, 104
    %v6352 = vpop.permute.xlu0 %6351
    %6353 = vrot.lane.b32.xlu0 %v416, 72
    %v6354 = vpop.permute.xlu0 %6353
    %v6356 = vsel %vm422, %v6352, 0
    %v6359 = vsel %vm422, %v6354, 0
    %6361 = vmatprep.subr.bf16.mxu0 0
    %6362 = vmatpush1.bf16.xpose.msra.mxu0 %v6359
    %6363 = vmatprep.subr.bf16.mxu0 0
    %6364 = vmatpush1.bf16.xpose.msra.mxu0 0
    %6365 = vmatprep.subr.bf16.mxu0 0
    %6366 = vmatpush1.bf16.xpose.msra.mxu0 0
    %6367 = vmatprep.subr.bf16.mxu0 0
    %6368 = vmatpush1.bf16.xpose.msra.mxu0 0
    %6369 = vmatprep.subr.bf16.mxu0 0
    %6370 = vmatpush1.bf16.xpose.msra.mxu0 0
    %6371 = vmatprep.subr.bf16.mxu0 0
    %6372 = vmatpush1.bf16.xpose.msra.mxu0 0
    %6373 = vmatprep.subr.bf16.mxu0 0
    %6374 = vmatpush1.bf16.xpose.msra.mxu0 0
    %6375 = vmatprep.subr.bf16.mxu0 0
    %6376 = vmatpush1.bf16.xpose.msra.mxu0 0
    %6377 = vmatprep.subr.bf16.mxu0 0
    %6378 = vmatpush1.bf16.xpose.msra.mxu0 0
    %6379 = vmatprep.subr.bf16.mxu0 0
    %6380 = vmatpush1.bf16.xpose.msra.mxu0 0
    %6381 = vmatprep.subr.bf16.mxu0 0
    %6382 = vmatpush1.bf16.xpose.msra.mxu0 0
    %6383 = vmatprep.subr.bf16.mxu0 0
    %6384 = vmatpush1.bf16.xpose.msra.mxu0 0
    %6385 = vmatprep.subr.bf16.mxu0 0
    %6386 = vmatpush1.bf16.xpose.msra.mxu0 0
    %6387 = vmatprep.subr.bf16.mxu0 0
    %6388 = vmatpush1.bf16.xpose.msra.mxu0 0
    %6389 = vmatprep.subr.bf16.mxu0 0
    %6390 = vmatpush1.bf16.xpose.msra.mxu0 0
    %6391 = vmatprep.subr.bf16.mxu0 0
    %6392 = vmatpush1.bf16.xpose.msra.mxu0 0
    %6393 = vmatprep.mubr.bf16.mxu0 0
    %6394 = vmatmul.mubr.bf16.gmra.mrb[0].mxu0 %v6356
    %v6395 = vpop.f32.mrb[0].mxu0
    %v6396 = vadd.f32 %v73, %v6395
    %v6397 = vpop.f32.mrb[0].mxu0
    %v6398 = vpop.f32.mrb[0].mxu0
    %v6399 = vpop.f32.mrb[0].mxu0
    %6400 = vdwg.mxu0
    %6401 = vrot.lane.b32.xlu0 %v401, 104
    %v6402 = vpop.permute.xlu0 %6401
    %6403 = vrot.lane.b32.xlu0 %v417, 72
    %v6404 = vpop.permute.xlu0 %6403
    %v6406 = vsel %vm422, %v6402, 0
    %v6409 = vsel %vm422, %v6404, 0
    %6411 = vmatprep.subr.bf16.mxu0 0
    %6412 = vmatpush1.bf16.xpose.msra.mxu0 %v6409
    %6413 = vmatprep.subr.bf16.mxu0 0
    %6414 = vmatpush1.bf16.xpose.msra.mxu0 0
    %6415 = vmatprep.subr.bf16.mxu0 0
    %6416 = vmatpush1.bf16.xpose.msra.mxu0 0
    %6417 = vmatprep.subr.bf16.mxu0 0
    %6418 = vmatpush1.bf16.xpose.msra.mxu0 0
    %6419 = vmatprep.subr.bf16.mxu0 0
    %6420 = vmatpush1.bf16.xpose.msra.mxu0 0
    %6421 = vmatprep.subr.bf16.mxu0 0
    %6422 = vmatpush1.bf16.xpose.msra.mxu0 0
    %6423 = vmatprep.subr.bf16.mxu0 0
    %6424 = vmatpush1.bf16.xpose.msra.mxu0 0
    %6425 = vmatprep.subr.bf16.mxu0 0
    %6426 = vmatpush1.bf16.xpose.msra.mxu0 0
    %6427 = vmatprep.subr.bf16.mxu0 0
    %6428 = vmatpush1.bf16.xpose.msra.mxu0 0
    %6429 = vmatprep.subr.bf16.mxu0 0
    %6430 = vmatpush1.bf16.xpose.msra.mxu0 0
    %6431 = vmatprep.subr.bf16.mxu0 0
    %6432 = vmatpush1.bf16.xpose.msra.mxu0 0
    %6433 = vmatprep.subr.bf16.mxu0 0
    %6434 = vmatpush1.bf16.xpose.msra.mxu0 0
    %6435 = vmatprep.subr.bf16.mxu0 0
    %6436 = vmatpush1.bf16.xpose.msra.mxu0 0
    %6437 = vmatprep.subr.bf16.mxu0 0
    %6438 = vmatpush1.bf16.xpose.msra.mxu0 0
    %6439 = vmatprep.subr.bf16.mxu0 0
    %6440 = vmatpush1.bf16.xpose.msra.mxu0 0
    %6441 = vmatprep.subr.bf16.mxu0 0
    %6442 = vmatpush1.bf16.xpose.msra.mxu0 0
    %6443 = vmatprep.mubr.bf16.mxu0 0
    %6444 = vmatmul.mubr.bf16.gmra.mrb[0].mxu0 %v6406
    %v6445 = vpop.f32.mrb[0].mxu0
    %v6446 = vadd.f32 %v74, %v6445
    %v6447 = vpop.f32.mrb[0].mxu0
    %v6448 = vpop.f32.mrb[0].mxu0
    %v6449 = vpop.f32.mrb[0].mxu0
    %6450 = vdwg.mxu0
    %6451 = vrot.lane.b32.xlu0 %v402, 104
    %v6452 = vpop.permute.xlu0 %6451
    %6453 = vrot.lane.b32.xlu0 %v418, 72
    %v6454 = vpop.permute.xlu0 %6453
    %v6456 = vsel %vm422, %v6452, 0
    %v6459 = vsel %vm422, %v6454, 0
    %6461 = vmatprep.subr.bf16.mxu0 0
    %6462 = vmatpush1.bf16.xpose.msra.mxu0 %v6459
    %6463 = vmatprep.subr.bf16.mxu0 0
    %6464 = vmatpush1.bf16.xpose.msra.mxu0 0
    %6465 = vmatprep.subr.bf16.mxu0 0
    %6466 = vmatpush1.bf16.xpose.msra.mxu0 0
    %6467 = vmatprep.subr.bf16.mxu0 0
    %6468 = vmatpush1.bf16.xpose.msra.mxu0 0
    %6469 = vmatprep.subr.bf16.mxu0 0
    %6470 = vmatpush1.bf16.xpose.msra.mxu0 0
    %6471 = vmatprep.subr.bf16.mxu0 0
    %6472 = vmatpush1.bf16.xpose.msra.mxu0 0
    %6473 = vmatprep.subr.bf16.mxu0 0
    %6474 = vmatpush1.bf16.xpose.msra.mxu0 0
    %6475 = vmatprep.subr.bf16.mxu0 0
    %6476 = vmatpush1.bf16.xpose.msra.mxu0 0
    %6477 = vmatprep.subr.bf16.mxu0 0
    %6478 = vmatpush1.bf16.xpose.msra.mxu0 0
    %6479 = vmatprep.subr.bf16.mxu0 0
    %6480 = vmatpush1.bf16.xpose.msra.mxu0 0
    %6481 = vmatprep.subr.bf16.mxu0 0
    %6482 = vmatpush1.bf16.xpose.msra.mxu0 0
    %6483 = vmatprep.subr.bf16.mxu0 0
    %6484 = vmatpush1.bf16.xpose.msra.mxu0 0
    %6485 = vmatprep.subr.bf16.mxu0 0
    %6486 = vmatpush1.bf16.xpose.msra.mxu0 0
    %6487 = vmatprep.subr.bf16.mxu0 0
    %6488 = vmatpush1.bf16.xpose.msra.mxu0 0
    %6489 = vmatprep.subr.bf16.mxu0 0
    %6490 = vmatpush1.bf16.xpose.msra.mxu0 0
    %6491 = vmatprep.subr.bf16.mxu0 0
    %6492 = vmatpush1.bf16.xpose.msra.mxu0 0
    %6493 = vmatprep.mubr.bf16.mxu0 0
    %6494 = vmatmul.mubr.bf16.gmra.mrb[0].mxu0 %v6456
    %v6495 = vpop.f32.mrb[0].mxu0
    %v6496 = vadd.f32 %v75, %v6495
    %v6497 = vpop.f32.mrb[0].mxu0
    %v6498 = vpop.f32.mrb[0].mxu0
    %v6499 = vpop.f32.mrb[0].mxu0
    %6500 = vdwg.mxu0
    %v6501 = vsel %vm422, %v5746, -inf
    %6502 = vmax.xlane.f32.xlu0 %v6501
    %v6503 = vpop.xlane.xlu0 %6502
    %v6504 = vsel %vm422, %v5796, -inf
    %6505 = vmax.xlane.f32.xlu0 %v6504
    %v6506 = vpop.xlane.xlu0 %6505
    %v6507 = vsel %vm422, %v5846, -inf
    %6508 = vmax.xlane.f32.xlu0 %v6507
    %v6509 = vpop.xlane.xlu0 %6508
    %v6510 = vsel %vm422, %v5896, -inf
    %6511 = vmax.xlane.f32.xlu0 %v6510
    %v6512 = vpop.xlane.xlu0 %6511
    %v6513 = vsel %vm422, %v5946, -inf
    %6514 = vmax.xlane.f32.xlu0 %v6513
    %v6515 = vpop.xlane.xlu0 %6514
    %v6516 = vsel %vm422, %v5996, -inf
    %6517 = vmax.xlane.f32.xlu0 %v6516
    %v6518 = vpop.xlane.xlu0 %6517
    %v6519 = vsel %vm422, %v6046, -inf
    %6520 = vmax.xlane.f32.xlu0 %v6519
    %v6521 = vpop.xlane.xlu0 %6520
    %v6522 = vsel %vm422, %v6096, -inf
    %6523 = vmax.xlane.f32.xlu0 %v6522
    %v6524 = vpop.xlane.xlu0 %6523
    %v6525 = vsel %vm422, %v6146, -inf
    %6526 = vmax.xlane.f32.xlu0 %v6525
    %v6527 = vpop.xlane.xlu0 %6526
    %v6528 = vsel %vm422, %v6196, -inf
    %6529 = vmax.xlane.f32.xlu0 %v6528
    %v6530 = vpop.xlane.xlu0 %6529
    %v6531 = vsel %vm422, %v6246, -inf
    %6532 = vmax.xlane.f32.xlu0 %v6531
    %v6533 = vpop.xlane.xlu0 %6532
    %v6534 = vsel %vm422, %v6296, -inf
    %6535 = vmax.xlane.f32.xlu0 %v6534
    %v6536 = vpop.xlane.xlu0 %6535
    %v6537 = vsel %vm422, %v6346, -inf
    %6538 = vmax.xlane.f32.xlu0 %v6537
    %v6539 = vpop.xlane.xlu0 %6538
    %v6540 = vsel %vm422, %v6396, -inf
    %6541 = vmax.xlane.f32.xlu0 %v6540
    %v6542 = vpop.xlane.xlu0 %6541
    %v6543 = vsel %vm422, %v6446, -inf
    %6544 = vmax.xlane.f32.xlu0 %v6543
    %v6545 = vpop.xlane.xlu0 %6544
    %v6546 = vsel %vm422, %v6496, -inf
    %6547 = vmax.xlane.f32.xlu0 %v6546
    %v6548 = vpop.xlane.xlu0 %6547
    %v6549 = vsub.f32 %v5746, %v6503
    %v6550 = vsub.f32 %v5796, %v6506
    %v6551 = vsub.f32 %v5846, %v6509
    %v6552 = vsub.f32 %v5896, %v6512
    %v6553 = vsub.f32 %v5946, %v6515
    %v6554 = vsub.f32 %v5996, %v6518
    %v6555 = vsub.f32 %v6046, %v6521
    %v6556 = vsub.f32 %v6096, %v6524
    %v6557 = vsub.f32 %v6146, %v6527
    %v6558 = vsub.f32 %v6196, %v6530
    %v6559 = vsub.f32 %v6246, %v6533
    %v6560 = vsub.f32 %v6296, %v6536
    %v6561 = vsub.f32 %v6346, %v6539
    %v6562 = vsub.f32 %v6396, %v6542
    %v6563 = vsub.f32 %v6446, %v6545
    %v6564 = vsub.f32 %v6496, %v6548
    %v6565 = vmul.f32 %v6549, 1.442695
    %v6566 = vpow.pop %v6565
    %v6567 = vmul.f32 %v6550, 1.442695
    %v6568 = vpow.pop %v6567
    %v6569 = vmul.f32 %v6551, 1.442695
    %v6570 = vpow.pop %v6569
    %v6571 = vmul.f32 %v6552, 1.442695
    %v6572 = vpow.pop %v6571
    %v6573 = vmul.f32 %v6553, 1.442695
    %v6574 = vpow.pop %v6573
    %v6575 = vmul.f32 %v6554, 1.442695
    %v6576 = vpow.pop %v6575
    %v6577 = vmul.f32 %v6555, 1.442695
    %v6578 = vpow.pop %v6577
    %v6579 = vmul.f32 %v6556, 1.442695
    %v6580 = vpow.pop %v6579
    %v6581 = vmul.f32 %v6557, 1.442695
    %v6582 = vpow.pop %v6581
    %v6583 = vmul.f32 %v6558, 1.442695
    %v6584 = vpow.pop %v6583
    %v6585 = vmul.f32 %v6559, 1.442695
    %v6586 = vpow.pop %v6585
    %v6587 = vmul.f32 %v6560, 1.442695
    %v6588 = vpow.pop %v6587
    %v6589 = vmul.f32 %v6561, 1.442695
    %v6590 = vpow.pop %v6589
    %v6591 = vmul.f32 %v6562, 1.442695
    %v6592 = vpow.pop %v6591
    %v6593 = vmul.f32 %v6563, 1.442695
    %v6594 = vpow.pop %v6593
    %v6595 = vmul.f32 %v6564, 1.442695
    %v6596 = vpow.pop %v6595
    %v6597 = vsel %vm422, %v6566, 0.0
    %6598 = vadd.xlane.f32.xlu0 %v6597
    %v6599 = vpop.xlane.xlu0 %6598
    %v6600 = vsel %vm422, %v6568, 0.0
    %6601 = vadd.xlane.f32.xlu0 %v6600
    %v6602 = vpop.xlane.xlu0 %6601
    %v6603 = vsel %vm422, %v6570, 0.0
    %6604 = vadd.xlane.f32.xlu0 %v6603
    %v6605 = vpop.xlane.xlu0 %6604
    %v6606 = vsel %vm422, %v6572, 0.0
    %6607 = vadd.xlane.f32.xlu0 %v6606
    %v6608 = vpop.xlane.xlu0 %6607
    %v6609 = vsel %vm422, %v6574, 0.0
    %6610 = vadd.xlane.f32.xlu0 %v6609
    %v6611 = vpop.xlane.xlu0 %6610
    %v6612 = vsel %vm422, %v6576, 0.0
    %6613 = vadd.xlane.f32.xlu0 %v6612
    %v6614 = vpop.xlane.xlu0 %6613
    %v6615 = vsel %vm422, %v6578, 0.0
    %6616 = vadd.xlane.f32.xlu0 %v6615
    %v6617 = vpop.xlane.xlu0 %6616
    %v6618 = vsel %vm422, %v6580, 0.0
    %6619 = vadd.xlane.f32.xlu0 %v6618
    %v6620 = vpop.xlane.xlu0 %6619
    %v6621 = vsel %vm422, %v6582, 0.0
    %6622 = vadd.xlane.f32.xlu0 %v6621
    %v6623 = vpop.xlane.xlu0 %6622
    %v6624 = vsel %vm422, %v6584, 0.0
    %6625 = vadd.xlane.f32.xlu0 %v6624
    %v6626 = vpop.xlane.xlu0 %6625
    %v6627 = vsel %vm422, %v6586, 0.0
    %6628 = vadd.xlane.f32.xlu0 %v6627
    %v6629 = vpop.xlane.xlu0 %6628
    %v6630 = vsel %vm422, %v6588, 0.0
    %6631 = vadd.xlane.f32.xlu0 %v6630
    %v6632 = vpop.xlane.xlu0 %6631
    %v6633 = vsel %vm422, %v6590, 0.0
    %6634 = vadd.xlane.f32.xlu0 %v6633
    %v6635 = vpop.xlane.xlu0 %6634
    %v6636 = vsel %vm422, %v6592, 0.0
    %6637 = vadd.xlane.f32.xlu0 %v6636
    %v6638 = vpop.xlane.xlu0 %6637
    %v6639 = vsel %vm422, %v6594, 0.0
    %6640 = vadd.xlane.f32.xlu0 %v6639
    %v6641 = vpop.xlane.xlu0 %6640
    %v6642 = vsel %vm422, %v6596, 0.0
    %6643 = vadd.xlane.f32.xlu0 %v6642
    %v6644 = vpop.xlane.xlu0 %6643
    %v6645 = vrcp.pop %v6599
    %v6646 = vrcp.pop %v6602
    %v6647 = vrcp.pop %v6605
    %v6648 = vrcp.pop %v6608
    %v6649 = vrcp.pop %v6611
    %v6650 = vrcp.pop %v6614
    %v6651 = vrcp.pop %v6617
    %v6652 = vrcp.pop %v6620
    %v6653 = vrcp.pop %v6623
    %v6654 = vrcp.pop %v6626
    %v6655 = vrcp.pop %v6629
    %v6656 = vrcp.pop %v6632
    %v6657 = vrcp.pop %v6635
    %v6658 = vrcp.pop %v6638
    %v6659 = vrcp.pop %v6641
    %v6660 = vrcp.pop %v6644
    %v6661 = vmul.f32 %v6566, %v6645
    %v6662 = vmul.f32 %v6568, %v6646
    %v6663 = vmul.f32 %v6570, %v6647
    %v6664 = vmul.f32 %v6572, %v6648
    %v6665 = vmul.f32 %v6574, %v6649
    %v6666 = vmul.f32 %v6576, %v6650
    %v6667 = vmul.f32 %v6578, %v6651
    %v6668 = vmul.f32 %v6580, %v6652
    %v6669 = vmul.f32 %v6582, %v6653
    %v6670 = vmul.f32 %v6584, %v6654
    %v6671 = vmul.f32 %v6586, %v6655
    %v6672 = vmul.f32 %v6588, %v6656
    %v6673 = vmul.f32 %v6590, %v6657
    %v6674 = vmul.f32 %v6592, %v6658
    %v6675 = vmul.f32 %v6594, %v6659
    %v6676 = vmul.f32 %v6596, %v6660
    %v6677 = vpack.c.bf16 %v6661, %v6661
    %v6678 = vpack.c.bf16 %v6662, %v6662
    %v6679 = vpack.c.bf16 %v6663, %v6663
    %v6680 = vpack.c.bf16 %v6664, %v6664
    %v6681 = vpack.c.bf16 %v6665, %v6665
    %v6682 = vpack.c.bf16 %v6666, %v6666
    %v6683 = vpack.c.bf16 %v6667, %v6667
    %v6684 = vpack.c.bf16 %v6668, %v6668
    %v6685 = vpack.c.bf16 %v6669, %v6669
    %v6686 = vpack.c.bf16 %v6670, %v6670
    %v6687 = vpack.c.bf16 %v6671, %v6671
    %v6688 = vpack.c.bf16 %v6672, %v6672
    %v6689 = vpack.c.bf16 %v6673, %v6673
    %v6690 = vpack.c.bf16 %v6674, %v6674
    %v6691 = vpack.c.bf16 %v6675, %v6675
    %v6692 = vpack.c.bf16 %v6676, %v6676
    %6693 = vrot.lane.b32.xlu0 %v403, 40
    %v6694 = vpop.permute.xlu0 %6693
    %v6696 = vsel %vm422, %v6677, 0
    %v6699 = vsel %vm1401, %v6694, 0
    %6701 = vmatprep.subr.bf16.mxu0 0
    %6702 = vmatpush1.bf16.msra.mxu0 %v6699
    %6703 = vmatprep.subr.bf16.mxu0 0
    %6704 = vmatpush1.bf16.msra.mxu0 0
    %6705 = vmatprep.subr.bf16.mxu0 0
    %6706 = vmatpush1.bf16.msra.mxu0 0
    %6707 = vmatprep.subr.bf16.mxu0 0
    %6708 = vmatpush1.bf16.msra.mxu0 0
    %6709 = vmatprep.subr.bf16.mxu0 0
    %6710 = vmatpush1.bf16.msra.mxu0 0
    %6711 = vmatprep.subr.bf16.mxu0 0
    %6712 = vmatpush1.bf16.msra.mxu0 0
    %6713 = vmatprep.subr.bf16.mxu0 0
    %6714 = vmatpush1.bf16.msra.mxu0 0
    %6715 = vmatprep.subr.bf16.mxu0 0
    %6716 = vmatpush1.bf16.msra.mxu0 0
    %6717 = vmatprep.subr.bf16.mxu0 0
    %6718 = vmatpush1.bf16.msra.mxu0 0
    %6719 = vmatprep.subr.bf16.mxu0 0
    %6720 = vmatpush1.bf16.msra.mxu0 0
    %6721 = vmatprep.subr.bf16.mxu0 0
    %6722 = vmatpush1.bf16.msra.mxu0 0
    %6723 = vmatprep.subr.bf16.mxu0 0
    %6724 = vmatpush1.bf16.msra.mxu0 0
    %6725 = vmatprep.subr.bf16.mxu0 0
    %6726 = vmatpush1.bf16.msra.mxu0 0
    %6727 = vmatprep.subr.bf16.mxu0 0
    %6728 = vmatpush1.bf16.msra.mxu0 0
    %6729 = vmatprep.subr.bf16.mxu0 0
    %6730 = vmatpush1.bf16.msra.mxu0 0
    %6731 = vmatprep.subr.bf16.mxu0 0
    %6732 = vmatpush1.bf16.msra.mxu0 0
    %6733 = vmatprep.mubr.bf16.mxu0 0
    %6734 = vmatmul.mubr.bf16.gmra.mrb[0].mxu0 %v6696
    %v6735 = vpop.f32.mrb[0].mxu0
    %v6736 = vadd.f32 0.0, %v6735
    %v6737 = vpop.f32.mrb[0].mxu0
    %v6738 = vpop.f32.mrb[0].mxu0
    %v6739 = vpop.f32.mrb[0].mxu0
    %6740 = vdwg.mxu0
    %6741 = vrot.lane.b32.xlu0 %v404, 40
    %v6742 = vpop.permute.xlu0 %6741
    %v6744 = vsel %vm422, %v6678, 0
    %v6747 = vsel %vm1401, %v6742, 0
    %6749 = vmatprep.subr.bf16.mxu0 0
    %6750 = vmatpush1.bf16.msra.mxu0 %v6747
    %6751 = vmatprep.subr.bf16.mxu0 0
    %6752 = vmatpush1.bf16.msra.mxu0 0
    %6753 = vmatprep.subr.bf16.mxu0 0
    %6754 = vmatpush1.bf16.msra.mxu0 0
    %6755 = vmatprep.subr.bf16.mxu0 0
    %6756 = vmatpush1.bf16.msra.mxu0 0
    %6757 = vmatprep.subr.bf16.mxu0 0
    %6758 = vmatpush1.bf16.msra.mxu0 0
    %6759 = vmatprep.subr.bf16.mxu0 0
    %6760 = vmatpush1.bf16.msra.mxu0 0
    %6761 = vmatprep.subr.bf16.mxu0 0
    %6762 = vmatpush1.bf16.msra.mxu0 0
    %6763 = vmatprep.subr.bf16.mxu0 0
    %6764 = vmatpush1.bf16.msra.mxu0 0
    %6765 = vmatprep.subr.bf16.mxu0 0
    %6766 = vmatpush1.bf16.msra.mxu0 0
    %6767 = vmatprep.subr.bf16.mxu0 0
    %6768 = vmatpush1.bf16.msra.mxu0 0
    %6769 = vmatprep.subr.bf16.mxu0 0
    %6770 = vmatpush1.bf16.msra.mxu0 0
    %6771 = vmatprep.subr.bf16.mxu0 0
    %6772 = vmatpush1.bf16.msra.mxu0 0
    %6773 = vmatprep.subr.bf16.mxu0 0
    %6774 = vmatpush1.bf16.msra.mxu0 0
    %6775 = vmatprep.subr.bf16.mxu0 0
    %6776 = vmatpush1.bf16.msra.mxu0 0
    %6777 = vmatprep.subr.bf16.mxu0 0
    %6778 = vmatpush1.bf16.msra.mxu0 0
    %6779 = vmatprep.subr.bf16.mxu0 0
    %6780 = vmatpush1.bf16.msra.mxu0 0
    %6781 = vmatprep.mubr.bf16.mxu0 0
    %6782 = vmatmul.mubr.bf16.gmra.mrb[0].mxu0 %v6744
    %v6783 = vpop.f32.mrb[0].mxu0
    %v6784 = vadd.f32 0.0, %v6783
    %v6785 = vpop.f32.mrb[0].mxu0
    %v6786 = vpop.f32.mrb[0].mxu0
    %v6787 = vpop.f32.mrb[0].mxu0
    %6788 = vdwg.mxu0
    %6789 = vrot.lane.b32.xlu0 %v405, 40
    %v6790 = vpop.permute.xlu0 %6789
    %v6792 = vsel %vm422, %v6679, 0
    %v6795 = vsel %vm1401, %v6790, 0
    %6797 = vmatprep.subr.bf16.mxu0 0
    %6798 = vmatpush1.bf16.msra.mxu0 %v6795
    %6799 = vmatprep.subr.bf16.mxu0 0
    %6800 = vmatpush1.bf16.msra.mxu0 0
    %6801 = vmatprep.subr.bf16.mxu0 0
    %6802 = vmatpush1.bf16.msra.mxu0 0
    %6803 = vmatprep.subr.bf16.mxu0 0
    %6804 = vmatpush1.bf16.msra.mxu0 0
    %6805 = vmatprep.subr.bf16.mxu0 0
    %6806 = vmatpush1.bf16.msra.mxu0 0
    %6807 = vmatprep.subr.bf16.mxu0 0
    %6808 = vmatpush1.bf16.msra.mxu0 0
    %6809 = vmatprep.subr.bf16.mxu0 0
    %6810 = vmatpush1.bf16.msra.mxu0 0
    %6811 = vmatprep.subr.bf16.mxu0 0
    %6812 = vmatpush1.bf16.msra.mxu0 0
    %6813 = vmatprep.subr.bf16.mxu0 0
    %6814 = vmatpush1.bf16.msra.mxu0 0
    %6815 = vmatprep.subr.bf16.mxu0 0
    %6816 = vmatpush1.bf16.msra.mxu0 0
    %6817 = vmatprep.subr.bf16.mxu0 0
    %6818 = vmatpush1.bf16.msra.mxu0 0
    %6819 = vmatprep.subr.bf16.mxu0 0
    %6820 = vmatpush1.bf16.msra.mxu0 0
    %6821 = vmatprep.subr.bf16.mxu0 0
    %6822 = vmatpush1.bf16.msra.mxu0 0
    %6823 = vmatprep.subr.bf16.mxu0 0
    %6824 = vmatpush1.bf16.msra.mxu0 0
    %6825 = vmatprep.subr.bf16.mxu0 0
    %6826 = vmatpush1.bf16.msra.mxu0 0
    %6827 = vmatprep.subr.bf16.mxu0 0
    %6828 = vmatpush1.bf16.msra.mxu0 0
    %6829 = vmatprep.mubr.bf16.mxu0 0
    %6830 = vmatmul.mubr.bf16.gmra.mrb[0].mxu0 %v6792
    %v6831 = vpop.f32.mrb[0].mxu0
    %v6832 = vadd.f32 0.0, %v6831
    %v6833 = vpop.f32.mrb[0].mxu0
    %v6834 = vpop.f32.mrb[0].mxu0
    %v6835 = vpop.f32.mrb[0].mxu0
    %6836 = vdwg.mxu0
    %6837 = vrot.lane.b32.xlu0 %v406, 40
    %v6838 = vpop.permute.xlu0 %6837
    %v6840 = vsel %vm422, %v6680, 0
    %v6843 = vsel %vm1401, %v6838, 0
    %6845 = vmatprep.subr.bf16.mxu0 0
    %6846 = vmatpush1.bf16.msra.mxu0 %v6843
    %6847 = vmatprep.subr.bf16.mxu0 0
    %6848 = vmatpush1.bf16.msra.mxu0 0
    %6849 = vmatprep.subr.bf16.mxu0 0
    %6850 = vmatpush1.bf16.msra.mxu0 0
    %6851 = vmatprep.subr.bf16.mxu0 0
    %6852 = vmatpush1.bf16.msra.mxu0 0
    %6853 = vmatprep.subr.bf16.mxu0 0
    %6854 = vmatpush1.bf16.msra.mxu0 0
    %6855 = vmatprep.subr.bf16.mxu0 0
    %6856 = vmatpush1.bf16.msra.mxu0 0
    %6857 = vmatprep.subr.bf16.mxu0 0
    %6858 = vmatpush1.bf16.msra.mxu0 0
    %6859 = vmatprep.subr.bf16.mxu0 0
    %6860 = vmatpush1.bf16.msra.mxu0 0
    %6861 = vmatprep.subr.bf16.mxu0 0
    %6862 = vmatpush1.bf16.msra.mxu0 0
    %6863 = vmatprep.subr.bf16.mxu0 0
    %6864 = vmatpush1.bf16.msra.mxu0 0
    %6865 = vmatprep.subr.bf16.mxu0 0
    %6866 = vmatpush1.bf16.msra.mxu0 0
    %6867 = vmatprep.subr.bf16.mxu0 0
    %6868 = vmatpush1.bf16.msra.mxu0 0
    %6869 = vmatprep.subr.bf16.mxu0 0
    %6870 = vmatpush1.bf16.msra.mxu0 0
    %6871 = vmatprep.subr.bf16.mxu0 0
    %6872 = vmatpush1.bf16.msra.mxu0 0
    %6873 = vmatprep.subr.bf16.mxu0 0
    %6874 = vmatpush1.bf16.msra.mxu0 0
    %6875 = vmatprep.subr.bf16.mxu0 0
    %6876 = vmatpush1.bf16.msra.mxu0 0
    %6877 = vmatprep.mubr.bf16.mxu0 0
    %6878 = vmatmul.mubr.bf16.gmra.mrb[0].mxu0 %v6840
    %v6879 = vpop.f32.mrb[0].mxu0
    %v6880 = vadd.f32 0.0, %v6879
    %v6881 = vpop.f32.mrb[0].mxu0
    %v6882 = vpop.f32.mrb[0].mxu0
    %v6883 = vpop.f32.mrb[0].mxu0
    %6884 = vdwg.mxu0
    %6885 = vrot.lane.b32.xlu0 %v407, 40
    %v6886 = vpop.permute.xlu0 %6885
    %v6888 = vsel %vm422, %v6681, 0
    %v6891 = vsel %vm1401, %v6886, 0
    %6893 = vmatprep.subr.bf16.mxu0 0
    %6894 = vmatpush1.bf16.msra.mxu0 %v6891
    %6895 = vmatprep.subr.bf16.mxu0 0
    %6896 = vmatpush1.bf16.msra.mxu0 0
    %6897 = vmatprep.subr.bf16.mxu0 0
    %6898 = vmatpush1.bf16.msra.mxu0 0
    %6899 = vmatprep.subr.bf16.mxu0 0
    %6900 = vmatpush1.bf16.msra.mxu0 0
    %6901 = vmatprep.subr.bf16.mxu0 0
    %6902 = vmatpush1.bf16.msra.mxu0 0
    %6903 = vmatprep.subr.bf16.mxu0 0
    %6904 = vmatpush1.bf16.msra.mxu0 0
    %6905 = vmatprep.subr.bf16.mxu0 0
    %6906 = vmatpush1.bf16.msra.mxu0 0
    %6907 = vmatprep.subr.bf16.mxu0 0
    %6908 = vmatpush1.bf16.msra.mxu0 0
    %6909 = vmatprep.subr.bf16.mxu0 0
    %6910 = vmatpush1.bf16.msra.mxu0 0
    %6911 = vmatprep.subr.bf16.mxu0 0
    %6912 = vmatpush1.bf16.msra.mxu0 0
    %6913 = vmatprep.subr.bf16.mxu0 0
    %6914 = vmatpush1.bf16.msra.mxu0 0
    %6915 = vmatprep.subr.bf16.mxu0 0
    %6916 = vmatpush1.bf16.msra.mxu0 0
    %6917 = vmatprep.subr.bf16.mxu0 0
    %6918 = vmatpush1.bf16.msra.mxu0 0
    %6919 = vmatprep.subr.bf16.mxu0 0
    %6920 = vmatpush1.bf16.msra.mxu0 0
    %6921 = vmatprep.subr.bf16.mxu0 0
    %6922 = vmatpush1.bf16.msra.mxu0 0
    %6923 = vmatprep.subr.bf16.mxu0 0
    %6924 = vmatpush1.bf16.msra.mxu0 0
    %6925 = vmatprep.mubr.bf16.mxu0 0
    %6926 = vmatmul.mubr.bf16.gmra.mrb[0].mxu0 %v6888
    %v6927 = vpop.f32.mrb[0].mxu0
    %v6928 = vadd.f32 0.0, %v6927
    %v6929 = vpop.f32.mrb[0].mxu0
    %v6930 = vpop.f32.mrb[0].mxu0
    %v6931 = vpop.f32.mrb[0].mxu0
    %6932 = vdwg.mxu0
    %6933 = vrot.lane.b32.xlu0 %v408, 40
    %v6934 = vpop.permute.xlu0 %6933
    %v6936 = vsel %vm422, %v6682, 0
    %v6939 = vsel %vm1401, %v6934, 0
    %6941 = vmatprep.subr.bf16.mxu0 0
    %6942 = vmatpush1.bf16.msra.mxu0 %v6939
    %6943 = vmatprep.subr.bf16.mxu0 0
    %6944 = vmatpush1.bf16.msra.mxu0 0
    %6945 = vmatprep.subr.bf16.mxu0 0
    %6946 = vmatpush1.bf16.msra.mxu0 0
    %6947 = vmatprep.subr.bf16.mxu0 0
    %6948 = vmatpush1.bf16.msra.mxu0 0
    %6949 = vmatprep.subr.bf16.mxu0 0
    %6950 = vmatpush1.bf16.msra.mxu0 0
    %6951 = vmatprep.subr.bf16.mxu0 0
    %6952 = vmatpush1.bf16.msra.mxu0 0
    %6953 = vmatprep.subr.bf16.mxu0 0
    %6954 = vmatpush1.bf16.msra.mxu0 0
    %6955 = vmatprep.subr.bf16.mxu0 0
    %6956 = vmatpush1.bf16.msra.mxu0 0
    %6957 = vmatprep.subr.bf16.mxu0 0
    %6958 = vmatpush1.bf16.msra.mxu0 0
    %6959 = vmatprep.subr.bf16.mxu0 0
    %6960 = vmatpush1.bf16.msra.mxu0 0
    %6961 = vmatprep.subr.bf16.mxu0 0
    %6962 = vmatpush1.bf16.msra.mxu0 0
    %6963 = vmatprep.subr.bf16.mxu0 0
    %6964 = vmatpush1.bf16.msra.mxu0 0
    %6965 = vmatprep.subr.bf16.mxu0 0
    %6966 = vmatpush1.bf16.msra.mxu0 0
    %6967 = vmatprep.subr.bf16.mxu0 0
    %6968 = vmatpush1.bf16.msra.mxu0 0
    %6969 = vmatprep.subr.bf16.mxu0 0
    %6970 = vmatpush1.bf16.msra.mxu0 0
    %6971 = vmatprep.subr.bf16.mxu0 0
    %6972 = vmatpush1.bf16.msra.mxu0 0
    %6973 = vmatprep.mubr.bf16.mxu0 0
    %6974 = vmatmul.mubr.bf16.gmra.mrb[0].mxu0 %v6936
    %v6975 = vpop.f32.mrb[0].mxu0
    %v6976 = vadd.f32 0.0, %v6975
    %v6977 = vpop.f32.mrb[0].mxu0
    %v6978 = vpop.f32.mrb[0].mxu0
    %v6979 = vpop.f32.mrb[0].mxu0
    %6980 = vdwg.mxu0
    %6981 = vrot.lane.b32.xlu0 %v409, 40
    %v6982 = vpop.permute.xlu0 %6981
    %v6984 = vsel %vm422, %v6683, 0
    %v6987 = vsel %vm1401, %v6982, 0
    %6989 = vmatprep.subr.bf16.mxu0 0
    %6990 = vmatpush1.bf16.msra.mxu0 %v6987
    %6991 = vmatprep.subr.bf16.mxu0 0
    %6992 = vmatpush1.bf16.msra.mxu0 0
    %6993 = vmatprep.subr.bf16.mxu0 0
    %6994 = vmatpush1.bf16.msra.mxu0 0
    %6995 = vmatprep.subr.bf16.mxu0 0
    %6996 = vmatpush1.bf16.msra.mxu0 0
    %6997 = vmatprep.subr.bf16.mxu0 0
    %6998 = vmatpush1.bf16.msra.mxu0 0
    %6999 = vmatprep.subr.bf16.mxu0 0
    %7000 = vmatpush1.bf16.msra.mxu0 0
    %7001 = vmatprep.subr.bf16.mxu0 0
    %7002 = vmatpush1.bf16.msra.mxu0 0
    %7003 = vmatprep.subr.bf16.mxu0 0
    %7004 = vmatpush1.bf16.msra.mxu0 0
    %7005 = vmatprep.subr.bf16.mxu0 0
    %7006 = vmatpush1.bf16.msra.mxu0 0
    %7007 = vmatprep.subr.bf16.mxu0 0
    %7008 = vmatpush1.bf16.msra.mxu0 0
    %7009 = vmatprep.subr.bf16.mxu0 0
    %7010 = vmatpush1.bf16.msra.mxu0 0
    %7011 = vmatprep.subr.bf16.mxu0 0
    %7012 = vmatpush1.bf16.msra.mxu0 0
    %7013 = vmatprep.subr.bf16.mxu0 0
    %7014 = vmatpush1.bf16.msra.mxu0 0
    %7015 = vmatprep.subr.bf16.mxu0 0
    %7016 = vmatpush1.bf16.msra.mxu0 0
    %7017 = vmatprep.subr.bf16.mxu0 0
    %7018 = vmatpush1.bf16.msra.mxu0 0
    %7019 = vmatprep.subr.bf16.mxu0 0
    %7020 = vmatpush1.bf16.msra.mxu0 0
    %7021 = vmatprep.mubr.bf16.mxu0 0
    %7022 = vmatmul.mubr.bf16.gmra.mrb[0].mxu0 %v6984
    %v7023 = vpop.f32.mrb[0].mxu0
    %v7024 = vadd.f32 0.0, %v7023
    %v7025 = vpop.f32.mrb[0].mxu0
    %v7026 = vpop.f32.mrb[0].mxu0
    %v7027 = vpop.f32.mrb[0].mxu0
    %7028 = vdwg.mxu0
    %7029 = vrot.lane.b32.xlu0 %v410, 40
    %v7030 = vpop.permute.xlu0 %7029
    %v7032 = vsel %vm422, %v6684, 0
    %v7035 = vsel %vm1401, %v7030, 0
    %7037 = vmatprep.subr.bf16.mxu0 0
    %7038 = vmatpush1.bf16.msra.mxu0 %v7035
    %7039 = vmatprep.subr.bf16.mxu0 0
    %7040 = vmatpush1.bf16.msra.mxu0 0
    %7041 = vmatprep.subr.bf16.mxu0 0
    %7042 = vmatpush1.bf16.msra.mxu0 0
    %7043 = vmatprep.subr.bf16.mxu0 0
    %7044 = vmatpush1.bf16.msra.mxu0 0
    %7045 = vmatprep.subr.bf16.mxu0 0
    %7046 = vmatpush1.bf16.msra.mxu0 0
    %7047 = vmatprep.subr.bf16.mxu0 0
    %7048 = vmatpush1.bf16.msra.mxu0 0
    %7049 = vmatprep.subr.bf16.mxu0 0
    %7050 = vmatpush1.bf16.msra.mxu0 0
    %7051 = vmatprep.subr.bf16.mxu0 0
    %7052 = vmatpush1.bf16.msra.mxu0 0
    %7053 = vmatprep.subr.bf16.mxu0 0
    %7054 = vmatpush1.bf16.msra.mxu0 0
    %7055 = vmatprep.subr.bf16.mxu0 0
    %7056 = vmatpush1.bf16.msra.mxu0 0
    %7057 = vmatprep.subr.bf16.mxu0 0
    %7058 = vmatpush1.bf16.msra.mxu0 0
    %7059 = vmatprep.subr.bf16.mxu0 0
    %7060 = vmatpush1.bf16.msra.mxu0 0
    %7061 = vmatprep.subr.bf16.mxu0 0
    %7062 = vmatpush1.bf16.msra.mxu0 0
    %7063 = vmatprep.subr.bf16.mxu0 0
    %7064 = vmatpush1.bf16.msra.mxu0 0
    %7065 = vmatprep.subr.bf16.mxu0 0
    %7066 = vmatpush1.bf16.msra.mxu0 0
    %7067 = vmatprep.subr.bf16.mxu0 0
    %7068 = vmatpush1.bf16.msra.mxu0 0
    %7069 = vmatprep.mubr.bf16.mxu0 0
    %7070 = vmatmul.mubr.bf16.gmra.mrb[0].mxu0 %v7032
    %v7071 = vpop.f32.mrb[0].mxu0
    %v7072 = vadd.f32 0.0, %v7071
    %v7073 = vpop.f32.mrb[0].mxu0
    %v7074 = vpop.f32.mrb[0].mxu0
    %v7075 = vpop.f32.mrb[0].mxu0
    %7076 = vdwg.mxu0
    %7077 = vrot.lane.b32.xlu0 %v411, 40
    %v7078 = vpop.permute.xlu0 %7077
    %v7080 = vsel %vm422, %v6685, 0
    %v7083 = vsel %vm1401, %v7078, 0
    %7085 = vmatprep.subr.bf16.mxu0 0
    %7086 = vmatpush1.bf16.msra.mxu0 %v7083
    %7087 = vmatprep.subr.bf16.mxu0 0
    %7088 = vmatpush1.bf16.msra.mxu0 0
    %7089 = vmatprep.subr.bf16.mxu0 0
    %7090 = vmatpush1.bf16.msra.mxu0 0
    %7091 = vmatprep.subr.bf16.mxu0 0
    %7092 = vmatpush1.bf16.msra.mxu0 0
    %7093 = vmatprep.subr.bf16.mxu0 0
    %7094 = vmatpush1.bf16.msra.mxu0 0
    %7095 = vmatprep.subr.bf16.mxu0 0
    %7096 = vmatpush1.bf16.msra.mxu0 0
    %7097 = vmatprep.subr.bf16.mxu0 0
    %7098 = vmatpush1.bf16.msra.mxu0 0
    %7099 = vmatprep.subr.bf16.mxu0 0
    %7100 = vmatpush1.bf16.msra.mxu0 0
    %7101 = vmatprep.subr.bf16.mxu0 0
    %7102 = vmatpush1.bf16.msra.mxu0 0
    %7103 = vmatprep.subr.bf16.mxu0 0
    %7104 = vmatpush1.bf16.msra.mxu0 0
    %7105 = vmatprep.subr.bf16.mxu0 0
    %7106 = vmatpush1.bf16.msra.mxu0 0
    %7107 = vmatprep.subr.bf16.mxu0 0
    %7108 = vmatpush1.bf16.msra.mxu0 0
    %7109 = vmatprep.subr.bf16.mxu0 0
    %7110 = vmatpush1.bf16.msra.mxu0 0
    %7111 = vmatprep.subr.bf16.mxu0 0
    %7112 = vmatpush1.bf16.msra.mxu0 0
    %7113 = vmatprep.subr.bf16.mxu0 0
    %7114 = vmatpush1.bf16.msra.mxu0 0
    %7115 = vmatprep.subr.bf16.mxu0 0
    %7116 = vmatpush1.bf16.msra.mxu0 0
    %7117 = vmatprep.mubr.bf16.mxu0 0
    %7118 = vmatmul.mubr.bf16.gmra.mrb[0].mxu0 %v7080
    %v7119 = vpop.f32.mrb[0].mxu0
    %v7120 = vadd.f32 0.0, %v7119
    %v7121 = vpop.f32.mrb[0].mxu0
    %v7122 = vpop.f32.mrb[0].mxu0
    %v7123 = vpop.f32.mrb[0].mxu0
    %7124 = vdwg.mxu0
    %7125 = vrot.lane.b32.xlu0 %v412, 40
    %v7126 = vpop.permute.xlu0 %7125
    %v7128 = vsel %vm422, %v6686, 0
    %v7131 = vsel %vm1401, %v7126, 0
    %7133 = vmatprep.subr.bf16.mxu0 0
    %7134 = vmatpush1.bf16.msra.mxu0 %v7131
    %7135 = vmatprep.subr.bf16.mxu0 0
    %7136 = vmatpush1.bf16.msra.mxu0 0
    %7137 = vmatprep.subr.bf16.mxu0 0
    %7138 = vmatpush1.bf16.msra.mxu0 0
    %7139 = vmatprep.subr.bf16.mxu0 0
    %7140 = vmatpush1.bf16.msra.mxu0 0
    %7141 = vmatprep.subr.bf16.mxu0 0
    %7142 = vmatpush1.bf16.msra.mxu0 0
    %7143 = vmatprep.subr.bf16.mxu0 0
    %7144 = vmatpush1.bf16.msra.mxu0 0
    %7145 = vmatprep.subr.bf16.mxu0 0
    %7146 = vmatpush1.bf16.msra.mxu0 0
    %7147 = vmatprep.subr.bf16.mxu0 0
    %7148 = vmatpush1.bf16.msra.mxu0 0
    %7149 = vmatprep.subr.bf16.mxu0 0
    %7150 = vmatpush1.bf16.msra.mxu0 0
    %7151 = vmatprep.subr.bf16.mxu0 0
    %7152 = vmatpush1.bf16.msra.mxu0 0
    %7153 = vmatprep.subr.bf16.mxu0 0
    %7154 = vmatpush1.bf16.msra.mxu0 0
    %7155 = vmatprep.subr.bf16.mxu0 0
    %7156 = vmatpush1.bf16.msra.mxu0 0
    %7157 = vmatprep.subr.bf16.mxu0 0
    %7158 = vmatpush1.bf16.msra.mxu0 0
    %7159 = vmatprep.subr.bf16.mxu0 0
    %7160 = vmatpush1.bf16.msra.mxu0 0
    %7161 = vmatprep.subr.bf16.mxu0 0
    %7162 = vmatpush1.bf16.msra.mxu0 0
    %7163 = vmatprep.subr.bf16.mxu0 0
    %7164 = vmatpush1.bf16.msra.mxu0 0
    %7165 = vmatprep.mubr.bf16.mxu0 0
    %7166 = vmatmul.mubr.bf16.gmra.mrb[0].mxu0 %v7128
    %v7167 = vpop.f32.mrb[0].mxu0
    %v7168 = vadd.f32 0.0, %v7167
    %v7169 = vpop.f32.mrb[0].mxu0
    %v7170 = vpop.f32.mrb[0].mxu0
    %v7171 = vpop.f32.mrb[0].mxu0
    %7172 = vdwg.mxu0
    %7173 = vrot.lane.b32.xlu0 %v413, 40
    %v7174 = vpop.permute.xlu0 %7173
    %v7176 = vsel %vm422, %v6687, 0
    %v7179 = vsel %vm1401, %v7174, 0
    %7181 = vmatprep.subr.bf16.mxu0 0
    %7182 = vmatpush1.bf16.msra.mxu0 %v7179
    %7183 = vmatprep.subr.bf16.mxu0 0
    %7184 = vmatpush1.bf16.msra.mxu0 0
    %7185 = vmatprep.subr.bf16.mxu0 0
    %7186 = vmatpush1.bf16.msra.mxu0 0
    %7187 = vmatprep.subr.bf16.mxu0 0
    %7188 = vmatpush1.bf16.msra.mxu0 0
    %7189 = vmatprep.subr.bf16.mxu0 0
    %7190 = vmatpush1.bf16.msra.mxu0 0
    %7191 = vmatprep.subr.bf16.mxu0 0
    %7192 = vmatpush1.bf16.msra.mxu0 0
    %7193 = vmatprep.subr.bf16.mxu0 0
    %7194 = vmatpush1.bf16.msra.mxu0 0
    %7195 = vmatprep.subr.bf16.mxu0 0
    %7196 = vmatpush1.bf16.msra.mxu0 0
    %7197 = vmatprep.subr.bf16.mxu0 0
    %7198 = vmatpush1.bf16.msra.mxu0 0
    %7199 = vmatprep.subr.bf16.mxu0 0
    %7200 = vmatpush1.bf16.msra.mxu0 0
    %7201 = vmatprep.subr.bf16.mxu0 0
    %7202 = vmatpush1.bf16.msra.mxu0 0
    %7203 = vmatprep.subr.bf16.mxu0 0
    %7204 = vmatpush1.bf16.msra.mxu0 0
    %7205 = vmatprep.subr.bf16.mxu0 0
    %7206 = vmatpush1.bf16.msra.mxu0 0
    %7207 = vmatprep.subr.bf16.mxu0 0
    %7208 = vmatpush1.bf16.msra.mxu0 0
    %7209 = vmatprep.subr.bf16.mxu0 0
    %7210 = vmatpush1.bf16.msra.mxu0 0
    %7211 = vmatprep.subr.bf16.mxu0 0
    %7212 = vmatpush1.bf16.msra.mxu0 0
    %7213 = vmatprep.mubr.bf16.mxu0 0
    %7214 = vmatmul.mubr.bf16.gmra.mrb[0].mxu0 %v7176
    %v7215 = vpop.f32.mrb[0].mxu0
    %v7216 = vadd.f32 0.0, %v7215
    %v7217 = vpop.f32.mrb[0].mxu0
    %v7218 = vpop.f32.mrb[0].mxu0
    %v7219 = vpop.f32.mrb[0].mxu0
    %7220 = vdwg.mxu0
    %7221 = vrot.lane.b32.xlu0 %v414, 40
    %v7222 = vpop.permute.xlu0 %7221
    %v7224 = vsel %vm422, %v6688, 0
    %v7227 = vsel %vm1401, %v7222, 0
    %7229 = vmatprep.subr.bf16.mxu0 0
    %7230 = vmatpush1.bf16.msra.mxu0 %v7227
    %7231 = vmatprep.subr.bf16.mxu0 0
    %7232 = vmatpush1.bf16.msra.mxu0 0
    %7233 = vmatprep.subr.bf16.mxu0 0
    %7234 = vmatpush1.bf16.msra.mxu0 0
    %7235 = vmatprep.subr.bf16.mxu0 0
    %7236 = vmatpush1.bf16.msra.mxu0 0
    %7237 = vmatprep.subr.bf16.mxu0 0
    %7238 = vmatpush1.bf16.msra.mxu0 0
    %7239 = vmatprep.subr.bf16.mxu0 0
    %7240 = vmatpush1.bf16.msra.mxu0 0
    %7241 = vmatprep.subr.bf16.mxu0 0
    %7242 = vmatpush1.bf16.msra.mxu0 0
    %7243 = vmatprep.subr.bf16.mxu0 0
    %7244 = vmatpush1.bf16.msra.mxu0 0
    %7245 = vmatprep.subr.bf16.mxu0 0
    %7246 = vmatpush1.bf16.msra.mxu0 0
    %7247 = vmatprep.subr.bf16.mxu0 0
    %7248 = vmatpush1.bf16.msra.mxu0 0
    %7249 = vmatprep.subr.bf16.mxu0 0
    %7250 = vmatpush1.bf16.msra.mxu0 0
    %7251 = vmatprep.subr.bf16.mxu0 0
    %7252 = vmatpush1.bf16.msra.mxu0 0
    %7253 = vmatprep.subr.bf16.mxu0 0
    %7254 = vmatpush1.bf16.msra.mxu0 0
    %7255 = vmatprep.subr.bf16.mxu0 0
    %7256 = vmatpush1.bf16.msra.mxu0 0
    %7257 = vmatprep.subr.bf16.mxu0 0
    %7258 = vmatpush1.bf16.msra.mxu0 0
    %7259 = vmatprep.subr.bf16.mxu0 0
    %7260 = vmatpush1.bf16.msra.mxu0 0
    %7261 = vmatprep.mubr.bf16.mxu0 0
    %7262 = vmatmul.mubr.bf16.gmra.mrb[0].mxu0 %v7224
    %v7263 = vpop.f32.mrb[0].mxu0
    %v7264 = vadd.f32 0.0, %v7263
    %v7265 = vpop.f32.mrb[0].mxu0
    %v7266 = vpop.f32.mrb[0].mxu0
    %v7267 = vpop.f32.mrb[0].mxu0
    %7268 = vdwg.mxu0
    %7269 = vrot.lane.b32.xlu0 %v415, 40
    %v7270 = vpop.permute.xlu0 %7269
    %v7272 = vsel %vm422, %v6689, 0
    %v7275 = vsel %vm1401, %v7270, 0
    %7277 = vmatprep.subr.bf16.mxu0 0
    %7278 = vmatpush1.bf16.msra.mxu0 %v7275
    %7279 = vmatprep.subr.bf16.mxu0 0
    %7280 = vmatpush1.bf16.msra.mxu0 0
    %7281 = vmatprep.subr.bf16.mxu0 0
    %7282 = vmatpush1.bf16.msra.mxu0 0
    %7283 = vmatprep.subr.bf16.mxu0 0
    %7284 = vmatpush1.bf16.msra.mxu0 0
    %7285 = vmatprep.subr.bf16.mxu0 0
    %7286 = vmatpush1.bf16.msra.mxu0 0
    %7287 = vmatprep.subr.bf16.mxu0 0
    %7288 = vmatpush1.bf16.msra.mxu0 0
    %7289 = vmatprep.subr.bf16.mxu0 0
    %7290 = vmatpush1.bf16.msra.mxu0 0
    %7291 = vmatprep.subr.bf16.mxu0 0
    %7292 = vmatpush1.bf16.msra.mxu0 0
    %7293 = vmatprep.subr.bf16.mxu0 0
    %7294 = vmatpush1.bf16.msra.mxu0 0
    %7295 = vmatprep.subr.bf16.mxu0 0
    %7296 = vmatpush1.bf16.msra.mxu0 0
    %7297 = vmatprep.subr.bf16.mxu0 0
    %7298 = vmatpush1.bf16.msra.mxu0 0
    %7299 = vmatprep.subr.bf16.mxu0 0
    %7300 = vmatpush1.bf16.msra.mxu0 0
    %7301 = vmatprep.subr.bf16.mxu0 0
    %7302 = vmatpush1.bf16.msra.mxu0 0
    %7303 = vmatprep.subr.bf16.mxu0 0
    %7304 = vmatpush1.bf16.msra.mxu0 0
    %7305 = vmatprep.subr.bf16.mxu0 0
    %7306 = vmatpush1.bf16.msra.mxu0 0
    %7307 = vmatprep.subr.bf16.mxu0 0
    %7308 = vmatpush1.bf16.msra.mxu0 0
    %7309 = vmatprep.mubr.bf16.mxu0 0
    %7310 = vmatmul.mubr.bf16.gmra.mrb[0].mxu0 %v7272
    %v7311 = vpop.f32.mrb[0].mxu0
    %v7312 = vadd.f32 0.0, %v7311
    %v7313 = vpop.f32.mrb[0].mxu0
    %v7314 = vpop.f32.mrb[0].mxu0
    %v7315 = vpop.f32.mrb[0].mxu0
    %7316 = vdwg.mxu0
    %7317 = vrot.lane.b32.xlu0 %v416, 40
    %v7318 = vpop.permute.xlu0 %7317
    %v7320 = vsel %vm422, %v6690, 0
    %v7323 = vsel %vm1401, %v7318, 0
    %7325 = vmatprep.subr.bf16.mxu0 0
    %7326 = vmatpush1.bf16.msra.mxu0 %v7323
    %7327 = vmatprep.subr.bf16.mxu0 0
    %7328 = vmatpush1.bf16.msra.mxu0 0
    %7329 = vmatprep.subr.bf16.mxu0 0
    %7330 = vmatpush1.bf16.msra.mxu0 0
    %7331 = vmatprep.subr.bf16.mxu0 0
    %7332 = vmatpush1.bf16.msra.mxu0 0
    %7333 = vmatprep.subr.bf16.mxu0 0
    %7334 = vmatpush1.bf16.msra.mxu0 0
    %7335 = vmatprep.subr.bf16.mxu0 0
    %7336 = vmatpush1.bf16.msra.mxu0 0
    %7337 = vmatprep.subr.bf16.mxu0 0
    %7338 = vmatpush1.bf16.msra.mxu0 0
    %7339 = vmatprep.subr.bf16.mxu0 0
    %7340 = vmatpush1.bf16.msra.mxu0 0
    %7341 = vmatprep.subr.bf16.mxu0 0
    %7342 = vmatpush1.bf16.msra.mxu0 0
    %7343 = vmatprep.subr.bf16.mxu0 0
    %7344 = vmatpush1.bf16.msra.mxu0 0
    %7345 = vmatprep.subr.bf16.mxu0 0
    %7346 = vmatpush1.bf16.msra.mxu0 0
    %7347 = vmatprep.subr.bf16.mxu0 0
    %7348 = vmatpush1.bf16.msra.mxu0 0
    %7349 = vmatprep.subr.bf16.mxu0 0
    %7350 = vmatpush1.bf16.msra.mxu0 0
    %7351 = vmatprep.subr.bf16.mxu0 0
    %7352 = vmatpush1.bf16.msra.mxu0 0
    %7353 = vmatprep.subr.bf16.mxu0 0
    %7354 = vmatpush1.bf16.msra.mxu0 0
    %7355 = vmatprep.subr.bf16.mxu0 0
    %7356 = vmatpush1.bf16.msra.mxu0 0
    %7357 = vmatprep.mubr.bf16.mxu0 0
    %7358 = vmatmul.mubr.bf16.gmra.mrb[0].mxu0 %v7320
    %v7359 = vpop.f32.mrb[0].mxu0
    %v7360 = vadd.f32 0.0, %v7359
    %v7361 = vpop.f32.mrb[0].mxu0
    %v7362 = vpop.f32.mrb[0].mxu0
    %v7363 = vpop.f32.mrb[0].mxu0
    %7364 = vdwg.mxu0
    %7365 = vrot.lane.b32.xlu0 %v417, 40
    %v7366 = vpop.permute.xlu0 %7365
    %v7368 = vsel %vm422, %v6691, 0
    %v7371 = vsel %vm1401, %v7366, 0
    %7373 = vmatprep.subr.bf16.mxu0 0
    %7374 = vmatpush1.bf16.msra.mxu0 %v7371
    %7375 = vmatprep.subr.bf16.mxu0 0
    %7376 = vmatpush1.bf16.msra.mxu0 0
    %7377 = vmatprep.subr.bf16.mxu0 0
    %7378 = vmatpush1.bf16.msra.mxu0 0
    %7379 = vmatprep.subr.bf16.mxu0 0
    %7380 = vmatpush1.bf16.msra.mxu0 0
    %7381 = vmatprep.subr.bf16.mxu0 0
    %7382 = vmatpush1.bf16.msra.mxu0 0
    %7383 = vmatprep.subr.bf16.mxu0 0
    %7384 = vmatpush1.bf16.msra.mxu0 0
    %7385 = vmatprep.subr.bf16.mxu0 0
    %7386 = vmatpush1.bf16.msra.mxu0 0
    %7387 = vmatprep.subr.bf16.mxu0 0
    %7388 = vmatpush1.bf16.msra.mxu0 0
    %7389 = vmatprep.subr.bf16.mxu0 0
    %7390 = vmatpush1.bf16.msra.mxu0 0
    %7391 = vmatprep.subr.bf16.mxu0 0
    %7392 = vmatpush1.bf16.msra.mxu0 0
    %7393 = vmatprep.subr.bf16.mxu0 0
    %7394 = vmatpush1.bf16.msra.mxu0 0
    %7395 = vmatprep.subr.bf16.mxu0 0
    %7396 = vmatpush1.bf16.msra.mxu0 0
    %7397 = vmatprep.subr.bf16.mxu0 0
    %7398 = vmatpush1.bf16.msra.mxu0 0
    %7399 = vmatprep.subr.bf16.mxu0 0
    %7400 = vmatpush1.bf16.msra.mxu0 0
    %7401 = vmatprep.subr.bf16.mxu0 0
    %7402 = vmatpush1.bf16.msra.mxu0 0
    %7403 = vmatprep.subr.bf16.mxu0 0
    %7404 = vmatpush1.bf16.msra.mxu0 0
    %7405 = vmatprep.mubr.bf16.mxu0 0
    %7406 = vmatmul.mubr.bf16.gmra.mrb[0].mxu0 %v7368
    %v7407 = vpop.f32.mrb[0].mxu0
    %v7408 = vadd.f32 0.0, %v7407
    %v7409 = vpop.f32.mrb[0].mxu0
    %v7410 = vpop.f32.mrb[0].mxu0
    %v7411 = vpop.f32.mrb[0].mxu0
    %7412 = vdwg.mxu0
    %7413 = vrot.lane.b32.xlu0 %v418, 40
    %v7414 = vpop.permute.xlu0 %7413
    %v7416 = vsel %vm422, %v6692, 0
    %v7419 = vsel %vm1401, %v7414, 0
    %7421 = vmatprep.subr.bf16.mxu0 0
    %7422 = vmatpush1.bf16.msra.mxu0 %v7419
    %7423 = vmatprep.subr.bf16.mxu0 0
    %7424 = vmatpush1.bf16.msra.mxu0 0
    %7425 = vmatprep.subr.bf16.mxu0 0
    %7426 = vmatpush1.bf16.msra.mxu0 0
    %7427 = vmatprep.subr.bf16.mxu0 0
    %7428 = vmatpush1.bf16.msra.mxu0 0
    %7429 = vmatprep.subr.bf16.mxu0 0
    %7430 = vmatpush1.bf16.msra.mxu0 0
    %7431 = vmatprep.subr.bf16.mxu0 0
    %7432 = vmatpush1.bf16.msra.mxu0 0
    %7433 = vmatprep.subr.bf16.mxu0 0
    %7434 = vmatpush1.bf16.msra.mxu0 0
    %7435 = vmatprep.subr.bf16.mxu0 0
    %7436 = vmatpush1.bf16.msra.mxu0 0
    %7437 = vmatprep.subr.bf16.mxu0 0
    %7438 = vmatpush1.bf16.msra.mxu0 0
    %7439 = vmatprep.subr.bf16.mxu0 0
    %7440 = vmatpush1.bf16.msra.mxu0 0
    %7441 = vmatprep.subr.bf16.mxu0 0
    %7442 = vmatpush1.bf16.msra.mxu0 0
    %7443 = vmatprep.subr.bf16.mxu0 0
    %7444 = vmatpush1.bf16.msra.mxu0 0
    %7445 = vmatprep.subr.bf16.mxu0 0
    %7446 = vmatpush1.bf16.msra.mxu0 0
    %7447 = vmatprep.subr.bf16.mxu0 0
    %7448 = vmatpush1.bf16.msra.mxu0 0
    %7449 = vmatprep.subr.bf16.mxu0 0
    %7450 = vmatpush1.bf16.msra.mxu0 0
    %7451 = vmatprep.subr.bf16.mxu0 0
    %7452 = vmatpush1.bf16.msra.mxu0 0
    %7453 = vmatprep.mubr.bf16.mxu0 0
    %7454 = vmatmul.mubr.bf16.gmra.mrb[0].mxu0 %v7416
    %v7455 = vpop.f32.mrb[0].mxu0
    %v7456 = vadd.f32 0.0, %v7455
    %v7457 = vpop.f32.mrb[0].mxu0
    %v7458 = vpop.f32.mrb[0].mxu0
    %v7459 = vpop.f32.mrb[0].mxu0
    %7460 = vdwg.mxu0
    %7477 = vrot.lane.b32.xlu0 %v3216, 8
    %v7478 = vpop.permute.xlu0 %7477
    %7479 = vrot.lane.b32.xlu0 %v3264, 8
    %v7480 = vpop.permute.xlu0 %7479
    %7481 = vrot.lane.b32.xlu0 %v3312, 8
    %v7482 = vpop.permute.xlu0 %7481
    %7483 = vrot.lane.b32.xlu0 %v3360, 8
    %v7484 = vpop.permute.xlu0 %7483
    %7485 = vrot.lane.b32.xlu0 %v3408, 8
    %v7486 = vpop.permute.xlu0 %7485
    %7487 = vrot.lane.b32.xlu0 %v3456, 8
    %v7488 = vpop.permute.xlu0 %7487
    %7489 = vrot.lane.b32.xlu0 %v3504, 8
    %v7490 = vpop.permute.xlu0 %7489
    %7491 = vrot.lane.b32.xlu0 %v3552, 8
    %v7492 = vpop.permute.xlu0 %7491
    %7493 = vrot.lane.b32.xlu0 %v3600, 8
    %v7494 = vpop.permute.xlu0 %7493
    %7495 = vrot.lane.b32.xlu0 %v3648, 8
    %v7496 = vpop.permute.xlu0 %7495
    %7497 = vrot.lane.b32.xlu0 %v3696, 8
    %v7498 = vpop.permute.xlu0 %7497
    %7499 = vrot.lane.b32.xlu0 %v3744, 8
    %v7500 = vpop.permute.xlu0 %7499
    %7501 = vrot.lane.b32.xlu0 %v3792, 8
    %v7502 = vpop.permute.xlu0 %7501
    %7503 = vrot.lane.b32.xlu0 %v3840, 8
    %v7504 = vpop.permute.xlu0 %7503
    %7505 = vrot.lane.b32.xlu0 %v3888, 8
    %v7506 = vpop.permute.xlu0 %7505
    %7507 = vrot.lane.b32.xlu0 %v3936, 8
    %v7508 = vpop.permute.xlu0 %7507
    %7541 = vrot.lane.b32.xlu0 %v4976, 16
    %v7542 = vpop.permute.xlu0 %7541
    %7543 = vrot.lane.b32.xlu0 %v5024, 16
    %v7544 = vpop.permute.xlu0 %7543
    %7545 = vrot.lane.b32.xlu0 %v5072, 16
    %v7546 = vpop.permute.xlu0 %7545
    %7547 = vrot.lane.b32.xlu0 %v5120, 16
    %v7548 = vpop.permute.xlu0 %7547
    %7549 = vrot.lane.b32.xlu0 %v5168, 16
    %v7550 = vpop.permute.xlu0 %7549
    %7551 = vrot.lane.b32.xlu0 %v5216, 16
    %v7552 = vpop.permute.xlu0 %7551
    %7553 = vrot.lane.b32.xlu0 %v5264, 16
    %v7554 = vpop.permute.xlu0 %7553
    %7555 = vrot.lane.b32.xlu0 %v5312, 16
    %v7556 = vpop.permute.xlu0 %7555
    %7557 = vrot.lane.b32.xlu0 %v5360, 16
    %v7558 = vpop.permute.xlu0 %7557
    %7559 = vrot.lane.b32.xlu0 %v5408, 16
    %v7560 = vpop.permute.xlu0 %7559
    %7561 = vrot.lane.b32.xlu0 %v5456, 16
    %v7562 = vpop.permute.xlu0 %7561
    %7563 = vrot.lane.b32.xlu0 %v5504, 16
    %v7564 = vpop.permute.xlu0 %7563
    %7565 = vrot.lane.b32.xlu0 %v5552, 16
    %v7566 = vpop.permute.xlu0 %7565
    %7567 = vrot.lane.b32.xlu0 %v5600, 16
    %v7568 = vpop.permute.xlu0 %7567
    %7569 = vrot.lane.b32.xlu0 %v5648, 16
    %v7570 = vpop.permute.xlu0 %7569
    %7571 = vrot.lane.b32.xlu0 %v5696, 16
    %v7572 = vpop.permute.xlu0 %7571
    %7605 = vrot.lane.b32.xlu0 %v6736, 24
    %v7606 = vpop.permute.xlu0 %7605
    %7607 = vrot.lane.b32.xlu0 %v6784, 24
    %v7608 = vpop.permute.xlu0 %7607
    %7609 = vrot.lane.b32.xlu0 %v6832, 24
    %v7610 = vpop.permute.xlu0 %7609
    %7611 = vrot.lane.b32.xlu0 %v6880, 24
    %v7612 = vpop.permute.xlu0 %7611
    %7613 = vrot.lane.b32.xlu0 %v6928, 24
    %v7614 = vpop.permute.xlu0 %7613
    %7615 = vrot.lane.b32.xlu0 %v6976, 24
    %v7616 = vpop.permute.xlu0 %7615
    %7617 = vrot.lane.b32.xlu0 %v7024, 24
    %v7618 = vpop.permute.xlu0 %7617
    %7619 = vrot.lane.b32.xlu0 %v7072, 24
    %v7620 = vpop.permute.xlu0 %7619
    %7621 = vrot.lane.b32.xlu0 %v7120, 24
    %v7622 = vpop.permute.xlu0 %7621
    %7623 = vrot.lane.b32.xlu0 %v7168, 24
    %v7624 = vpop.permute.xlu0 %7623
    %7625 = vrot.lane.b32.xlu0 %v7216, 24
    %v7626 = vpop.permute.xlu0 %7625
    %7627 = vrot.lane.b32.xlu0 %v7264, 24
    %v7628 = vpop.permute.xlu0 %7627
    %7629 = vrot.lane.b32.xlu0 %v7312, 24
    %v7630 = vpop.permute.xlu0 %7629
    %7631 = vrot.lane.b32.xlu0 %v7360, 24
    %v7632 = vpop.permute.xlu0 %7631
    %7633 = vrot.lane.b32.xlu0 %v7408, 24
    %v7634 = vpop.permute.xlu0 %7633
    %7635 = vrot.lane.b32.xlu0 %v7456, 24
    %v7636 = vpop.permute.xlu0 %7635
    %v7653 = vsel %vm422, %v1440, %v7478
    %v7654 = vsel %vm422, %v1488, %v7480
    %v7655 = vsel %vm422, %v1536, %v7482
    %v7656 = vsel %vm422, %v1584, %v7484
    %v7657 = vsel %vm422, %v1632, %v7486
    %v7658 = vsel %vm422, %v1680, %v7488
    %v7659 = vsel %vm422, %v1728, %v7490
    %v7660 = vsel %vm422, %v1776, %v7492
    %v7661 = vsel %vm422, %v1824, %v7494
    %v7662 = vsel %vm422, %v1872, %v7496
    %v7663 = vsel %vm422, %v1920, %v7498
    %v7664 = vsel %vm422, %v1968, %v7500
    %v7665 = vsel %vm422, %v2016, %v7502
    %v7666 = vsel %vm422, %v2064, %v7504
    %v7667 = vsel %vm422, %v2112, %v7506
    %v7668 = vsel %vm422, %v2160, %v7508
    %v7669 = vsel %vm96, %v7653, %v7542
    %v7670 = vsel %vm96, %v7654, %v7544
    %v7671 = vsel %vm96, %v7655, %v7546
    %v7672 = vsel %vm96, %v7656, %v7548
    %v7673 = vsel %vm96, %v7657, %v7550
    %v7674 = vsel %vm96, %v7658, %v7552
    %v7675 = vsel %vm96, %v7659, %v7554
    %v7676 = vsel %vm96, %v7660, %v7556
    %v7677 = vsel %vm96, %v7661, %v7558
    %v7678 = vsel %vm96, %v7662, %v7560
    %v7679 = vsel %vm96, %v7663, %v7562
    %v7680 = vsel %vm96, %v7664, %v7564
    %v7681 = vsel %vm96, %v7665, %v7566
    %v7682 = vsel %vm96, %v7666, %v7568
    %v7683 = vsel %vm96, %v7667, %v7570
    %v7684 = vsel %vm96, %v7668, %v7572
    %vm7685 = vcmask 195584
    %v7686 = vsel %vm7685, %v7669, %v7606
    %v7687 = vsel %vm7685, %v7670, %v7608
    %v7688 = vsel %vm7685, %v7671, %v7610
    %v7689 = vsel %vm7685, %v7672, %v7612
    %v7690 = vsel %vm7685, %v7673, %v7614
    %v7691 = vsel %vm7685, %v7674, %v7616
    %v7692 = vsel %vm7685, %v7675, %v7618
    %v7693 = vsel %vm7685, %v7676, %v7620
    %v7694 = vsel %vm7685, %v7677, %v7622
    %v7695 = vsel %vm7685, %v7678, %v7624
    %v7696 = vsel %vm7685, %v7679, %v7626
    %v7697 = vsel %vm7685, %v7680, %v7628
    %v7698 = vsel %vm7685, %v7681, %v7630
    %v7699 = vsel %vm7685, %v7682, %v7632
    %v7700 = vsel %vm7685, %v7683, %v7634
    %v7701 = vsel %vm7685, %v7684, %v7636
    %v7702 = vpack.c.bf16 %v7687, %v7686
    %v7703 = vpack.c.bf16 %v7689, %v7688
    %v7704 = vpack.c.bf16 %v7691, %v7690
    %v7705 = vpack.c.bf16 %v7693, %v7692
    %v7706 = vpack.c.bf16 %v7695, %v7694
    %v7707 = vpack.c.bf16 %v7697, %v7696
    %v7708 = vpack.c.bf16 %v7699, %v7698
    %v7709 = vpack.c.bf16 %v7701, %v7700
    %v7710 = vld [vmem:[%s5] sm:$0xf]
    %v7711 = vld [vmem:[%s5 + $0x4] sm:$0xf]
    %v7712 = vld [vmem:[%s5 + $0x8] sm:$0xf]
    %v7713 = vld [vmem:[%s5 + $0xc] sm:$0xf]
    %v7714 = vlaneseq
    %v7715 = vshrl.u32 %v7714, 7
    %v7716 = vsub.s32 1, %v7715
    %v7717 = vrot.slane %v43, %v7716
    %v7722 = vunpack.c.l.b16 %v7710
    %v7723 = vunpack.c.l.b16 %v7711
    %v7724 = vunpack.c.l.b16 %v7712
    %v7725 = vunpack.c.l.b16 %v7713
    %v7726 = vpack.c.b16 %v7723, %v7722
    %v7727 = vpack.c.b16 %v7725, %v7724
    %v7731 = vsel %vm249, %v7702, 0
    %v7734 = vsel %vm249, %v7703, 0
    %v7737 = vsel %vm249, %v7704, 0
    %v7740 = vsel %vm249, %v7705, 0
    %v7743 = vsel %vm249, %v7706, 0
    %v7746 = vsel %vm249, %v7707, 0
    %v7749 = vsel %vm249, %v7708, 0
    %v7752 = vsel %vm249, %v7709, 0
    %7754 = vmatprep.subr.bf16.mxu0 0
    %7755 = vmatpush1.bf16.msra.mxu0 %v7726
    %7756 = vmatprep.subr.bf16.mxu0 0
    %7757 = vmatpush1.bf16.msra.mxu0 %v7727
    %7758 = vmatprep.subr.bf16.mxu0 0
    %7759 = vmatpush1.bf16.msra.mxu0 0
    %7760 = vmatprep.subr.bf16.mxu0 0
    %7761 = vmatpush1.bf16.msra.mxu0 0
    %7762 = vmatprep.subr.bf16.mxu0 0
    %7763 = vmatpush1.bf16.msra.mxu0 0
    %7764 = vmatprep.subr.bf16.mxu0 0
    %7765 = vmatpush1.bf16.msra.mxu0 0
    %7766 = vmatprep.subr.bf16.mxu0 0
    %7767 = vmatpush1.bf16.msra.mxu0 0
    %7768 = vmatprep.subr.bf16.mxu0 0
    %7769 = vmatpush1.bf16.msra.mxu0 0
    %7770 = vmatprep.subr.bf16.mxu0 0
    %7771 = vmatpush1.bf16.msra.mxu0 0
    %7772 = vmatprep.subr.bf16.mxu0 0
    %7773 = vmatpush1.bf16.msra.mxu0 0
    %7774 = vmatprep.subr.bf16.mxu0 0
    %7775 = vmatpush1.bf16.msra.mxu0 0
    %7776 = vmatprep.subr.bf16.mxu0 0
    %7777 = vmatpush1.bf16.msra.mxu0 0
    %7778 = vmatprep.subr.bf16.mxu0 0
    %7779 = vmatpush1.bf16.msra.mxu0 0
    %7780 = vmatprep.subr.bf16.mxu0 0
    %7781 = vmatpush1.bf16.msra.mxu0 0
    %7782 = vmatprep.subr.bf16.mxu0 0
    %7783 = vmatpush1.bf16.msra.mxu0 0
    %7784 = vmatprep.subr.bf16.mxu0 0
    %7785 = vmatpush1.bf16.msra.mxu0 0
    %7786 = vmatprep.mubr.bf16.mxu0 0
    %7787 = vmatmul.mubr.bf16.gmra.mrb[0].mxu0 %v7731
    %v7788 = vpop.f32.mrb[0].mxu0
    %v7789 = vadd.f32 %v7717, %v7788
    %v7790 = vpop.f32.mrb[0].mxu0
    %v7791 = vpop.f32.mrb[0].mxu0
    %v7792 = vadd.f32 %v7717, %v7791
    %v7793 = vpop.f32.mrb[0].mxu0
    %7794 = vmatprep.mubr.bf16.mxu0 0
    %7795 = vmatmul.mubr.bf16.gmra.mrb[0].mxu0 %v7734
    %v7796 = vpop.f32.mrb[0].mxu0
    %v7797 = vadd.f32 %v7717, %v7796
    %v7798 = vpop.f32.mrb[0].mxu0
    %v7799 = vpop.f32.mrb[0].mxu0
    %v7800 = vadd.f32 %v7717, %v7799
    %v7801 = vpop.f32.mrb[0].mxu0
    %7802 = vmatprep.mubr.bf16.mxu0 0
    %7803 = vmatmul.mubr.bf16.gmra.mrb[0].mxu0 %v7737
    %v7804 = vpop.f32.mrb[0].mxu0
    %v7805 = vadd.f32 %v7717, %v7804
    %v7806 = vpop.f32.mrb[0].mxu0
    %v7807 = vpop.f32.mrb[0].mxu0
    %v7808 = vadd.f32 %v7717, %v7807
    %v7809 = vpop.f32.mrb[0].mxu0
    %7810 = vmatprep.mubr.bf16.mxu0 0
    %7811 = vmatmul.mubr.bf16.gmra.mrb[0].mxu0 %v7740
    %v7812 = vpop.f32.mrb[0].mxu0
    %v7813 = vadd.f32 %v7717, %v7812
    %v7814 = vpop.f32.mrb[0].mxu0
    %v7815 = vpop.f32.mrb[0].mxu0
    %v7816 = vadd.f32 %v7717, %v7815
    %v7817 = vpop.f32.mrb[0].mxu0
    %7818 = vmatprep.mubr.bf16.mxu0 0
    %7819 = vmatmul.mubr.bf16.gmra.mrb[0].mxu0 %v7743
    %v7820 = vpop.f32.mrb[0].mxu0
    %v7821 = vadd.f32 %v7717, %v7820
    %v7822 = vpop.f32.mrb[0].mxu0
    %v7823 = vpop.f32.mrb[0].mxu0
    %v7824 = vadd.f32 %v7717, %v7823
    %v7825 = vpop.f32.mrb[0].mxu0
    %7826 = vmatprep.mubr.bf16.mxu0 0
    %7827 = vmatmul.mubr.bf16.gmra.mrb[0].mxu0 %v7746
    %v7828 = vpop.f32.mrb[0].mxu0
    %v7829 = vadd.f32 %v7717, %v7828
    %v7830 = vpop.f32.mrb[0].mxu0
    %v7831 = vpop.f32.mrb[0].mxu0
    %v7832 = vadd.f32 %v7717, %v7831
    %v7833 = vpop.f32.mrb[0].mxu0
    %7834 = vmatprep.mubr.bf16.mxu0 0
    %7835 = vmatmul.mubr.bf16.gmra.mrb[0].mxu0 %v7749
    %v7836 = vpop.f32.mrb[0].mxu0
    %v7837 = vadd.f32 %v7717, %v7836
    %v7838 = vpop.f32.mrb[0].mxu0
    %v7839 = vpop.f32.mrb[0].mxu0
    %v7840 = vadd.f32 %v7717, %v7839
    %v7841 = vpop.f32.mrb[0].mxu0
    %7842 = vmatprep.mubr.bf16.mxu0 0
    %7843 = vmatmul.mubr.bf16.gmra.mrb[0].mxu0 %v7752
    %v7844 = vpop.f32.mrb[0].mxu0
    %v7845 = vadd.f32 %v7717, %v7844
    %v7846 = vpop.f32.mrb[0].mxu0
    %v7847 = vpop.f32.mrb[0].mxu0
    %v7848 = vadd.f32 %v7717, %v7847
    %v7849 = vpop.f32.mrb[0].mxu0
    %7850 = vdwg.mxu0
    %v7851 = vadd.f32 %v156, %v7789
    %v7852 = vadd.f32 %v159, %v7792
    %v7853 = vadd.f32 %v164, %v7797
    %v7854 = vadd.f32 %v167, %v7800
    %v7855 = vadd.f32 %v172, %v7805
    %v7856 = vadd.f32 %v175, %v7808
    %v7857 = vadd.f32 %v180, %v7813
    %v7858 = vadd.f32 %v183, %v7816
    %v7859 = vadd.f32 %v188, %v7821
    %v7860 = vadd.f32 %v191, %v7824
    %v7861 = vadd.f32 %v196, %v7829
    %v7862 = vadd.f32 %v199, %v7832
    %v7863 = vadd.f32 %v204, %v7837
    %v7864 = vadd.f32 %v207, %v7840
    %v7865 = vadd.f32 %v212, %v7845
    %v7866 = vadd.f32 %v215, %v7848
    %v7867 = vsel %vm249, %v7851, 0.0
    %7868 = vadd.xlane.f32.xlu0 %v7867
    %v7869 = vpop.xlane.xlu0 %7868
    %v7870 = vsel %vm249, %v7852, 0.0
    %7871 = vadd.xlane.f32.xlu0 %v7870
    %v7872 = vpop.xlane.xlu0 %7871
    %v7873 = vsel %vm249, %v7853, 0.0
    %7874 = vadd.xlane.f32.xlu0 %v7873
    %v7875 = vpop.xlane.xlu0 %7874
    %v7876 = vsel %vm249, %v7854, 0.0
    %7877 = vadd.xlane.f32.xlu0 %v7876
    %v7878 = vpop.xlane.xlu0 %7877
    %v7879 = vsel %vm249, %v7855, 0.0
    %7880 = vadd.xlane.f32.xlu0 %v7879
    %v7881 = vpop.xlane.xlu0 %7880
    %v7882 = vsel %vm249, %v7856, 0.0
    %7883 = vadd.xlane.f32.xlu0 %v7882
    %v7884 = vpop.xlane.xlu0 %7883
    %v7885 = vsel %vm249, %v7857, 0.0
    %7886 = vadd.xlane.f32.xlu0 %v7885
    %v7887 = vpop.xlane.xlu0 %7886
    %v7888 = vsel %vm249, %v7858, 0.0
    %7889 = vadd.xlane.f32.xlu0 %v7888
    %v7890 = vpop.xlane.xlu0 %7889
    %v7891 = vsel %vm249, %v7859, 0.0
    %7892 = vadd.xlane.f32.xlu0 %v7891
    %v7893 = vpop.xlane.xlu0 %7892
    %v7894 = vsel %vm249, %v7860, 0.0
    %7895 = vadd.xlane.f32.xlu0 %v7894
    %v7896 = vpop.xlane.xlu0 %7895
    %v7897 = vsel %vm249, %v7861, 0.0
    %7898 = vadd.xlane.f32.xlu0 %v7897
    %v7899 = vpop.xlane.xlu0 %7898
    %v7900 = vsel %vm249, %v7862, 0.0
    %7901 = vadd.xlane.f32.xlu0 %v7900
    %v7902 = vpop.xlane.xlu0 %7901
    %v7903 = vsel %vm249, %v7863, 0.0
    %7904 = vadd.xlane.f32.xlu0 %v7903
    %v7905 = vpop.xlane.xlu0 %7904
    %v7906 = vsel %vm249, %v7864, 0.0
    %7907 = vadd.xlane.f32.xlu0 %v7906
    %v7908 = vpop.xlane.xlu0 %7907
    %v7909 = vsel %vm249, %v7865, 0.0
    %7910 = vadd.xlane.f32.xlu0 %v7909
    %v7911 = vpop.xlane.xlu0 %7910
    %v7912 = vsel %vm249, %v7866, 0.0
    %7913 = vadd.xlane.f32.xlu0 %v7912
    %v7914 = vpop.xlane.xlu0 %7913
    %v7915 = vrcp.pop 32.0
    %v7916 = vmul.f32 %v7869, %v7915
    %v7917 = vmul.f32 %v7872, %v7915
    %v7918 = vmul.f32 %v7875, %v7915
    %v7919 = vmul.f32 %v7878, %v7915
    %v7920 = vmul.f32 %v7881, %v7915
    %v7921 = vmul.f32 %v7884, %v7915
    %v7922 = vmul.f32 %v7887, %v7915
    %v7923 = vmul.f32 %v7890, %v7915
    %v7924 = vmul.f32 %v7893, %v7915
    %v7925 = vmul.f32 %v7896, %v7915
    %v7926 = vmul.f32 %v7899, %v7915
    %v7927 = vmul.f32 %v7902, %v7915
    %v7928 = vmul.f32 %v7905, %v7915
    %v7929 = vmul.f32 %v7908, %v7915
    %v7930 = vmul.f32 %v7911, %v7915
    %v7931 = vmul.f32 %v7914, %v7915
    %v7932 = vsub.f32 %v7851, %v7916
    %v7933 = vsub.f32 %v7852, %v7917
    %v7934 = vsub.f32 %v7853, %v7918
    %v7935 = vsub.f32 %v7854, %v7919
    %v7936 = vsub.f32 %v7855, %v7920
    %v7937 = vsub.f32 %v7856, %v7921
    %v7938 = vsub.f32 %v7857, %v7922
    %v7939 = vsub.f32 %v7858, %v7923
    %v7940 = vsub.f32 %v7859, %v7924
    %v7941 = vsub.f32 %v7860, %v7925
    %v7942 = vsub.f32 %v7861, %v7926
    %v7943 = vsub.f32 %v7862, %v7927
    %v7944 = vsub.f32 %v7863, %v7928
    %v7945 = vsub.f32 %v7864, %v7929
    %v7946 = vsub.f32 %v7865, %v7930
    %v7947 = vsub.f32 %v7866, %v7931
    %v7948 = vmul.f32 %v7932, %v7932
    %v7949 = vmul.f32 %v7933, %v7933
    %v7950 = vmul.f32 %v7934, %v7934
    %v7951 = vmul.f32 %v7935, %v7935
    %v7952 = vmul.f32 %v7936, %v7936
    %v7953 = vmul.f32 %v7937, %v7937
    %v7954 = vmul.f32 %v7938, %v7938
    %v7955 = vmul.f32 %v7939, %v7939
    %v7956 = vmul.f32 %v7940, %v7940
    %v7957 = vmul.f32 %v7941, %v7941
    %v7958 = vmul.f32 %v7942, %v7942
    %v7959 = vmul.f32 %v7943, %v7943
    %v7960 = vmul.f32 %v7944, %v7944
    %v7961 = vmul.f32 %v7945, %v7945
    %v7962 = vmul.f32 %v7946, %v7946
    %v7963 = vmul.f32 %v7947, %v7947
    %v7964 = vsel %vm249, %v7948, 0.0
    %7965 = vadd.xlane.f32.xlu0 %v7964
    %v7966 = vpop.xlane.xlu0 %7965
    %v7967 = vsel %vm249, %v7949, 0.0
    %7968 = vadd.xlane.f32.xlu0 %v7967
    %v7969 = vpop.xlane.xlu0 %7968
    %v7970 = vsel %vm249, %v7950, 0.0
    %7971 = vadd.xlane.f32.xlu0 %v7970
    %v7972 = vpop.xlane.xlu0 %7971
    %v7973 = vsel %vm249, %v7951, 0.0
    %7974 = vadd.xlane.f32.xlu0 %v7973
    %v7975 = vpop.xlane.xlu0 %7974
    %v7976 = vsel %vm249, %v7952, 0.0
    %7977 = vadd.xlane.f32.xlu0 %v7976
    %v7978 = vpop.xlane.xlu0 %7977
    %v7979 = vsel %vm249, %v7953, 0.0
    %7980 = vadd.xlane.f32.xlu0 %v7979
    %v7981 = vpop.xlane.xlu0 %7980
    %v7982 = vsel %vm249, %v7954, 0.0
    %7983 = vadd.xlane.f32.xlu0 %v7982
    %v7984 = vpop.xlane.xlu0 %7983
    %v7985 = vsel %vm249, %v7955, 0.0
    %7986 = vadd.xlane.f32.xlu0 %v7985
    %v7987 = vpop.xlane.xlu0 %7986
    %v7988 = vsel %vm249, %v7956, 0.0
    %7989 = vadd.xlane.f32.xlu0 %v7988
    %v7990 = vpop.xlane.xlu0 %7989
    %v7991 = vsel %vm249, %v7957, 0.0
    %7992 = vadd.xlane.f32.xlu0 %v7991
    %v7993 = vpop.xlane.xlu0 %7992
    %v7994 = vsel %vm249, %v7958, 0.0
    %7995 = vadd.xlane.f32.xlu0 %v7994
    %v7996 = vpop.xlane.xlu0 %7995
    %v7997 = vsel %vm249, %v7959, 0.0
    %7998 = vadd.xlane.f32.xlu0 %v7997
    %v7999 = vpop.xlane.xlu0 %7998
    %v8000 = vsel %vm249, %v7960, 0.0
    %8001 = vadd.xlane.f32.xlu0 %v8000
    %v8002 = vpop.xlane.xlu0 %8001
    %v8003 = vsel %vm249, %v7961, 0.0
    %8004 = vadd.xlane.f32.xlu0 %v8003
    %v8005 = vpop.xlane.xlu0 %8004
    %v8006 = vsel %vm249, %v7962, 0.0
    %8007 = vadd.xlane.f32.xlu0 %v8006
    %v8008 = vpop.xlane.xlu0 %8007
    %v8009 = vsel %vm249, %v7963, 0.0
    %8010 = vadd.xlane.f32.xlu0 %v8009
    %v8011 = vpop.xlane.xlu0 %8010
    %v8012 = vmul.f32 %v7966, %v7915
    %v8013 = vmul.f32 %v7969, %v7915
    %v8014 = vmul.f32 %v7972, %v7915
    %v8015 = vmul.f32 %v7975, %v7915
    %v8016 = vmul.f32 %v7978, %v7915
    %v8017 = vmul.f32 %v7981, %v7915
    %v8018 = vmul.f32 %v7984, %v7915
    %v8019 = vmul.f32 %v7987, %v7915
    %v8020 = vmul.f32 %v7990, %v7915
    %v8021 = vmul.f32 %v7993, %v7915
    %v8022 = vmul.f32 %v7996, %v7915
    %v8023 = vmul.f32 %v7999, %v7915
    %v8024 = vmul.f32 %v8002, %v7915
    %v8025 = vmul.f32 %v8005, %v7915
    %v8026 = vmul.f32 %v8008, %v7915
    %v8027 = vmul.f32 %v8011, %v7915
    %v8028 = vadd.f32 %v8012, 1e-05
    %v8029 = vadd.f32 %v8013, 1e-05
    %v8030 = vadd.f32 %v8014, 1e-05
    %v8031 = vadd.f32 %v8015, 1e-05
    %v8032 = vadd.f32 %v8016, 1e-05
    %v8033 = vadd.f32 %v8017, 1e-05
    %v8034 = vadd.f32 %v8018, 1e-05
    %v8035 = vadd.f32 %v8019, 1e-05
    %v8036 = vadd.f32 %v8020, 1e-05
    %v8037 = vadd.f32 %v8021, 1e-05
    %v8038 = vadd.f32 %v8022, 1e-05
    %v8039 = vadd.f32 %v8023, 1e-05
    %v8040 = vadd.f32 %v8024, 1e-05
    %v8041 = vadd.f32 %v8025, 1e-05
    %v8042 = vadd.f32 %v8026, 1e-05
    %v8043 = vadd.f32 %v8027, 1e-05
    %v8044 = vrsqrt.pop %v8028
    %v8045 = vrsqrt.pop %v8029
    %v8046 = vrsqrt.pop %v8030
    %v8047 = vrsqrt.pop %v8031
    %v8048 = vrsqrt.pop %v8032
    %v8049 = vrsqrt.pop %v8033
    %v8050 = vrsqrt.pop %v8034
    %v8051 = vrsqrt.pop %v8035
    %v8052 = vrsqrt.pop %v8036
    %v8053 = vrsqrt.pop %v8037
    %v8054 = vrsqrt.pop %v8038
    %v8055 = vrsqrt.pop %v8039
    %v8056 = vrsqrt.pop %v8040
    %v8057 = vrsqrt.pop %v8041
    %v8058 = vrsqrt.pop %v8042
    %v8059 = vrsqrt.pop %v8043
    %v8060 = vmul.f32 %v7932, %v8044
    %v8061 = vmul.f32 %v7933, %v8045
    %v8062 = vmul.f32 %v7934, %v8046
    %v8063 = vmul.f32 %v7935, %v8047
    %v8064 = vmul.f32 %v7936, %v8048
    %v8065 = vmul.f32 %v7937, %v8049
    %v8066 = vmul.f32 %v7938, %v8050
    %v8067 = vmul.f32 %v7939, %v8051
    %v8068 = vmul.f32 %v7940, %v8052
    %v8069 = vmul.f32 %v7941, %v8053
    %v8070 = vmul.f32 %v7942, %v8054
    %v8071 = vmul.f32 %v7943, %v8055
    %v8072 = vmul.f32 %v7944, %v8056
    %v8073 = vmul.f32 %v7945, %v8057
    %v8074 = vmul.f32 %v7946, %v8058
    %v8075 = vmul.f32 %v7947, %v8059
    %v8076 = vlaneseq
    %v8077 = vshrl.u32 %v8076, 7
    %v8078 = vsub.s32 2, %v8077
    %v8079 = vrot.slane %v43, %v8078
    %v8080 = vmul.f32 %v8060, %v8079
    %v8081 = vmul.f32 %v8061, %v8079
    %v8082 = vmul.f32 %v8062, %v8079
    %v8083 = vmul.f32 %v8063, %v8079
    %v8084 = vmul.f32 %v8064, %v8079
    %v8085 = vmul.f32 %v8065, %v8079
    %v8086 = vmul.f32 %v8066, %v8079
    %v8087 = vmul.f32 %v8067, %v8079
    %v8088 = vmul.f32 %v8068, %v8079
    %v8089 = vmul.f32 %v8069, %v8079
    %v8090 = vmul.f32 %v8070, %v8079
    %v8091 = vmul.f32 %v8071, %v8079
    %v8092 = vmul.f32 %v8072, %v8079
    %v8093 = vmul.f32 %v8073, %v8079
    %v8094 = vmul.f32 %v8074, %v8079
    %v8095 = vmul.f32 %v8075, %v8079
    %v8096 = vlaneseq
    %v8097 = vshrl.u32 %v8096, 7
    %v8098 = vsub.s32 3, %v8097
    %v8099 = vrot.slane %v43, %v8098
    %v8100 = vadd.f32 %v8080, %v8099
    %v8101 = vadd.f32 %v8081, %v8099
    %v8102 = vadd.f32 %v8082, %v8099
    %v8103 = vadd.f32 %v8083, %v8099
    %v8104 = vadd.f32 %v8084, %v8099
    %v8105 = vadd.f32 %v8085, %v8099
    %v8106 = vadd.f32 %v8086, %v8099
    %v8107 = vadd.f32 %v8087, %v8099
    %v8108 = vadd.f32 %v8088, %v8099
    %v8109 = vadd.f32 %v8089, %v8099
    %v8110 = vadd.f32 %v8090, %v8099
    %v8111 = vadd.f32 %v8091, %v8099
    %v8112 = vadd.f32 %v8092, %v8099
    %v8113 = vadd.f32 %v8093, %v8099
    %v8114 = vadd.f32 %v8094, %v8099
    %v8115 = vadd.f32 %v8095, %v8099
    %v8116 = vpack.c.bf16 %v8101, %v8100
    %v8117 = vpack.c.bf16 %v8103, %v8102
    %v8118 = vpack.c.bf16 %v8105, %v8104
    %v8119 = vpack.c.bf16 %v8107, %v8106
    %v8120 = vpack.c.bf16 %v8109, %v8108
    %v8121 = vpack.c.bf16 %v8111, %v8110
    %v8122 = vpack.c.bf16 %v8113, %v8112
    %v8123 = vpack.c.bf16 %v8115, %v8114
    %v8124 = vld [vmem:[%s6] sm:$0xf]
    %v8125 = vld [vmem:[%s6 + $0x4] sm:$0xf]
    %v8126 = vld [vmem:[%s6 + $0x8] sm:$0xf]
    %v8127 = vld [vmem:[%s6 + $0xc] sm:$0xf]
    %v8128 = vld [vmem:[%s7] sm:$0x1]
    %v8130 = vlaneseq
    %v8131 = vshrl.u32 %v8130, 7
    %v8132 = vsub.s32 0, %v8131
    %v8133 = vrot.slane %v8128, %v8132
    %v8139 = vunpack.c.l.b16 %v8124
    %v8140 = vunpack.c.l.b16 %v8125
    %v8141 = vunpack.c.l.b16 %v8126
    %v8142 = vunpack.c.l.b16 %v8127
    %v8143 = vpack.c.b16 %v8140, %v8139
    %v8144 = vpack.c.b16 %v8142, %v8141
    %v8148 = vsel %vm249, %v8116, 0
    %v8151 = vsel %vm249, %v8117, 0
    %v8154 = vsel %vm249, %v8118, 0
    %v8157 = vsel %vm249, %v8119, 0
    %v8160 = vsel %vm249, %v8120, 0
    %v8163 = vsel %vm249, %v8121, 0
    %v8166 = vsel %vm249, %v8122, 0
    %v8169 = vsel %vm249, %v8123, 0
    %8171 = vmatprep.subr.bf16.mxu0 0
    %8172 = vmatpush1.bf16.msra.mxu0 %v8143
    %8173 = vmatprep.subr.bf16.mxu0 0
    %8174 = vmatpush1.bf16.msra.mxu0 %v8144
    %8175 = vmatprep.subr.bf16.mxu0 0
    %8176 = vmatpush1.bf16.msra.mxu0 0
    %8177 = vmatprep.subr.bf16.mxu0 0
    %8178 = vmatpush1.bf16.msra.mxu0 0
    %8179 = vmatprep.subr.bf16.mxu0 0
    %8180 = vmatpush1.bf16.msra.mxu0 0
    %8181 = vmatprep.subr.bf16.mxu0 0
    %8182 = vmatpush1.bf16.msra.mxu0 0
    %8183 = vmatprep.subr.bf16.mxu0 0
    %8184 = vmatpush1.bf16.msra.mxu0 0
    %8185 = vmatprep.subr.bf16.mxu0 0
    %8186 = vmatpush1.bf16.msra.mxu0 0
    %8187 = vmatprep.subr.bf16.mxu0 0
    %8188 = vmatpush1.bf16.msra.mxu0 0
    %8189 = vmatprep.subr.bf16.mxu0 0
    %8190 = vmatpush1.bf16.msra.mxu0 0
    %8191 = vmatprep.subr.bf16.mxu0 0
    %8192 = vmatpush1.bf16.msra.mxu0 0
    %8193 = vmatprep.subr.bf16.mxu0 0
    %8194 = vmatpush1.bf16.msra.mxu0 0
    %8195 = vmatprep.subr.bf16.mxu0 0
    %8196 = vmatpush1.bf16.msra.mxu0 0
    %8197 = vmatprep.subr.bf16.mxu0 0
    %8198 = vmatpush1.bf16.msra.mxu0 0
    %8199 = vmatprep.subr.bf16.mxu0 0
    %8200 = vmatpush1.bf16.msra.mxu0 0
    %8201 = vmatprep.subr.bf16.mxu0 0
    %8202 = vmatpush1.bf16.msra.mxu0 0
    %8203 = vmatprep.mubr.bf16.mxu0 0
    %8204 = vmatmul.mubr.bf16.gmra.mrb[0].mxu0 %v8148
    %v8205 = vpop.f32.mrb[0].mxu0
    %v8206 = vadd.f32 %v8133, %v8205
    %v8207 = vpop.f32.mrb[0].mxu0
    %v8208 = vpop.f32.mrb[0].mxu0
    %v8209 = vadd.f32 %v8133, %v8208
    %v8210 = vpop.f32.mrb[0].mxu0
    %8211 = vmatprep.mubr.bf16.mxu0 0
    %8212 = vmatmul.mubr.bf16.gmra.mrb[0].mxu0 %v8151
    %v8213 = vpop.f32.mrb[0].mxu0
    %v8214 = vadd.f32 %v8133, %v8213
    %v8215 = vpop.f32.mrb[0].mxu0
    %v8216 = vpop.f32.mrb[0].mxu0
    %v8217 = vadd.f32 %v8133, %v8216
    %v8218 = vpop.f32.mrb[0].mxu0
    %8219 = vmatprep.mubr.bf16.mxu0 0
    %8220 = vmatmul.mubr.bf16.gmra.mrb[0].mxu0 %v8154
    %v8221 = vpop.f32.mrb[0].mxu0
    %v8222 = vadd.f32 %v8133, %v8221
    %v8223 = vpop.f32.mrb[0].mxu0
    %v8224 = vpop.f32.mrb[0].mxu0
    %v8225 = vadd.f32 %v8133, %v8224
    %v8226 = vpop.f32.mrb[0].mxu0
    %8227 = vmatprep.mubr.bf16.mxu0 0
    %8228 = vmatmul.mubr.bf16.gmra.mrb[0].mxu0 %v8157
    %v8229 = vpop.f32.mrb[0].mxu0
    %v8230 = vadd.f32 %v8133, %v8229
    %v8231 = vpop.f32.mrb[0].mxu0
    %v8232 = vpop.f32.mrb[0].mxu0
    %v8233 = vadd.f32 %v8133, %v8232
    %v8234 = vpop.f32.mrb[0].mxu0
    %8235 = vmatprep.mubr.bf16.mxu0 0
    %8236 = vmatmul.mubr.bf16.gmra.mrb[0].mxu0 %v8160
    %v8237 = vpop.f32.mrb[0].mxu0
    %v8238 = vadd.f32 %v8133, %v8237
    %v8239 = vpop.f32.mrb[0].mxu0
    %v8240 = vpop.f32.mrb[0].mxu0
    %v8241 = vadd.f32 %v8133, %v8240
    %v8242 = vpop.f32.mrb[0].mxu0
    %8243 = vmatprep.mubr.bf16.mxu0 0
    %8244 = vmatmul.mubr.bf16.gmra.mrb[0].mxu0 %v8163
    %v8245 = vpop.f32.mrb[0].mxu0
    %v8246 = vadd.f32 %v8133, %v8245
    %v8247 = vpop.f32.mrb[0].mxu0
    %v8248 = vpop.f32.mrb[0].mxu0
    %v8249 = vadd.f32 %v8133, %v8248
    %v8250 = vpop.f32.mrb[0].mxu0
    %8251 = vmatprep.mubr.bf16.mxu0 0
    %8252 = vmatmul.mubr.bf16.gmra.mrb[0].mxu0 %v8166
    %v8253 = vpop.f32.mrb[0].mxu0
    %v8254 = vadd.f32 %v8133, %v8253
    %v8255 = vpop.f32.mrb[0].mxu0
    %v8256 = vpop.f32.mrb[0].mxu0
    %v8257 = vadd.f32 %v8133, %v8256
    %v8258 = vpop.f32.mrb[0].mxu0
    %8259 = vmatprep.mubr.bf16.mxu0 0
    %8260 = vmatmul.mubr.bf16.gmra.mrb[0].mxu0 %v8169
    %v8261 = vpop.f32.mrb[0].mxu0
    %v8262 = vadd.f32 %v8133, %v8261
    %v8263 = vpop.f32.mrb[0].mxu0
    %v8264 = vpop.f32.mrb[0].mxu0
    %v8265 = vadd.f32 %v8133, %v8264
    %v8266 = vpop.f32.mrb[0].mxu0
    %8267 = vdwg.mxu0
    %v8268 = vmax.f32 %v8206, 0.0
    %v8269 = vmax.f32 %v8209, 0.0
    %v8270 = vmax.f32 %v8214, 0.0
    %v8271 = vmax.f32 %v8217, 0.0
    %v8272 = vmax.f32 %v8222, 0.0
    %v8273 = vmax.f32 %v8225, 0.0
    %v8274 = vmax.f32 %v8230, 0.0
    %v8275 = vmax.f32 %v8233, 0.0
    %v8276 = vmax.f32 %v8238, 0.0
    %v8277 = vmax.f32 %v8241, 0.0
    %v8278 = vmax.f32 %v8246, 0.0
    %v8279 = vmax.f32 %v8249, 0.0
    %v8280 = vmax.f32 %v8254, 0.0
    %v8281 = vmax.f32 %v8257, 0.0
    %v8282 = vmax.f32 %v8262, 0.0
    %v8283 = vmax.f32 %v8265, 0.0
    %v8284 = vpack.c.bf16 %v8269, %v8268
    %v8285 = vpack.c.bf16 %v8271, %v8270
    %v8286 = vpack.c.bf16 %v8273, %v8272
    %v8287 = vpack.c.bf16 %v8275, %v8274
    %v8288 = vpack.c.bf16 %v8277, %v8276
    %v8289 = vpack.c.bf16 %v8279, %v8278
    %v8290 = vpack.c.bf16 %v8281, %v8280
    %v8291 = vpack.c.bf16 %v8283, %v8282
    %v8292 = vld [vmem:[%s8] sm:$0xf]
    %v8293 = vld [vmem:[%s8 + $0x4] sm:$0xf]
    %v8294 = vld [vmem:[%s8 + $0x8] sm:$0xf]
    %v8295 = vld [vmem:[%s8 + $0xc] sm:$0xf]
    %v8296 = vld [vmem:[%s8 + $0x10] sm:$0xf]
    %v8297 = vld [vmem:[%s8 + $0x14] sm:$0xf]
    %v8298 = vld [vmem:[%s8 + $0x18] sm:$0xf]
    %v8299 = vld [vmem:[%s8 + $0x1c] sm:$0xf]
    %v8300 = vlaneseq
    %v8301 = vshrl.u32 %v8300, 7
    %v8302 = vsub.s32 4, %v8301
    %v8303 = vrot.slane %v43, %v8302
    %v8312 = vunpack.c.l.b16 %v8292
    %v8313 = vunpack.c.l.b16 %v8293
    %v8314 = vunpack.c.l.b16 %v8294
    %v8315 = vunpack.c.l.b16 %v8295
    %v8316 = vunpack.c.l.b16 %v8296
    %v8317 = vunpack.c.l.b16 %v8297
    %v8318 = vunpack.c.l.b16 %v8298
    %v8319 = vunpack.c.l.b16 %v8299
    %v8320 = vpack.c.b16 %v8313, %v8312
    %v8321 = vpack.c.b16 %v8315, %v8314
    %v8322 = vpack.c.b16 %v8317, %v8316
    %v8323 = vpack.c.b16 %v8319, %v8318
    %vm8328 = vcmask 523264
    %v8330 = vsel %vm8328, %v8284, 0
    %v8333 = vsel %vm8328, %v8285, 0
    %v8336 = vsel %vm8328, %v8286, 0
    %v8339 = vsel %vm8328, %v8287, 0
    %v8342 = vsel %vm8328, %v8288, 0
    %v8345 = vsel %vm8328, %v8289, 0
    %v8348 = vsel %vm8328, %v8290, 0
    %v8351 = vsel %vm8328, %v8291, 0
    %8353 = vmatprep.subr.bf16.mxu0 0
    %8354 = vmatpush1.bf16.msra.mxu0 %v8320
    %8355 = vmatprep.subr.bf16.mxu0 0
    %8356 = vmatpush1.bf16.msra.mxu0 %v8321
    %8357 = vmatprep.subr.bf16.mxu0 0
    %8358 = vmatpush1.bf16.msra.mxu0 %v8322
    %8359 = vmatprep.subr.bf16.mxu0 0
    %8360 = vmatpush1.bf16.msra.mxu0 %v8323
    %8361 = vmatprep.subr.bf16.mxu0 0
    %8362 = vmatpush1.bf16.msra.mxu0 0
    %8363 = vmatprep.subr.bf16.mxu0 0
    %8364 = vmatpush1.bf16.msra.mxu0 0
    %8365 = vmatprep.subr.bf16.mxu0 0
    %8366 = vmatpush1.bf16.msra.mxu0 0
    %8367 = vmatprep.subr.bf16.mxu0 0
    %8368 = vmatpush1.bf16.msra.mxu0 0
    %8369 = vmatprep.subr.bf16.mxu0 0
    %8370 = vmatpush1.bf16.msra.mxu0 0
    %8371 = vmatprep.subr.bf16.mxu0 0
    %8372 = vmatpush1.bf16.msra.mxu0 0
    %8373 = vmatprep.subr.bf16.mxu0 0
    %8374 = vmatpush1.bf16.msra.mxu0 0
    %8375 = vmatprep.subr.bf16.mxu0 0
    %8376 = vmatpush1.bf16.msra.mxu0 0
    %8377 = vmatprep.subr.bf16.mxu0 0
    %8378 = vmatpush1.bf16.msra.mxu0 0
    %8379 = vmatprep.subr.bf16.mxu0 0
    %8380 = vmatpush1.bf16.msra.mxu0 0
    %8381 = vmatprep.subr.bf16.mxu0 0
    %8382 = vmatpush1.bf16.msra.mxu0 0
    %8383 = vmatprep.subr.bf16.mxu0 0
    %8384 = vmatpush1.bf16.msra.mxu0 0
    %8385 = vmatprep.mubr.bf16.mxu0 0
    %8386 = vmatmul.mubr.bf16.gmra.mrb[0].mxu0 %v8330
    %v8387 = vpop.f32.mrb[0].mxu0
    %v8388 = vadd.f32 %v8303, %v8387
    %v8389 = vpop.f32.mrb[0].mxu0
    %v8390 = vpop.f32.mrb[0].mxu0
    %v8391 = vadd.f32 %v8303, %v8390
    %v8392 = vpop.f32.mrb[0].mxu0
    %8393 = vmatprep.mubr.bf16.mxu0 0
    %8394 = vmatmul.mubr.bf16.gmra.mrb[0].mxu0 %v8333
    %v8395 = vpop.f32.mrb[0].mxu0
    %v8396 = vadd.f32 %v8303, %v8395
    %v8397 = vpop.f32.mrb[0].mxu0
    %v8398 = vpop.f32.mrb[0].mxu0
    %v8399 = vadd.f32 %v8303, %v8398
    %v8400 = vpop.f32.mrb[0].mxu0
    %8401 = vmatprep.mubr.bf16.mxu0 0
    %8402 = vmatmul.mubr.bf16.gmra.mrb[0].mxu0 %v8336
    %v8403 = vpop.f32.mrb[0].mxu0
    %v8404 = vadd.f32 %v8303, %v8403
    %v8405 = vpop.f32.mrb[0].mxu0
    %v8406 = vpop.f32.mrb[0].mxu0
    %v8407 = vadd.f32 %v8303, %v8406
    %v8408 = vpop.f32.mrb[0].mxu0
    %8409 = vmatprep.mubr.bf16.mxu0 0
    %8410 = vmatmul.mubr.bf16.gmra.mrb[0].mxu0 %v8339
    %v8411 = vpop.f32.mrb[0].mxu0
    %v8412 = vadd.f32 %v8303, %v8411
    %v8413 = vpop.f32.mrb[0].mxu0
    %v8414 = vpop.f32.mrb[0].mxu0
    %v8415 = vadd.f32 %v8303, %v8414
    %v8416 = vpop.f32.mrb[0].mxu0
    %8417 = vmatprep.mubr.bf16.mxu0 0
    %8418 = vmatmul.mubr.bf16.gmra.mrb[0].mxu0 %v8342
    %v8419 = vpop.f32.mrb[0].mxu0
    %v8420 = vadd.f32 %v8303, %v8419
    %v8421 = vpop.f32.mrb[0].mxu0
    %v8422 = vpop.f32.mrb[0].mxu0
    %v8423 = vadd.f32 %v8303, %v8422
    %v8424 = vpop.f32.mrb[0].mxu0
    %8425 = vmatprep.mubr.bf16.mxu0 0
    %8426 = vmatmul.mubr.bf16.gmra.mrb[0].mxu0 %v8345
    %v8427 = vpop.f32.mrb[0].mxu0
    %v8428 = vadd.f32 %v8303, %v8427
    %v8429 = vpop.f32.mrb[0].mxu0
    %v8430 = vpop.f32.mrb[0].mxu0
    %v8431 = vadd.f32 %v8303, %v8430
    %v8432 = vpop.f32.mrb[0].mxu0
    %8433 = vmatprep.mubr.bf16.mxu0 0
    %8434 = vmatmul.mubr.bf16.gmra.mrb[0].mxu0 %v8348
    %v8435 = vpop.f32.mrb[0].mxu0
    %v8436 = vadd.f32 %v8303, %v8435
    %v8437 = vpop.f32.mrb[0].mxu0
    %v8438 = vpop.f32.mrb[0].mxu0
    %v8439 = vadd.f32 %v8303, %v8438
    %v8440 = vpop.f32.mrb[0].mxu0
    %8441 = vmatprep.mubr.bf16.mxu0 0
    %8442 = vmatmul.mubr.bf16.gmra.mrb[0].mxu0 %v8351
    %v8443 = vpop.f32.mrb[0].mxu0
    %v8444 = vadd.f32 %v8303, %v8443
    %v8445 = vpop.f32.mrb[0].mxu0
    %v8446 = vpop.f32.mrb[0].mxu0
    %v8447 = vadd.f32 %v8303, %v8446
    %v8448 = vpop.f32.mrb[0].mxu0
    %8449 = vdwg.mxu0
    %v8450 = vadd.f32 %v8100, %v8388
    %v8451 = vadd.f32 %v8101, %v8391
    %v8452 = vadd.f32 %v8102, %v8396
    %v8453 = vadd.f32 %v8103, %v8399
    %v8454 = vadd.f32 %v8104, %v8404
    %v8455 = vadd.f32 %v8105, %v8407
    %v8456 = vadd.f32 %v8106, %v8412
    %v8457 = vadd.f32 %v8107, %v8415
    %v8458 = vadd.f32 %v8108, %v8420
    %v8459 = vadd.f32 %v8109, %v8423
    %v8460 = vadd.f32 %v8110, %v8428
    %v8461 = vadd.f32 %v8111, %v8431
    %v8462 = vadd.f32 %v8112, %v8436
    %v8463 = vadd.f32 %v8113, %v8439
    %v8464 = vadd.f32 %v8114, %v8444
    %v8465 = vadd.f32 %v8115, %v8447
    %v8466 = vsel %vm249, %v8450, 0.0
    %8467 = vadd.xlane.f32.xlu0 %v8466
    %v8468 = vpop.xlane.xlu0 %8467
    %v8469 = vsel %vm249, %v8451, 0.0
    %8470 = vadd.xlane.f32.xlu0 %v8469
    %v8471 = vpop.xlane.xlu0 %8470
    %v8472 = vsel %vm249, %v8452, 0.0
    %8473 = vadd.xlane.f32.xlu0 %v8472
    %v8474 = vpop.xlane.xlu0 %8473
    %v8475 = vsel %vm249, %v8453, 0.0
    %8476 = vadd.xlane.f32.xlu0 %v8475
    %v8477 = vpop.xlane.xlu0 %8476
    %v8478 = vsel %vm249, %v8454, 0.0
    %8479 = vadd.xlane.f32.xlu0 %v8478
    %v8480 = vpop.xlane.xlu0 %8479
    %v8481 = vsel %vm249, %v8455, 0.0
    %8482 = vadd.xlane.f32.xlu0 %v8481
    %v8483 = vpop.xlane.xlu0 %8482
    %v8484 = vsel %vm249, %v8456, 0.0
    %8485 = vadd.xlane.f32.xlu0 %v8484
    %v8486 = vpop.xlane.xlu0 %8485
    %v8487 = vsel %vm249, %v8457, 0.0
    %8488 = vadd.xlane.f32.xlu0 %v8487
    %v8489 = vpop.xlane.xlu0 %8488
    %v8490 = vsel %vm249, %v8458, 0.0
    %8491 = vadd.xlane.f32.xlu0 %v8490
    %v8492 = vpop.xlane.xlu0 %8491
    %v8493 = vsel %vm249, %v8459, 0.0
    %8494 = vadd.xlane.f32.xlu0 %v8493
    %v8495 = vpop.xlane.xlu0 %8494
    %v8496 = vsel %vm249, %v8460, 0.0
    %8497 = vadd.xlane.f32.xlu0 %v8496
    %v8498 = vpop.xlane.xlu0 %8497
    %v8499 = vsel %vm249, %v8461, 0.0
    %8500 = vadd.xlane.f32.xlu0 %v8499
    %v8501 = vpop.xlane.xlu0 %8500
    %v8502 = vsel %vm249, %v8462, 0.0
    %8503 = vadd.xlane.f32.xlu0 %v8502
    %v8504 = vpop.xlane.xlu0 %8503
    %v8505 = vsel %vm249, %v8463, 0.0
    %8506 = vadd.xlane.f32.xlu0 %v8505
    %v8507 = vpop.xlane.xlu0 %8506
    %v8508 = vsel %vm249, %v8464, 0.0
    %8509 = vadd.xlane.f32.xlu0 %v8508
    %v8510 = vpop.xlane.xlu0 %8509
    %v8511 = vsel %vm249, %v8465, 0.0
    %8512 = vadd.xlane.f32.xlu0 %v8511
    %v8513 = vpop.xlane.xlu0 %8512
    %v8514 = vmul.f32 %v8468, %v7915
    %v8515 = vmul.f32 %v8471, %v7915
    %v8516 = vmul.f32 %v8474, %v7915
    %v8517 = vmul.f32 %v8477, %v7915
    %v8518 = vmul.f32 %v8480, %v7915
    %v8519 = vmul.f32 %v8483, %v7915
    %v8520 = vmul.f32 %v8486, %v7915
    %v8521 = vmul.f32 %v8489, %v7915
    %v8522 = vmul.f32 %v8492, %v7915
    %v8523 = vmul.f32 %v8495, %v7915
    %v8524 = vmul.f32 %v8498, %v7915
    %v8525 = vmul.f32 %v8501, %v7915
    %v8526 = vmul.f32 %v8504, %v7915
    %v8527 = vmul.f32 %v8507, %v7915
    %v8528 = vmul.f32 %v8510, %v7915
    %v8529 = vmul.f32 %v8513, %v7915
    %v8530 = vsub.f32 %v8450, %v8514
    %v8531 = vsub.f32 %v8451, %v8515
    %v8532 = vsub.f32 %v8452, %v8516
    %v8533 = vsub.f32 %v8453, %v8517
    %v8534 = vsub.f32 %v8454, %v8518
    %v8535 = vsub.f32 %v8455, %v8519
    %v8536 = vsub.f32 %v8456, %v8520
    %v8537 = vsub.f32 %v8457, %v8521
    %v8538 = vsub.f32 %v8458, %v8522
    %v8539 = vsub.f32 %v8459, %v8523
    %v8540 = vsub.f32 %v8460, %v8524
    %v8541 = vsub.f32 %v8461, %v8525
    %v8542 = vsub.f32 %v8462, %v8526
    %v8543 = vsub.f32 %v8463, %v8527
    %v8544 = vsub.f32 %v8464, %v8528
    %v8545 = vsub.f32 %v8465, %v8529
    %v8546 = vmul.f32 %v8530, %v8530
    %v8547 = vmul.f32 %v8531, %v8531
    %v8548 = vmul.f32 %v8532, %v8532
    %v8549 = vmul.f32 %v8533, %v8533
    %v8550 = vmul.f32 %v8534, %v8534
    %v8551 = vmul.f32 %v8535, %v8535
    %v8552 = vmul.f32 %v8536, %v8536
    %v8553 = vmul.f32 %v8537, %v8537
    %v8554 = vmul.f32 %v8538, %v8538
    %v8555 = vmul.f32 %v8539, %v8539
    %v8556 = vmul.f32 %v8540, %v8540
    %v8557 = vmul.f32 %v8541, %v8541
    %v8558 = vmul.f32 %v8542, %v8542
    %v8559 = vmul.f32 %v8543, %v8543
    %v8560 = vmul.f32 %v8544, %v8544
    %v8561 = vmul.f32 %v8545, %v8545
    %v8562 = vsel %vm249, %v8546, 0.0
    %8563 = vadd.xlane.f32.xlu0 %v8562
    %v8564 = vpop.xlane.xlu0 %8563
    %v8565 = vsel %vm249, %v8547, 0.0
    %8566 = vadd.xlane.f32.xlu0 %v8565
    %v8567 = vpop.xlane.xlu0 %8566
    %v8568 = vsel %vm249, %v8548, 0.0
    %8569 = vadd.xlane.f32.xlu0 %v8568
    %v8570 = vpop.xlane.xlu0 %8569
    %v8571 = vsel %vm249, %v8549, 0.0
    %8572 = vadd.xlane.f32.xlu0 %v8571
    %v8573 = vpop.xlane.xlu0 %8572
    %v8574 = vsel %vm249, %v8550, 0.0
    %8575 = vadd.xlane.f32.xlu0 %v8574
    %v8576 = vpop.xlane.xlu0 %8575
    %v8577 = vsel %vm249, %v8551, 0.0
    %8578 = vadd.xlane.f32.xlu0 %v8577
    %v8579 = vpop.xlane.xlu0 %8578
    %v8580 = vsel %vm249, %v8552, 0.0
    %8581 = vadd.xlane.f32.xlu0 %v8580
    %v8582 = vpop.xlane.xlu0 %8581
    %v8583 = vsel %vm249, %v8553, 0.0
    %8584 = vadd.xlane.f32.xlu0 %v8583
    %v8585 = vpop.xlane.xlu0 %8584
    %v8586 = vsel %vm249, %v8554, 0.0
    %8587 = vadd.xlane.f32.xlu0 %v8586
    %v8588 = vpop.xlane.xlu0 %8587
    %v8589 = vsel %vm249, %v8555, 0.0
    %8590 = vadd.xlane.f32.xlu0 %v8589
    %v8591 = vpop.xlane.xlu0 %8590
    %v8592 = vsel %vm249, %v8556, 0.0
    %8593 = vadd.xlane.f32.xlu0 %v8592
    %v8594 = vpop.xlane.xlu0 %8593
    %v8595 = vsel %vm249, %v8557, 0.0
    %8596 = vadd.xlane.f32.xlu0 %v8595
    %v8597 = vpop.xlane.xlu0 %8596
    %v8598 = vsel %vm249, %v8558, 0.0
    %8599 = vadd.xlane.f32.xlu0 %v8598
    %v8600 = vpop.xlane.xlu0 %8599
    %v8601 = vsel %vm249, %v8559, 0.0
    %8602 = vadd.xlane.f32.xlu0 %v8601
    %v8603 = vpop.xlane.xlu0 %8602
    %v8604 = vsel %vm249, %v8560, 0.0
    %8605 = vadd.xlane.f32.xlu0 %v8604
    %v8606 = vpop.xlane.xlu0 %8605
    %v8607 = vsel %vm249, %v8561, 0.0
    %8608 = vadd.xlane.f32.xlu0 %v8607
    %v8609 = vpop.xlane.xlu0 %8608
    %v8610 = vmul.f32 %v8564, %v7915
    %v8611 = vmul.f32 %v8567, %v7915
    %v8612 = vmul.f32 %v8570, %v7915
    %v8613 = vmul.f32 %v8573, %v7915
    %v8614 = vmul.f32 %v8576, %v7915
    %v8615 = vmul.f32 %v8579, %v7915
    %v8616 = vmul.f32 %v8582, %v7915
    %v8617 = vmul.f32 %v8585, %v7915
    %v8618 = vmul.f32 %v8588, %v7915
    %v8619 = vmul.f32 %v8591, %v7915
    %v8620 = vmul.f32 %v8594, %v7915
    %v8621 = vmul.f32 %v8597, %v7915
    %v8622 = vmul.f32 %v8600, %v7915
    %v8623 = vmul.f32 %v8603, %v7915
    %v8624 = vmul.f32 %v8606, %v7915
    %v8625 = vmul.f32 %v8609, %v7915
    %v8626 = vadd.f32 %v8610, 1e-05
    %v8627 = vadd.f32 %v8611, 1e-05
    %v8628 = vadd.f32 %v8612, 1e-05
    %v8629 = vadd.f32 %v8613, 1e-05
    %v8630 = vadd.f32 %v8614, 1e-05
    %v8631 = vadd.f32 %v8615, 1e-05
    %v8632 = vadd.f32 %v8616, 1e-05
    %v8633 = vadd.f32 %v8617, 1e-05
    %v8634 = vadd.f32 %v8618, 1e-05
    %v8635 = vadd.f32 %v8619, 1e-05
    %v8636 = vadd.f32 %v8620, 1e-05
    %v8637 = vadd.f32 %v8621, 1e-05
    %v8638 = vadd.f32 %v8622, 1e-05
    %v8639 = vadd.f32 %v8623, 1e-05
    %v8640 = vadd.f32 %v8624, 1e-05
    %v8641 = vadd.f32 %v8625, 1e-05
    %v8642 = vrsqrt.pop %v8626
    %v8643 = vrsqrt.pop %v8627
    %v8644 = vrsqrt.pop %v8628
    %v8645 = vrsqrt.pop %v8629
    %v8646 = vrsqrt.pop %v8630
    %v8647 = vrsqrt.pop %v8631
    %v8648 = vrsqrt.pop %v8632
    %v8649 = vrsqrt.pop %v8633
    %v8650 = vrsqrt.pop %v8634
    %v8651 = vrsqrt.pop %v8635
    %v8652 = vrsqrt.pop %v8636
    %v8653 = vrsqrt.pop %v8637
    %v8654 = vrsqrt.pop %v8638
    %v8655 = vrsqrt.pop %v8639
    %v8656 = vrsqrt.pop %v8640
    %v8657 = vrsqrt.pop %v8641
    %v8658 = vmul.f32 %v8530, %v8642
    %v8659 = vmul.f32 %v8531, %v8643
    %v8660 = vmul.f32 %v8532, %v8644
    %v8661 = vmul.f32 %v8533, %v8645
    %v8662 = vmul.f32 %v8534, %v8646
    %v8663 = vmul.f32 %v8535, %v8647
    %v8664 = vmul.f32 %v8536, %v8648
    %v8665 = vmul.f32 %v8537, %v8649
    %v8666 = vmul.f32 %v8538, %v8650
    %v8667 = vmul.f32 %v8539, %v8651
    %v8668 = vmul.f32 %v8540, %v8652
    %v8669 = vmul.f32 %v8541, %v8653
    %v8670 = vmul.f32 %v8542, %v8654
    %v8671 = vmul.f32 %v8543, %v8655
    %v8672 = vmul.f32 %v8544, %v8656
    %v8673 = vmul.f32 %v8545, %v8657
    %v8674 = vlaneseq
    %v8675 = vshrl.u32 %v8674, 7
    %v8676 = vsub.s32 5, %v8675
    %v8677 = vrot.slane %v43, %v8676
    %v8678 = vmul.f32 %v8658, %v8677
    %v8679 = vmul.f32 %v8659, %v8677
    %v8680 = vmul.f32 %v8660, %v8677
    %v8681 = vmul.f32 %v8661, %v8677
    %v8682 = vmul.f32 %v8662, %v8677
    %v8683 = vmul.f32 %v8663, %v8677
    %v8684 = vmul.f32 %v8664, %v8677
    %v8685 = vmul.f32 %v8665, %v8677
    %v8686 = vmul.f32 %v8666, %v8677
    %v8687 = vmul.f32 %v8667, %v8677
    %v8688 = vmul.f32 %v8668, %v8677
    %v8689 = vmul.f32 %v8669, %v8677
    %v8690 = vmul.f32 %v8670, %v8677
    %v8691 = vmul.f32 %v8671, %v8677
    %v8692 = vmul.f32 %v8672, %v8677
    %v8693 = vmul.f32 %v8673, %v8677
    %v8694 = vlaneseq
    %v8695 = vshrl.u32 %v8694, 7
    %v8696 = vsub.s32 6, %v8695
    %v8697 = vrot.slane %v43, %v8696
    %v8698 = vadd.f32 %v8678, %v8697
    %v8699 = vadd.f32 %v8679, %v8697
    %v8700 = vadd.f32 %v8680, %v8697
    %v8701 = vadd.f32 %v8681, %v8697
    %v8702 = vadd.f32 %v8682, %v8697
    %v8703 = vadd.f32 %v8683, %v8697
    %v8704 = vadd.f32 %v8684, %v8697
    %v8705 = vadd.f32 %v8685, %v8697
    %v8706 = vadd.f32 %v8686, %v8697
    %v8707 = vadd.f32 %v8687, %v8697
    %v8708 = vadd.f32 %v8688, %v8697
    %v8709 = vadd.f32 %v8689, %v8697
    %v8710 = vadd.f32 %v8690, %v8697
    %v8711 = vadd.f32 %v8691, %v8697
    %v8712 = vadd.f32 %v8692, %v8697
    %v8713 = vadd.f32 %v8693, %v8697
    %v8714 = vpack.c.bf16 %v8698, %v8698
    %v8715 = vpack.c.bf16 %v8699, %v8699
    %v8716 = vpack.c.bf16 %v8700, %v8700
    %v8717 = vpack.c.bf16 %v8701, %v8701
    %v8718 = vpack.c.bf16 %v8702, %v8702
    %v8719 = vpack.c.bf16 %v8703, %v8703
    %v8720 = vpack.c.bf16 %v8704, %v8704
    %v8721 = vpack.c.bf16 %v8705, %v8705
    %v8722 = vpack.c.bf16 %v8706, %v8706
    %v8723 = vpack.c.bf16 %v8707, %v8707
    %v8724 = vpack.c.bf16 %v8708, %v8708
    %v8725 = vpack.c.bf16 %v8709, %v8709
    %v8726 = vpack.c.bf16 %v8710, %v8710
    %v8727 = vpack.c.bf16 %v8711, %v8711
    %v8728 = vpack.c.bf16 %v8712, %v8712
    %v8729 = vpack.c.bf16 %v8713, %v8713
    %v8730 = vld [vmem:[%s9] sm:$0xf]
    %v8731 = vld [vmem:[%s9 + $0x4] sm:$0xf]
    %v8732 = vld [vmem:[%s9 + $0x8] sm:$0xf]
    %v8733 = vld [vmem:[%s9 + $0xc] sm:$0xf]
    %v8734 = vld [vmem:[%s10] sm:$0x1]
    %v8736 = vlaneseq
    %v8737 = vshrl.u32 %v8736, 7
    %v8738 = vsub.s32 0, %v8737
    %v8739 = vrot.slane %v8734, %v8738
    %v8757 = vunpack.c.l.b16 %v8714
    %v8758 = vunpack.c.l.b16 %v8715
    %v8759 = vunpack.c.l.b16 %v8716
    %v8760 = vunpack.c.l.b16 %v8717
    %v8761 = vunpack.c.l.b16 %v8718
    %v8762 = vunpack.c.l.b16 %v8719
    %v8763 = vunpack.c.l.b16 %v8720
    %v8764 = vunpack.c.l.b16 %v8721
    %v8765 = vunpack.c.l.b16 %v8722
    %v8766 = vunpack.c.l.b16 %v8723
    %v8767 = vunpack.c.l.b16 %v8724
    %v8768 = vunpack.c.l.b16 %v8725
    %v8769 = vunpack.c.l.b16 %v8726
    %v8770 = vunpack.c.l.b16 %v8727
    %v8771 = vunpack.c.l.b16 %v8728
    %v8772 = vunpack.c.l.b16 %v8729
    %v8773 = vrot.slane %v8758, 7
    %vm8774 = vcmask 1041409
    %v8775 = vsel %vm8774, %v8773, %v8757
    %v8776 = vrot.slane %v8759, 6
    %vm8777 = vcmask 1042434
    %v8778 = vsel %vm8777, %v8776, %v8775
    %v8779 = vrot.slane %v8760, 5
    %vm8780 = vcmask 1043459
    %v8781 = vsel %vm8780, %v8779, %v8778
    %v8782 = vrot.slane %v8761, 4
    %vm8783 = vcmask 1044484
    %v8784 = vsel %vm8783, %v8782, %v8781
    %v8785 = vrot.slane %v8762, 3
    %vm8786 = vcmask 1045509
    %v8787 = vsel %vm8786, %v8785, %v8784
    %v8788 = vrot.slane %v8763, 2
    %vm8789 = vcmask 1046534
    %v8790 = vsel %vm8789, %v8788, %v8787
    %v8791 = vrot.slane %v8764, 1
    %vm8792 = vcmask 1047559
    %v8793 = vsel %vm8792, %v8791, %v8790
    %v8794 = vrot.slane %v8766, 7
    %v8795 = vsel %vm8774, %v8794, %v8765
    %v8796 = vrot.slane %v8767, 6
    %v8797 = vsel %vm8777, %v8796, %v8795
    %v8798 = vrot.slane %v8768, 5
    %v8799 = vsel %vm8780, %v8798, %v8797
    %v8800 = vrot.slane %v8769, 4
    %v8801 = vsel %vm8783, %v8800, %v8799
    %v8802 = vrot.slane %v8770, 3
    %v8803 = vsel %vm8786, %v8802, %v8801
    %v8804 = vrot.slane %v8771, 2
    %v8805 = vsel %vm8789, %v8804, %v8803
    %v8806 = vrot.slane %v8772, 1
    %v8807 = vsel %vm8792, %v8806, %v8805
    %v8808 = vpack.c.b16 %v8807, %v8793
    %v8813 = vunpack.c.l.b16 %v8730
    %v8814 = vunpack.c.l.b16 %v8731
    %v8815 = vunpack.c.l.b16 %v8732
    %v8816 = vunpack.c.l.b16 %v8733
    %v8817 = vpack.c.b16 %v8814, %v8813
    %v8818 = vpack.c.b16 %v8816, %v8815
    %v8822 = vsel %vm249, %v8808, 0
    %8824 = vmatprep.subr.bf16.mxu0 0
    %8825 = vmatpush1.bf16.msra.mxu0 %v8817
    %8826 = vmatprep.subr.bf16.mxu0 0
    %8827 = vmatpush1.bf16.msra.mxu0 %v8818
    %8828 = vmatprep.subr.bf16.mxu0 0
    %8829 = vmatpush1.bf16.msra.mxu0 0
    %8830 = vmatprep.subr.bf16.mxu0 0
    %8831 = vmatpush1.bf16.msra.mxu0 0
    %8832 = vmatprep.subr.bf16.mxu0 0
    %8833 = vmatpush1.bf16.msra.mxu0 0
    %8834 = vmatprep.subr.bf16.mxu0 0
    %8835 = vmatpush1.bf16.msra.mxu0 0
    %8836 = vmatprep.subr.bf16.mxu0 0
    %8837 = vmatpush1.bf16.msra.mxu0 0
    %8838 = vmatprep.subr.bf16.mxu0 0
    %8839 = vmatpush1.bf16.msra.mxu0 0
    %8840 = vmatprep.subr.bf16.mxu0 0
    %8841 = vmatpush1.bf16.msra.mxu0 0
    %8842 = vmatprep.subr.bf16.mxu0 0
    %8843 = vmatpush1.bf16.msra.mxu0 0
    %8844 = vmatprep.subr.bf16.mxu0 0
    %8845 = vmatpush1.bf16.msra.mxu0 0
    %8846 = vmatprep.subr.bf16.mxu0 0
    %8847 = vmatpush1.bf16.msra.mxu0 0
    %8848 = vmatprep.subr.bf16.mxu0 0
    %8849 = vmatpush1.bf16.msra.mxu0 0
    %8850 = vmatprep.subr.bf16.mxu0 0
    %8851 = vmatpush1.bf16.msra.mxu0 0
    %8852 = vmatprep.subr.bf16.mxu0 0
    %8853 = vmatpush1.bf16.msra.mxu0 0
    %8854 = vmatprep.subr.bf16.mxu0 0
    %8855 = vmatpush1.bf16.msra.mxu0 0
    %8856 = vmatprep.mubr.bf16.mxu0 0
    %8857 = vmatmul.mubr.bf16.gmra.mrb[0].mxu0 %v8822
    %v8858 = vpop.f32.mrb[0].mxu0
    %v8859 = vadd.f32 %v8739, %v8858
    %v8860 = vpop.f32.mrb[0].mxu0
    %v8861 = vpop.f32.mrb[0].mxu0
    %v8862 = vadd.f32 %v8739, %v8861
    %v8863 = vpop.f32.mrb[0].mxu0
    %8864 = vdwg.mxu0
    %8865 = vst [vmem:[#allocation2] sm:$0xff] %v8859
    %8866 = vst [vmem:[#allocation2 + $0x8] sm:$0xff] %v8862
    // Predicated region
    $region50: #{tpu_custom_call.1} parent=1 // pred_check
      _
    $region51: #{tpu_custom_call.1} parent=1 // pred_check_branch
      %8868 = sbr.rel (0) target = $region53
    $region52: #{tpu_custom_call.1} parent=1 // pred_region
      %s8870 = ssub.s32 256, 256
      %8871 = vsyncadd [#allocation3], %s8870
      %s8872 = sshll.u32 [#allocation2], 4
      %s8873 = int_to_ptr.vmem [resolvable:$true] %s8872
      %8878 = dma.vmem_to_hbm [thread:$0]  %s8873, 256, %s12, [#allocation3], 128, 128, 8
    $region53: #{tpu_custom_call.1} parent=1 // pred_fallthru
      _
    // Predicated region
    $region54: #{tpu_custom_call.1} parent=1 // pred_check
      _
    $region55: #{tpu_custom_call.1} parent=1 // pred_check_branch
      %8880 = sbr.rel (0) target = $region57
    $region56: #{tpu_custom_call.1} parent=1 // pred_region
      %8881 = dma.done [#allocation3], 256
    $region57: #{tpu_custom_call.1} parent=1 // pred_fallthru
      _
    %8882 = vsyncpa [#allocation3], 1

</llo_original>
